<compile_context>
chip_gen: v6e
topology: v6e:2x2x1
jax: 0.10.0
libtpu: 0.0.40
codegen_flags: <defaults>
</compile_context>

<pallas_src>
import functools

import jax
import jax.numpy as jnp
from jax.experimental import pallas as pl
from jax.experimental.pallas import tpu as pltpu

_VMEM = pltpu.MemorySpace.VMEM

# Padded tile sizes (lane dim multiple of 128, sublane dim multiple of 8).
E_PAD = 128          # padded embedding width
H_PAD = 128          # padded encoder hidden width (per direction / per gate slot)
D_PAD = 128          # padded fc (decoder-hidden) width
G4 = 4 * H_PAD       # per-direction packed gate width: [r | z | n_x | n_h]


def _round_up(x, m):
    return ((x + m - 1) // m) * m


# --------------------------------------------------------------------------
# Fused encoder kernel: bidirectional GRU over the whole sequence + tanh(fc)
# --------------------------------------------------------------------------
def _bigru_encoder_kernel(emb_ref, wx_ref, b_ref, whh_ref, fcw_ref, fcb_ref,
                          enc_f_ref, enc_b_ref, s_ref, gx_ref, *, src_len):
    b_pad = enc_f_ref.shape[1]
    h_pad = enc_f_ref.shape[2]

    # ---- Input projection for the whole sequence, both directions, one big
    # MXU matmul: [L*B, E_PAD] @ [E_PAD, 8*H_PAD]; biases folded in here.
    gx_ref[...] = (
        jnp.dot(emb_ref[...].astype(jnp.bfloat16), wx_ref[...],
                preferred_element_type=jnp.float32)
        + b_ref[...])

    def gru_update(g, h):
        # Gate slots are 128-lane aligned: [r | z | n_x | n_h].
        r = jax.nn.sigmoid(g[:, 0:h_pad])
        z = jax.nn.sigmoid(g[:, h_pad:2 * h_pad])
        n = jnp.tanh(g[:, 2 * h_pad:3 * h_pad] + r * g[:, 3 * h_pad:4 * h_pad])
        return (1.0 - z) * n + z * h

    h_f = jnp.zeros((b_pad, h_pad), jnp.float32)
    h_b = jnp.zeros((b_pad, h_pad), jnp.float32)

    # Fully unrolled static loop (src_len is small & static); both directions
    # advance each iteration driven by ONE block-diagonal recurrent matmul.
    for t in range(src_len):
        tb = src_len - 1 - t
        hcat = jnp.concatenate([h_f, h_b], axis=-1).astype(jnp.bfloat16)
        gh = jnp.dot(hcat, whh_ref[...], preferred_element_type=jnp.float32)
        g_f = gx_ref[t * b_pad:(t + 1) * b_pad, 0:G4] + gh[:, 0:G4]
        g_b = gx_ref[tb * b_pad:(tb + 1) * b_pad, G4:2 * G4] + gh[:, G4:2 * G4]
        h_f = gru_update(g_f, h_f)
        h_b = gru_update(g_b, h_b)
        enc_f_ref[t] = h_f
        enc_b_ref[tb] = h_b

    # s = tanh(fc(cat(h_fwd_last, h_bwd_last)))
    hcat = jnp.concatenate([h_f, h_b], axis=-1).astype(jnp.bfloat16)
    s_ref[...] = jnp.tanh(
        jnp.dot(hcat, fcw_ref[...], preferred_element_type=jnp.float32)
        + fcb_ref[...])


# --------------------------------------------------------------------------
# Parameter init (PyTorch-like natural layout) and packing to padded layout
# --------------------------------------------------------------------------
def init_raw_params(key, input_dim, emb_dim, enc_hid, dec_hid):
    ks = jax.random.split(key, 11)

    def w(k, shape, scale=0.1):
        return (scale * jax.random.normal(k, shape)).astype(jnp.float32)

    return {
        'emb': w(ks[0], (input_dim, emb_dim)),
        # GRU weights, gate order r | z | n (PyTorch), stored transposed [in, 3H]
        'wih_f': w(ks[1], (emb_dim, 3 * enc_hid)),
        'whh_f': w(ks[2], (enc_hid, 3 * enc_hid)),
        'bih_f': w(ks[3], (3 * enc_hid,)),
        'bhh_f': w(ks[4], (3 * enc_hid,)),
        'wih_b': w(ks[5], (emb_dim, 3 * enc_hid)),
        'whh_b': w(ks[6], (enc_hid, 3 * enc_hid)),
        'bih_b': w(ks[7], (3 * enc_hid,)),
        'bhh_b': w(ks[8], (3 * enc_hid,)),
        'fc_w': w(ks[9], (2 * enc_hid, dec_hid)),
        'fc_b': w(ks[10], (dec_hid,)),
    }


def pack_encoder_params(raw, emb_dim, enc_hid, dec_hid):
    """Pack into padded, lane-aligned fused weights.

    Per direction the gate slots (each 128 lanes) are [r | z | n_x | n_h]:
      * w_x  [E_PAD, 2*G4]   : input weights, slots [r|z|n_x|0] per direction
      * w_hh [2*H_PAD, 2*G4] : block-diagonal recurrent weights, slots [r|z|0|n_h]
      * b    [1, 2*G4]       : b_ih+b_hh for r,z; b_in in n_x; b_hn in n_h
    Zero padding keeps the recurrence exact in the valid region.
    """
    E, H, D = emb_dim, enc_hid, dec_hid

    def pack_x(wih):
        w = jnp.zeros((E_PAD, G4), jnp.float32)
        w = w.at[:E, 0:H].set(wih[:, 0:H])
        w = w.at[:E, H_PAD:H_PAD + H].set(wih[:, H:2 * H])
        w = w.at[:E, 2 * H_PAD:2 * H_PAD + H].set(wih[:, 2 * H:3 * H])
        return w

    def pack_h(whh):
        w = jnp.zeros((H_PAD, G4), jnp.float32)
        w = w.at[:H, 0:H].set(whh[:, 0:H])
        w = w.at[:H, H_PAD:H_PAD + H].set(whh[:, H:2 * H])
        w = w.at[:H, 3 * H_PAD:3 * H_PAD + H].set(whh[:, 2 * H:3 * H])
        return w

    def pack_b(bih, bhh):
        b = jnp.zeros((G4,), jnp.float32)
        b = b.at[0:H].set(bih[0:H] + bhh[0:H])
        b = b.at[H_PAD:H_PAD + H].set(bih[H:2 * H] + bhh[H:2 * H])
        b = b.at[2 * H_PAD:2 * H_PAD + H].set(bih[2 * H:3 * H])
        b = b.at[3 * H_PAD:3 * H_PAD + H].set(bhh[2 * H:3 * H])
        return b

    wx = jnp.concatenate([pack_x(raw['wih_f']), pack_x(raw['wih_b'])], axis=1)

    whh = jnp.zeros((2 * H_PAD, 2 * G4), jnp.float32)
    whh = whh.at[0:H_PAD, 0:G4].set(pack_h(raw['whh_f']))
    whh = whh.at[H_PAD:2 * H_PAD, G4:2 * G4].set(pack_h(raw['whh_b']))

    b_all = jnp.concatenate([pack_b(raw['bih_f'], raw['bhh_f']),
                             pack_b(raw['bih_b'], raw['bhh_b'])])[None, :]

    fcw = jnp.zeros((2 * H_PAD, D_PAD), jnp.float32)
    fcw = fcw.at[:H, :D].set(raw['fc_w'][:H])
    fcw = fcw.at[H_PAD:H_PAD + H, :D].set(raw['fc_w'][H:2 * H])
    fcb = jnp.zeros((1, D_PAD), jnp.float32).at[0, :D].set(raw['fc_b'])

    return {'w_x': wx.astype(jnp.bfloat16), 'b': b_all,
            'w_hh': whh.astype(jnp.bfloat16),
            'fc_w': fcw.astype(jnp.bfloat16), 'fc_b': fcb,
            'emb': raw['emb']}


# --------------------------------------------------------------------------
# Encoder forward (mirrors PyTorch Encoder.forward, eval mode)
# --------------------------------------------------------------------------
def make_encoder_forward(raw_params, emb_dim, enc_hid, dec_hid):
    packed = pack_encoder_params(raw_params, emb_dim, enc_hid, dec_hid)

    @jax.jit
    def forward(src):
        src_len, batch = src.shape
        b_pad = _round_up(max(batch, 8), 8)

        # TODO(synk): nn.Dropout omitted (eval-mode identity).
        emb = jnp.take(packed['emb'], src, axis=0)                  # [L, B, E]
        emb_pad = jnp.zeros((src_len, b_pad, E_PAD), jnp.float32)
        emb_pad = emb_pad.at[:, :batch, :emb_dim].set(emb)
        emb_flat = emb_pad.reshape(src_len * b_pad, E_PAD)          # [L*B, E_PAD]

        kernel = functools.partial(_bigru_encoder_kernel, src_len=src_len)
        enc_f, enc_b, s_pad = pl.pallas_call(
            kernel,
            out_shape=(
                jax.ShapeDtypeStruct((src_len, b_pad, H_PAD), jnp.float32),
                jax.ShapeDtypeStruct((src_len, b_pad, H_PAD), jnp.float32),
                jax.ShapeDtypeStruct((b_pad, D_PAD), jnp.float32),
            ),
            in_specs=[pl.BlockSpec(memory_space=_VMEM)] * 6,
            out_specs=(pl.BlockSpec(memory_space=_VMEM),) * 3,
            scratch_shapes=[pltpu.VMEM((src_len * b_pad, 2 * G4), jnp.float32)],
        )(emb_flat, packed['w_x'], packed['b'], packed['w_hh'],
          packed['fc_w'], packed['fc_b'])

        enc_output = jnp.concatenate(
            [enc_f[:, :batch, :enc_hid], enc_b[:, :batch, :enc_hid]], axis=-1)
        s = s_pad[:batch, :dec_hid]
        return enc_output, s

    return forward


# --------------------------------------------------------------------------
# Pure-JAX f32 reference (PyTorch GRU semantics) for correctness check
# --------------------------------------------------------------------------
def encoder_reference(raw, src, enc_hid):
    H = enc_hid
    emb = jnp.take(raw['emb'], src, axis=0)

    def cell(x, h, wih, whh, bih, bhh):
        gx = x @ wih + bih
        gh = h @ whh + bhh
        r = jax.nn.sigmoid(gx[:, :H] + gh[:, :H])
        z = jax.nn.sigmoid(gx[:, H:2 * H] + gh[:, H:2 * H])
        n = jnp.tanh(gx[:, 2 * H:] + r * gh[:, 2 * H:])
        return (1.0 - z) * n + z * h

    L, B = src.shape
    h_f = jnp.zeros((B, H), jnp.float32)
    fwd = []
    for t in range(L):
        h_f = cell(emb[t], h_f, raw['wih_f'], raw['whh_f'], raw['bih_f'], raw['bhh_f'])
        fwd.append(h_f)
    h_b = jnp.zeros((B, H), jnp.float32)
    bwd = [None] * L
    for t in reversed(range(L)):
        h_b = cell(emb[t], h_b, raw['wih_b'], raw['whh_b'], raw['bih_b'], raw['bhh_b'])
        bwd[t] = h_b
    enc_output = jnp.concatenate([jnp.stack(fwd), jnp.stack(bwd)], axis=-1)
    s = jnp.tanh(jnp.concatenate([h_f, h_b], axis=-1) @ raw['fc_w'] + raw['fc_b'])
    return enc_output, s


if __name__ == "__main__":
    INPUT_DIM = 12
    EMB_DIM, ENC_HID, DEC_HID = 8, 16, 16
    SRC_LEN, BATCH = 8, 2

    key = jax.random.PRNGKey(0)
    pkey, skey = jax.random.split(key)
    raw = init_raw_params(pkey, INPUT_DIM, EMB_DIM, ENC_HID, DEC_HID)
    src = jax.random.randint(skey, (SRC_LEN, BATCH), 0, INPUT_DIM, dtype=jnp.int32)

    encoder = make_encoder_forward(raw, EMB_DIM, ENC_HID, DEC_HID)
    enc_output, s = jax.block_until_ready(encoder(src))

    assert enc_output.shape == (SRC_LEN, BATCH, 2 * ENC_HID), enc_output.shape
    assert s.shape == (BATCH, DEC_HID), s.shape
    assert bool(jnp.all(jnp.isfinite(enc_output))) and bool(jnp.all(jnp.isfinite(s)))

    ref_out, ref_s = encoder_reference(raw, src, ENC_HID)
    assert bool(jnp.allclose(enc_output, ref_out, atol=2e-2, rtol=2e-2)), \
        float(jnp.max(jnp.abs(enc_output - ref_out)))
    assert bool(jnp.allclose(s, ref_s, atol=2e-2, rtol=2e-2)), \
        float(jnp.max(jnp.abs(s - ref_s)))

    print("KERNEL_OK")
</pallas_src>

<mosaic_0001>
module attributes {stable_mosaic.version = 11 : i64} {
  func.func @_bigru_encoder_kernel(%arg0: memref<64x128xf32, #tpu.memory_space<vmem>>, %arg1: memref<128x1024xbf16, #tpu.memory_space<vmem>>, %arg2: memref<1x1024xf32, #tpu.memory_space<vmem>>, %arg3: memref<256x1024xbf16, #tpu.memory_space<vmem>>, %arg4: memref<256x128xbf16, #tpu.memory_space<vmem>>, %arg5: memref<1x128xf32, #tpu.memory_space<vmem>>, %arg6: memref<8x8x128xf32, #tpu.memory_space<vmem>>, %arg7: memref<8x8x128xf32, #tpu.memory_space<vmem>>, %arg8: memref<8x128xf32, #tpu.memory_space<vmem>>, %arg9: memref<64x1024xf32, #tpu.memory_space<vmem>>) attributes {dimension_semantics = [], scalar_prefetch = 0 : i64, scratch_operands = 1 : i64, tpu.core_type = #tpu.core_type<tc>} {
    %c0 = arith.constant 0 : index
    %c0_0 = arith.constant 0 : index
    %0 = vector.load %arg0[%c0, %c0_0] : memref<64x128xf32, #tpu.memory_space<vmem>>, vector<64x128xf32>
    %1 = arith.truncf %0 : vector<64x128xf32> to vector<64x128xbf16>
    %c0_1 = arith.constant 0 : index
    %c0_2 = arith.constant 0 : index
    %2 = vector.load %arg1[%c0_1, %c0_2] : memref<128x1024xbf16, #tpu.memory_space<vmem>>, vector<128x1024xbf16>
    %cst = arith.constant dense<0.000000e+00> : vector<64x1024xf32>
    %3 = tpu.matmul %1, %2, %cst {dimension_numbers = #tpu.dot_dimension_numbers<[1], [0], [0], [1], [0, 0, 1, 1], [], []>} : vector<64x128xbf16>, vector<128x1024xbf16>, vector<64x1024xf32> -> vector<64x1024xf32>
    %c0_3 = arith.constant 0 : index
    %c0_4 = arith.constant 0 : index
    %4 = vector.load %arg2[%c0_3, %c0_4] : memref<1x1024xf32, #tpu.memory_space<vmem>>, vector<1x1024xf32>
    %5 = vector.broadcast %4 : vector<1x1024xf32> to vector<64x1024xf32>
    %6 = arith.addf %3, %5 : vector<64x1024xf32>
    %c0_5 = arith.constant 0 : index
    %c0_6 = arith.constant 0 : index
    %7 = vector.load %arg9[%c0_5, %c0_6] : memref<64x1024xf32, #tpu.memory_space<vmem>>, vector<64x1024xf32>
    tpu.vector_store %arg9[%c0_5, %c0_6], %6 {strides = array<i32>} : memref<64x1024xf32, #tpu.memory_space<vmem>>, vector<64x1024xf32>,
    %cst_7 = arith.constant 0.000000e+00 : f32
    %8 = vector.broadcast %cst_7 : f32 to vector<8x128xf32>
    %cst_8 = arith.constant 0.000000e+00 : f32
    %9 = vector.broadcast %cst_8 : f32 to vector<8x128xf32>
    %10 = tpu.concatenate %8, %9 in 1 : vector<8x128xf32>, vector<8x128xf32> -> vector<8x256xf32>
    %11 = arith.truncf %10 : vector<8x256xf32> to vector<8x256xbf16>
    %c0_9 = arith.constant 0 : index
    %c0_10 = arith.constant 0 : index
    %12 = vector.load %arg3[%c0_9, %c0_10] : memref<256x1024xbf16, #tpu.memory_space<vmem>>, vector<256x1024xbf16>
    %cst_11 = arith.constant dense<0.000000e+00> : vector<8x1024xf32>
    %13 = tpu.matmul %11, %12, %cst_11 {dimension_numbers = #tpu.dot_dimension_numbers<[1], [0], [0], [1], [0, 0, 1, 1], [], []>} : vector<8x256xbf16>, vector<256x1024xbf16>, vector<8x1024xf32> -> vector<8x1024xf32>
    %c0_12 = arith.constant 0 : index
    %c0_13 = arith.constant 0 : index
    %14 = vector.load %arg9[%c0_12, %c0_13] : memref<64x1024xf32, #tpu.memory_space<vmem>>, vector<8x512xf32>
    %15 = vector.extract_strided_slice %13 {offsets = [0, 0], sizes = [8, 512], strides = [1, 1]} : vector<8x1024xf32> to vector<8x512xf32>
    %16 = arith.addf %14, %15 : vector<8x512xf32>
    %c56 = arith.constant 56 : index
    %c512 = arith.constant 512 : index
    %17 = vector.load %arg9[%c56, %c512] : memref<64x1024xf32, #tpu.memory_space<vmem>>, vector<8x512xf32>
    %18 = vector.extract_strided_slice %13 {offsets = [0, 512], sizes = [8, 512], strides = [1, 1]} : vector<8x1024xf32> to vector<8x512xf32>
    %19 = arith.addf %17, %18 : vector<8x512xf32>
    %20 = vector.extract_strided_slice %16 {offsets = [0, 0], sizes = [8, 128], strides = [1, 1]} : vector<8x512xf32> to vector<8x128xf32>
    %21 = arith.negf %20 : vector<8x128xf32>
    %22 = math.exp %21 : vector<8x128xf32>
    %cst_14 = arith.constant 1.000000e+00 : f32
    %23 = vector.broadcast %cst_14 : f32 to vector<8x128xf32>
    %24 = arith.addf %23, %22 : vector<8x128xf32>
    %25 = arith.divf %23, %24 : vector<8x128xf32>
    %26 = vector.extract_strided_slice %16 {offsets = [0, 128], sizes = [8, 128], strides = [1, 1]} : vector<8x512xf32> to vector<8x128xf32>
    %27 = arith.negf %26 : vector<8x128xf32>
    %28 = math.exp %27 : vector<8x128xf32>
    %cst_15 = arith.constant 1.000000e+00 : f32
    %29 = vector.broadcast %cst_15 : f32 to vector<8x128xf32>
    %30 = arith.addf %29, %28 : vector<8x128xf32>
    %31 = arith.divf %29, %30 : vector<8x128xf32>
    %32 = vector.extract_strided_slice %16 {offsets = [0, 256], sizes = [8, 128], strides = [1, 1]} : vector<8x512xf32> to vector<8x128xf32>
    %33 = vector.extract_strided_slice %16 {offsets = [0, 384], sizes = [8, 128], strides = [1, 1]} : vector<8x512xf32> to vector<8x128xf32>
    %34 = arith.mulf %25, %33 : vector<8x128xf32>
    %35 = arith.addf %32, %34 : vector<8x128xf32>
    %36 = math.tanh %35 : vector<8x128xf32>
    %cst_16 = arith.constant 1.000000e+00 : f32
    %37 = vector.broadcast %cst_16 : f32 to vector<8x128xf32>
    %38 = arith.subf %37, %31 : vector<8x128xf32>
    %39 = arith.mulf %38, %36 : vector<8x128xf32>
    %40 = arith.mulf %31, %8 : vector<8x128xf32>
    %41 = arith.addf %39, %40 : vector<8x128xf32>
    %42 = vector.extract_strided_slice %19 {offsets = [0, 0], sizes = [8, 128], strides = [1, 1]} : vector<8x512xf32> to vector<8x128xf32>
    %43 = arith.negf %42 : vector<8x128xf32>
    %44 = math.exp %43 : vector<8x128xf32>
    %cst_17 = arith.constant 1.000000e+00 : f32
    %45 = vector.broadcast %cst_17 : f32 to vector<8x128xf32>
    %46 = arith.addf %45, %44 : vector<8x128xf32>
    %47 = arith.divf %45, %46 : vector<8x128xf32>
    %48 = vector.extract_strided_slice %19 {offsets = [0, 128], sizes = [8, 128], strides = [1, 1]} : vector<8x512xf32> to vector<8x128xf32>
    %49 = arith.negf %48 : vector<8x128xf32>
    %50 = math.exp %49 : vector<8x128xf32>
    %cst_18 = arith.constant 1.000000e+00 : f32
    %51 = vector.broadcast %cst_18 : f32 to vector<8x128xf32>
    %52 = arith.addf %51, %50 : vector<8x128xf32>
    %53 = arith.divf %51, %52 : vector<8x128xf32>
    %54 = vector.extract_strided_slice %19 {offsets = [0, 256], sizes = [8, 128], strides = [1, 1]} : vector<8x512xf32> to vector<8x128xf32>
    %55 = vector.extract_strided_slice %19 {offsets = [0, 384], sizes = [8, 128], strides = [1, 1]} : vector<8x512xf32> to vector<8x128xf32>
    %56 = arith.mulf %47, %55 : vector<8x128xf32>
    %57 = arith.addf %54, %56 : vector<8x128xf32>
    %58 = math.tanh %57 : vector<8x128xf32>
    %cst_19 = arith.constant 1.000000e+00 : f32
    %59 = vector.broadcast %cst_19 : f32 to vector<8x128xf32>
    %60 = arith.subf %59, %53 : vector<8x128xf32>
    %61 = arith.mulf %60, %58 : vector<8x128xf32>
    %62 = arith.mulf %53, %9 : vector<8x128xf32>
    %63 = arith.addf %61, %62 : vector<8x128xf32>
    %c0_20 = arith.constant 0 : index
    %c0_21 = arith.constant 0 : index
    %c0_22 = arith.constant 0 : index
    %64 = vector.load %arg6[%c0_20, %c0_21, %c0_22] : memref<8x8x128xf32, #tpu.memory_space<vmem>>, vector<1x8x128xf32>
    %65 = vector.shape_cast %64 : vector<1x8x128xf32> to vector<8x128xf32>
    %66 = vector.shape_cast %41 : vector<8x128xf32> to vector<1x8x128xf32>
    tpu.vector_store %arg6[%c0_20, %c0_21, %c0_22], %66 {strides = array<i32>} : memref<8x8x128xf32, #tpu.memory_space<vmem>>, vector<1x8x128xf32>,
    %c7 = arith.constant 7 : index
    %c0_23 = arith.constant 0 : index
    %c0_24 = arith.constant 0 : index
    %67 = vector.load %arg7[%c7, %c0_23, %c0_24] : memref<8x8x128xf32, #tpu.memory_space<vmem>>, vector<1x8x128xf32>
    %68 = vector.shape_cast %67 : vector<1x8x128xf32> to vector<8x128xf32>
    %69 = vector.shape_cast %63 : vector<8x128xf32> to vector<1x8x128xf32>
    tpu.vector_store %arg7[%c7, %c0_23, %c0_24], %69 {strides = array<i32>} : memref<8x8x128xf32, #tpu.memory_space<vmem>>, vector<1x8x128xf32>,
    %70 = tpu.concatenate %41, %63 in 1 : vector<8x128xf32>, vector<8x128xf32> -> vector<8x256xf32>
    %71 = arith.truncf %70 : vector<8x256xf32> to vector<8x256xbf16>
    %c0_25 = arith.constant 0 : index
    %c0_26 = arith.constant 0 : index
    %72 = vector.load %arg3[%c0_25, %c0_26] : memref<256x1024xbf16, #tpu.memory_space<vmem>>, vector<256x1024xbf16>
    %cst_27 = arith.constant dense<0.000000e+00> : vector<8x1024xf32>
    %73 = tpu.matmul %71, %72, %cst_27 {dimension_numbers = #tpu.dot_dimension_numbers<[1], [0], [0], [1], [0, 0, 1, 1], [], []>} : vector<8x256xbf16>, vector<256x1024xbf16>, vector<8x1024xf32> -> vector<8x1024xf32>
    %c8 = arith.constant 8 : index
    %c0_28 = arith.constant 0 : index
    %74 = vector.load %arg9[%c8, %c0_28] : memref<64x1024xf32, #tpu.memory_space<vmem>>, vector<8x512xf32>
    %75 = vector.extract_strided_slice %73 {offsets = [0, 0], sizes = [8, 512], strides = [1, 1]} : vector<8x1024xf32> to vector<8x512xf32>
    %76 = arith.addf %74, %75 : vector<8x512xf32>
    %c48 = arith.constant 48 : index
    %c512_29 = arith.constant 512 : index
    %77 = vector.load %arg9[%c48, %c512_29] : memref<64x1024xf32, #tpu.memory_space<vmem>>, vector<8x512xf32>
    %78 = vector.extract_strided_slice %73 {offsets = [0, 512], sizes = [8, 512], strides = [1, 1]} : vector<8x1024xf32> to vector<8x512xf32>
    %79 = arith.addf %77, %78 : vector<8x512xf32>
    %80 = vector.extract_strided_slice %76 {offsets = [0, 0], sizes = [8, 128], strides = [1, 1]} : vector<8x512xf32> to vector<8x128xf32>
    %81 = arith.negf %80 : vector<8x128xf32>
    %82 = math.exp %81 : vector<8x128xf32>
    %cst_30 = arith.constant 1.000000e+00 : f32
    %83 = vector.broadcast %cst_30 : f32 to vector<8x128xf32>
    %84 = arith.addf %83, %82 : vector<8x128xf32>
    %85 = arith.divf %83, %84 : vector<8x128xf32>
    %86 = vector.extract_strided_slice %76 {offsets = [0, 128], sizes = [8, 128], strides = [1, 1]} : vector<8x512xf32> to vector<8x128xf32>
    %87 = arith.negf %86 : vector<8x128xf32>
    %88 = math.exp %87 : vector<8x128xf32>
    %cst_31 = arith.constant 1.000000e+00 : f32
    %89 = vector.broadcast %cst_31 : f32 to vector<8x128xf32>
    %90 = arith.addf %89, %88 : vector<8x128xf32>
    %91 = arith.divf %89, %90 : vector<8x128xf32>
    %92 = vector.extract_strided_slice %76 {offsets = [0, 256], sizes = [8, 128], strides = [1, 1]} : vector<8x512xf32> to vector<8x128xf32>
    %93 = vector.extract_strided_slice %76 {offsets = [0, 384], sizes = [8, 128], strides = [1, 1]} : vector<8x512xf32> to vector<8x128xf32>
    %94 = arith.mulf %85, %93 : vector<8x128xf32>
    %95 = arith.addf %92, %94 : vector<8x128xf32>
    %96 = math.tanh %95 : vector<8x128xf32>
    %cst_32 = arith.constant 1.000000e+00 : f32
    %97 = vector.broadcast %cst_32 : f32 to vector<8x128xf32>
    %98 = arith.subf %97, %91 : vector<8x128xf32>
    %99 = arith.mulf %98, %96 : vector<8x128xf32>
    %100 = arith.mulf %91, %41 : vector<8x128xf32>
    %101 = arith.addf %99, %100 : vector<8x128xf32>
    %102 = vector.extract_strided_slice %79 {offsets = [0, 0], sizes = [8, 128], strides = [1, 1]} : vector<8x512xf32> to vector<8x128xf32>
    %103 = arith.negf %102 : vector<8x128xf32>
    %104 = math.exp %103 : vector<8x128xf32>
    %cst_33 = arith.constant 1.000000e+00 : f32
    %105 = vector.broadcast %cst_33 : f32 to vector<8x128xf32>
    %106 = arith.addf %105, %104 : vector<8x128xf32>
    %107 = arith.divf %105, %106 : vector<8x128xf32>
    %108 = vector.extract_strided_slice %79 {offsets = [0, 128], sizes = [8, 128], strides = [1, 1]} : vector<8x512xf32> to vector<8x128xf32>
    %109 = arith.negf %108 : vector<8x128xf32>
    %110 = math.exp %109 : vector<8x128xf32>
    %cst_34 = arith.constant 1.000000e+00 : f32
    %111 = vector.broadcast %cst_34 : f32 to vector<8x128xf32>
    %112 = arith.addf %111, %110 : vector<8x128xf32>
    %113 = arith.divf %111, %112 : vector<8x128xf32>
    %114 = vector.extract_strided_slice %79 {offsets = [0, 256], sizes = [8, 128], strides = [1, 1]} : vector<8x512xf32> to vector<8x128xf32>
    %115 = vector.extract_strided_slice %79 {offsets = [0, 384], sizes = [8, 128], strides = [1, 1]} : vector<8x512xf32> to vector<8x128xf32>
    %116 = arith.mulf %107, %115 : vector<8x128xf32>
    %117 = arith.addf %114, %116 : vector<8x128xf32>
    %118 = math.tanh %117 : vector<8x128xf32>
    %cst_35 = arith.constant 1.000000e+00 : f32
    %119 = vector.broadcast %cst_35 : f32 to vector<8x128xf32>
    %120 = arith.subf %119, %113 : vector<8x128xf32>
    %121 = arith.mulf %120, %118 : vector<8x128xf32>
    %122 = arith.mulf %113, %63 : vector<8x128xf32>
    %123 = arith.addf %121, %122 : vector<8x128xf32>
    %c1 = arith.constant 1 : index
    %c0_36 = arith.constant 0 : index
    %c0_37 = arith.constant 0 : index
    %124 = vector.load %arg6[%c1, %c0_36, %c0_37] : memref<8x8x128xf32, #tpu.memory_space<vmem>>, vector<1x8x128xf32>
    %125 = vector.shape_cast %124 : vector<1x8x128xf32> to vector<8x128xf32>
    %126 = vector.shape_cast %101 : vector<8x128xf32> to vector<1x8x128xf32>
    tpu.vector_store %arg6[%c1, %c0_36, %c0_37], %126 {strides = array<i32>} : memref<8x8x128xf32, #tpu.memory_space<vmem>>, vector<1x8x128xf32>,
    %c6 = arith.constant 6 : index
    %c0_38 = arith.constant 0 : index
    %c0_39 = arith.constant 0 : index
    %127 = vector.load %arg7[%c6, %c0_38, %c0_39] : memref<8x8x128xf32, #tpu.memory_space<vmem>>, vector<1x8x128xf32>
    %128 = vector.shape_cast %127 : vector<1x8x128xf32> to vector<8x128xf32>
    %129 = vector.shape_cast %123 : vector<8x128xf32> to vector<1x8x128xf32>
    tpu.vector_store %arg7[%c6, %c0_38, %c0_39], %129 {strides = array<i32>} : memref<8x8x128xf32, #tpu.memory_space<vmem>>, vector<1x8x128xf32>,
    %130 = tpu.concatenate %101, %123 in 1 : vector<8x128xf32>, vector<8x128xf32> -> vector<8x256xf32>
    %131 = arith.truncf %130 : vector<8x256xf32> to vector<8x256xbf16>
    %c0_40 = arith.constant 0 : index
    %c0_41 = arith.constant 0 : index
    %132 = vector.load %arg3[%c0_40, %c0_41] : memref<256x1024xbf16, #tpu.memory_space<vmem>>, vector<256x1024xbf16>
    %cst_42 = arith.constant dense<0.000000e+00> : vector<8x1024xf32>
    %133 = tpu.matmul %131, %132, %cst_42 {dimension_numbers = #tpu.dot_dimension_numbers<[1], [0], [0], [1], [0, 0, 1, 1], [], []>} : vector<8x256xbf16>, vector<256x1024xbf16>, vector<8x1024xf32> -> vector<8x1024xf32>
    %c16 = arith.constant 16 : index
    %c0_43 = arith.constant 0 : index
    %134 = vector.load %arg9[%c16, %c0_43] : memref<64x1024xf32, #tpu.memory_space<vmem>>, vector<8x512xf32>
    %135 = vector.extract_strided_slice %133 {offsets = [0, 0], sizes = [8, 512], strides = [1, 1]} : vector<8x1024xf32> to vector<8x512xf32>
    %136 = arith.addf %134, %135 : vector<8x512xf32>
    %c40 = arith.constant 40 : index
    %c512_44 = arith.constant 512 : index
    %137 = vector.load %arg9[%c40, %c512_44] : memref<64x1024xf32, #tpu.memory_space<vmem>>, vector<8x512xf32>
    %138 = vector.extract_strided_slice %133 {offsets = [0, 512], sizes = [8, 512], strides = [1, 1]} : vector<8x1024xf32> to vector<8x512xf32>
    %139 = arith.addf %137, %138 : vector<8x512xf32>
    %140 = vector.extract_strided_slice %136 {offsets = [0, 0], sizes = [8, 128], strides = [1, 1]} : vector<8x512xf32> to vector<8x128xf32>
    %141 = arith.negf %140 : vector<8x128xf32>
    %142 = math.exp %141 : vector<8x128xf32>
    %cst_45 = arith.constant 1.000000e+00 : f32
    %143 = vector.broadcast %cst_45 : f32 to vector<8x128xf32>
    %144 = arith.addf %143, %142 : vector<8x128xf32>
    %145 = arith.divf %143, %144 : vector<8x128xf32>
    %146 = vector.extract_strided_slice %136 {offsets = [0, 128], sizes = [8, 128], strides = [1, 1]} : vector<8x512xf32> to vector<8x128xf32>
    %147 = arith.negf %146 : vector<8x128xf32>
    %148 = math.exp %147 : vector<8x128xf32>
    %cst_46 = arith.constant 1.000000e+00 : f32
    %149 = vector.broadcast %cst_46 : f32 to vector<8x128xf32>
    %150 = arith.addf %149, %148 : vector<8x128xf32>
    %151 = arith.divf %149, %150 : vector<8x128xf32>
    %152 = vector.extract_strided_slice %136 {offsets = [0, 256], sizes = [8, 128], strides = [1, 1]} : vector<8x512xf32> to vector<8x128xf32>
    %153 = vector.extract_strided_slice %136 {offsets = [0, 384], sizes = [8, 128], strides = [1, 1]} : vector<8x512xf32> to vector<8x128xf32>
    %154 = arith.mulf %145, %153 : vector<8x128xf32>
    %155 = arith.addf %152, %154 : vector<8x128xf32>
    %156 = math.tanh %155 : vector<8x128xf32>
    %cst_47 = arith.constant 1.000000e+00 : f32
    %157 = vector.broadcast %cst_47 : f32 to vector<8x128xf32>
    %158 = arith.subf %157, %151 : vector<8x128xf32>
    %159 = arith.mulf %158, %156 : vector<8x128xf32>
    %160 = arith.mulf %151, %101 : vector<8x128xf32>
    %161 = arith.addf %159, %160 : vector<8x128xf32>
    %162 = vector.extract_strided_slice %139 {offsets = [0, 0], sizes = [8, 128], strides = [1, 1]} : vector<8x512xf32> to vector<8x128xf32>
    %163 = arith.negf %162 : vector<8x128xf32>
    %164 = math.exp %163 : vector<8x128xf32>
    %cst_48 = arith.constant 1.000000e+00 : f32
    %165 = vector.broadcast %cst_48 : f32 to vector<8x128xf32>
    %166 = arith.addf %165, %164 : vector<8x128xf32>
    %167 = arith.divf %165, %166 : vector<8x128xf32>
    %168 = vector.extract_strided_slice %139 {offsets = [0, 128], sizes = [8, 128], strides = [1, 1]} : vector<8x512xf32> to vector<8x128xf32>
    %169 = arith.negf %168 : vector<8x128xf32>
    %170 = math.exp %169 : vector<8x128xf32>
    %cst_49 = arith.constant 1.000000e+00 : f32
    %171 = vector.broadcast %cst_49 : f32 to vector<8x128xf32>
    %172 = arith.addf %171, %170 : vector<8x128xf32>
    %173 = arith.divf %171, %172 : vector<8x128xf32>
    %174 = vector.extract_strided_slice %139 {offsets = [0, 256], sizes = [8, 128], strides = [1, 1]} : vector<8x512xf32> to vector<8x128xf32>
    %175 = vector.extract_strided_slice %139 {offsets = [0, 384], sizes = [8, 128], strides = [1, 1]} : vector<8x512xf32> to vector<8x128xf32>
    %176 = arith.mulf %167, %175 : vector<8x128xf32>
    %177 = arith.addf %174, %176 : vector<8x128xf32>
    %178 = math.tanh %177 : vector<8x128xf32>
    %cst_50 = arith.constant 1.000000e+00 : f32
    %179 = vector.broadcast %cst_50 : f32 to vector<8x128xf32>
    %180 = arith.subf %179, %173 : vector<8x128xf32>
    %181 = arith.mulf %180, %178 : vector<8x128xf32>
    %182 = arith.mulf %173, %123 : vector<8x128xf32>
    %183 = arith.addf %181, %182 : vector<8x128xf32>
    %c2 = arith.constant 2 : index
    %c0_51 = arith.constant 0 : index
    %c0_52 = arith.constant 0 : index
    %184 = vector.load %arg6[%c2, %c0_51, %c0_52] : memref<8x8x128xf32, #tpu.memory_space<vmem>>, vector<1x8x128xf32>
    %185 = vector.shape_cast %184 : vector<1x8x128xf32> to vector<8x128xf32>
    %186 = vector.shape_cast %161 : vector<8x128xf32> to vector<1x8x128xf32>
    tpu.vector_store %arg6[%c2, %c0_51, %c0_52], %186 {strides = array<i32>} : memref<8x8x128xf32, #tpu.memory_space<vmem>>, vector<1x8x128xf32>,
    %c5 = arith.constant 5 : index
    %c0_53 = arith.constant 0 : index
    %c0_54 = arith.constant 0 : index
    %187 = vector.load %arg7[%c5, %c0_53, %c0_54] : memref<8x8x128xf32, #tpu.memory_space<vmem>>, vector<1x8x128xf32>
    %188 = vector.shape_cast %187 : vector<1x8x128xf32> to vector<8x128xf32>
    %189 = vector.shape_cast %183 : vector<8x128xf32> to vector<1x8x128xf32>
    tpu.vector_store %arg7[%c5, %c0_53, %c0_54], %189 {strides = array<i32>} : memref<8x8x128xf32, #tpu.memory_space<vmem>>, vector<1x8x128xf32>,
    %190 = tpu.concatenate %161, %183 in 1 : vector<8x128xf32>, vector<8x128xf32> -> vector<8x256xf32>
    %191 = arith.truncf %190 : vector<8x256xf32> to vector<8x256xbf16>
    %c0_55 = arith.constant 0 : index
    %c0_56 = arith.constant 0 : index
    %192 = vector.load %arg3[%c0_55, %c0_56] : memref<256x1024xbf16, #tpu.memory_space<vmem>>, vector<256x1024xbf16>
    %cst_57 = arith.constant dense<0.000000e+00> : vector<8x1024xf32>
    %193 = tpu.matmul %191, %192, %cst_57 {dimension_numbers = #tpu.dot_dimension_numbers<[1], [0], [0], [1], [0, 0, 1, 1], [], []>} : vector<8x256xbf16>, vector<256x1024xbf16>, vector<8x1024xf32> -> vector<8x1024xf32>
    %c24 = arith.constant 24 : index
    %c0_58 = arith.constant 0 : index
    %194 = vector.load %arg9[%c24, %c0_58] : memref<64x1024xf32, #tpu.memory_space<vmem>>, vector<8x512xf32>
    %195 = vector.extract_strided_slice %193 {offsets = [0, 0], sizes = [8, 512], strides = [1, 1]} : vector<8x1024xf32> to vector<8x512xf32>
    %196 = arith.addf %194, %195 : vector<8x512xf32>
    %c32 = arith.constant 32 : index
    %c512_59 = arith.constant 512 : index
    %197 = vector.load %arg9[%c32, %c512_59] : memref<64x1024xf32, #tpu.memory_space<vmem>>, vector<8x512xf32>
    %198 = vector.extract_strided_slice %193 {offsets = [0, 512], sizes = [8, 512], strides = [1, 1]} : vector<8x1024xf32> to vector<8x512xf32>
    %199 = arith.addf %197, %198 : vector<8x512xf32>
    %200 = vector.extract_strided_slice %196 {offsets = [0, 0], sizes = [8, 128], strides = [1, 1]} : vector<8x512xf32> to vector<8x128xf32>
    %201 = arith.negf %200 : vector<8x128xf32>
    %202 = math.exp %201 : vector<8x128xf32>
    %cst_60 = arith.constant 1.000000e+00 : f32
    %203 = vector.broadcast %cst_60 : f32 to vector<8x128xf32>
    %204 = arith.addf %203, %202 : vector<8x128xf32>
    %205 = arith.divf %203, %204 : vector<8x128xf32>
    %206 = vector.extract_strided_slice %196 {offsets = [0, 128], sizes = [8, 128], strides = [1, 1]} : vector<8x512xf32> to vector<8x128xf32>
    %207 = arith.negf %206 : vector<8x128xf32>
    %208 = math.exp %207 : vector<8x128xf32>
    %cst_61 = arith.constant 1.000000e+00 : f32
    %209 = vector.broadcast %cst_61 : f32 to vector<8x128xf32>
    %210 = arith.addf %209, %208 : vector<8x128xf32>
    %211 = arith.divf %209, %210 : vector<8x128xf32>
    %212 = vector.extract_strided_slice %196 {offsets = [0, 256], sizes = [8, 128], strides = [1, 1]} : vector<8x512xf32> to vector<8x128xf32>
    %213 = vector.extract_strided_slice %196 {offsets = [0, 384], sizes = [8, 128], strides = [1, 1]} : vector<8x512xf32> to vector<8x128xf32>
    %214 = arith.mulf %205, %213 : vector<8x128xf32>
    %215 = arith.addf %212, %214 : vector<8x128xf32>
    %216 = math.tanh %215 : vector<8x128xf32>
    %cst_62 = arith.constant 1.000000e+00 : f32
    %217 = vector.broadcast %cst_62 : f32 to vector<8x128xf32>
    %218 = arith.subf %217, %211 : vector<8x128xf32>
    %219 = arith.mulf %218, %216 : vector<8x128xf32>
    %220 = arith.mulf %211, %161 : vector<8x128xf32>
    %221 = arith.addf %219, %220 : vector<8x128xf32>
    %222 = vector.extract_strided_slice %199 {offsets = [0, 0], sizes = [8, 128], strides = [1, 1]} : vector<8x512xf32> to vector<8x128xf32>
    %223 = arith.negf %222 : vector<8x128xf32>
    %224 = math.exp %223 : vector<8x128xf32>
    %cst_63 = arith.constant 1.000000e+00 : f32
    %225 = vector.broadcast %cst_63 : f32 to vector<8x128xf32>
    %226 = arith.addf %225, %224 : vector<8x128xf32>
    %227 = arith.divf %225, %226 : vector<8x128xf32>
    %228 = vector.extract_strided_slice %199 {offsets = [0, 128], sizes = [8, 128], strides = [1, 1]} : vector<8x512xf32> to vector<8x128xf32>
    %229 = arith.negf %228 : vector<8x128xf32>
    %230 = math.exp %229 : vector<8x128xf32>
    %cst_64 = arith.constant 1.000000e+00 : f32
    %231 = vector.broadcast %cst_64 : f32 to vector<8x128xf32>
    %232 = arith.addf %231, %230 : vector<8x128xf32>
    %233 = arith.divf %231, %232 : vector<8x128xf32>
    %234 = vector.extract_strided_slice %199 {offsets = [0, 256], sizes = [8, 128], strides = [1, 1]} : vector<8x512xf32> to vector<8x128xf32>
    %235 = vector.extract_strided_slice %199 {offsets = [0, 384], sizes = [8, 128], strides = [1, 1]} : vector<8x512xf32> to vector<8x128xf32>
    %236 = arith.mulf %227, %235 : vector<8x128xf32>
    %237 = arith.addf %234, %236 : vector<8x128xf32>
    %238 = math.tanh %237 : vector<8x128xf32>
    %cst_65 = arith.constant 1.000000e+00 : f32
    %239 = vector.broadcast %cst_65 : f32 to vector<8x128xf32>
    %240 = arith.subf %239, %233 : vector<8x128xf32>
    %241 = arith.mulf %240, %238 : vector<8x128xf32>
    %242 = arith.mulf %233, %183 : vector<8x128xf32>
    %243 = arith.addf %241, %242 : vector<8x128xf32>
    %c3 = arith.constant 3 : index
    %c0_66 = arith.constant 0 : index
    %c0_67 = arith.constant 0 : index
    %244 = vector.load %arg6[%c3, %c0_66, %c0_67] : memref<8x8x128xf32, #tpu.memory_space<vmem>>, vector<1x8x128xf32>
    %245 = vector.shape_cast %244 : vector<1x8x128xf32> to vector<8x128xf32>
    %246 = vector.shape_cast %221 : vector<8x128xf32> to vector<1x8x128xf32>
    tpu.vector_store %arg6[%c3, %c0_66, %c0_67], %246 {strides = array<i32>} : memref<8x8x128xf32, #tpu.memory_space<vmem>>, vector<1x8x128xf32>,
    %c4 = arith.constant 4 : index
    %c0_68 = arith.constant 0 : index
    %c0_69 = arith.constant 0 : index
    %247 = vector.load %arg7[%c4, %c0_68, %c0_69] : memref<8x8x128xf32, #tpu.memory_space<vmem>>, vector<1x8x128xf32>
    %248 = vector.shape_cast %247 : vector<1x8x128xf32> to vector<8x128xf32>
    %249 = vector.shape_cast %243 : vector<8x128xf32> to vector<1x8x128xf32>
    tpu.vector_store %arg7[%c4, %c0_68, %c0_69], %249 {strides = array<i32>} : memref<8x8x128xf32, #tpu.memory_space<vmem>>, vector<1x8x128xf32>,
    %250 = tpu.concatenate %221, %243 in 1 : vector<8x128xf32>, vector<8x128xf32> -> vector<8x256xf32>
    %251 = arith.truncf %250 : vector<8x256xf32> to vector<8x256xbf16>
    %c0_70 = arith.constant 0 : index
    %c0_71 = arith.constant 0 : index
    %252 = vector.load %arg3[%c0_70, %c0_71] : memref<256x1024xbf16, #tpu.memory_space<vmem>>, vector<256x1024xbf16>
    %cst_72 = arith.constant dense<0.000000e+00> : vector<8x1024xf32>
    %253 = tpu.matmul %251, %252, %cst_72 {dimension_numbers = #tpu.dot_dimension_numbers<[1], [0], [0], [1], [0, 0, 1, 1], [], []>} : vector<8x256xbf16>, vector<256x1024xbf16>, vector<8x1024xf32> -> vector<8x1024xf32>
    %c32_73 = arith.constant 32 : index
    %c0_74 = arith.constant 0 : index
    %254 = vector.load %arg9[%c32_73, %c0_74] : memref<64x1024xf32, #tpu.memory_space<vmem>>, vector<8x512xf32>
    %255 = vector.extract_strided_slice %253 {offsets = [0, 0], sizes = [8, 512], strides = [1, 1]} : vector<8x1024xf32> to vector<8x512xf32>
    %256 = arith.addf %254, %255 : vector<8x512xf32>
    %c24_75 = arith.constant 24 : index
    %c512_76 = arith.constant 512 : index
    %257 = vector.load %arg9[%c24_75, %c512_76] : memref<64x1024xf32, #tpu.memory_space<vmem>>, vector<8x512xf32>
    %258 = vector.extract_strided_slice %253 {offsets = [0, 512], sizes = [8, 512], strides = [1, 1]} : vector<8x1024xf32> to vector<8x512xf32>
    %259 = arith.addf %257, %258 : vector<8x512xf32>
    %260 = vector.extract_strided_slice %256 {offsets = [0, 0], sizes = [8, 128], strides = [1, 1]} : vector<8x512xf32> to vector<8x128xf32>
    %261 = arith.negf %260 : vector<8x128xf32>
    %262 = math.exp %261 : vector<8x128xf32>
    %cst_77 = arith.constant 1.000000e+00 : f32
    %263 = vector.broadcast %cst_77 : f32 to vector<8x128xf32>
    %264 = arith.addf %263, %262 : vector<8x128xf32>
    %265 = arith.divf %263, %264 : vector<8x128xf32>
    %266 = vector.extract_strided_slice %256 {offsets = [0, 128], sizes = [8, 128], strides = [1, 1]} : vector<8x512xf32> to vector<8x128xf32>
    %267 = arith.negf %266 : vector<8x128xf32>
    %268 = math.exp %267 : vector<8x128xf32>
    %cst_78 = arith.constant 1.000000e+00 : f32
    %269 = vector.broadcast %cst_78 : f32 to vector<8x128xf32>
    %270 = arith.addf %269, %268 : vector<8x128xf32>
    %271 = arith.divf %269, %270 : vector<8x128xf32>
    %272 = vector.extract_strided_slice %256 {offsets = [0, 256], sizes = [8, 128], strides = [1, 1]} : vector<8x512xf32> to vector<8x128xf32>
    %273 = vector.extract_strided_slice %256 {offsets = [0, 384], sizes = [8, 128], strides = [1, 1]} : vector<8x512xf32> to vector<8x128xf32>
    %274 = arith.mulf %265, %273 : vector<8x128xf32>
    %275 = arith.addf %272, %274 : vector<8x128xf32>
    %276 = math.tanh %275 : vector<8x128xf32>
    %cst_79 = arith.constant 1.000000e+00 : f32
    %277 = vector.broadcast %cst_79 : f32 to vector<8x128xf32>
    %278 = arith.subf %277, %271 : vector<8x128xf32>
    %279 = arith.mulf %278, %276 : vector<8x128xf32>
    %280 = arith.mulf %271, %221 : vector<8x128xf32>
    %281 = arith.addf %279, %280 : vector<8x128xf32>
    %282 = vector.extract_strided_slice %259 {offsets = [0, 0], sizes = [8, 128], strides = [1, 1]} : vector<8x512xf32> to vector<8x128xf32>
    %283 = arith.negf %282 : vector<8x128xf32>
    %284 = math.exp %283 : vector<8x128xf32>
    %cst_80 = arith.constant 1.000000e+00 : f32
    %285 = vector.broadcast %cst_80 : f32 to vector<8x128xf32>
    %286 = arith.addf %285, %284 : vector<8x128xf32>
    %287 = arith.divf %285, %286 : vector<8x128xf32>
    %288 = vector.extract_strided_slice %259 {offsets = [0, 128], sizes = [8, 128], strides = [1, 1]} : vector<8x512xf32> to vector<8x128xf32>
    %289 = arith.negf %288 : vector<8x128xf32>
    %290 = math.exp %289 : vector<8x128xf32>
    %cst_81 = arith.constant 1.000000e+00 : f32
    %291 = vector.broadcast %cst_81 : f32 to vector<8x128xf32>
    %292 = arith.addf %291, %290 : vector<8x128xf32>
    %293 = arith.divf %291, %292 : vector<8x128xf32>
    %294 = vector.extract_strided_slice %259 {offsets = [0, 256], sizes = [8, 128], strides = [1, 1]} : vector<8x512xf32> to vector<8x128xf32>
    %295 = vector.extract_strided_slice %259 {offsets = [0, 384], sizes = [8, 128], strides = [1, 1]} : vector<8x512xf32> to vector<8x128xf32>
    %296 = arith.mulf %287, %295 : vector<8x128xf32>
    %297 = arith.addf %294, %296 : vector<8x128xf32>
    %298 = math.tanh %297 : vector<8x128xf32>
    %cst_82 = arith.constant 1.000000e+00 : f32
    %299 = vector.broadcast %cst_82 : f32 to vector<8x128xf32>
    %300 = arith.subf %299, %293 : vector<8x128xf32>
    %301 = arith.mulf %300, %298 : vector<8x128xf32>
    %302 = arith.mulf %293, %243 : vector<8x128xf32>
    %303 = arith.addf %301, %302 : vector<8x128xf32>
    %c4_83 = arith.constant 4 : index
    %c0_84 = arith.constant 0 : index
    %c0_85 = arith.constant 0 : index
    %304 = vector.load %arg6[%c4_83, %c0_84, %c0_85] : memref<8x8x128xf32, #tpu.memory_space<vmem>>, vector<1x8x128xf32>
    %305 = vector.shape_cast %304 : vector<1x8x128xf32> to vector<8x128xf32>
    %306 = vector.shape_cast %281 : vector<8x128xf32> to vector<1x8x128xf32>
    tpu.vector_store %arg6[%c4_83, %c0_84, %c0_85], %306 {strides = array<i32>} : memref<8x8x128xf32, #tpu.memory_space<vmem>>, vector<1x8x128xf32>,
    %c3_86 = arith.constant 3 : index
    %c0_87 = arith.constant 0 : index
    %c0_88 = arith.constant 0 : index
    %307 = vector.load %arg7[%c3_86, %c0_87, %c0_88] : memref<8x8x128xf32, #tpu.memory_space<vmem>>, vector<1x8x128xf32>
    %308 = vector.shape_cast %307 : vector<1x8x128xf32> to vector<8x128xf32>
    %309 = vector.shape_cast %303 : vector<8x128xf32> to vector<1x8x128xf32>
    tpu.vector_store %arg7[%c3_86, %c0_87, %c0_88], %309 {strides = array<i32>} : memref<8x8x128xf32, #tpu.memory_space<vmem>>, vector<1x8x128xf32>,
    %310 = tpu.concatenate %281, %303 in 1 : vector<8x128xf32>, vector<8x128xf32> -> vector<8x256xf32>
    %311 = arith.truncf %310 : vector<8x256xf32> to vector<8x256xbf16>
    %c0_89 = arith.constant 0 : index
    %c0_90 = arith.constant 0 : index
    %312 = vector.load %arg3[%c0_89, %c0_90] : memref<256x1024xbf16, #tpu.memory_space<vmem>>, vector<256x1024xbf16>
    %cst_91 = arith.constant dense<0.000000e+00> : vector<8x1024xf32>
    %313 = tpu.matmul %311, %312, %cst_91 {dimension_numbers = #tpu.dot_dimension_numbers<[1], [0], [0], [1], [0, 0, 1, 1], [], []>} : vector<8x256xbf16>, vector<256x1024xbf16>, vector<8x1024xf32> -> vector<8x1024xf32>
    %c40_92 = arith.constant 40 : index
    %c0_93 = arith.constant 0 : index
    %314 = vector.load %arg9[%c40_92, %c0_93] : memref<64x1024xf32, #tpu.memory_space<vmem>>, vector<8x512xf32>
    %315 = vector.extract_strided_slice %313 {offsets = [0, 0], sizes = [8, 512], strides = [1, 1]} : vector<8x1024xf32> to vector<8x512xf32>
    %316 = arith.addf %314, %315 : vector<8x512xf32>
    %c16_94 = arith.constant 16 : index
    %c512_95 = arith.constant 512 : index
    %317 = vector.load %arg9[%c16_94, %c512_95] : memref<64x1024xf32, #tpu.memory_space<vmem>>, vector<8x512xf32>
    %318 = vector.extract_strided_slice %313 {offsets = [0, 512], sizes = [8, 512], strides = [1, 1]} : vector<8x1024xf32> to vector<8x512xf32>
    %319 = arith.addf %317, %318 : vector<8x512xf32>
    %320 = vector.extract_strided_slice %316 {offsets = [0, 0], sizes = [8, 128], strides = [1, 1]} : vector<8x512xf32> to vector<8x128xf32>
    %321 = arith.negf %320 : vector<8x128xf32>
    %322 = math.exp %321 : vector<8x128xf32>
    %cst_96 = arith.constant 1.000000e+00 : f32
    %323 = vector.broadcast %cst_96 : f32 to vector<8x128xf32>
    %324 = arith.addf %323, %322 : vector<8x128xf32>
    %325 = arith.divf %323, %324 : vector<8x128xf32>
    %326 = vector.extract_strided_slice %316 {offsets = [0, 128], sizes = [8, 128], strides = [1, 1]} : vector<8x512xf32> to vector<8x128xf32>
    %327 = arith.negf %326 : vector<8x128xf32>
    %328 = math.exp %327 : vector<8x128xf32>
    %cst_97 = arith.constant 1.000000e+00 : f32
    %329 = vector.broadcast %cst_97 : f32 to vector<8x128xf32>
    %330 = arith.addf %329, %328 : vector<8x128xf32>
    %331 = arith.divf %329, %330 : vector<8x128xf32>
    %332 = vector.extract_strided_slice %316 {offsets = [0, 256], sizes = [8, 128], strides = [1, 1]} : vector<8x512xf32> to vector<8x128xf32>
    %333 = vector.extract_strided_slice %316 {offsets = [0, 384], sizes = [8, 128], strides = [1, 1]} : vector<8x512xf32> to vector<8x128xf32>
    %334 = arith.mulf %325, %333 : vector<8x128xf32>
    %335 = arith.addf %332, %334 : vector<8x128xf32>
    %336 = math.tanh %335 : vector<8x128xf32>
    %cst_98 = arith.constant 1.000000e+00 : f32
    %337 = vector.broadcast %cst_98 : f32 to vector<8x128xf32>
    %338 = arith.subf %337, %331 : vector<8x128xf32>
    %339 = arith.mulf %338, %336 : vector<8x128xf32>
    %340 = arith.mulf %331, %281 : vector<8x128xf32>
    %341 = arith.addf %339, %340 : vector<8x128xf32>
    %342 = vector.extract_strided_slice %319 {offsets = [0, 0], sizes = [8, 128], strides = [1, 1]} : vector<8x512xf32> to vector<8x128xf32>
    %343 = arith.negf %342 : vector<8x128xf32>
    %344 = math.exp %343 : vector<8x128xf32>
    %cst_99 = arith.constant 1.000000e+00 : f32
    %345 = vector.broadcast %cst_99 : f32 to vector<8x128xf32>
    %346 = arith.addf %345, %344 : vector<8x128xf32>
    %347 = arith.divf %345, %346 : vector<8x128xf32>
    %348 = vector.extract_strided_slice %319 {offsets = [0, 128], sizes = [8, 128], strides = [1, 1]} : vector<8x512xf32> to vector<8x128xf32>
    %349 = arith.negf %348 : vector<8x128xf32>
    %350 = math.exp %349 : vector<8x128xf32>
    %cst_100 = arith.constant 1.000000e+00 : f32
    %351 = vector.broadcast %cst_100 : f32 to vector<8x128xf32>
    %352 = arith.addf %351, %350 : vector<8x128xf32>
    %353 = arith.divf %351, %352 : vector<8x128xf32>
    %354 = vector.extract_strided_slice %319 {offsets = [0, 256], sizes = [8, 128], strides = [1, 1]} : vector<8x512xf32> to vector<8x128xf32>
    %355 = vector.extract_strided_slice %319 {offsets = [0, 384], sizes = [8, 128], strides = [1, 1]} : vector<8x512xf32> to vector<8x128xf32>
    %356 = arith.mulf %347, %355 : vector<8x128xf32>
    %357 = arith.addf %354, %356 : vector<8x128xf32>
    %358 = math.tanh %357 : vector<8x128xf32>
    %cst_101 = arith.constant 1.000000e+00 : f32
    %359 = vector.broadcast %cst_101 : f32 to vector<8x128xf32>
    %360 = arith.subf %359, %353 : vector<8x128xf32>
    %361 = arith.mulf %360, %358 : vector<8x128xf32>
    %362 = arith.mulf %353, %303 : vector<8x128xf32>
    %363 = arith.addf %361, %362 : vector<8x128xf32>
    %c5_102 = arith.constant 5 : index
    %c0_103 = arith.constant 0 : index
    %c0_104 = arith.constant 0 : index
    %364 = vector.load %arg6[%c5_102, %c0_103, %c0_104] : memref<8x8x128xf32, #tpu.memory_space<vmem>>, vector<1x8x128xf32>
    %365 = vector.shape_cast %364 : vector<1x8x128xf32> to vector<8x128xf32>
    %366 = vector.shape_cast %341 : vector<8x128xf32> to vector<1x8x128xf32>
    tpu.vector_store %arg6[%c5_102, %c0_103, %c0_104], %366 {strides = array<i32>} : memref<8x8x128xf32, #tpu.memory_space<vmem>>, vector<1x8x128xf32>,
    %c2_105 = arith.constant 2 : index
    %c0_106 = arith.constant 0 : index
    %c0_107 = arith.constant 0 : index
    %367 = vector.load %arg7[%c2_105, %c0_106, %c0_107] : memref<8x8x128xf32, #tpu.memory_space<vmem>>, vector<1x8x128xf32>
    %368 = vector.shape_cast %367 : vector<1x8x128xf32> to vector<8x128xf32>
    %369 = vector.shape_cast %363 : vector<8x128xf32> to vector<1x8x128xf32>
    tpu.vector_store %arg7[%c2_105, %c0_106, %c0_107], %369 {strides = array<i32>} : memref<8x8x128xf32, #tpu.memory_space<vmem>>, vector<1x8x128xf32>,
    %370 = tpu.concatenate %341, %363 in 1 : vector<8x128xf32>, vector<8x128xf32> -> vector<8x256xf32>
    %371 = arith.truncf %370 : vector<8x256xf32> to vector<8x256xbf16>
    %c0_108 = arith.constant 0 : index
    %c0_109 = arith.constant 0 : index
    %372 = vector.load %arg3[%c0_108, %c0_109] : memref<256x1024xbf16, #tpu.memory_space<vmem>>, vector<256x1024xbf16>
    %cst_110 = arith.constant dense<0.000000e+00> : vector<8x1024xf32>
    %373 = tpu.matmul %371, %372, %cst_110 {dimension_numbers = #tpu.dot_dimension_numbers<[1], [0], [0], [1], [0, 0, 1, 1], [], []>} : vector<8x256xbf16>, vector<256x1024xbf16>, vector<8x1024xf32> -> vector<8x1024xf32>
    %c48_111 = arith.constant 48 : index
    %c0_112 = arith.constant 0 : index
    %374 = vector.load %arg9[%c48_111, %c0_112] : memref<64x1024xf32, #tpu.memory_space<vmem>>, vector<8x512xf32>
    %375 = vector.extract_strided_slice %373 {offsets = [0, 0], sizes = [8, 512], strides = [1, 1]} : vector<8x1024xf32> to vector<8x512xf32>
    %376 = arith.addf %374, %375 : vector<8x512xf32>
    %c8_113 = arith.constant 8 : index
    %c512_114 = arith.constant 512 : index
    %377 = vector.load %arg9[%c8_113, %c512_114] : memref<64x1024xf32, #tpu.memory_space<vmem>>, vector<8x512xf32>
    %378 = vector.extract_strided_slice %373 {offsets = [0, 512], sizes = [8, 512], strides = [1, 1]} : vector<8x1024xf32> to vector<8x512xf32>
    %379 = arith.addf %377, %378 : vector<8x512xf32>
    %380 = vector.extract_strided_slice %376 {offsets = [0, 0], sizes = [8, 128], strides = [1, 1]} : vector<8x512xf32> to vector<8x128xf32>
    %381 = arith.negf %380 : vector<8x128xf32>
    %382 = math.exp %381 : vector<8x128xf32>
    %cst_115 = arith.constant 1.000000e+00 : f32
    %383 = vector.broadcast %cst_115 : f32 to vector<8x128xf32>
    %384 = arith.addf %383, %382 : vector<8x128xf32>
    %385 = arith.divf %383, %384 : vector<8x128xf32>
    %386 = vector.extract_strided_slice %376 {offsets = [0, 128], sizes = [8, 128], strides = [1, 1]} : vector<8x512xf32> to vector<8x128xf32>
    %387 = arith.negf %386 : vector<8x128xf32>
    %388 = math.exp %387 : vector<8x128xf32>
    %cst_116 = arith.constant 1.000000e+00 : f32
    %389 = vector.broadcast %cst_116 : f32 to vector<8x128xf32>
    %390 = arith.addf %389, %388 : vector<8x128xf32>
    %391 = arith.divf %389, %390 : vector<8x128xf32>
    %392 = vector.extract_strided_slice %376 {offsets = [0, 256], sizes = [8, 128], strides = [1, 1]} : vector<8x512xf32> to vector<8x128xf32>
    %393 = vector.extract_strided_slice %376 {offsets = [0, 384], sizes = [8, 128], strides = [1, 1]} : vector<8x512xf32> to vector<8x128xf32>
    %394 = arith.mulf %385, %393 : vector<8x128xf32>
    %395 = arith.addf %392, %394 : vector<8x128xf32>
    %396 = math.tanh %395 : vector<8x128xf32>
    %cst_117 = arith.constant 1.000000e+00 : f32
    %397 = vector.broadcast %cst_117 : f32 to vector<8x128xf32>
    %398 = arith.subf %397, %391 : vector<8x128xf32>
    %399 = arith.mulf %398, %396 : vector<8x128xf32>
    %400 = arith.mulf %391, %341 : vector<8x128xf32>
    %401 = arith.addf %399, %400 : vector<8x128xf32>
    %402 = vector.extract_strided_slice %379 {offsets = [0, 0], sizes = [8, 128], strides = [1, 1]} : vector<8x512xf32> to vector<8x128xf32>
    %403 = arith.negf %402 : vector<8x128xf32>
    %404 = math.exp %403 : vector<8x128xf32>
    %cst_118 = arith.constant 1.000000e+00 : f32
    %405 = vector.broadcast %cst_118 : f32 to vector<8x128xf32>
    %406 = arith.addf %405, %404 : vector<8x128xf32>
    %407 = arith.divf %405, %406 : vector<8x128xf32>
    %408 = vector.extract_strided_slice %379 {offsets = [0, 128], sizes = [8, 128], strides = [1, 1]} : vector<8x512xf32> to vector<8x128xf32>
    %409 = arith.negf %408 : vector<8x128xf32>
    %410 = math.exp %409 : vector<8x128xf32>
    %cst_119 = arith.constant 1.000000e+00 : f32
    %411 = vector.broadcast %cst_119 : f32 to vector<8x128xf32>
    %412 = arith.addf %411, %410 : vector<8x128xf32>
    %413 = arith.divf %411, %412 : vector<8x128xf32>
    %414 = vector.extract_strided_slice %379 {offsets = [0, 256], sizes = [8, 128], strides = [1, 1]} : vector<8x512xf32> to vector<8x128xf32>
    %415 = vector.extract_strided_slice %379 {offsets = [0, 384], sizes = [8, 128], strides = [1, 1]} : vector<8x512xf32> to vector<8x128xf32>
    %416 = arith.mulf %407, %415 : vector<8x128xf32>
    %417 = arith.addf %414, %416 : vector<8x128xf32>
    %418 = math.tanh %417 : vector<8x128xf32>
    %cst_120 = arith.constant 1.000000e+00 : f32
    %419 = vector.broadcast %cst_120 : f32 to vector<8x128xf32>
    %420 = arith.subf %419, %413 : vector<8x128xf32>
    %421 = arith.mulf %420, %418 : vector<8x128xf32>
    %422 = arith.mulf %413, %363 : vector<8x128xf32>
    %423 = arith.addf %421, %422 : vector<8x128xf32>
    %c6_121 = arith.constant 6 : index
    %c0_122 = arith.constant 0 : index
    %c0_123 = arith.constant 0 : index
    %424 = vector.load %arg6[%c6_121, %c0_122, %c0_123] : memref<8x8x128xf32, #tpu.memory_space<vmem>>, vector<1x8x128xf32>
    %425 = vector.shape_cast %424 : vector<1x8x128xf32> to vector<8x128xf32>
    %426 = vector.shape_cast %401 : vector<8x128xf32> to vector<1x8x128xf32>
    tpu.vector_store %arg6[%c6_121, %c0_122, %c0_123], %426 {strides = array<i32>} : memref<8x8x128xf32, #tpu.memory_space<vmem>>, vector<1x8x128xf32>,
    %c1_124 = arith.constant 1 : index
    %c0_125 = arith.constant 0 : index
    %c0_126 = arith.constant 0 : index
    %427 = vector.load %arg7[%c1_124, %c0_125, %c0_126] : memref<8x8x128xf32, #tpu.memory_space<vmem>>, vector<1x8x128xf32>
    %428 = vector.shape_cast %427 : vector<1x8x128xf32> to vector<8x128xf32>
    %429 = vector.shape_cast %423 : vector<8x128xf32> to vector<1x8x128xf32>
    tpu.vector_store %arg7[%c1_124, %c0_125, %c0_126], %429 {strides = array<i32>} : memref<8x8x128xf32, #tpu.memory_space<vmem>>, vector<1x8x128xf32>,
    %430 = tpu.concatenate %401, %423 in 1 : vector<8x128xf32>, vector<8x128xf32> -> vector<8x256xf32>
    %431 = arith.truncf %430 : vector<8x256xf32> to vector<8x256xbf16>
    %c0_127 = arith.constant 0 : index
    %c0_128 = arith.constant 0 : index
    %432 = vector.load %arg3[%c0_127, %c0_128] : memref<256x1024xbf16, #tpu.memory_space<vmem>>, vector<256x1024xbf16>
    %cst_129 = arith.constant dense<0.000000e+00> : vector<8x1024xf32>
    %433 = tpu.matmul %431, %432, %cst_129 {dimension_numbers = #tpu.dot_dimension_numbers<[1], [0], [0], [1], [0, 0, 1, 1], [], []>} : vector<8x256xbf16>, vector<256x1024xbf16>, vector<8x1024xf32> -> vector<8x1024xf32>
    %c56_130 = arith.constant 56 : index
    %c0_131 = arith.constant 0 : index
    %434 = vector.load %arg9[%c56_130, %c0_131] : memref<64x1024xf32, #tpu.memory_space<vmem>>, vector<8x512xf32>
    %435 = vector.extract_strided_slice %433 {offsets = [0, 0], sizes = [8, 512], strides = [1, 1]} : vector<8x1024xf32> to vector<8x512xf32>
    %436 = arith.addf %434, %435 : vector<8x512xf32>
    %c0_132 = arith.constant 0 : index
    %c512_133 = arith.constant 512 : index
    %437 = vector.load %arg9[%c0_132, %c512_133] : memref<64x1024xf32, #tpu.memory_space<vmem>>, vector<8x512xf32>
    %438 = vector.extract_strided_slice %433 {offsets = [0, 512], sizes = [8, 512], strides = [1, 1]} : vector<8x1024xf32> to vector<8x512xf32>
    %439 = arith.addf %437, %438 : vector<8x512xf32>
    %440 = vector.extract_strided_slice %436 {offsets = [0, 0], sizes = [8, 128], strides = [1, 1]} : vector<8x512xf32> to vector<8x128xf32>
    %441 = arith.negf %440 : vector<8x128xf32>
    %442 = math.exp %441 : vector<8x128xf32>
    %cst_134 = arith.constant 1.000000e+00 : f32
    %443 = vector.broadcast %cst_134 : f32 to vector<8x128xf32>
    %444 = arith.addf %443, %442 : vector<8x128xf32>
    %445 = arith.divf %443, %444 : vector<8x128xf32>
    %446 = vector.extract_strided_slice %436 {offsets = [0, 128], sizes = [8, 128], strides = [1, 1]} : vector<8x512xf32> to vector<8x128xf32>
    %447 = arith.negf %446 : vector<8x128xf32>
    %448 = math.exp %447 : vector<8x128xf32>
    %cst_135 = arith.constant 1.000000e+00 : f32
    %449 = vector.broadcast %cst_135 : f32 to vector<8x128xf32>
    %450 = arith.addf %449, %448 : vector<8x128xf32>
    %451 = arith.divf %449, %450 : vector<8x128xf32>
    %452 = vector.extract_strided_slice %436 {offsets = [0, 256], sizes = [8, 128], strides = [1, 1]} : vector<8x512xf32> to vector<8x128xf32>
    %453 = vector.extract_strided_slice %436 {offsets = [0, 384], sizes = [8, 128], strides = [1, 1]} : vector<8x512xf32> to vector<8x128xf32>
    %454 = arith.mulf %445, %453 : vector<8x128xf32>
    %455 = arith.addf %452, %454 : vector<8x128xf32>
    %456 = math.tanh %455 : vector<8x128xf32>
    %cst_136 = arith.constant 1.000000e+00 : f32
    %457 = vector.broadcast %cst_136 : f32 to vector<8x128xf32>
    %458 = arith.subf %457, %451 : vector<8x128xf32>
    %459 = arith.mulf %458, %456 : vector<8x128xf32>
    %460 = arith.mulf %451, %401 : vector<8x128xf32>
    %461 = arith.addf %459, %460 : vector<8x128xf32>
    %462 = vector.extract_strided_slice %439 {offsets = [0, 0], sizes = [8, 128], strides = [1, 1]} : vector<8x512xf32> to vector<8x128xf32>
    %463 = arith.negf %462 : vector<8x128xf32>
    %464 = math.exp %463 : vector<8x128xf32>
    %cst_137 = arith.constant 1.000000e+00 : f32
    %465 = vector.broadcast %cst_137 : f32 to vector<8x128xf32>
    %466 = arith.addf %465, %464 : vector<8x128xf32>
    %467 = arith.divf %465, %466 : vector<8x128xf32>
    %468 = vector.extract_strided_slice %439 {offsets = [0, 128], sizes = [8, 128], strides = [1, 1]} : vector<8x512xf32> to vector<8x128xf32>
    %469 = arith.negf %468 : vector<8x128xf32>
    %470 = math.exp %469 : vector<8x128xf32>
    %cst_138 = arith.constant 1.000000e+00 : f32
    %471 = vector.broadcast %cst_138 : f32 to vector<8x128xf32>
    %472 = arith.addf %471, %470 : vector<8x128xf32>
    %473 = arith.divf %471, %472 : vector<8x128xf32>
    %474 = vector.extract_strided_slice %439 {offsets = [0, 256], sizes = [8, 128], strides = [1, 1]} : vector<8x512xf32> to vector<8x128xf32>
    %475 = vector.extract_strided_slice %439 {offsets = [0, 384], sizes = [8, 128], strides = [1, 1]} : vector<8x512xf32> to vector<8x128xf32>
    %476 = arith.mulf %467, %475 : vector<8x128xf32>
    %477 = arith.addf %474, %476 : vector<8x128xf32>
    %478 = math.tanh %477 : vector<8x128xf32>
    %cst_139 = arith.constant 1.000000e+00 : f32
    %479 = vector.broadcast %cst_139 : f32 to vector<8x128xf32>
    %480 = arith.subf %479, %473 : vector<8x128xf32>
    %481 = arith.mulf %480, %478 : vector<8x128xf32>
    %482 = arith.mulf %473, %423 : vector<8x128xf32>
    %483 = arith.addf %481, %482 : vector<8x128xf32>
    %c7_140 = arith.constant 7 : index
    %c0_141 = arith.constant 0 : index
    %c0_142 = arith.constant 0 : index
    %484 = vector.load %arg6[%c7_140, %c0_141, %c0_142] : memref<8x8x128xf32, #tpu.memory_space<vmem>>, vector<1x8x128xf32>
    %485 = vector.shape_cast %484 : vector<1x8x128xf32> to vector<8x128xf32>
    %486 = vector.shape_cast %461 : vector<8x128xf32> to vector<1x8x128xf32>
    tpu.vector_store %arg6[%c7_140, %c0_141, %c0_142], %486 {strides = array<i32>} : memref<8x8x128xf32, #tpu.memory_space<vmem>>, vector<1x8x128xf32>,
    %c0_143 = arith.constant 0 : index
    %c0_144 = arith.constant 0 : index
    %c0_145 = arith.constant 0 : index
    %487 = vector.load %arg7[%c0_143, %c0_144, %c0_145] : memref<8x8x128xf32, #tpu.memory_space<vmem>>, vector<1x8x128xf32>
    %488 = vector.shape_cast %487 : vector<1x8x128xf32> to vector<8x128xf32>
    %489 = vector.shape_cast %483 : vector<8x128xf32> to vector<1x8x128xf32>
    tpu.vector_store %arg7[%c0_143, %c0_144, %c0_145], %489 {strides = array<i32>} : memref<8x8x128xf32, #tpu.memory_space<vmem>>, vector<1x8x128xf32>,
    %490 = tpu.concatenate %461, %483 in 1 : vector<8x128xf32>, vector<8x128xf32> -> vector<8x256xf32>
    %491 = arith.truncf %490 : vector<8x256xf32> to vector<8x256xbf16>
    %c0_146 = arith.constant 0 : index
    %c0_147 = arith.constant 0 : index
    %492 = vector.load %arg4[%c0_146, %c0_147] : memref<256x128xbf16, #tpu.memory_space<vmem>>, vector<256x128xbf16>
    %cst_148 = arith.constant dense<0.000000e+00> : vector<8x128xf32>
    %493 = tpu.matmul %491, %492, %cst_148 {dimension_numbers = #tpu.dot_dimension_numbers<[1], [0], [0], [1], [0, 0, 1, 1], [], []>} : vector<8x256xbf16>, vector<256x128xbf16>, vector<8x128xf32> -> vector<8x128xf32>
    %c0_149 = arith.constant 0 : index
    %c0_150 = arith.constant 0 : index
    %494 = vector.load %arg5[%c0_149, %c0_150] : memref<1x128xf32, #tpu.memory_space<vmem>>, vector<1x128xf32>
    %495 = vector.broadcast %494 : vector<1x128xf32> to vector<8x128xf32>
    %496 = arith.addf %493, %495 : vector<8x128xf32>
    %497 = math.tanh %496 : vector<8x128xf32>
    %c0_151 = arith.constant 0 : index
    %c0_152 = arith.constant 0 : index
    %498 = vector.load %arg8[%c0_151, %c0_152] : memref<8x128xf32, #tpu.memory_space<vmem>>, vector<8x128xf32>
    tpu.vector_store %arg8[%c0_151, %c0_152], %497 {strides = array<i32>} : memref<8x128xf32, #tpu.memory_space<vmem>>, vector<8x128xf32>,
    return
  }
}

</mosaic_0001>

<llo_original>
// kernel: forward.1
$region0: #{forward.1}
  #allocation0 [shape = 'u32[]', space=smem, size = 0x4, offset = 0x4, fixed_abs, tag = 'smem constant byte address 0x4 - core index']
  #allocation1 [shape = 'u32[144,128]{1,0:T(1,128)}', space=vmem, size = 0x12000, scoped, tag = 'internal scratch']
  #allocation2 [shape = 'f32[64,1024]{1,0:T(8,128)}', space=vmem, size = 0x40000, scoped, tag = 'scratch operand']
  %s0 = inlined_call_operand.vmem [shape: f32[64,128], index: 0, kind: input, shape index: {}]
  %s1 = inlined_call_operand.hbm [shape: bf16[128,1024], index: 1, kind: input, shape index: {}]
  %s2 = inlined_call_operand.vmem [shape: f32[1,1024], index: 2, kind: input, shape index: {}]
  %s3 = inlined_call_operand.hbm [shape: bf16[256,1024], index: 3, kind: input, shape index: {}]
  %s4 = inlined_call_operand.vmem [shape: bf16[256,128], index: 4, kind: input, shape index: {}]
  %s5 = inlined_call_operand.vmem [shape: f32[1,128], index: 5, kind: input, shape index: {}]
  %s6 = inlined_call_operand.vmem [shape: f32[8,8,128], index: 6, kind: output, shape index: {0}]
  %s7 = inlined_call_operand.vmem [shape: f32[8,8,128], index: 7, kind: output, shape index: {1}]
  %s8 = inlined_call_operand.vmem [shape: f32[8,128], index: 8, kind: output, shape index: {2}]
  %9 = xla_tuple %s6, %s7, %s8
  %s10 = sld [smem:[#allocation0]]
  $region58: #{forward.1} parent=0
    _
  %s12 = ssub.s32 1, %s10
  %s13 = scalar_select 0, %s12, %s10
  $region1: #{forward.1} parent=0
    #allocation3 [shape = 'u8[262144]{0}', space=vmem, size = 0x40000, scoped, tag = 'input window, operand 1, single buffered']
    #allocation4 [shape = 's32[1]{0}', space=sflag, size = 0x4, scoped, tag = 'scoped memory for forward.1']
    #allocation5 [shape = 'u8[524288]{0}', space=vmem, size = 0x80000, scoped, tag = 'input window, operand 3, single buffered']
    #allocation6 [shape = 's32[1]{0}', space=sflag, size = 0x4, scoped, tag = 'scoped memory for forward.1']
    %14 = vsyncpa [#allocation4], 0
    %15 = vsyncpa [#allocation6], 0
    // Predicated region
    $region2: #{forward.1} parent=1 // pred_check
      _
    $region3: #{forward.1} parent=1 // pred_check_branch
      %17 = sbr.rel (0) target = $region5
    $region4: #{forward.1} parent=1 // pred_region
      _
    $region5: #{forward.1} parent=1 // pred_fallthru
      _
    // Predicated region
    $region6: #{forward.1} parent=1 // pred_check
      _
    $region7: #{forward.1} parent=1 // pred_check_branch
      %19 = sbr.rel (0) target = $region9
    $region8: #{forward.1} parent=1 // pred_region
      %s21 = ssub.s32 8192, 8192
      %22 = vsyncadd [#allocation4], %s21
      %s23 = sshll.u32 [#allocation3], 4
      %s24 = int_to_ptr.vmem [resolvable:$true] %s23
      %29 = dma.hbm_to_vmem [thread:$0]  %s1, 8192, %s24, [#allocation4], 512, 512, 32
    $region9: #{forward.1} parent=1 // pred_fallthru
      _
    // Predicated region
    $region10: #{forward.1} parent=1 // pred_check
      _
    $region11: #{forward.1} parent=1 // pred_check_branch
      %31 = sbr.rel (0) target = $region13
    $region12: #{forward.1} parent=1 // pred_region
      _
    $region13: #{forward.1} parent=1 // pred_fallthru
      _
    // Predicated region
    $region14: #{forward.1} parent=1 // pred_check
      _
    $region15: #{forward.1} parent=1 // pred_check_branch
      %33 = sbr.rel (0) target = $region17
    $region16: #{forward.1} parent=1 // pred_region
      %s35 = ssub.s32 16384, 16384
      %36 = vsyncadd [#allocation6], %s35
      %s37 = sshll.u32 [#allocation5], 4
      %s38 = int_to_ptr.vmem [resolvable:$true] %s37
      %43 = dma.hbm_to_vmem [thread:$0]  %s3, 16384, %s38, [#allocation6], 512, 512, 32
    $region17: #{forward.1} parent=1 // pred_fallthru
      _
    // Predicated region
    $region18: #{forward.1} parent=1 // pred_check
      _
    $region19: #{forward.1} parent=1 // pred_check_branch
      %45 = sbr.rel (0) target = $region21
    $region20: #{forward.1} parent=1 // pred_region
      _
    $region21: #{forward.1} parent=1 // pred_fallthru
      _
    // Predicated region
    $region22: #{forward.1} parent=1 // pred_check
      _
    $region23: #{forward.1} parent=1 // pred_check_branch
      %47 = sbr.rel (0) target = $region25
    $region24: #{forward.1} parent=1 // pred_region
      _
    $region25: #{forward.1} parent=1 // pred_fallthru
      _
    // Predicated region
    $region26: #{forward.1} parent=1 // pred_check
      _
    $region27: #{forward.1} parent=1 // pred_check_branch
      %49 = sbr.rel (0) target = $region29
    $region28: #{forward.1} parent=1 // pred_region
      %50 = dma.done [#allocation4], 8192
    $region29: #{forward.1} parent=1 // pred_fallthru
      _
    // Predicated region
    $region30: #{forward.1} parent=1 // pred_check
      _
    $region31: #{forward.1} parent=1 // pred_check_branch
      %52 = sbr.rel (0) target = $region33
    $region32: #{forward.1} parent=1 // pred_region
      %53 = dma.done [#allocation6], 16384
    $region33: #{forward.1} parent=1 // pred_fallthru
      _
    %v55 = vld [vmem:[%s0] sm:$0xff]
    %v56 = vld [vmem:[%s0 + $0x8] sm:$0xff]
    %v57 = vld [vmem:[%s0 + $0x10] sm:$0xff]
    %v58 = vld [vmem:[%s0 + $0x18] sm:$0xff]
    %v59 = vld [vmem:[%s0 + $0x20] sm:$0xff]
    %v60 = vld [vmem:[%s0 + $0x28] sm:$0xff]
    %v61 = vld [vmem:[%s0 + $0x30] sm:$0xff]
    %v62 = vld [vmem:[%s0 + $0x38] sm:$0xff]
    %v63 = vpack.c.bf16 %v56, %v55
    %v64 = vpack.c.bf16 %v58, %v57
    %v65 = vpack.c.bf16 %v60, %v59
    %v66 = vpack.c.bf16 %v62, %v61
    %v67 = vld [vmem:[#allocation3] sm:$0xff]
    %v68 = vld [vmem:[#allocation3 + $0x8] sm:$0xff]
    %v69 = vld [vmem:[#allocation3 + $0x10] sm:$0xff]
    %v70 = vld [vmem:[#allocation3 + $0x18] sm:$0xff]
    %v71 = vld [vmem:[#allocation3 + $0x20] sm:$0xff]
    %v72 = vld [vmem:[#allocation3 + $0x28] sm:$0xff]
    %v73 = vld [vmem:[#allocation3 + $0x30] sm:$0xff]
    %v74 = vld [vmem:[#allocation3 + $0x38] sm:$0xff]
    %v75 = vld [vmem:[#allocation3 + $0x40] sm:$0xff]
    %v76 = vld [vmem:[#allocation3 + $0x48] sm:$0xff]
    %v77 = vld [vmem:[#allocation3 + $0x50] sm:$0xff]
    %v78 = vld [vmem:[#allocation3 + $0x58] sm:$0xff]
    %v79 = vld [vmem:[#allocation3 + $0x60] sm:$0xff]
    %v80 = vld [vmem:[#allocation3 + $0x68] sm:$0xff]
    %v81 = vld [vmem:[#allocation3 + $0x70] sm:$0xff]
    %v82 = vld [vmem:[#allocation3 + $0x78] sm:$0xff]
    %v83 = vld [vmem:[#allocation3 + $0x80] sm:$0xff]
    %v84 = vld [vmem:[#allocation3 + $0x88] sm:$0xff]
    %v85 = vld [vmem:[#allocation3 + $0x90] sm:$0xff]
    %v86 = vld [vmem:[#allocation3 + $0x98] sm:$0xff]
    %v87 = vld [vmem:[#allocation3 + $0xa0] sm:$0xff]
    %v88 = vld [vmem:[#allocation3 + $0xa8] sm:$0xff]
    %v89 = vld [vmem:[#allocation3 + $0xb0] sm:$0xff]
    %v90 = vld [vmem:[#allocation3 + $0xb8] sm:$0xff]
    %v91 = vld [vmem:[#allocation3 + $0xc0] sm:$0xff]
    %v92 = vld [vmem:[#allocation3 + $0xc8] sm:$0xff]
    %v93 = vld [vmem:[#allocation3 + $0xd0] sm:$0xff]
    %v94 = vld [vmem:[#allocation3 + $0xd8] sm:$0xff]
    %v95 = vld [vmem:[#allocation3 + $0xe0] sm:$0xff]
    %v96 = vld [vmem:[#allocation3 + $0xe8] sm:$0xff]
    %v97 = vld [vmem:[#allocation3 + $0xf0] sm:$0xff]
    %v98 = vld [vmem:[#allocation3 + $0xf8] sm:$0xff]
    %v99 = vld [vmem:[#allocation3 + $0x100] sm:$0xff]
    %v100 = vld [vmem:[#allocation3 + $0x108] sm:$0xff]
    %v101 = vld [vmem:[#allocation3 + $0x110] sm:$0xff]
    %v102 = vld [vmem:[#allocation3 + $0x118] sm:$0xff]
    %v103 = vld [vmem:[#allocation3 + $0x120] sm:$0xff]
    %v104 = vld [vmem:[#allocation3 + $0x128] sm:$0xff]
    %v105 = vld [vmem:[#allocation3 + $0x130] sm:$0xff]
    %v106 = vld [vmem:[#allocation3 + $0x138] sm:$0xff]
    %v107 = vld [vmem:[#allocation3 + $0x140] sm:$0xff]
    %v108 = vld [vmem:[#allocation3 + $0x148] sm:$0xff]
    %v109 = vld [vmem:[#allocation3 + $0x150] sm:$0xff]
    %v110 = vld [vmem:[#allocation3 + $0x158] sm:$0xff]
    %v111 = vld [vmem:[#allocation3 + $0x160] sm:$0xff]
    %v112 = vld [vmem:[#allocation3 + $0x168] sm:$0xff]
    %v113 = vld [vmem:[#allocation3 + $0x170] sm:$0xff]
    %v114 = vld [vmem:[#allocation3 + $0x178] sm:$0xff]
    %v115 = vld [vmem:[#allocation3 + $0x180] sm:$0xff]
    %v116 = vld [vmem:[#allocation3 + $0x188] sm:$0xff]
    %v117 = vld [vmem:[#allocation3 + $0x190] sm:$0xff]
    %v118 = vld [vmem:[#allocation3 + $0x198] sm:$0xff]
    %v119 = vld [vmem:[#allocation3 + $0x1a0] sm:$0xff]
    %v120 = vld [vmem:[#allocation3 + $0x1a8] sm:$0xff]
    %v121 = vld [vmem:[#allocation3 + $0x1b0] sm:$0xff]
    %v122 = vld [vmem:[#allocation3 + $0x1b8] sm:$0xff]
    %v123 = vld [vmem:[#allocation3 + $0x1c0] sm:$0xff]
    %v124 = vld [vmem:[#allocation3 + $0x1c8] sm:$0xff]
    %v125 = vld [vmem:[#allocation3 + $0x1d0] sm:$0xff]
    %v126 = vld [vmem:[#allocation3 + $0x1d8] sm:$0xff]
    %v127 = vld [vmem:[#allocation3 + $0x1e0] sm:$0xff]
    %v128 = vld [vmem:[#allocation3 + $0x1e8] sm:$0xff]
    %v129 = vld [vmem:[#allocation3 + $0x1f0] sm:$0xff]
    %v130 = vld [vmem:[#allocation3 + $0x1f8] sm:$0xff]
    %v131 = vld [vmem:[%s2] sm:$0xff]
    %v133 = vlaneseq
    %v134 = vshrl.u32 %v133, 7
    %v135 = vsub.s32 0, %v134
    %v136 = vrot.slane %v131, %v135
    %v137 = vlaneseq
    %v138 = vshrl.u32 %v137, 7
    %v139 = vsub.s32 1, %v138
    %v140 = vrot.slane %v131, %v139
    %v141 = vlaneseq
    %v142 = vshrl.u32 %v141, 7
    %v143 = vsub.s32 2, %v142
    %v144 = vrot.slane %v131, %v143
    %v145 = vlaneseq
    %v146 = vshrl.u32 %v145, 7
    %v147 = vsub.s32 3, %v146
    %v148 = vrot.slane %v131, %v147
    %v149 = vlaneseq
    %v150 = vshrl.u32 %v149, 7
    %v151 = vsub.s32 4, %v150
    %v152 = vrot.slane %v131, %v151
    %v153 = vlaneseq
    %v154 = vshrl.u32 %v153, 7
    %v155 = vsub.s32 5, %v154
    %v156 = vrot.slane %v131, %v155
    %v157 = vlaneseq
    %v158 = vshrl.u32 %v157, 7
    %v159 = vsub.s32 6, %v158
    %v160 = vrot.slane %v131, %v159
    %v161 = vlaneseq
    %v162 = vshrl.u32 %v161, 7
    %v163 = vsub.s32 7, %v162
    %v164 = vrot.slane %v131, %v163
    %v237 = vunpack.c.l.b16 %v67
    %v238 = vunpack.c.h.b16 %v67
    %v239 = vunpack.c.l.b16 %v68
    %v240 = vunpack.c.h.b16 %v68
    %v241 = vunpack.c.l.b16 %v69
    %v242 = vunpack.c.h.b16 %v69
    %v243 = vunpack.c.l.b16 %v70
    %v244 = vunpack.c.h.b16 %v70
    %v245 = vunpack.c.l.b16 %v71
    %v246 = vunpack.c.h.b16 %v71
    %v247 = vunpack.c.l.b16 %v72
    %v248 = vunpack.c.h.b16 %v72
    %v249 = vunpack.c.l.b16 %v73
    %v250 = vunpack.c.h.b16 %v73
    %v251 = vunpack.c.l.b16 %v74
    %v252 = vunpack.c.h.b16 %v74
    %v253 = vunpack.c.l.b16 %v75
    %v254 = vunpack.c.h.b16 %v75
    %v255 = vunpack.c.l.b16 %v76
    %v256 = vunpack.c.h.b16 %v76
    %v257 = vunpack.c.l.b16 %v77
    %v258 = vunpack.c.h.b16 %v77
    %v259 = vunpack.c.l.b16 %v78
    %v260 = vunpack.c.h.b16 %v78
    %v261 = vunpack.c.l.b16 %v79
    %v262 = vunpack.c.h.b16 %v79
    %v263 = vunpack.c.l.b16 %v80
    %v264 = vunpack.c.h.b16 %v80
    %v265 = vunpack.c.l.b16 %v81
    %v266 = vunpack.c.h.b16 %v81
    %v267 = vunpack.c.l.b16 %v82
    %v268 = vunpack.c.h.b16 %v82
    %v269 = vunpack.c.l.b16 %v83
    %v270 = vunpack.c.h.b16 %v83
    %v271 = vunpack.c.l.b16 %v84
    %v272 = vunpack.c.h.b16 %v84
    %v273 = vunpack.c.l.b16 %v85
    %v274 = vunpack.c.h.b16 %v85
    %v275 = vunpack.c.l.b16 %v86
    %v276 = vunpack.c.h.b16 %v86
    %v277 = vunpack.c.l.b16 %v87
    %v278 = vunpack.c.h.b16 %v87
    %v279 = vunpack.c.l.b16 %v88
    %v280 = vunpack.c.h.b16 %v88
    %v281 = vunpack.c.l.b16 %v89
    %v282 = vunpack.c.h.b16 %v89
    %v283 = vunpack.c.l.b16 %v90
    %v284 = vunpack.c.h.b16 %v90
    %v285 = vunpack.c.l.b16 %v91
    %v286 = vunpack.c.h.b16 %v91
    %v287 = vunpack.c.l.b16 %v92
    %v288 = vunpack.c.h.b16 %v92
    %v289 = vunpack.c.l.b16 %v93
    %v290 = vunpack.c.h.b16 %v93
    %v291 = vunpack.c.l.b16 %v94
    %v292 = vunpack.c.h.b16 %v94
    %v293 = vunpack.c.l.b16 %v95
    %v294 = vunpack.c.h.b16 %v95
    %v295 = vunpack.c.l.b16 %v96
    %v296 = vunpack.c.h.b16 %v96
    %v297 = vunpack.c.l.b16 %v97
    %v298 = vunpack.c.h.b16 %v97
    %v299 = vunpack.c.l.b16 %v98
    %v300 = vunpack.c.h.b16 %v98
    %v301 = vunpack.c.l.b16 %v99
    %v302 = vunpack.c.h.b16 %v99
    %v303 = vunpack.c.l.b16 %v100
    %v304 = vunpack.c.h.b16 %v100
    %v305 = vunpack.c.l.b16 %v101
    %v306 = vunpack.c.h.b16 %v101
    %v307 = vunpack.c.l.b16 %v102
    %v308 = vunpack.c.h.b16 %v102
    %v309 = vunpack.c.l.b16 %v103
    %v310 = vunpack.c.h.b16 %v103
    %v311 = vunpack.c.l.b16 %v104
    %v312 = vunpack.c.h.b16 %v104
    %v313 = vunpack.c.l.b16 %v105
    %v314 = vunpack.c.h.b16 %v105
    %v315 = vunpack.c.l.b16 %v106
    %v316 = vunpack.c.h.b16 %v106
    %v317 = vunpack.c.l.b16 %v107
    %v318 = vunpack.c.h.b16 %v107
    %v319 = vunpack.c.l.b16 %v108
    %v320 = vunpack.c.h.b16 %v108
    %v321 = vunpack.c.l.b16 %v109
    %v322 = vunpack.c.h.b16 %v109
    %v323 = vunpack.c.l.b16 %v110
    %v324 = vunpack.c.h.b16 %v110
    %v325 = vunpack.c.l.b16 %v111
    %v326 = vunpack.c.h.b16 %v111
    %v327 = vunpack.c.l.b16 %v112
    %v328 = vunpack.c.h.b16 %v112
    %v329 = vunpack.c.l.b16 %v113
    %v330 = vunpack.c.h.b16 %v113
    %v331 = vunpack.c.l.b16 %v114
    %v332 = vunpack.c.h.b16 %v114
    %v333 = vunpack.c.l.b16 %v115
    %v334 = vunpack.c.h.b16 %v115
    %v335 = vunpack.c.l.b16 %v116
    %v336 = vunpack.c.h.b16 %v116
    %v337 = vunpack.c.l.b16 %v117
    %v338 = vunpack.c.h.b16 %v117
    %v339 = vunpack.c.l.b16 %v118
    %v340 = vunpack.c.h.b16 %v118
    %v341 = vunpack.c.l.b16 %v119
    %v342 = vunpack.c.h.b16 %v119
    %v343 = vunpack.c.l.b16 %v120
    %v344 = vunpack.c.h.b16 %v120
    %v345 = vunpack.c.l.b16 %v121
    %v346 = vunpack.c.h.b16 %v121
    %v347 = vunpack.c.l.b16 %v122
    %v348 = vunpack.c.h.b16 %v122
    %v349 = vunpack.c.l.b16 %v123
    %v350 = vunpack.c.h.b16 %v123
    %v351 = vunpack.c.l.b16 %v124
    %v352 = vunpack.c.h.b16 %v124
    %v353 = vunpack.c.l.b16 %v125
    %v354 = vunpack.c.h.b16 %v125
    %v355 = vunpack.c.l.b16 %v126
    %v356 = vunpack.c.h.b16 %v126
    %v357 = vunpack.c.l.b16 %v127
    %v358 = vunpack.c.h.b16 %v127
    %v359 = vunpack.c.l.b16 %v128
    %v360 = vunpack.c.h.b16 %v128
    %v361 = vunpack.c.l.b16 %v129
    %v362 = vunpack.c.h.b16 %v129
    %v363 = vunpack.c.l.b16 %v130
    %v364 = vunpack.c.h.b16 %v130
    %v365 = vpack.c.b16 %v245, %v237
    %v366 = vpack.c.b16 %v246, %v238
    %v367 = vpack.c.b16 %v247, %v239
    %v368 = vpack.c.b16 %v248, %v240
    %v369 = vpack.c.b16 %v249, %v241
    %v370 = vpack.c.b16 %v250, %v242
    %v371 = vpack.c.b16 %v251, %v243
    %v372 = vpack.c.b16 %v252, %v244
    %v373 = vpack.c.b16 %v261, %v253
    %v374 = vpack.c.b16 %v262, %v254
    %v375 = vpack.c.b16 %v263, %v255
    %v376 = vpack.c.b16 %v264, %v256
    %v377 = vpack.c.b16 %v265, %v257
    %v378 = vpack.c.b16 %v266, %v258
    %v379 = vpack.c.b16 %v267, %v259
    %v380 = vpack.c.b16 %v268, %v260
    %v381 = vpack.c.b16 %v277, %v269
    %v382 = vpack.c.b16 %v278, %v270
    %v383 = vpack.c.b16 %v279, %v271
    %v384 = vpack.c.b16 %v280, %v272
    %v385 = vpack.c.b16 %v281, %v273
    %v386 = vpack.c.b16 %v282, %v274
    %v387 = vpack.c.b16 %v283, %v275
    %v388 = vpack.c.b16 %v284, %v276
    %v389 = vpack.c.b16 %v293, %v285
    %v390 = vpack.c.b16 %v294, %v286
    %v391 = vpack.c.b16 %v295, %v287
    %v392 = vpack.c.b16 %v296, %v288
    %v393 = vpack.c.b16 %v297, %v289
    %v394 = vpack.c.b16 %v298, %v290
    %v395 = vpack.c.b16 %v299, %v291
    %v396 = vpack.c.b16 %v300, %v292
    %v397 = vpack.c.b16 %v309, %v301
    %v398 = vpack.c.b16 %v310, %v302
    %v399 = vpack.c.b16 %v311, %v303
    %v400 = vpack.c.b16 %v312, %v304
    %v401 = vpack.c.b16 %v313, %v305
    %v402 = vpack.c.b16 %v314, %v306
    %v403 = vpack.c.b16 %v315, %v307
    %v404 = vpack.c.b16 %v316, %v308
    %v405 = vpack.c.b16 %v325, %v317
    %v406 = vpack.c.b16 %v326, %v318
    %v407 = vpack.c.b16 %v327, %v319
    %v408 = vpack.c.b16 %v328, %v320
    %v409 = vpack.c.b16 %v329, %v321
    %v410 = vpack.c.b16 %v330, %v322
    %v411 = vpack.c.b16 %v331, %v323
    %v412 = vpack.c.b16 %v332, %v324
    %v413 = vpack.c.b16 %v341, %v333
    %v414 = vpack.c.b16 %v342, %v334
    %v415 = vpack.c.b16 %v343, %v335
    %v416 = vpack.c.b16 %v344, %v336
    %v417 = vpack.c.b16 %v345, %v337
    %v418 = vpack.c.b16 %v346, %v338
    %v419 = vpack.c.b16 %v347, %v339
    %v420 = vpack.c.b16 %v348, %v340
    %v421 = vpack.c.b16 %v357, %v349
    %v422 = vpack.c.b16 %v358, %v350
    %v423 = vpack.c.b16 %v359, %v351
    %v424 = vpack.c.b16 %v360, %v352
    %v425 = vpack.c.b16 %v361, %v353
    %v426 = vpack.c.b16 %v362, %v354
    %v427 = vpack.c.b16 %v363, %v355
    %v428 = vpack.c.b16 %v364, %v356
    %493 = vmatprep.subr.bf16.mxu0 %v422
    %494 = vmatpush1.bf16.msra.mxu0 %v421
    %495 = vmatprep.subr.bf16.mxu0 %v414
    %496 = vmatpush1.bf16.msra.mxu0 %v413
    %497 = vmatprep.subr.bf16.mxu0 %v406
    %498 = vmatpush1.bf16.msra.mxu0 %v405
    %499 = vmatprep.subr.bf16.mxu0 %v398
    %500 = vmatpush1.bf16.msra.mxu0 %v397
    %501 = vmatprep.subr.bf16.mxu0 %v390
    %502 = vmatpush1.bf16.msra.mxu0 %v389
    %503 = vmatprep.subr.bf16.mxu0 %v382
    %504 = vmatpush1.bf16.msra.mxu0 %v381
    %505 = vmatprep.subr.bf16.mxu0 %v374
    %506 = vmatpush1.bf16.msra.mxu0 %v373
    %507 = vmatprep.subr.bf16.mxu0 %v366
    %508 = vmatpush1.bf16.msra.mxu0 %v365
    %509 = vmatprep.subr.bf16.mxu0 0
    %510 = vmatpush2.bf16.msra.mxu0 0
    %511 = vmatprep.subr.bf16.mxu0 0
    %512 = vmatpush2.bf16.msra.mxu0 0
    %513 = vmatprep.subr.bf16.mxu0 0
    %514 = vmatpush2.bf16.msra.mxu0 0
    %515 = vmatprep.subr.bf16.mxu0 0
    %516 = vmatpush2.bf16.msra.mxu0 0
    %517 = vmatprep.subr.bf16.mxu0 0
    %518 = vmatpush2.bf16.msra.mxu0 0
    %519 = vmatprep.subr.bf16.mxu0 0
    %520 = vmatpush2.bf16.msra.mxu0 0
    %521 = vmatprep.subr.bf16.mxu0 0
    %522 = vmatpush2.bf16.msra.mxu0 0
    %523 = vmatprep.subr.bf16.mxu0 0
    %524 = vmatpush2.bf16.msra.mxu0 0
    %525 = vmatprep.mubr.bf16.mxu0 0
    %526 = vmatmul.mubr.bf16.gmra.mxu0 %v63
    %v527 = vpop.f32.mrf.mxu0
    %v528 = vadd.f32 %v136, %v527
    %v529 = vpop.f32.mrf.mxu0
    %v530 = vadd.f32 %v140, %v529
    %v531 = vpop.f32.mrf.mxu0
    %v532 = vadd.f32 %v136, %v531
    %v533 = vpop.f32.mrf.mxu0
    %v534 = vadd.f32 %v140, %v533
    %535 = vmatprep.mubr.bf16.mxu0 0
    %536 = vmatmul.mubr.bf16.gmra.mxu0 %v64
    %v537 = vpop.f32.mrf.mxu0
    %v538 = vadd.f32 %v136, %v537
    %v539 = vpop.f32.mrf.mxu0
    %v540 = vadd.f32 %v140, %v539
    %v541 = vpop.f32.mrf.mxu0
    %v542 = vadd.f32 %v136, %v541
    %v543 = vpop.f32.mrf.mxu0
    %v544 = vadd.f32 %v140, %v543
    %545 = vmatprep.mubr.bf16.mxu0 0
    %546 = vmatmul.mubr.bf16.gmra.mxu0 %v65
    %v547 = vpop.f32.mrf.mxu0
    %v548 = vadd.f32 %v136, %v547
    %v549 = vpop.f32.mrf.mxu0
    %v550 = vadd.f32 %v140, %v549
    %v551 = vpop.f32.mrf.mxu0
    %v552 = vadd.f32 %v136, %v551
    %v553 = vpop.f32.mrf.mxu0
    %v554 = vadd.f32 %v140, %v553
    %555 = vmatprep.mubr.bf16.mxu0 0
    %556 = vmatmul.mubr.bf16.gmra.mxu0 %v66
    %v557 = vpop.f32.mrf.mxu0
    %v558 = vadd.f32 %v136, %v557
    %v559 = vpop.f32.mrf.mxu0
    %v560 = vadd.f32 %v140, %v559
    %v561 = vpop.f32.mrf.mxu0
    %v562 = vadd.f32 %v136, %v561
    %v563 = vpop.f32.mrf.mxu0
    %v564 = vadd.f32 %v140, %v563
    %565 = vdwg.mxu0
    %566 = vmatprep.subr.bf16.mxu0 %v424
    %567 = vmatpush1.bf16.msra.mxu0 %v423
    %568 = vmatprep.subr.bf16.mxu0 %v416
    %569 = vmatpush1.bf16.msra.mxu0 %v415
    %570 = vmatprep.subr.bf16.mxu0 %v408
    %571 = vmatpush1.bf16.msra.mxu0 %v407
    %572 = vmatprep.subr.bf16.mxu0 %v400
    %573 = vmatpush1.bf16.msra.mxu0 %v399
    %574 = vmatprep.subr.bf16.mxu0 %v392
    %575 = vmatpush1.bf16.msra.mxu0 %v391
    %576 = vmatprep.subr.bf16.mxu0 %v384
    %577 = vmatpush1.bf16.msra.mxu0 %v383
    %578 = vmatprep.subr.bf16.mxu0 %v376
    %579 = vmatpush1.bf16.msra.mxu0 %v375
    %580 = vmatprep.subr.bf16.mxu0 %v368
    %581 = vmatpush1.bf16.msra.mxu0 %v367
    %582 = vmatprep.subr.bf16.mxu0 0
    %583 = vmatpush2.bf16.msra.mxu0 0
    %584 = vmatprep.subr.bf16.mxu0 0
    %585 = vmatpush2.bf16.msra.mxu0 0
    %586 = vmatprep.subr.bf16.mxu0 0
    %587 = vmatpush2.bf16.msra.mxu0 0
    %588 = vmatprep.subr.bf16.mxu0 0
    %589 = vmatpush2.bf16.msra.mxu0 0
    %590 = vmatprep.subr.bf16.mxu0 0
    %591 = vmatpush2.bf16.msra.mxu0 0
    %592 = vmatprep.subr.bf16.mxu0 0
    %593 = vmatpush2.bf16.msra.mxu0 0
    %594 = vmatprep.subr.bf16.mxu0 0
    %595 = vmatpush2.bf16.msra.mxu0 0
    %596 = vmatprep.subr.bf16.mxu0 0
    %597 = vmatpush2.bf16.msra.mxu0 0
    %598 = vmatprep.mubr.bf16.mxu0 0
    %599 = vmatmul.mubr.bf16.gmra.mxu0 %v63
    %v600 = vpop.f32.mrf.mxu0
    %v601 = vadd.f32 %v144, %v600
    %v602 = vpop.f32.mrf.mxu0
    %v603 = vadd.f32 %v148, %v602
    %v604 = vpop.f32.mrf.mxu0
    %v605 = vadd.f32 %v144, %v604
    %v606 = vpop.f32.mrf.mxu0
    %v607 = vadd.f32 %v148, %v606
    %608 = vmatprep.mubr.bf16.mxu0 0
    %609 = vmatmul.mubr.bf16.gmra.mxu0 %v64
    %v610 = vpop.f32.mrf.mxu0
    %v611 = vadd.f32 %v144, %v610
    %v612 = vpop.f32.mrf.mxu0
    %v613 = vadd.f32 %v148, %v612
    %v614 = vpop.f32.mrf.mxu0
    %v615 = vadd.f32 %v144, %v614
    %v616 = vpop.f32.mrf.mxu0
    %v617 = vadd.f32 %v148, %v616
    %618 = vmatprep.mubr.bf16.mxu0 0
    %619 = vmatmul.mubr.bf16.gmra.mxu0 %v65
    %v620 = vpop.f32.mrf.mxu0
    %v621 = vadd.f32 %v144, %v620
    %v622 = vpop.f32.mrf.mxu0
    %v623 = vadd.f32 %v148, %v622
    %v624 = vpop.f32.mrf.mxu0
    %v625 = vadd.f32 %v144, %v624
    %v626 = vpop.f32.mrf.mxu0
    %v627 = vadd.f32 %v148, %v626
    %628 = vmatprep.mubr.bf16.mxu0 0
    %629 = vmatmul.mubr.bf16.gmra.mxu0 %v66
    %v630 = vpop.f32.mrf.mxu0
    %v631 = vadd.f32 %v144, %v630
    %v632 = vpop.f32.mrf.mxu0
    %v633 = vadd.f32 %v148, %v632
    %v634 = vpop.f32.mrf.mxu0
    %v635 = vadd.f32 %v144, %v634
    %v636 = vpop.f32.mrf.mxu0
    %v637 = vadd.f32 %v148, %v636
    %638 = vdwg.mxu0
    %639 = vmatprep.subr.bf16.mxu0 %v426
    %640 = vmatpush1.bf16.msra.mxu0 %v425
    %641 = vmatprep.subr.bf16.mxu0 %v418
    %642 = vmatpush1.bf16.msra.mxu0 %v417
    %643 = vmatprep.subr.bf16.mxu0 %v410
    %644 = vmatpush1.bf16.msra.mxu0 %v409
    %645 = vmatprep.subr.bf16.mxu0 %v402
    %646 = vmatpush1.bf16.msra.mxu0 %v401
    %647 = vmatprep.subr.bf16.mxu0 %v394
    %648 = vmatpush1.bf16.msra.mxu0 %v393
    %649 = vmatprep.subr.bf16.mxu0 %v386
    %650 = vmatpush1.bf16.msra.mxu0 %v385
    %651 = vmatprep.subr.bf16.mxu0 %v378
    %652 = vmatpush1.bf16.msra.mxu0 %v377
    %653 = vmatprep.subr.bf16.mxu0 %v370
    %654 = vmatpush1.bf16.msra.mxu0 %v369
    %655 = vmatprep.subr.bf16.mxu0 0
    %656 = vmatpush2.bf16.msra.mxu0 0
    %657 = vmatprep.subr.bf16.mxu0 0
    %658 = vmatpush2.bf16.msra.mxu0 0
    %659 = vmatprep.subr.bf16.mxu0 0
    %660 = vmatpush2.bf16.msra.mxu0 0
    %661 = vmatprep.subr.bf16.mxu0 0
    %662 = vmatpush2.bf16.msra.mxu0 0
    %663 = vmatprep.subr.bf16.mxu0 0
    %664 = vmatpush2.bf16.msra.mxu0 0
    %665 = vmatprep.subr.bf16.mxu0 0
    %666 = vmatpush2.bf16.msra.mxu0 0
    %667 = vmatprep.subr.bf16.mxu0 0
    %668 = vmatpush2.bf16.msra.mxu0 0
    %669 = vmatprep.subr.bf16.mxu0 0
    %670 = vmatpush2.bf16.msra.mxu0 0
    %671 = vmatprep.mubr.bf16.mxu0 0
    %672 = vmatmul.mubr.bf16.gmra.mxu0 %v63
    %v673 = vpop.f32.mrf.mxu0
    %v674 = vadd.f32 %v152, %v673
    %v675 = vpop.f32.mrf.mxu0
    %v676 = vadd.f32 %v156, %v675
    %v677 = vpop.f32.mrf.mxu0
    %v678 = vadd.f32 %v152, %v677
    %v679 = vpop.f32.mrf.mxu0
    %v680 = vadd.f32 %v156, %v679
    %681 = vmatprep.mubr.bf16.mxu0 0
    %682 = vmatmul.mubr.bf16.gmra.mxu0 %v64
    %v683 = vpop.f32.mrf.mxu0
    %v684 = vadd.f32 %v152, %v683
    %v685 = vpop.f32.mrf.mxu0
    %v686 = vadd.f32 %v156, %v685
    %v687 = vpop.f32.mrf.mxu0
    %v688 = vadd.f32 %v152, %v687
    %v689 = vpop.f32.mrf.mxu0
    %v690 = vadd.f32 %v156, %v689
    %691 = vmatprep.mubr.bf16.mxu0 0
    %692 = vmatmul.mubr.bf16.gmra.mxu0 %v65
    %v693 = vpop.f32.mrf.mxu0
    %v694 = vadd.f32 %v152, %v693
    %v695 = vpop.f32.mrf.mxu0
    %v696 = vadd.f32 %v156, %v695
    %v697 = vpop.f32.mrf.mxu0
    %v698 = vadd.f32 %v152, %v697
    %v699 = vpop.f32.mrf.mxu0
    %v700 = vadd.f32 %v156, %v699
    %701 = vmatprep.mubr.bf16.mxu0 0
    %702 = vmatmul.mubr.bf16.gmra.mxu0 %v66
    %v703 = vpop.f32.mrf.mxu0
    %v704 = vadd.f32 %v152, %v703
    %v705 = vpop.f32.mrf.mxu0
    %v706 = vadd.f32 %v156, %v705
    %v707 = vpop.f32.mrf.mxu0
    %v708 = vadd.f32 %v152, %v707
    %v709 = vpop.f32.mrf.mxu0
    %v710 = vadd.f32 %v156, %v709
    %711 = vdwg.mxu0
    %712 = vmatprep.subr.bf16.mxu0 %v428
    %713 = vmatpush1.bf16.msra.mxu0 %v427
    %714 = vmatprep.subr.bf16.mxu0 %v420
    %715 = vmatpush1.bf16.msra.mxu0 %v419
    %716 = vmatprep.subr.bf16.mxu0 %v412
    %717 = vmatpush1.bf16.msra.mxu0 %v411
    %718 = vmatprep.subr.bf16.mxu0 %v404
    %719 = vmatpush1.bf16.msra.mxu0 %v403
    %720 = vmatprep.subr.bf16.mxu0 %v396
    %721 = vmatpush1.bf16.msra.mxu0 %v395
    %722 = vmatprep.subr.bf16.mxu0 %v388
    %723 = vmatpush1.bf16.msra.mxu0 %v387
    %724 = vmatprep.subr.bf16.mxu0 %v380
    %725 = vmatpush1.bf16.msra.mxu0 %v379
    %726 = vmatprep.subr.bf16.mxu0 %v372
    %727 = vmatpush1.bf16.msra.mxu0 %v371
    %728 = vmatprep.subr.bf16.mxu0 0
    %729 = vmatpush2.bf16.msra.mxu0 0
    %730 = vmatprep.subr.bf16.mxu0 0
    %731 = vmatpush2.bf16.msra.mxu0 0
    %732 = vmatprep.subr.bf16.mxu0 0
    %733 = vmatpush2.bf16.msra.mxu0 0
    %734 = vmatprep.subr.bf16.mxu0 0
    %735 = vmatpush2.bf16.msra.mxu0 0
    %736 = vmatprep.subr.bf16.mxu0 0
    %737 = vmatpush2.bf16.msra.mxu0 0
    %738 = vmatprep.subr.bf16.mxu0 0
    %739 = vmatpush2.bf16.msra.mxu0 0
    %740 = vmatprep.subr.bf16.mxu0 0
    %741 = vmatpush2.bf16.msra.mxu0 0
    %742 = vmatprep.subr.bf16.mxu0 0
    %743 = vmatpush2.bf16.msra.mxu0 0
    %744 = vmatprep.mubr.bf16.mxu0 0
    %745 = vmatmul.mubr.bf16.gmra.mxu0 %v63
    %v746 = vpop.f32.mrf.mxu0
    %v747 = vadd.f32 %v160, %v746
    %v748 = vpop.f32.mrf.mxu0
    %v749 = vadd.f32 %v164, %v748
    %v750 = vpop.f32.mrf.mxu0
    %v751 = vadd.f32 %v160, %v750
    %v752 = vpop.f32.mrf.mxu0
    %v753 = vadd.f32 %v164, %v752
    %754 = vmatprep.mubr.bf16.mxu0 0
    %755 = vmatmul.mubr.bf16.gmra.mxu0 %v64
    %v756 = vpop.f32.mrf.mxu0
    %v757 = vadd.f32 %v160, %v756
    %v758 = vpop.f32.mrf.mxu0
    %v759 = vadd.f32 %v164, %v758
    %v760 = vpop.f32.mrf.mxu0
    %v761 = vadd.f32 %v160, %v760
    %v762 = vpop.f32.mrf.mxu0
    %v763 = vadd.f32 %v164, %v762
    %764 = vmatprep.mubr.bf16.mxu0 0
    %765 = vmatmul.mubr.bf16.gmra.mxu0 %v65
    %v766 = vpop.f32.mrf.mxu0
    %v767 = vadd.f32 %v160, %v766
    %v768 = vpop.f32.mrf.mxu0
    %v769 = vadd.f32 %v164, %v768
    %v770 = vpop.f32.mrf.mxu0
    %v771 = vadd.f32 %v160, %v770
    %v772 = vpop.f32.mrf.mxu0
    %v773 = vadd.f32 %v164, %v772
    %774 = vmatprep.mubr.bf16.mxu0 0
    %775 = vmatmul.mubr.bf16.gmra.mxu0 %v66
    %v776 = vpop.f32.mrf.mxu0
    %v777 = vadd.f32 %v160, %v776
    %v778 = vpop.f32.mrf.mxu0
    %v779 = vadd.f32 %v164, %v778
    %v780 = vpop.f32.mrf.mxu0
    %v781 = vadd.f32 %v160, %v780
    %v782 = vpop.f32.mrf.mxu0
    %v783 = vadd.f32 %v164, %v782
    %784 = vdwg.mxu0
    %785 = vst [vmem:[#allocation2] sm:$0xff] %v528
    %786 = vst [vmem:[#allocation2 + $0x8] sm:$0xff] %v530
    %787 = vst [vmem:[#allocation2 + $0x10] sm:$0xff] %v601
    %788 = vst [vmem:[#allocation2 + $0x18] sm:$0xff] %v603
    %789 = vst [vmem:[#allocation2 + $0x20] sm:$0xff] %v674
    %790 = vst [vmem:[#allocation2 + $0x28] sm:$0xff] %v676
    %791 = vst [vmem:[#allocation2 + $0x30] sm:$0xff] %v747
    %792 = vst [vmem:[#allocation2 + $0x38] sm:$0xff] %v749
    %793 = vst [vmem:[#allocation2 + $0x40] sm:$0xff] %v532
    %794 = vst [vmem:[#allocation2 + $0x48] sm:$0xff] %v534
    %795 = vst [vmem:[#allocation2 + $0x50] sm:$0xff] %v605
    %796 = vst [vmem:[#allocation2 + $0x58] sm:$0xff] %v607
    %797 = vst [vmem:[#allocation2 + $0x60] sm:$0xff] %v678
    %798 = vst [vmem:[#allocation2 + $0x68] sm:$0xff] %v680
    %799 = vst [vmem:[#allocation2 + $0x70] sm:$0xff] %v751
    %800 = vst [vmem:[#allocation2 + $0x78] sm:$0xff] %v753
    %801 = vst [vmem:[#allocation2 + $0x80] sm:$0xff] %v538
    %802 = vst [vmem:[#allocation2 + $0x88] sm:$0xff] %v540
    %803 = vst [vmem:[#allocation2 + $0x90] sm:$0xff] %v611
    %804 = vst [vmem:[#allocation2 + $0x98] sm:$0xff] %v613
    %805 = vst [vmem:[#allocation2 + $0xa0] sm:$0xff] %v684
    %806 = vst [vmem:[#allocation2 + $0xa8] sm:$0xff] %v686
    %807 = vst [vmem:[#allocation2 + $0xb0] sm:$0xff] %v757
    %808 = vst [vmem:[#allocation2 + $0xb8] sm:$0xff] %v759
    %809 = vst [vmem:[#allocation2 + $0xc0] sm:$0xff] %v542
    %810 = vst [vmem:[#allocation2 + $0xc8] sm:$0xff] %v544
    %811 = vst [vmem:[#allocation2 + $0xd0] sm:$0xff] %v615
    %812 = vst [vmem:[#allocation2 + $0xd8] sm:$0xff] %v617
    %813 = vst [vmem:[#allocation2 + $0xe0] sm:$0xff] %v688
    %814 = vst [vmem:[#allocation2 + $0xe8] sm:$0xff] %v690
    %815 = vst [vmem:[#allocation2 + $0xf0] sm:$0xff] %v761
    %816 = vst [vmem:[#allocation2 + $0xf8] sm:$0xff] %v763
    %817 = vst [vmem:[#allocation2 + $0x100] sm:$0xff] %v548
    %818 = vst [vmem:[#allocation2 + $0x108] sm:$0xff] %v550
    %819 = vst [vmem:[#allocation2 + $0x110] sm:$0xff] %v621
    %820 = vst [vmem:[#allocation2 + $0x118] sm:$0xff] %v623
    %821 = vst [vmem:[#allocation2 + $0x120] sm:$0xff] %v694
    %822 = vst [vmem:[#allocation2 + $0x128] sm:$0xff] %v696
    %823 = vst [vmem:[#allocation2 + $0x130] sm:$0xff] %v767
    %824 = vst [vmem:[#allocation2 + $0x138] sm:$0xff] %v769
    %825 = vst [vmem:[#allocation2 + $0x140] sm:$0xff] %v552
    %826 = vst [vmem:[#allocation2 + $0x148] sm:$0xff] %v554
    %827 = vst [vmem:[#allocation2 + $0x150] sm:$0xff] %v625
    %828 = vst [vmem:[#allocation2 + $0x158] sm:$0xff] %v627
    %829 = vst [vmem:[#allocation2 + $0x160] sm:$0xff] %v698
    %830 = vst [vmem:[#allocation2 + $0x168] sm:$0xff] %v700
    %831 = vst [vmem:[#allocation2 + $0x170] sm:$0xff] %v771
    %832 = vst [vmem:[#allocation2 + $0x178] sm:$0xff] %v773
    %833 = vst [vmem:[#allocation2 + $0x180] sm:$0xff] %v558
    %834 = vst [vmem:[#allocation2 + $0x188] sm:$0xff] %v560
    %835 = vst [vmem:[#allocation2 + $0x190] sm:$0xff] %v631
    %836 = vst [vmem:[#allocation2 + $0x198] sm:$0xff] %v633
    %837 = vst [vmem:[#allocation2 + $0x1a0] sm:$0xff] %v704
    %838 = vst [vmem:[#allocation2 + $0x1a8] sm:$0xff] %v706
    %839 = vst [vmem:[#allocation2 + $0x1b0] sm:$0xff] %v777
    %840 = vst [vmem:[#allocation2 + $0x1b8] sm:$0xff] %v779
    %841 = vst [vmem:[#allocation2 + $0x1c0] sm:$0xff] %v562
    %842 = vst [vmem:[#allocation2 + $0x1c8] sm:$0xff] %v564
    %843 = vst [vmem:[#allocation2 + $0x1d0] sm:$0xff] %v635
    %844 = vst [vmem:[#allocation2 + $0x1d8] sm:$0xff] %v637
    %845 = vst [vmem:[#allocation2 + $0x1e0] sm:$0xff] %v708
    %846 = vst [vmem:[#allocation2 + $0x1e8] sm:$0xff] %v710
    %847 = vst [vmem:[#allocation2 + $0x1f0] sm:$0xff] %v781
    %848 = vst [vmem:[#allocation2 + $0x1f8] sm:$0xff] %v783
    %v849 = vpack.c.bf16 0.0, 0.0
    %v850 = vld [vmem:[#allocation5] sm:$0xff]
    %v851 = vld [vmem:[#allocation5 + $0x8] sm:$0xff]
    %v852 = vld [vmem:[#allocation5 + $0x10] sm:$0xff]
    %v853 = vld [vmem:[#allocation5 + $0x18] sm:$0xff]
    %v854 = vld [vmem:[#allocation5 + $0x20] sm:$0xff]
    %v855 = vld [vmem:[#allocation5 + $0x28] sm:$0xff]
    %v856 = vld [vmem:[#allocation5 + $0x30] sm:$0xff]
    %v857 = vld [vmem:[#allocation5 + $0x38] sm:$0xff]
    %v858 = vld [vmem:[#allocation5 + $0x40] sm:$0xff]
    %v859 = vld [vmem:[#allocation5 + $0x48] sm:$0xff]
    %v860 = vld [vmem:[#allocation5 + $0x50] sm:$0xff]
    %v861 = vld [vmem:[#allocation5 + $0x58] sm:$0xff]
    %v862 = vld [vmem:[#allocation5 + $0x60] sm:$0xff]
    %v863 = vld [vmem:[#allocation5 + $0x68] sm:$0xff]
    %v864 = vld [vmem:[#allocation5 + $0x70] sm:$0xff]
    %v865 = vld [vmem:[#allocation5 + $0x78] sm:$0xff]
    %v866 = vld [vmem:[#allocation5 + $0x80] sm:$0xff]
    %v867 = vld [vmem:[#allocation5 + $0x88] sm:$0xff]
    %v868 = vld [vmem:[#allocation5 + $0x90] sm:$0xff]
    %v869 = vld [vmem:[#allocation5 + $0x98] sm:$0xff]
    %v870 = vld [vmem:[#allocation5 + $0xa0] sm:$0xff]
    %v871 = vld [vmem:[#allocation5 + $0xa8] sm:$0xff]
    %v872 = vld [vmem:[#allocation5 + $0xb0] sm:$0xff]
    %v873 = vld [vmem:[#allocation5 + $0xb8] sm:$0xff]
    %v874 = vld [vmem:[#allocation5 + $0xc0] sm:$0xff]
    %v875 = vld [vmem:[#allocation5 + $0xc8] sm:$0xff]
    %v876 = vld [vmem:[#allocation5 + $0xd0] sm:$0xff]
    %v877 = vld [vmem:[#allocation5 + $0xd8] sm:$0xff]
    %v878 = vld [vmem:[#allocation5 + $0xe0] sm:$0xff]
    %v879 = vld [vmem:[#allocation5 + $0xe8] sm:$0xff]
    %v880 = vld [vmem:[#allocation5 + $0xf0] sm:$0xff]
    %v881 = vld [vmem:[#allocation5 + $0xf8] sm:$0xff]
    %v882 = vld [vmem:[#allocation5 + $0x100] sm:$0xff]
    %v883 = vld [vmem:[#allocation5 + $0x108] sm:$0xff]
    %v884 = vld [vmem:[#allocation5 + $0x110] sm:$0xff]
    %v885 = vld [vmem:[#allocation5 + $0x118] sm:$0xff]
    %v886 = vld [vmem:[#allocation5 + $0x120] sm:$0xff]
    %v887 = vld [vmem:[#allocation5 + $0x128] sm:$0xff]
    %v888 = vld [vmem:[#allocation5 + $0x130] sm:$0xff]
    %v889 = vld [vmem:[#allocation5 + $0x138] sm:$0xff]
    %v890 = vld [vmem:[#allocation5 + $0x140] sm:$0xff]
    %v891 = vld [vmem:[#allocation5 + $0x148] sm:$0xff]
    %v892 = vld [vmem:[#allocation5 + $0x150] sm:$0xff]
    %v893 = vld [vmem:[#allocation5 + $0x158] sm:$0xff]
    %v894 = vld [vmem:[#allocation5 + $0x160] sm:$0xff]
    %v895 = vld [vmem:[#allocation5 + $0x168] sm:$0xff]
    %v896 = vld [vmem:[#allocation5 + $0x170] sm:$0xff]
    %v897 = vld [vmem:[#allocation5 + $0x178] sm:$0xff]
    %v898 = vld [vmem:[#allocation5 + $0x180] sm:$0xff]
    %v899 = vld [vmem:[#allocation5 + $0x188] sm:$0xff]
    %v900 = vld [vmem:[#allocation5 + $0x190] sm:$0xff]
    %v901 = vld [vmem:[#allocation5 + $0x198] sm:$0xff]
    %v902 = vld [vmem:[#allocation5 + $0x1a0] sm:$0xff]
    %v903 = vld [vmem:[#allocation5 + $0x1a8] sm:$0xff]
    %v904 = vld [vmem:[#allocation5 + $0x1b0] sm:$0xff]
    %v905 = vld [vmem:[#allocation5 + $0x1b8] sm:$0xff]
    %v906 = vld [vmem:[#allocation5 + $0x1c0] sm:$0xff]
    %v907 = vld [vmem:[#allocation5 + $0x1c8] sm:$0xff]
    %v908 = vld [vmem:[#allocation5 + $0x1d0] sm:$0xff]
    %v909 = vld [vmem:[#allocation5 + $0x1d8] sm:$0xff]
    %v910 = vld [vmem:[#allocation5 + $0x1e0] sm:$0xff]
    %v911 = vld [vmem:[#allocation5 + $0x1e8] sm:$0xff]
    %v912 = vld [vmem:[#allocation5 + $0x1f0] sm:$0xff]
    %v913 = vld [vmem:[#allocation5 + $0x1f8] sm:$0xff]
    %v914 = vld [vmem:[#allocation5 + $0x200] sm:$0xff]
    %v915 = vld [vmem:[#allocation5 + $0x208] sm:$0xff]
    %v916 = vld [vmem:[#allocation5 + $0x210] sm:$0xff]
    %v917 = vld [vmem:[#allocation5 + $0x218] sm:$0xff]
    %v918 = vld [vmem:[#allocation5 + $0x220] sm:$0xff]
    %v919 = vld [vmem:[#allocation5 + $0x228] sm:$0xff]
    %v920 = vld [vmem:[#allocation5 + $0x230] sm:$0xff]
    %v921 = vld [vmem:[#allocation5 + $0x238] sm:$0xff]
    %v922 = vld [vmem:[#allocation5 + $0x240] sm:$0xff]
    %v923 = vld [vmem:[#allocation5 + $0x248] sm:$0xff]
    %v924 = vld [vmem:[#allocation5 + $0x250] sm:$0xff]
    %v925 = vld [vmem:[#allocation5 + $0x258] sm:$0xff]
    %v926 = vld [vmem:[#allocation5 + $0x260] sm:$0xff]
    %v927 = vld [vmem:[#allocation5 + $0x268] sm:$0xff]
    %v928 = vld [vmem:[#allocation5 + $0x270] sm:$0xff]
    %v929 = vld [vmem:[#allocation5 + $0x278] sm:$0xff]
    %v930 = vld [vmem:[#allocation5 + $0x280] sm:$0xff]
    %v931 = vld [vmem:[#allocation5 + $0x288] sm:$0xff]
    %v932 = vld [vmem:[#allocation5 + $0x290] sm:$0xff]
    %v933 = vld [vmem:[#allocation5 + $0x298] sm:$0xff]
    %v934 = vld [vmem:[#allocation5 + $0x2a0] sm:$0xff]
    %v935 = vld [vmem:[#allocation5 + $0x2a8] sm:$0xff]
    %v936 = vld [vmem:[#allocation5 + $0x2b0] sm:$0xff]
    %v937 = vld [vmem:[#allocation5 + $0x2b8] sm:$0xff]
    %v938 = vld [vmem:[#allocation5 + $0x2c0] sm:$0xff]
    %v939 = vld [vmem:[#allocation5 + $0x2c8] sm:$0xff]
    %v940 = vld [vmem:[#allocation5 + $0x2d0] sm:$0xff]
    %v941 = vld [vmem:[#allocation5 + $0x2d8] sm:$0xff]
    %v942 = vld [vmem:[#allocation5 + $0x2e0] sm:$0xff]
    %v943 = vld [vmem:[#allocation5 + $0x2e8] sm:$0xff]
    %v944 = vld [vmem:[#allocation5 + $0x2f0] sm:$0xff]
    %v945 = vld [vmem:[#allocation5 + $0x2f8] sm:$0xff]
    %v946 = vld [vmem:[#allocation5 + $0x300] sm:$0xff]
    %v947 = vld [vmem:[#allocation5 + $0x308] sm:$0xff]
    %v948 = vld [vmem:[#allocation5 + $0x310] sm:$0xff]
    %v949 = vld [vmem:[#allocation5 + $0x318] sm:$0xff]
    %v950 = vld [vmem:[#allocation5 + $0x320] sm:$0xff]
    %v951 = vld [vmem:[#allocation5 + $0x328] sm:$0xff]
    %v952 = vld [vmem:[#allocation5 + $0x330] sm:$0xff]
    %v953 = vld [vmem:[#allocation5 + $0x338] sm:$0xff]
    %v954 = vld [vmem:[#allocation5 + $0x340] sm:$0xff]
    %v955 = vld [vmem:[#allocation5 + $0x348] sm:$0xff]
    %v956 = vld [vmem:[#allocation5 + $0x350] sm:$0xff]
    %v957 = vld [vmem:[#allocation5 + $0x358] sm:$0xff]
    %v958 = vld [vmem:[#allocation5 + $0x360] sm:$0xff]
    %v959 = vld [vmem:[#allocation5 + $0x368] sm:$0xff]
    %v960 = vld [vmem:[#allocation5 + $0x370] sm:$0xff]
    %v961 = vld [vmem:[#allocation5 + $0x378] sm:$0xff]
    %v962 = vld [vmem:[#allocation5 + $0x380] sm:$0xff]
    %v963 = vld [vmem:[#allocation5 + $0x388] sm:$0xff]
    %v964 = vld [vmem:[#allocation5 + $0x390] sm:$0xff]
    %v965 = vld [vmem:[#allocation5 + $0x398] sm:$0xff]
    %v966 = vld [vmem:[#allocation5 + $0x3a0] sm:$0xff]
    %v967 = vld [vmem:[#allocation5 + $0x3a8] sm:$0xff]
    %v968 = vld [vmem:[#allocation5 + $0x3b0] sm:$0xff]
    %v969 = vld [vmem:[#allocation5 + $0x3b8] sm:$0xff]
    %v970 = vld [vmem:[#allocation5 + $0x3c0] sm:$0xff]
    %v971 = vld [vmem:[#allocation5 + $0x3c8] sm:$0xff]
    %v972 = vld [vmem:[#allocation5 + $0x3d0] sm:$0xff]
    %v973 = vld [vmem:[#allocation5 + $0x3d8] sm:$0xff]
    %v974 = vld [vmem:[#allocation5 + $0x3e0] sm:$0xff]
    %v975 = vld [vmem:[#allocation5 + $0x3e8] sm:$0xff]
    %v976 = vld [vmem:[#allocation5 + $0x3f0] sm:$0xff]
    %v977 = vld [vmem:[#allocation5 + $0x3f8] sm:$0xff]
    %v1106 = vunpack.c.l.b16 %v850
    %v1107 = vunpack.c.h.b16 %v850
    %v1108 = vunpack.c.l.b16 %v851
    %v1109 = vunpack.c.h.b16 %v851
    %v1110 = vunpack.c.l.b16 %v852
    %v1111 = vunpack.c.h.b16 %v852
    %v1112 = vunpack.c.l.b16 %v853
    %v1113 = vunpack.c.h.b16 %v853
    %v1114 = vunpack.c.l.b16 %v854
    %v1115 = vunpack.c.h.b16 %v854
    %v1116 = vunpack.c.l.b16 %v855
    %v1117 = vunpack.c.h.b16 %v855
    %v1118 = vunpack.c.l.b16 %v856
    %v1119 = vunpack.c.h.b16 %v856
    %v1120 = vunpack.c.l.b16 %v857
    %v1121 = vunpack.c.h.b16 %v857
    %v1122 = vunpack.c.l.b16 %v858
    %v1123 = vunpack.c.h.b16 %v858
    %v1124 = vunpack.c.l.b16 %v859
    %v1125 = vunpack.c.h.b16 %v859
    %v1126 = vunpack.c.l.b16 %v860
    %v1127 = vunpack.c.h.b16 %v860
    %v1128 = vunpack.c.l.b16 %v861
    %v1129 = vunpack.c.h.b16 %v861
    %v1130 = vunpack.c.l.b16 %v862
    %v1131 = vunpack.c.h.b16 %v862
    %v1132 = vunpack.c.l.b16 %v863
    %v1133 = vunpack.c.h.b16 %v863
    %v1134 = vunpack.c.l.b16 %v864
    %v1135 = vunpack.c.h.b16 %v864
    %v1136 = vunpack.c.l.b16 %v865
    %v1137 = vunpack.c.h.b16 %v865
    %v1138 = vunpack.c.l.b16 %v866
    %v1139 = vunpack.c.h.b16 %v866
    %v1140 = vunpack.c.l.b16 %v867
    %v1141 = vunpack.c.h.b16 %v867
    %v1142 = vunpack.c.l.b16 %v868
    %v1143 = vunpack.c.h.b16 %v868
    %v1144 = vunpack.c.l.b16 %v869
    %v1145 = vunpack.c.h.b16 %v869
    %v1146 = vunpack.c.l.b16 %v870
    %v1147 = vunpack.c.h.b16 %v870
    %v1148 = vunpack.c.l.b16 %v871
    %v1149 = vunpack.c.h.b16 %v871
    %v1150 = vunpack.c.l.b16 %v872
    %v1151 = vunpack.c.h.b16 %v872
    %v1152 = vunpack.c.l.b16 %v873
    %v1153 = vunpack.c.h.b16 %v873
    %v1154 = vunpack.c.l.b16 %v874
    %v1155 = vunpack.c.h.b16 %v874
    %v1156 = vunpack.c.l.b16 %v875
    %v1157 = vunpack.c.h.b16 %v875
    %v1158 = vunpack.c.l.b16 %v876
    %v1159 = vunpack.c.h.b16 %v876
    %v1160 = vunpack.c.l.b16 %v877
    %v1161 = vunpack.c.h.b16 %v877
    %v1162 = vunpack.c.l.b16 %v878
    %v1163 = vunpack.c.h.b16 %v878
    %v1164 = vunpack.c.l.b16 %v879
    %v1165 = vunpack.c.h.b16 %v879
    %v1166 = vunpack.c.l.b16 %v880
    %v1167 = vunpack.c.h.b16 %v880
    %v1168 = vunpack.c.l.b16 %v881
    %v1169 = vunpack.c.h.b16 %v881
    %v1170 = vunpack.c.l.b16 %v882
    %v1171 = vunpack.c.h.b16 %v882
    %v1172 = vunpack.c.l.b16 %v883
    %v1173 = vunpack.c.h.b16 %v883
    %v1174 = vunpack.c.l.b16 %v884
    %v1175 = vunpack.c.h.b16 %v884
    %v1176 = vunpack.c.l.b16 %v885
    %v1177 = vunpack.c.h.b16 %v885
    %v1178 = vunpack.c.l.b16 %v886
    %v1179 = vunpack.c.h.b16 %v886
    %v1180 = vunpack.c.l.b16 %v887
    %v1181 = vunpack.c.h.b16 %v887
    %v1182 = vunpack.c.l.b16 %v888
    %v1183 = vunpack.c.h.b16 %v888
    %v1184 = vunpack.c.l.b16 %v889
    %v1185 = vunpack.c.h.b16 %v889
    %v1186 = vunpack.c.l.b16 %v890
    %v1187 = vunpack.c.h.b16 %v890
    %v1188 = vunpack.c.l.b16 %v891
    %v1189 = vunpack.c.h.b16 %v891
    %v1190 = vunpack.c.l.b16 %v892
    %v1191 = vunpack.c.h.b16 %v892
    %v1192 = vunpack.c.l.b16 %v893
    %v1193 = vunpack.c.h.b16 %v893
    %v1194 = vunpack.c.l.b16 %v894
    %v1195 = vunpack.c.h.b16 %v894
    %v1196 = vunpack.c.l.b16 %v895
    %v1197 = vunpack.c.h.b16 %v895
    %v1198 = vunpack.c.l.b16 %v896
    %v1199 = vunpack.c.h.b16 %v896
    %v1200 = vunpack.c.l.b16 %v897
    %v1201 = vunpack.c.h.b16 %v897
    %v1202 = vunpack.c.l.b16 %v898
    %v1203 = vunpack.c.h.b16 %v898
    %v1204 = vunpack.c.l.b16 %v899
    %v1205 = vunpack.c.h.b16 %v899
    %v1206 = vunpack.c.l.b16 %v900
    %v1207 = vunpack.c.h.b16 %v900
    %v1208 = vunpack.c.l.b16 %v901
    %v1209 = vunpack.c.h.b16 %v901
    %v1210 = vunpack.c.l.b16 %v902
    %v1211 = vunpack.c.h.b16 %v902
    %v1212 = vunpack.c.l.b16 %v903
    %v1213 = vunpack.c.h.b16 %v903
    %v1214 = vunpack.c.l.b16 %v904
    %v1215 = vunpack.c.h.b16 %v904
    %v1216 = vunpack.c.l.b16 %v905
    %v1217 = vunpack.c.h.b16 %v905
    %v1218 = vunpack.c.l.b16 %v906
    %v1219 = vunpack.c.h.b16 %v906
    %v1220 = vunpack.c.l.b16 %v907
    %v1221 = vunpack.c.h.b16 %v907
    %v1222 = vunpack.c.l.b16 %v908
    %v1223 = vunpack.c.h.b16 %v908
    %v1224 = vunpack.c.l.b16 %v909
    %v1225 = vunpack.c.h.b16 %v909
    %v1226 = vunpack.c.l.b16 %v910
    %v1227 = vunpack.c.h.b16 %v910
    %v1228 = vunpack.c.l.b16 %v911
    %v1229 = vunpack.c.h.b16 %v911
    %v1230 = vunpack.c.l.b16 %v912
    %v1231 = vunpack.c.h.b16 %v912
    %v1232 = vunpack.c.l.b16 %v913
    %v1233 = vunpack.c.h.b16 %v913
    %v1234 = vunpack.c.l.b16 %v914
    %v1235 = vunpack.c.h.b16 %v914
    %v1236 = vunpack.c.l.b16 %v915
    %v1237 = vunpack.c.h.b16 %v915
    %v1238 = vunpack.c.l.b16 %v916
    %v1239 = vunpack.c.h.b16 %v916
    %v1240 = vunpack.c.l.b16 %v917
    %v1241 = vunpack.c.h.b16 %v917
    %v1242 = vunpack.c.l.b16 %v918
    %v1243 = vunpack.c.h.b16 %v918
    %v1244 = vunpack.c.l.b16 %v919
    %v1245 = vunpack.c.h.b16 %v919
    %v1246 = vunpack.c.l.b16 %v920
    %v1247 = vunpack.c.h.b16 %v920
    %v1248 = vunpack.c.l.b16 %v921
    %v1249 = vunpack.c.h.b16 %v921
    %v1250 = vunpack.c.l.b16 %v922
    %v1251 = vunpack.c.h.b16 %v922
    %v1252 = vunpack.c.l.b16 %v923
    %v1253 = vunpack.c.h.b16 %v923
    %v1254 = vunpack.c.l.b16 %v924
    %v1255 = vunpack.c.h.b16 %v924
    %v1256 = vunpack.c.l.b16 %v925
    %v1257 = vunpack.c.h.b16 %v925
    %v1258 = vunpack.c.l.b16 %v926
    %v1259 = vunpack.c.h.b16 %v926
    %v1260 = vunpack.c.l.b16 %v927
    %v1261 = vunpack.c.h.b16 %v927
    %v1262 = vunpack.c.l.b16 %v928
    %v1263 = vunpack.c.h.b16 %v928
    %v1264 = vunpack.c.l.b16 %v929
    %v1265 = vunpack.c.h.b16 %v929
    %v1266 = vunpack.c.l.b16 %v930
    %v1267 = vunpack.c.h.b16 %v930
    %v1268 = vunpack.c.l.b16 %v931
    %v1269 = vunpack.c.h.b16 %v931
    %v1270 = vunpack.c.l.b16 %v932
    %v1271 = vunpack.c.h.b16 %v932
    %v1272 = vunpack.c.l.b16 %v933
    %v1273 = vunpack.c.h.b16 %v933
    %v1274 = vunpack.c.l.b16 %v934
    %v1275 = vunpack.c.h.b16 %v934
    %v1276 = vunpack.c.l.b16 %v935
    %v1277 = vunpack.c.h.b16 %v935
    %v1278 = vunpack.c.l.b16 %v936
    %v1279 = vunpack.c.h.b16 %v936
    %v1280 = vunpack.c.l.b16 %v937
    %v1281 = vunpack.c.h.b16 %v937
    %v1282 = vunpack.c.l.b16 %v938
    %v1283 = vunpack.c.h.b16 %v938
    %v1284 = vunpack.c.l.b16 %v939
    %v1285 = vunpack.c.h.b16 %v939
    %v1286 = vunpack.c.l.b16 %v940
    %v1287 = vunpack.c.h.b16 %v940
    %v1288 = vunpack.c.l.b16 %v941
    %v1289 = vunpack.c.h.b16 %v941
    %v1290 = vunpack.c.l.b16 %v942
    %v1291 = vunpack.c.h.b16 %v942
    %v1292 = vunpack.c.l.b16 %v943
    %v1293 = vunpack.c.h.b16 %v943
    %v1294 = vunpack.c.l.b16 %v944
    %v1295 = vunpack.c.h.b16 %v944
    %v1296 = vunpack.c.l.b16 %v945
    %v1297 = vunpack.c.h.b16 %v945
    %v1298 = vunpack.c.l.b16 %v946
    %v1299 = vunpack.c.h.b16 %v946
    %v1300 = vunpack.c.l.b16 %v947
    %v1301 = vunpack.c.h.b16 %v947
    %v1302 = vunpack.c.l.b16 %v948
    %v1303 = vunpack.c.h.b16 %v948
    %v1304 = vunpack.c.l.b16 %v949
    %v1305 = vunpack.c.h.b16 %v949
    %v1306 = vunpack.c.l.b16 %v950
    %v1307 = vunpack.c.h.b16 %v950
    %v1308 = vunpack.c.l.b16 %v951
    %v1309 = vunpack.c.h.b16 %v951
    %v1310 = vunpack.c.l.b16 %v952
    %v1311 = vunpack.c.h.b16 %v952
    %v1312 = vunpack.c.l.b16 %v953
    %v1313 = vunpack.c.h.b16 %v953
    %v1314 = vunpack.c.l.b16 %v954
    %v1315 = vunpack.c.h.b16 %v954
    %v1316 = vunpack.c.l.b16 %v955
    %v1317 = vunpack.c.h.b16 %v955
    %v1318 = vunpack.c.l.b16 %v956
    %v1319 = vunpack.c.h.b16 %v956
    %v1320 = vunpack.c.l.b16 %v957
    %v1321 = vunpack.c.h.b16 %v957
    %v1322 = vunpack.c.l.b16 %v958
    %v1323 = vunpack.c.h.b16 %v958
    %v1324 = vunpack.c.l.b16 %v959
    %v1325 = vunpack.c.h.b16 %v959
    %v1326 = vunpack.c.l.b16 %v960
    %v1327 = vunpack.c.h.b16 %v960
    %v1328 = vunpack.c.l.b16 %v961
    %v1329 = vunpack.c.h.b16 %v961
    %v1330 = vunpack.c.l.b16 %v962
    %v1331 = vunpack.c.h.b16 %v962
    %v1332 = vunpack.c.l.b16 %v963
    %v1333 = vunpack.c.h.b16 %v963
    %v1334 = vunpack.c.l.b16 %v964
    %v1335 = vunpack.c.h.b16 %v964
    %v1336 = vunpack.c.l.b16 %v965
    %v1337 = vunpack.c.h.b16 %v965
    %v1338 = vunpack.c.l.b16 %v966
    %v1339 = vunpack.c.h.b16 %v966
    %v1340 = vunpack.c.l.b16 %v967
    %v1341 = vunpack.c.h.b16 %v967
    %v1342 = vunpack.c.l.b16 %v968
    %v1343 = vunpack.c.h.b16 %v968
    %v1344 = vunpack.c.l.b16 %v969
    %v1345 = vunpack.c.h.b16 %v969
    %v1346 = vunpack.c.l.b16 %v970
    %v1347 = vunpack.c.h.b16 %v970
    %v1348 = vunpack.c.l.b16 %v971
    %v1349 = vunpack.c.h.b16 %v971
    %v1350 = vunpack.c.l.b16 %v972
    %v1351 = vunpack.c.h.b16 %v972
    %v1352 = vunpack.c.l.b16 %v973
    %v1353 = vunpack.c.h.b16 %v973
    %v1354 = vunpack.c.l.b16 %v974
    %v1355 = vunpack.c.h.b16 %v974
    %v1356 = vunpack.c.l.b16 %v975
    %v1357 = vunpack.c.h.b16 %v975
    %v1358 = vunpack.c.l.b16 %v976
    %v1359 = vunpack.c.h.b16 %v976
    %v1360 = vunpack.c.l.b16 %v977
    %v1361 = vunpack.c.h.b16 %v977
    %v1362 = vpack.c.b16 %v1114, %v1106
    %v1363 = vpack.c.b16 %v1115, %v1107
    %v1364 = vpack.c.b16 %v1116, %v1108
    %v1365 = vpack.c.b16 %v1117, %v1109
    %v1366 = vpack.c.b16 %v1118, %v1110
    %v1367 = vpack.c.b16 %v1119, %v1111
    %v1368 = vpack.c.b16 %v1120, %v1112
    %v1369 = vpack.c.b16 %v1121, %v1113
    %v1370 = vpack.c.b16 %v1130, %v1122
    %v1371 = vpack.c.b16 %v1131, %v1123
    %v1372 = vpack.c.b16 %v1132, %v1124
    %v1373 = vpack.c.b16 %v1133, %v1125
    %v1374 = vpack.c.b16 %v1134, %v1126
    %v1375 = vpack.c.b16 %v1135, %v1127
    %v1376 = vpack.c.b16 %v1136, %v1128
    %v1377 = vpack.c.b16 %v1137, %v1129
    %v1378 = vpack.c.b16 %v1146, %v1138
    %v1379 = vpack.c.b16 %v1147, %v1139
    %v1380 = vpack.c.b16 %v1148, %v1140
    %v1381 = vpack.c.b16 %v1149, %v1141
    %v1382 = vpack.c.b16 %v1150, %v1142
    %v1383 = vpack.c.b16 %v1151, %v1143
    %v1384 = vpack.c.b16 %v1152, %v1144
    %v1385 = vpack.c.b16 %v1153, %v1145
    %v1386 = vpack.c.b16 %v1162, %v1154
    %v1387 = vpack.c.b16 %v1163, %v1155
    %v1388 = vpack.c.b16 %v1164, %v1156
    %v1389 = vpack.c.b16 %v1165, %v1157
    %v1390 = vpack.c.b16 %v1166, %v1158
    %v1391 = vpack.c.b16 %v1167, %v1159
    %v1392 = vpack.c.b16 %v1168, %v1160
    %v1393 = vpack.c.b16 %v1169, %v1161
    %v1394 = vpack.c.b16 %v1178, %v1170
    %v1395 = vpack.c.b16 %v1179, %v1171
    %v1396 = vpack.c.b16 %v1180, %v1172
    %v1397 = vpack.c.b16 %v1181, %v1173
    %v1398 = vpack.c.b16 %v1182, %v1174
    %v1399 = vpack.c.b16 %v1183, %v1175
    %v1400 = vpack.c.b16 %v1184, %v1176
    %v1401 = vpack.c.b16 %v1185, %v1177
    %v1402 = vpack.c.b16 %v1194, %v1186
    %v1403 = vpack.c.b16 %v1195, %v1187
    %v1404 = vpack.c.b16 %v1196, %v1188
    %v1405 = vpack.c.b16 %v1197, %v1189
    %v1406 = vpack.c.b16 %v1198, %v1190
    %v1407 = vpack.c.b16 %v1199, %v1191
    %v1408 = vpack.c.b16 %v1200, %v1192
    %v1409 = vpack.c.b16 %v1201, %v1193
    %v1410 = vpack.c.b16 %v1210, %v1202
    %v1411 = vpack.c.b16 %v1211, %v1203
    %v1412 = vpack.c.b16 %v1212, %v1204
    %v1413 = vpack.c.b16 %v1213, %v1205
    %v1414 = vpack.c.b16 %v1214, %v1206
    %v1415 = vpack.c.b16 %v1215, %v1207
    %v1416 = vpack.c.b16 %v1216, %v1208
    %v1417 = vpack.c.b16 %v1217, %v1209
    %v1418 = vpack.c.b16 %v1226, %v1218
    %v1419 = vpack.c.b16 %v1227, %v1219
    %v1420 = vpack.c.b16 %v1228, %v1220
    %v1421 = vpack.c.b16 %v1229, %v1221
    %v1422 = vpack.c.b16 %v1230, %v1222
    %v1423 = vpack.c.b16 %v1231, %v1223
    %v1424 = vpack.c.b16 %v1232, %v1224
    %v1425 = vpack.c.b16 %v1233, %v1225
    %v1426 = vpack.c.b16 %v1242, %v1234
    %v1427 = vpack.c.b16 %v1243, %v1235
    %v1428 = vpack.c.b16 %v1244, %v1236
    %v1429 = vpack.c.b16 %v1245, %v1237
    %v1430 = vpack.c.b16 %v1246, %v1238
    %v1431 = vpack.c.b16 %v1247, %v1239
    %v1432 = vpack.c.b16 %v1248, %v1240
    %v1433 = vpack.c.b16 %v1249, %v1241
    %v1434 = vpack.c.b16 %v1258, %v1250
    %v1435 = vpack.c.b16 %v1259, %v1251
    %v1436 = vpack.c.b16 %v1260, %v1252
    %v1437 = vpack.c.b16 %v1261, %v1253
    %v1438 = vpack.c.b16 %v1262, %v1254
    %v1439 = vpack.c.b16 %v1263, %v1255
    %v1440 = vpack.c.b16 %v1264, %v1256
    %v1441 = vpack.c.b16 %v1265, %v1257
    %v1442 = vpack.c.b16 %v1274, %v1266
    %v1443 = vpack.c.b16 %v1275, %v1267
    %v1444 = vpack.c.b16 %v1276, %v1268
    %v1445 = vpack.c.b16 %v1277, %v1269
    %v1446 = vpack.c.b16 %v1278, %v1270
    %v1447 = vpack.c.b16 %v1279, %v1271
    %v1448 = vpack.c.b16 %v1280, %v1272
    %v1449 = vpack.c.b16 %v1281, %v1273
    %v1450 = vpack.c.b16 %v1290, %v1282
    %v1451 = vpack.c.b16 %v1291, %v1283
    %v1452 = vpack.c.b16 %v1292, %v1284
    %v1453 = vpack.c.b16 %v1293, %v1285
    %v1454 = vpack.c.b16 %v1294, %v1286
    %v1455 = vpack.c.b16 %v1295, %v1287
    %v1456 = vpack.c.b16 %v1296, %v1288
    %v1457 = vpack.c.b16 %v1297, %v1289
    %v1458 = vpack.c.b16 %v1306, %v1298
    %v1459 = vpack.c.b16 %v1307, %v1299
    %v1460 = vpack.c.b16 %v1308, %v1300
    %v1461 = vpack.c.b16 %v1309, %v1301
    %v1462 = vpack.c.b16 %v1310, %v1302
    %v1463 = vpack.c.b16 %v1311, %v1303
    %v1464 = vpack.c.b16 %v1312, %v1304
    %v1465 = vpack.c.b16 %v1313, %v1305
    %v1466 = vpack.c.b16 %v1322, %v1314
    %v1467 = vpack.c.b16 %v1323, %v1315
    %v1468 = vpack.c.b16 %v1324, %v1316
    %v1469 = vpack.c.b16 %v1325, %v1317
    %v1470 = vpack.c.b16 %v1326, %v1318
    %v1471 = vpack.c.b16 %v1327, %v1319
    %v1472 = vpack.c.b16 %v1328, %v1320
    %v1473 = vpack.c.b16 %v1329, %v1321
    %v1474 = vpack.c.b16 %v1338, %v1330
    %v1475 = vpack.c.b16 %v1339, %v1331
    %v1476 = vpack.c.b16 %v1340, %v1332
    %v1477 = vpack.c.b16 %v1341, %v1333
    %v1478 = vpack.c.b16 %v1342, %v1334
    %v1479 = vpack.c.b16 %v1343, %v1335
    %v1480 = vpack.c.b16 %v1344, %v1336
    %v1481 = vpack.c.b16 %v1345, %v1337
    %v1482 = vpack.c.b16 %v1354, %v1346
    %v1483 = vpack.c.b16 %v1355, %v1347
    %v1484 = vpack.c.b16 %v1356, %v1348
    %v1485 = vpack.c.b16 %v1357, %v1349
    %v1486 = vpack.c.b16 %v1358, %v1350
    %v1487 = vpack.c.b16 %v1359, %v1351
    %v1488 = vpack.c.b16 %v1360, %v1352
    %v1489 = vpack.c.b16 %v1361, %v1353
    %1618 = vmatprep.subr.bf16.mxu0 %v1419
    %1619 = vmatpush1.bf16.msra.mxu0 %v1418
    %1620 = vmatprep.subr.bf16.mxu0 %v1411
    %1621 = vmatpush1.bf16.msra.mxu0 %v1410
    %1622 = vmatprep.subr.bf16.mxu0 %v1403
    %1623 = vmatpush1.bf16.msra.mxu0 %v1402
    %1624 = vmatprep.subr.bf16.mxu0 %v1395
    %1625 = vmatpush1.bf16.msra.mxu0 %v1394
    %1626 = vmatprep.subr.bf16.mxu0 %v1387
    %1627 = vmatpush1.bf16.msra.mxu0 %v1386
    %1628 = vmatprep.subr.bf16.mxu0 %v1379
    %1629 = vmatpush1.bf16.msra.mxu0 %v1378
    %1630 = vmatprep.subr.bf16.mxu0 %v1371
    %1631 = vmatpush1.bf16.msra.mxu0 %v1370
    %1632 = vmatprep.subr.bf16.mxu0 %v1363
    %1633 = vmatpush1.bf16.msra.mxu0 %v1362
    %1634 = vmatprep.subr.bf16.mxu0 %v1483
    %1635 = vmatpush2.bf16.msra.mxu0 %v1482
    %1636 = vmatprep.subr.bf16.mxu0 %v1475
    %1637 = vmatpush2.bf16.msra.mxu0 %v1474
    %1638 = vmatprep.subr.bf16.mxu0 %v1467
    %1639 = vmatpush2.bf16.msra.mxu0 %v1466
    %1640 = vmatprep.subr.bf16.mxu0 %v1459
    %1641 = vmatpush2.bf16.msra.mxu0 %v1458
    %1642 = vmatprep.subr.bf16.mxu0 %v1451
    %1643 = vmatpush2.bf16.msra.mxu0 %v1450
    %1644 = vmatprep.subr.bf16.mxu0 %v1443
    %1645 = vmatpush2.bf16.msra.mxu0 %v1442
    %1646 = vmatprep.subr.bf16.mxu0 %v1435
    %1647 = vmatpush2.bf16.msra.mxu0 %v1434
    %1648 = vmatprep.subr.bf16.mxu0 %v1427
    %1649 = vmatpush2.bf16.msra.mxu0 %v1426
    %1650 = vmatprep.mubr.bf16.mxu0 %v849
    %1651 = vmatmul.mubr.bf16.gmra.mxu0 %v849
    %v1652 = vpop.f32.mrf.mxu0
    %v1653 = vadd.f32 0.0, %v1652
    %v1654 = vpop.f32.mrf.mxu0
    %v1655 = vadd.f32 0.0, %v1654
    %v1656 = vpop.f32.mrf.mxu0
    %v1657 = vpop.f32.mrf.mxu0
    %1658 = vdwg.mxu0
    %1659 = vmatprep.subr.bf16.mxu0 %v1421
    %1660 = vmatpush1.bf16.msra.mxu0 %v1420
    %1661 = vmatprep.subr.bf16.mxu0 %v1413
    %1662 = vmatpush1.bf16.msra.mxu0 %v1412
    %1663 = vmatprep.subr.bf16.mxu0 %v1405
    %1664 = vmatpush1.bf16.msra.mxu0 %v1404
    %1665 = vmatprep.subr.bf16.mxu0 %v1397
    %1666 = vmatpush1.bf16.msra.mxu0 %v1396
    %1667 = vmatprep.subr.bf16.mxu0 %v1389
    %1668 = vmatpush1.bf16.msra.mxu0 %v1388
    %1669 = vmatprep.subr.bf16.mxu0 %v1381
    %1670 = vmatpush1.bf16.msra.mxu0 %v1380
    %1671 = vmatprep.subr.bf16.mxu0 %v1373
    %1672 = vmatpush1.bf16.msra.mxu0 %v1372
    %1673 = vmatprep.subr.bf16.mxu0 %v1365
    %1674 = vmatpush1.bf16.msra.mxu0 %v1364
    %1675 = vmatprep.subr.bf16.mxu0 %v1485
    %1676 = vmatpush2.bf16.msra.mxu0 %v1484
    %1677 = vmatprep.subr.bf16.mxu0 %v1477
    %1678 = vmatpush2.bf16.msra.mxu0 %v1476
    %1679 = vmatprep.subr.bf16.mxu0 %v1469
    %1680 = vmatpush2.bf16.msra.mxu0 %v1468
    %1681 = vmatprep.subr.bf16.mxu0 %v1461
    %1682 = vmatpush2.bf16.msra.mxu0 %v1460
    %1683 = vmatprep.subr.bf16.mxu0 %v1453
    %1684 = vmatpush2.bf16.msra.mxu0 %v1452
    %1685 = vmatprep.subr.bf16.mxu0 %v1445
    %1686 = vmatpush2.bf16.msra.mxu0 %v1444
    %1687 = vmatprep.subr.bf16.mxu0 %v1437
    %1688 = vmatpush2.bf16.msra.mxu0 %v1436
    %1689 = vmatprep.subr.bf16.mxu0 %v1429
    %1690 = vmatpush2.bf16.msra.mxu0 %v1428
    %1691 = vmatprep.mubr.bf16.mxu0 %v849
    %1692 = vmatmul.mubr.bf16.gmra.mxu0 %v849
    %v1693 = vpop.f32.mrf.mxu0
    %v1694 = vadd.f32 0.0, %v1693
    %v1695 = vpop.f32.mrf.mxu0
    %v1696 = vadd.f32 0.0, %v1695
    %v1697 = vpop.f32.mrf.mxu0
    %v1698 = vpop.f32.mrf.mxu0
    %1699 = vdwg.mxu0
    %1700 = vmatprep.subr.bf16.mxu0 %v1423
    %1701 = vmatpush1.bf16.msra.mxu0 %v1422
    %1702 = vmatprep.subr.bf16.mxu0 %v1415
    %1703 = vmatpush1.bf16.msra.mxu0 %v1414
    %1704 = vmatprep.subr.bf16.mxu0 %v1407
    %1705 = vmatpush1.bf16.msra.mxu0 %v1406
    %1706 = vmatprep.subr.bf16.mxu0 %v1399
    %1707 = vmatpush1.bf16.msra.mxu0 %v1398
    %1708 = vmatprep.subr.bf16.mxu0 %v1391
    %1709 = vmatpush1.bf16.msra.mxu0 %v1390
    %1710 = vmatprep.subr.bf16.mxu0 %v1383
    %1711 = vmatpush1.bf16.msra.mxu0 %v1382
    %1712 = vmatprep.subr.bf16.mxu0 %v1375
    %1713 = vmatpush1.bf16.msra.mxu0 %v1374
    %1714 = vmatprep.subr.bf16.mxu0 %v1367
    %1715 = vmatpush1.bf16.msra.mxu0 %v1366
    %1716 = vmatprep.subr.bf16.mxu0 %v1487
    %1717 = vmatpush2.bf16.msra.mxu0 %v1486
    %1718 = vmatprep.subr.bf16.mxu0 %v1479
    %1719 = vmatpush2.bf16.msra.mxu0 %v1478
    %1720 = vmatprep.subr.bf16.mxu0 %v1471
    %1721 = vmatpush2.bf16.msra.mxu0 %v1470
    %1722 = vmatprep.subr.bf16.mxu0 %v1463
    %1723 = vmatpush2.bf16.msra.mxu0 %v1462
    %1724 = vmatprep.subr.bf16.mxu0 %v1455
    %1725 = vmatpush2.bf16.msra.mxu0 %v1454
    %1726 = vmatprep.subr.bf16.mxu0 %v1447
    %1727 = vmatpush2.bf16.msra.mxu0 %v1446
    %1728 = vmatprep.subr.bf16.mxu0 %v1439
    %1729 = vmatpush2.bf16.msra.mxu0 %v1438
    %1730 = vmatprep.subr.bf16.mxu0 %v1431
    %1731 = vmatpush2.bf16.msra.mxu0 %v1430
    %1732 = vmatprep.mubr.bf16.mxu0 %v849
    %1733 = vmatmul.mubr.bf16.gmra.mxu0 %v849
    %v1734 = vpop.f32.mrf.mxu0
    %v1735 = vadd.f32 0.0, %v1734
    %v1736 = vpop.f32.mrf.mxu0
    %v1737 = vadd.f32 0.0, %v1736
    %v1738 = vpop.f32.mrf.mxu0
    %v1739 = vpop.f32.mrf.mxu0
    %1740 = vdwg.mxu0
    %1741 = vmatprep.subr.bf16.mxu0 %v1425
    %1742 = vmatpush1.bf16.msra.mxu0 %v1424
    %1743 = vmatprep.subr.bf16.mxu0 %v1417
    %1744 = vmatpush1.bf16.msra.mxu0 %v1416
    %1745 = vmatprep.subr.bf16.mxu0 %v1409
    %1746 = vmatpush1.bf16.msra.mxu0 %v1408
    %1747 = vmatprep.subr.bf16.mxu0 %v1401
    %1748 = vmatpush1.bf16.msra.mxu0 %v1400
    %1749 = vmatprep.subr.bf16.mxu0 %v1393
    %1750 = vmatpush1.bf16.msra.mxu0 %v1392
    %1751 = vmatprep.subr.bf16.mxu0 %v1385
    %1752 = vmatpush1.bf16.msra.mxu0 %v1384
    %1753 = vmatprep.subr.bf16.mxu0 %v1377
    %1754 = vmatpush1.bf16.msra.mxu0 %v1376
    %1755 = vmatprep.subr.bf16.mxu0 %v1369
    %1756 = vmatpush1.bf16.msra.mxu0 %v1368
    %1757 = vmatprep.subr.bf16.mxu0 %v1489
    %1758 = vmatpush2.bf16.msra.mxu0 %v1488
    %1759 = vmatprep.subr.bf16.mxu0 %v1481
    %1760 = vmatpush2.bf16.msra.mxu0 %v1480
    %1761 = vmatprep.subr.bf16.mxu0 %v1473
    %1762 = vmatpush2.bf16.msra.mxu0 %v1472
    %1763 = vmatprep.subr.bf16.mxu0 %v1465
    %1764 = vmatpush2.bf16.msra.mxu0 %v1464
    %1765 = vmatprep.subr.bf16.mxu0 %v1457
    %1766 = vmatpush2.bf16.msra.mxu0 %v1456
    %1767 = vmatprep.subr.bf16.mxu0 %v1449
    %1768 = vmatpush2.bf16.msra.mxu0 %v1448
    %1769 = vmatprep.subr.bf16.mxu0 %v1441
    %1770 = vmatpush2.bf16.msra.mxu0 %v1440
    %1771 = vmatprep.subr.bf16.mxu0 %v1433
    %1772 = vmatpush2.bf16.msra.mxu0 %v1432
    %1773 = vmatprep.mubr.bf16.mxu0 %v849
    %1774 = vmatmul.mubr.bf16.gmra.mxu0 %v849
    %v1775 = vpop.f32.mrf.mxu0
    %v1776 = vadd.f32 0.0, %v1775
    %v1777 = vpop.f32.mrf.mxu0
    %v1778 = vadd.f32 0.0, %v1777
    %v1779 = vpop.f32.mrf.mxu0
    %v1780 = vpop.f32.mrf.mxu0
    %1781 = vdwg.mxu0
    %v1782 = vld [vmem:[#allocation2] sm:$0xff]
    %v1783 = vld [vmem:[#allocation2 + $0x8] sm:$0xff]
    %v1784 = vld [vmem:[#allocation2 + $0x10] sm:$0xff]
    %v1785 = vld [vmem:[#allocation2 + $0x18] sm:$0xff]
    %v1786 = vadd.f32 %v1782, %v1653
    %v1787 = vadd.f32 %v1783, %v1655
    %v1788 = vadd.f32 %v1784, %v1694
    %v1789 = vadd.f32 %v1785, %v1696
    %v1790 = vld [vmem:[#allocation2 + $0x1e0] sm:$0xff]
    %v1791 = vld [vmem:[#allocation2 + $0x1e8] sm:$0xff]
    %v1792 = vld [vmem:[#allocation2 + $0x1f0] sm:$0xff]
    %v1793 = vld [vmem:[#allocation2 + $0x1f8] sm:$0xff]
    %v1794 = vadd.f32 %v1790, %v1735
    %v1795 = vadd.f32 %v1791, %v1737
    %v1796 = vadd.f32 %v1792, %v1776
    %v1797 = vadd.f32 %v1793, %v1778
    %v1798 = vxor.u32 %v1786, 2147483648
    %v1799 = vmul.f32 %v1798, 1.442695
    %v1800 = vpow.pop %v1799
    %v1801 = vadd.f32 %v1800, 1.0
    %v1802 = vrcp.pop %v1801
    %v1803 = vmul.f32 1.0, %v1802
    %v1804 = vxor.u32 %v1787, 2147483648
    %v1805 = vmul.f32 %v1804, 1.442695
    %v1806 = vpow.pop %v1805
    %v1807 = vadd.f32 %v1806, 1.0
    %v1808 = vrcp.pop %v1807
    %v1809 = vmul.f32 1.0, %v1808
    %v1810 = vmul.f32 %v1803, %v1789
    %v1811 = vadd.f32 %v1788, %v1810
    %v1812 = vtanh.pop %v1811
    %v1813 = vsub.f32 1.0, %v1809
    %v1814 = vmul.f32 %v1813, %v1812
    %v1815 = vmul.f32 %v1809, 0.0
    %v1816 = vadd.f32 %v1814, %v1815
    %v1817 = vxor.u32 %v1794, 2147483648
    %v1818 = vmul.f32 %v1817, 1.442695
    %v1819 = vpow.pop %v1818
    %v1820 = vadd.f32 %v1819, 1.0
    %v1821 = vrcp.pop %v1820
    %v1822 = vmul.f32 1.0, %v1821
    %v1823 = vxor.u32 %v1795, 2147483648
    %v1824 = vmul.f32 %v1823, 1.442695
    %v1825 = vpow.pop %v1824
    %v1826 = vadd.f32 %v1825, 1.0
    %v1827 = vrcp.pop %v1826
    %v1828 = vmul.f32 1.0, %v1827
    %v1829 = vmul.f32 %v1822, %v1797
    %v1830 = vadd.f32 %v1796, %v1829
    %v1831 = vtanh.pop %v1830
    %v1832 = vsub.f32 1.0, %v1828
    %v1833 = vmul.f32 %v1832, %v1831
    %v1834 = vmul.f32 %v1828, 0.0
    %v1835 = vadd.f32 %v1833, %v1834
    %1836 = vst [vmem:[%s6] sm:$0xff] %v1816
    %s1837 = scalar_lea.vmem %s7, 56
    %1838 = vst [vmem:[%s1837] sm:$0xff] %v1835
    %v1839 = vpack.c.bf16 %v1816, %v1816
    %v1840 = vpack.c.bf16 %v1835, %v1835
    %v1841 = vld [vmem:[#allocation5] sm:$0xff]
    %v1842 = vld [vmem:[#allocation5 + $0x8] sm:$0xff]
    %v1843 = vld [vmem:[#allocation5 + $0x10] sm:$0xff]
    %v1844 = vld [vmem:[#allocation5 + $0x18] sm:$0xff]
    %v1845 = vld [vmem:[#allocation5 + $0x20] sm:$0xff]
    %v1846 = vld [vmem:[#allocation5 + $0x28] sm:$0xff]
    %v1847 = vld [vmem:[#allocation5 + $0x30] sm:$0xff]
    %v1848 = vld [vmem:[#allocation5 + $0x38] sm:$0xff]
    %v1849 = vld [vmem:[#allocation5 + $0x40] sm:$0xff]
    %v1850 = vld [vmem:[#allocation5 + $0x48] sm:$0xff]
    %v1851 = vld [vmem:[#allocation5 + $0x50] sm:$0xff]
    %v1852 = vld [vmem:[#allocation5 + $0x58] sm:$0xff]
    %v1853 = vld [vmem:[#allocation5 + $0x60] sm:$0xff]
    %v1854 = vld [vmem:[#allocation5 + $0x68] sm:$0xff]
    %v1855 = vld [vmem:[#allocation5 + $0x70] sm:$0xff]
    %v1856 = vld [vmem:[#allocation5 + $0x78] sm:$0xff]
    %v1857 = vld [vmem:[#allocation5 + $0x80] sm:$0xff]
    %v1858 = vld [vmem:[#allocation5 + $0x88] sm:$0xff]
    %v1859 = vld [vmem:[#allocation5 + $0x90] sm:$0xff]
    %v1860 = vld [vmem:[#allocation5 + $0x98] sm:$0xff]
    %v1861 = vld [vmem:[#allocation5 + $0xa0] sm:$0xff]
    %v1862 = vld [vmem:[#allocation5 + $0xa8] sm:$0xff]
    %v1863 = vld [vmem:[#allocation5 + $0xb0] sm:$0xff]
    %v1864 = vld [vmem:[#allocation5 + $0xb8] sm:$0xff]
    %v1865 = vld [vmem:[#allocation5 + $0xc0] sm:$0xff]
    %v1866 = vld [vmem:[#allocation5 + $0xc8] sm:$0xff]
    %v1867 = vld [vmem:[#allocation5 + $0xd0] sm:$0xff]
    %v1868 = vld [vmem:[#allocation5 + $0xd8] sm:$0xff]
    %v1869 = vld [vmem:[#allocation5 + $0xe0] sm:$0xff]
    %v1870 = vld [vmem:[#allocation5 + $0xe8] sm:$0xff]
    %v1871 = vld [vmem:[#allocation5 + $0xf0] sm:$0xff]
    %v1872 = vld [vmem:[#allocation5 + $0xf8] sm:$0xff]
    %v1873 = vld [vmem:[#allocation5 + $0x100] sm:$0xff]
    %v1874 = vld [vmem:[#allocation5 + $0x108] sm:$0xff]
    %v1875 = vld [vmem:[#allocation5 + $0x110] sm:$0xff]
    %v1876 = vld [vmem:[#allocation5 + $0x118] sm:$0xff]
    %v1877 = vld [vmem:[#allocation5 + $0x120] sm:$0xff]
    %v1878 = vld [vmem:[#allocation5 + $0x128] sm:$0xff]
    %v1879 = vld [vmem:[#allocation5 + $0x130] sm:$0xff]
    %v1880 = vld [vmem:[#allocation5 + $0x138] sm:$0xff]
    %v1881 = vld [vmem:[#allocation5 + $0x140] sm:$0xff]
    %v1882 = vld [vmem:[#allocation5 + $0x148] sm:$0xff]
    %v1883 = vld [vmem:[#allocation5 + $0x150] sm:$0xff]
    %v1884 = vld [vmem:[#allocation5 + $0x158] sm:$0xff]
    %v1885 = vld [vmem:[#allocation5 + $0x160] sm:$0xff]
    %v1886 = vld [vmem:[#allocation5 + $0x168] sm:$0xff]
    %v1887 = vld [vmem:[#allocation5 + $0x170] sm:$0xff]
    %v1888 = vld [vmem:[#allocation5 + $0x178] sm:$0xff]
    %v1889 = vld [vmem:[#allocation5 + $0x180] sm:$0xff]
    %v1890 = vld [vmem:[#allocation5 + $0x188] sm:$0xff]
    %v1891 = vld [vmem:[#allocation5 + $0x190] sm:$0xff]
    %v1892 = vld [vmem:[#allocation5 + $0x198] sm:$0xff]
    %v1893 = vld [vmem:[#allocation5 + $0x1a0] sm:$0xff]
    %v1894 = vld [vmem:[#allocation5 + $0x1a8] sm:$0xff]
    %v1895 = vld [vmem:[#allocation5 + $0x1b0] sm:$0xff]
    %v1896 = vld [vmem:[#allocation5 + $0x1b8] sm:$0xff]
    %v1897 = vld [vmem:[#allocation5 + $0x1c0] sm:$0xff]
    %v1898 = vld [vmem:[#allocation5 + $0x1c8] sm:$0xff]
    %v1899 = vld [vmem:[#allocation5 + $0x1d0] sm:$0xff]
    %v1900 = vld [vmem:[#allocation5 + $0x1d8] sm:$0xff]
    %v1901 = vld [vmem:[#allocation5 + $0x1e0] sm:$0xff]
    %v1902 = vld [vmem:[#allocation5 + $0x1e8] sm:$0xff]
    %v1903 = vld [vmem:[#allocation5 + $0x1f0] sm:$0xff]
    %v1904 = vld [vmem:[#allocation5 + $0x1f8] sm:$0xff]
    %v1905 = vld [vmem:[#allocation5 + $0x200] sm:$0xff]
    %v1906 = vld [vmem:[#allocation5 + $0x208] sm:$0xff]
    %v1907 = vld [vmem:[#allocation5 + $0x210] sm:$0xff]
    %v1908 = vld [vmem:[#allocation5 + $0x218] sm:$0xff]
    %v1909 = vld [vmem:[#allocation5 + $0x220] sm:$0xff]
    %v1910 = vld [vmem:[#allocation5 + $0x228] sm:$0xff]
    %v1911 = vld [vmem:[#allocation5 + $0x230] sm:$0xff]
    %v1912 = vld [vmem:[#allocation5 + $0x238] sm:$0xff]
    %v1913 = vld [vmem:[#allocation5 + $0x240] sm:$0xff]
    %v1914 = vld [vmem:[#allocation5 + $0x248] sm:$0xff]
    %v1915 = vld [vmem:[#allocation5 + $0x250] sm:$0xff]
    %v1916 = vld [vmem:[#allocation5 + $0x258] sm:$0xff]
    %v1917 = vld [vmem:[#allocation5 + $0x260] sm:$0xff]
    %v1918 = vld [vmem:[#allocation5 + $0x268] sm:$0xff]
    %v1919 = vld [vmem:[#allocation5 + $0x270] sm:$0xff]
    %v1920 = vld [vmem:[#allocation5 + $0x278] sm:$0xff]
    %v1921 = vld [vmem:[#allocation5 + $0x280] sm:$0xff]
    %v1922 = vld [vmem:[#allocation5 + $0x288] sm:$0xff]
    %v1923 = vld [vmem:[#allocation5 + $0x290] sm:$0xff]
    %v1924 = vld [vmem:[#allocation5 + $0x298] sm:$0xff]
    %v1925 = vld [vmem:[#allocation5 + $0x2a0] sm:$0xff]
    %v1926 = vld [vmem:[#allocation5 + $0x2a8] sm:$0xff]
    %v1927 = vld [vmem:[#allocation5 + $0x2b0] sm:$0xff]
    %v1928 = vld [vmem:[#allocation5 + $0x2b8] sm:$0xff]
    %v1929 = vld [vmem:[#allocation5 + $0x2c0] sm:$0xff]
    %v1930 = vld [vmem:[#allocation5 + $0x2c8] sm:$0xff]
    %v1931 = vld [vmem:[#allocation5 + $0x2d0] sm:$0xff]
    %v1932 = vld [vmem:[#allocation5 + $0x2d8] sm:$0xff]
    %v1933 = vld [vmem:[#allocation5 + $0x2e0] sm:$0xff]
    %v1934 = vld [vmem:[#allocation5 + $0x2e8] sm:$0xff]
    %v1935 = vld [vmem:[#allocation5 + $0x2f0] sm:$0xff]
    %v1936 = vld [vmem:[#allocation5 + $0x2f8] sm:$0xff]
    %v1937 = vld [vmem:[#allocation5 + $0x300] sm:$0xff]
    %v1938 = vld [vmem:[#allocation5 + $0x308] sm:$0xff]
    %v1939 = vld [vmem:[#allocation5 + $0x310] sm:$0xff]
    %v1940 = vld [vmem:[#allocation5 + $0x318] sm:$0xff]
    %v1941 = vld [vmem:[#allocation5 + $0x320] sm:$0xff]
    %v1942 = vld [vmem:[#allocation5 + $0x328] sm:$0xff]
    %v1943 = vld [vmem:[#allocation5 + $0x330] sm:$0xff]
    %v1944 = vld [vmem:[#allocation5 + $0x338] sm:$0xff]
    %v1945 = vld [vmem:[#allocation5 + $0x340] sm:$0xff]
    %v1946 = vld [vmem:[#allocation5 + $0x348] sm:$0xff]
    %v1947 = vld [vmem:[#allocation5 + $0x350] sm:$0xff]
    %v1948 = vld [vmem:[#allocation5 + $0x358] sm:$0xff]
    %v1949 = vld [vmem:[#allocation5 + $0x360] sm:$0xff]
    %v1950 = vld [vmem:[#allocation5 + $0x368] sm:$0xff]
    %v1951 = vld [vmem:[#allocation5 + $0x370] sm:$0xff]
    %v1952 = vld [vmem:[#allocation5 + $0x378] sm:$0xff]
    %v1953 = vld [vmem:[#allocation5 + $0x380] sm:$0xff]
    %v1954 = vld [vmem:[#allocation5 + $0x388] sm:$0xff]
    %v1955 = vld [vmem:[#allocation5 + $0x390] sm:$0xff]
    %v1956 = vld [vmem:[#allocation5 + $0x398] sm:$0xff]
    %v1957 = vld [vmem:[#allocation5 + $0x3a0] sm:$0xff]
    %v1958 = vld [vmem:[#allocation5 + $0x3a8] sm:$0xff]
    %v1959 = vld [vmem:[#allocation5 + $0x3b0] sm:$0xff]
    %v1960 = vld [vmem:[#allocation5 + $0x3b8] sm:$0xff]
    %v1961 = vld [vmem:[#allocation5 + $0x3c0] sm:$0xff]
    %v1962 = vld [vmem:[#allocation5 + $0x3c8] sm:$0xff]
    %v1963 = vld [vmem:[#allocation5 + $0x3d0] sm:$0xff]
    %v1964 = vld [vmem:[#allocation5 + $0x3d8] sm:$0xff]
    %v1965 = vld [vmem:[#allocation5 + $0x3e0] sm:$0xff]
    %v1966 = vld [vmem:[#allocation5 + $0x3e8] sm:$0xff]
    %v1967 = vld [vmem:[#allocation5 + $0x3f0] sm:$0xff]
    %v1968 = vld [vmem:[#allocation5 + $0x3f8] sm:$0xff]
    %v2097 = vunpack.c.l.b16 %v1841
    %v2098 = vunpack.c.h.b16 %v1841
    %v2099 = vunpack.c.l.b16 %v1842
    %v2100 = vunpack.c.h.b16 %v1842
    %v2101 = vunpack.c.l.b16 %v1843
    %v2102 = vunpack.c.h.b16 %v1843
    %v2103 = vunpack.c.l.b16 %v1844
    %v2104 = vunpack.c.h.b16 %v1844
    %v2105 = vunpack.c.l.b16 %v1845
    %v2106 = vunpack.c.h.b16 %v1845
    %v2107 = vunpack.c.l.b16 %v1846
    %v2108 = vunpack.c.h.b16 %v1846
    %v2109 = vunpack.c.l.b16 %v1847
    %v2110 = vunpack.c.h.b16 %v1847
    %v2111 = vunpack.c.l.b16 %v1848
    %v2112 = vunpack.c.h.b16 %v1848
    %v2113 = vunpack.c.l.b16 %v1849
    %v2114 = vunpack.c.h.b16 %v1849
    %v2115 = vunpack.c.l.b16 %v1850
    %v2116 = vunpack.c.h.b16 %v1850
    %v2117 = vunpack.c.l.b16 %v1851
    %v2118 = vunpack.c.h.b16 %v1851
    %v2119 = vunpack.c.l.b16 %v1852
    %v2120 = vunpack.c.h.b16 %v1852
    %v2121 = vunpack.c.l.b16 %v1853
    %v2122 = vunpack.c.h.b16 %v1853
    %v2123 = vunpack.c.l.b16 %v1854
    %v2124 = vunpack.c.h.b16 %v1854
    %v2125 = vunpack.c.l.b16 %v1855
    %v2126 = vunpack.c.h.b16 %v1855
    %v2127 = vunpack.c.l.b16 %v1856
    %v2128 = vunpack.c.h.b16 %v1856
    %v2129 = vunpack.c.l.b16 %v1857
    %v2130 = vunpack.c.h.b16 %v1857
    %v2131 = vunpack.c.l.b16 %v1858
    %v2132 = vunpack.c.h.b16 %v1858
    %v2133 = vunpack.c.l.b16 %v1859
    %v2134 = vunpack.c.h.b16 %v1859
    %v2135 = vunpack.c.l.b16 %v1860
    %v2136 = vunpack.c.h.b16 %v1860
    %v2137 = vunpack.c.l.b16 %v1861
    %v2138 = vunpack.c.h.b16 %v1861
    %v2139 = vunpack.c.l.b16 %v1862
    %v2140 = vunpack.c.h.b16 %v1862
    %v2141 = vunpack.c.l.b16 %v1863
    %v2142 = vunpack.c.h.b16 %v1863
    %v2143 = vunpack.c.l.b16 %v1864
    %v2144 = vunpack.c.h.b16 %v1864
    %v2145 = vunpack.c.l.b16 %v1865
    %v2146 = vunpack.c.h.b16 %v1865
    %v2147 = vunpack.c.l.b16 %v1866
    %v2148 = vunpack.c.h.b16 %v1866
    %v2149 = vunpack.c.l.b16 %v1867
    %v2150 = vunpack.c.h.b16 %v1867
    %v2151 = vunpack.c.l.b16 %v1868
    %v2152 = vunpack.c.h.b16 %v1868
    %v2153 = vunpack.c.l.b16 %v1869
    %v2154 = vunpack.c.h.b16 %v1869
    %v2155 = vunpack.c.l.b16 %v1870
    %v2156 = vunpack.c.h.b16 %v1870
    %v2157 = vunpack.c.l.b16 %v1871
    %v2158 = vunpack.c.h.b16 %v1871
    %v2159 = vunpack.c.l.b16 %v1872
    %v2160 = vunpack.c.h.b16 %v1872
    %v2161 = vunpack.c.l.b16 %v1873
    %v2162 = vunpack.c.h.b16 %v1873
    %v2163 = vunpack.c.l.b16 %v1874
    %v2164 = vunpack.c.h.b16 %v1874
    %v2165 = vunpack.c.l.b16 %v1875
    %v2166 = vunpack.c.h.b16 %v1875
    %v2167 = vunpack.c.l.b16 %v1876
    %v2168 = vunpack.c.h.b16 %v1876
    %v2169 = vunpack.c.l.b16 %v1877
    %v2170 = vunpack.c.h.b16 %v1877
    %v2171 = vunpack.c.l.b16 %v1878
    %v2172 = vunpack.c.h.b16 %v1878
    %v2173 = vunpack.c.l.b16 %v1879
    %v2174 = vunpack.c.h.b16 %v1879
    %v2175 = vunpack.c.l.b16 %v1880
    %v2176 = vunpack.c.h.b16 %v1880
    %v2177 = vunpack.c.l.b16 %v1881
    %v2178 = vunpack.c.h.b16 %v1881
    %v2179 = vunpack.c.l.b16 %v1882
    %v2180 = vunpack.c.h.b16 %v1882
    %v2181 = vunpack.c.l.b16 %v1883
    %v2182 = vunpack.c.h.b16 %v1883
    %v2183 = vunpack.c.l.b16 %v1884
    %v2184 = vunpack.c.h.b16 %v1884
    %v2185 = vunpack.c.l.b16 %v1885
    %v2186 = vunpack.c.h.b16 %v1885
    %v2187 = vunpack.c.l.b16 %v1886
    %v2188 = vunpack.c.h.b16 %v1886
    %v2189 = vunpack.c.l.b16 %v1887
    %v2190 = vunpack.c.h.b16 %v1887
    %v2191 = vunpack.c.l.b16 %v1888
    %v2192 = vunpack.c.h.b16 %v1888
    %v2193 = vunpack.c.l.b16 %v1889
    %v2194 = vunpack.c.h.b16 %v1889
    %v2195 = vunpack.c.l.b16 %v1890
    %v2196 = vunpack.c.h.b16 %v1890
    %v2197 = vunpack.c.l.b16 %v1891
    %v2198 = vunpack.c.h.b16 %v1891
    %v2199 = vunpack.c.l.b16 %v1892
    %v2200 = vunpack.c.h.b16 %v1892
    %v2201 = vunpack.c.l.b16 %v1893
    %v2202 = vunpack.c.h.b16 %v1893
    %v2203 = vunpack.c.l.b16 %v1894
    %v2204 = vunpack.c.h.b16 %v1894
    %v2205 = vunpack.c.l.b16 %v1895
    %v2206 = vunpack.c.h.b16 %v1895
    %v2207 = vunpack.c.l.b16 %v1896
    %v2208 = vunpack.c.h.b16 %v1896
    %v2209 = vunpack.c.l.b16 %v1897
    %v2210 = vunpack.c.h.b16 %v1897
    %v2211 = vunpack.c.l.b16 %v1898
    %v2212 = vunpack.c.h.b16 %v1898
    %v2213 = vunpack.c.l.b16 %v1899
    %v2214 = vunpack.c.h.b16 %v1899
    %v2215 = vunpack.c.l.b16 %v1900
    %v2216 = vunpack.c.h.b16 %v1900
    %v2217 = vunpack.c.l.b16 %v1901
    %v2218 = vunpack.c.h.b16 %v1901
    %v2219 = vunpack.c.l.b16 %v1902
    %v2220 = vunpack.c.h.b16 %v1902
    %v2221 = vunpack.c.l.b16 %v1903
    %v2222 = vunpack.c.h.b16 %v1903
    %v2223 = vunpack.c.l.b16 %v1904
    %v2224 = vunpack.c.h.b16 %v1904
    %v2225 = vunpack.c.l.b16 %v1905
    %v2226 = vunpack.c.h.b16 %v1905
    %v2227 = vunpack.c.l.b16 %v1906
    %v2228 = vunpack.c.h.b16 %v1906
    %v2229 = vunpack.c.l.b16 %v1907
    %v2230 = vunpack.c.h.b16 %v1907
    %v2231 = vunpack.c.l.b16 %v1908
    %v2232 = vunpack.c.h.b16 %v1908
    %v2233 = vunpack.c.l.b16 %v1909
    %v2234 = vunpack.c.h.b16 %v1909
    %v2235 = vunpack.c.l.b16 %v1910
    %v2236 = vunpack.c.h.b16 %v1910
    %v2237 = vunpack.c.l.b16 %v1911
    %v2238 = vunpack.c.h.b16 %v1911
    %v2239 = vunpack.c.l.b16 %v1912
    %v2240 = vunpack.c.h.b16 %v1912
    %v2241 = vunpack.c.l.b16 %v1913
    %v2242 = vunpack.c.h.b16 %v1913
    %v2243 = vunpack.c.l.b16 %v1914
    %v2244 = vunpack.c.h.b16 %v1914
    %v2245 = vunpack.c.l.b16 %v1915
    %v2246 = vunpack.c.h.b16 %v1915
    %v2247 = vunpack.c.l.b16 %v1916
    %v2248 = vunpack.c.h.b16 %v1916
    %v2249 = vunpack.c.l.b16 %v1917
    %v2250 = vunpack.c.h.b16 %v1917
    %v2251 = vunpack.c.l.b16 %v1918
    %v2252 = vunpack.c.h.b16 %v1918
    %v2253 = vunpack.c.l.b16 %v1919
    %v2254 = vunpack.c.h.b16 %v1919
    %v2255 = vunpack.c.l.b16 %v1920
    %v2256 = vunpack.c.h.b16 %v1920
    %v2257 = vunpack.c.l.b16 %v1921
    %v2258 = vunpack.c.h.b16 %v1921
    %v2259 = vunpack.c.l.b16 %v1922
    %v2260 = vunpack.c.h.b16 %v1922
    %v2261 = vunpack.c.l.b16 %v1923
    %v2262 = vunpack.c.h.b16 %v1923
    %v2263 = vunpack.c.l.b16 %v1924
    %v2264 = vunpack.c.h.b16 %v1924
    %v2265 = vunpack.c.l.b16 %v1925
    %v2266 = vunpack.c.h.b16 %v1925
    %v2267 = vunpack.c.l.b16 %v1926
    %v2268 = vunpack.c.h.b16 %v1926
    %v2269 = vunpack.c.l.b16 %v1927
    %v2270 = vunpack.c.h.b16 %v1927
    %v2271 = vunpack.c.l.b16 %v1928
    %v2272 = vunpack.c.h.b16 %v1928
    %v2273 = vunpack.c.l.b16 %v1929
    %v2274 = vunpack.c.h.b16 %v1929
    %v2275 = vunpack.c.l.b16 %v1930
    %v2276 = vunpack.c.h.b16 %v1930
    %v2277 = vunpack.c.l.b16 %v1931
    %v2278 = vunpack.c.h.b16 %v1931
    %v2279 = vunpack.c.l.b16 %v1932
    %v2280 = vunpack.c.h.b16 %v1932
    %v2281 = vunpack.c.l.b16 %v1933
    %v2282 = vunpack.c.h.b16 %v1933
    %v2283 = vunpack.c.l.b16 %v1934
    %v2284 = vunpack.c.h.b16 %v1934
    %v2285 = vunpack.c.l.b16 %v1935
    %v2286 = vunpack.c.h.b16 %v1935
    %v2287 = vunpack.c.l.b16 %v1936
    %v2288 = vunpack.c.h.b16 %v1936
    %v2289 = vunpack.c.l.b16 %v1937
    %v2290 = vunpack.c.h.b16 %v1937
    %v2291 = vunpack.c.l.b16 %v1938
    %v2292 = vunpack.c.h.b16 %v1938
    %v2293 = vunpack.c.l.b16 %v1939
    %v2294 = vunpack.c.h.b16 %v1939
    %v2295 = vunpack.c.l.b16 %v1940
    %v2296 = vunpack.c.h.b16 %v1940
    %v2297 = vunpack.c.l.b16 %v1941
    %v2298 = vunpack.c.h.b16 %v1941
    %v2299 = vunpack.c.l.b16 %v1942
    %v2300 = vunpack.c.h.b16 %v1942
    %v2301 = vunpack.c.l.b16 %v1943
    %v2302 = vunpack.c.h.b16 %v1943
    %v2303 = vunpack.c.l.b16 %v1944
    %v2304 = vunpack.c.h.b16 %v1944
    %v2305 = vunpack.c.l.b16 %v1945
    %v2306 = vunpack.c.h.b16 %v1945
    %v2307 = vunpack.c.l.b16 %v1946
    %v2308 = vunpack.c.h.b16 %v1946
    %v2309 = vunpack.c.l.b16 %v1947
    %v2310 = vunpack.c.h.b16 %v1947
    %v2311 = vunpack.c.l.b16 %v1948
    %v2312 = vunpack.c.h.b16 %v1948
    %v2313 = vunpack.c.l.b16 %v1949
    %v2314 = vunpack.c.h.b16 %v1949
    %v2315 = vunpack.c.l.b16 %v1950
    %v2316 = vunpack.c.h.b16 %v1950
    %v2317 = vunpack.c.l.b16 %v1951
    %v2318 = vunpack.c.h.b16 %v1951
    %v2319 = vunpack.c.l.b16 %v1952
    %v2320 = vunpack.c.h.b16 %v1952
    %v2321 = vunpack.c.l.b16 %v1953
    %v2322 = vunpack.c.h.b16 %v1953
    %v2323 = vunpack.c.l.b16 %v1954
    %v2324 = vunpack.c.h.b16 %v1954
    %v2325 = vunpack.c.l.b16 %v1955
    %v2326 = vunpack.c.h.b16 %v1955
    %v2327 = vunpack.c.l.b16 %v1956
    %v2328 = vunpack.c.h.b16 %v1956
    %v2329 = vunpack.c.l.b16 %v1957
    %v2330 = vunpack.c.h.b16 %v1957
    %v2331 = vunpack.c.l.b16 %v1958
    %v2332 = vunpack.c.h.b16 %v1958
    %v2333 = vunpack.c.l.b16 %v1959
    %v2334 = vunpack.c.h.b16 %v1959
    %v2335 = vunpack.c.l.b16 %v1960
    %v2336 = vunpack.c.h.b16 %v1960
    %v2337 = vunpack.c.l.b16 %v1961
    %v2338 = vunpack.c.h.b16 %v1961
    %v2339 = vunpack.c.l.b16 %v1962
    %v2340 = vunpack.c.h.b16 %v1962
    %v2341 = vunpack.c.l.b16 %v1963
    %v2342 = vunpack.c.h.b16 %v1963
    %v2343 = vunpack.c.l.b16 %v1964
    %v2344 = vunpack.c.h.b16 %v1964
    %v2345 = vunpack.c.l.b16 %v1965
    %v2346 = vunpack.c.h.b16 %v1965
    %v2347 = vunpack.c.l.b16 %v1966
    %v2348 = vunpack.c.h.b16 %v1966
    %v2349 = vunpack.c.l.b16 %v1967
    %v2350 = vunpack.c.h.b16 %v1967
    %v2351 = vunpack.c.l.b16 %v1968
    %v2352 = vunpack.c.h.b16 %v1968
    %v2353 = vpack.c.b16 %v2105, %v2097
    %v2354 = vpack.c.b16 %v2106, %v2098
    %v2355 = vpack.c.b16 %v2107, %v2099
    %v2356 = vpack.c.b16 %v2108, %v2100
    %v2357 = vpack.c.b16 %v2109, %v2101
    %v2358 = vpack.c.b16 %v2110, %v2102
    %v2359 = vpack.c.b16 %v2111, %v2103
    %v2360 = vpack.c.b16 %v2112, %v2104
    %v2361 = vpack.c.b16 %v2121, %v2113
    %v2362 = vpack.c.b16 %v2122, %v2114
    %v2363 = vpack.c.b16 %v2123, %v2115
    %v2364 = vpack.c.b16 %v2124, %v2116
    %v2365 = vpack.c.b16 %v2125, %v2117
    %v2366 = vpack.c.b16 %v2126, %v2118
    %v2367 = vpack.c.b16 %v2127, %v2119
    %v2368 = vpack.c.b16 %v2128, %v2120
    %v2369 = vpack.c.b16 %v2137, %v2129
    %v2370 = vpack.c.b16 %v2138, %v2130
    %v2371 = vpack.c.b16 %v2139, %v2131
    %v2372 = vpack.c.b16 %v2140, %v2132
    %v2373 = vpack.c.b16 %v2141, %v2133
    %v2374 = vpack.c.b16 %v2142, %v2134
    %v2375 = vpack.c.b16 %v2143, %v2135
    %v2376 = vpack.c.b16 %v2144, %v2136
    %v2377 = vpack.c.b16 %v2153, %v2145
    %v2378 = vpack.c.b16 %v2154, %v2146
    %v2379 = vpack.c.b16 %v2155, %v2147
    %v2380 = vpack.c.b16 %v2156, %v2148
    %v2381 = vpack.c.b16 %v2157, %v2149
    %v2382 = vpack.c.b16 %v2158, %v2150
    %v2383 = vpack.c.b16 %v2159, %v2151
    %v2384 = vpack.c.b16 %v2160, %v2152
    %v2385 = vpack.c.b16 %v2169, %v2161
    %v2386 = vpack.c.b16 %v2170, %v2162
    %v2387 = vpack.c.b16 %v2171, %v2163
    %v2388 = vpack.c.b16 %v2172, %v2164
    %v2389 = vpack.c.b16 %v2173, %v2165
    %v2390 = vpack.c.b16 %v2174, %v2166
    %v2391 = vpack.c.b16 %v2175, %v2167
    %v2392 = vpack.c.b16 %v2176, %v2168
    %v2393 = vpack.c.b16 %v2185, %v2177
    %v2394 = vpack.c.b16 %v2186, %v2178
    %v2395 = vpack.c.b16 %v2187, %v2179
    %v2396 = vpack.c.b16 %v2188, %v2180
    %v2397 = vpack.c.b16 %v2189, %v2181
    %v2398 = vpack.c.b16 %v2190, %v2182
    %v2399 = vpack.c.b16 %v2191, %v2183
    %v2400 = vpack.c.b16 %v2192, %v2184
    %v2401 = vpack.c.b16 %v2201, %v2193
    %v2402 = vpack.c.b16 %v2202, %v2194
    %v2403 = vpack.c.b16 %v2203, %v2195
    %v2404 = vpack.c.b16 %v2204, %v2196
    %v2405 = vpack.c.b16 %v2205, %v2197
    %v2406 = vpack.c.b16 %v2206, %v2198
    %v2407 = vpack.c.b16 %v2207, %v2199
    %v2408 = vpack.c.b16 %v2208, %v2200
    %v2409 = vpack.c.b16 %v2217, %v2209
    %v2410 = vpack.c.b16 %v2218, %v2210
    %v2411 = vpack.c.b16 %v2219, %v2211
    %v2412 = vpack.c.b16 %v2220, %v2212
    %v2413 = vpack.c.b16 %v2221, %v2213
    %v2414 = vpack.c.b16 %v2222, %v2214
    %v2415 = vpack.c.b16 %v2223, %v2215
    %v2416 = vpack.c.b16 %v2224, %v2216
    %v2417 = vpack.c.b16 %v2233, %v2225
    %v2418 = vpack.c.b16 %v2234, %v2226
    %v2419 = vpack.c.b16 %v2235, %v2227
    %v2420 = vpack.c.b16 %v2236, %v2228
    %v2421 = vpack.c.b16 %v2237, %v2229
    %v2422 = vpack.c.b16 %v2238, %v2230
    %v2423 = vpack.c.b16 %v2239, %v2231
    %v2424 = vpack.c.b16 %v2240, %v2232
    %v2425 = vpack.c.b16 %v2249, %v2241
    %v2426 = vpack.c.b16 %v2250, %v2242
    %v2427 = vpack.c.b16 %v2251, %v2243
    %v2428 = vpack.c.b16 %v2252, %v2244
    %v2429 = vpack.c.b16 %v2253, %v2245
    %v2430 = vpack.c.b16 %v2254, %v2246
    %v2431 = vpack.c.b16 %v2255, %v2247
    %v2432 = vpack.c.b16 %v2256, %v2248
    %v2433 = vpack.c.b16 %v2265, %v2257
    %v2434 = vpack.c.b16 %v2266, %v2258
    %v2435 = vpack.c.b16 %v2267, %v2259
    %v2436 = vpack.c.b16 %v2268, %v2260
    %v2437 = vpack.c.b16 %v2269, %v2261
    %v2438 = vpack.c.b16 %v2270, %v2262
    %v2439 = vpack.c.b16 %v2271, %v2263
    %v2440 = vpack.c.b16 %v2272, %v2264
    %v2441 = vpack.c.b16 %v2281, %v2273
    %v2442 = vpack.c.b16 %v2282, %v2274
    %v2443 = vpack.c.b16 %v2283, %v2275
    %v2444 = vpack.c.b16 %v2284, %v2276
    %v2445 = vpack.c.b16 %v2285, %v2277
    %v2446 = vpack.c.b16 %v2286, %v2278
    %v2447 = vpack.c.b16 %v2287, %v2279
    %v2448 = vpack.c.b16 %v2288, %v2280
    %v2449 = vpack.c.b16 %v2297, %v2289
    %v2450 = vpack.c.b16 %v2298, %v2290
    %v2451 = vpack.c.b16 %v2299, %v2291
    %v2452 = vpack.c.b16 %v2300, %v2292
    %v2453 = vpack.c.b16 %v2301, %v2293
    %v2454 = vpack.c.b16 %v2302, %v2294
    %v2455 = vpack.c.b16 %v2303, %v2295
    %v2456 = vpack.c.b16 %v2304, %v2296
    %v2457 = vpack.c.b16 %v2313, %v2305
    %v2458 = vpack.c.b16 %v2314, %v2306
    %v2459 = vpack.c.b16 %v2315, %v2307
    %v2460 = vpack.c.b16 %v2316, %v2308
    %v2461 = vpack.c.b16 %v2317, %v2309
    %v2462 = vpack.c.b16 %v2318, %v2310
    %v2463 = vpack.c.b16 %v2319, %v2311
    %v2464 = vpack.c.b16 %v2320, %v2312
    %v2465 = vpack.c.b16 %v2329, %v2321
    %v2466 = vpack.c.b16 %v2330, %v2322
    %v2467 = vpack.c.b16 %v2331, %v2323
    %v2468 = vpack.c.b16 %v2332, %v2324
    %v2469 = vpack.c.b16 %v2333, %v2325
    %v2470 = vpack.c.b16 %v2334, %v2326
    %v2471 = vpack.c.b16 %v2335, %v2327
    %v2472 = vpack.c.b16 %v2336, %v2328
    %v2473 = vpack.c.b16 %v2345, %v2337
    %v2474 = vpack.c.b16 %v2346, %v2338
    %v2475 = vpack.c.b16 %v2347, %v2339
    %v2476 = vpack.c.b16 %v2348, %v2340
    %v2477 = vpack.c.b16 %v2349, %v2341
    %v2478 = vpack.c.b16 %v2350, %v2342
    %v2479 = vpack.c.b16 %v2351, %v2343
    %v2480 = vpack.c.b16 %v2352, %v2344
    %2609 = vmatprep.subr.bf16.mxu0 %v2410
    %2610 = vmatpush1.bf16.msra.mxu0 %v2409
    %2611 = vmatprep.subr.bf16.mxu0 %v2402
    %2612 = vmatpush1.bf16.msra.mxu0 %v2401
    %2613 = vmatprep.subr.bf16.mxu0 %v2394
    %2614 = vmatpush1.bf16.msra.mxu0 %v2393
    %2615 = vmatprep.subr.bf16.mxu0 %v2386
    %2616 = vmatpush1.bf16.msra.mxu0 %v2385
    %2617 = vmatprep.subr.bf16.mxu0 %v2378
    %2618 = vmatpush1.bf16.msra.mxu0 %v2377
    %2619 = vmatprep.subr.bf16.mxu0 %v2370
    %2620 = vmatpush1.bf16.msra.mxu0 %v2369
    %2621 = vmatprep.subr.bf16.mxu0 %v2362
    %2622 = vmatpush1.bf16.msra.mxu0 %v2361
    %2623 = vmatprep.subr.bf16.mxu0 %v2354
    %2624 = vmatpush1.bf16.msra.mxu0 %v2353
    %2625 = vmatprep.subr.bf16.mxu0 %v2474
    %2626 = vmatpush2.bf16.msra.mxu0 %v2473
    %2627 = vmatprep.subr.bf16.mxu0 %v2466
    %2628 = vmatpush2.bf16.msra.mxu0 %v2465
    %2629 = vmatprep.subr.bf16.mxu0 %v2458
    %2630 = vmatpush2.bf16.msra.mxu0 %v2457
    %2631 = vmatprep.subr.bf16.mxu0 %v2450
    %2632 = vmatpush2.bf16.msra.mxu0 %v2449
    %2633 = vmatprep.subr.bf16.mxu0 %v2442
    %2634 = vmatpush2.bf16.msra.mxu0 %v2441
    %2635 = vmatprep.subr.bf16.mxu0 %v2434
    %2636 = vmatpush2.bf16.msra.mxu0 %v2433
    %2637 = vmatprep.subr.bf16.mxu0 %v2426
    %2638 = vmatpush2.bf16.msra.mxu0 %v2425
    %2639 = vmatprep.subr.bf16.mxu0 %v2418
    %2640 = vmatpush2.bf16.msra.mxu0 %v2417
    %2641 = vmatprep.mubr.bf16.mxu0 %v1840
    %2642 = vmatmul.mubr.bf16.gmra.mxu0 %v1839
    %v2643 = vpop.f32.mrf.mxu0
    %v2644 = vadd.f32 0.0, %v2643
    %v2645 = vpop.f32.mrf.mxu0
    %v2646 = vadd.f32 0.0, %v2645
    %v2647 = vpop.f32.mrf.mxu0
    %v2648 = vpop.f32.mrf.mxu0
    %2649 = vdwg.mxu0
    %2650 = vmatprep.subr.bf16.mxu0 %v2412
    %2651 = vmatpush1.bf16.msra.mxu0 %v2411
    %2652 = vmatprep.subr.bf16.mxu0 %v2404
    %2653 = vmatpush1.bf16.msra.mxu0 %v2403
    %2654 = vmatprep.subr.bf16.mxu0 %v2396
    %2655 = vmatpush1.bf16.msra.mxu0 %v2395
    %2656 = vmatprep.subr.bf16.mxu0 %v2388
    %2657 = vmatpush1.bf16.msra.mxu0 %v2387
    %2658 = vmatprep.subr.bf16.mxu0 %v2380
    %2659 = vmatpush1.bf16.msra.mxu0 %v2379
    %2660 = vmatprep.subr.bf16.mxu0 %v2372
    %2661 = vmatpush1.bf16.msra.mxu0 %v2371
    %2662 = vmatprep.subr.bf16.mxu0 %v2364
    %2663 = vmatpush1.bf16.msra.mxu0 %v2363
    %2664 = vmatprep.subr.bf16.mxu0 %v2356
    %2665 = vmatpush1.bf16.msra.mxu0 %v2355
    %2666 = vmatprep.subr.bf16.mxu0 %v2476
    %2667 = vmatpush2.bf16.msra.mxu0 %v2475
    %2668 = vmatprep.subr.bf16.mxu0 %v2468
    %2669 = vmatpush2.bf16.msra.mxu0 %v2467
    %2670 = vmatprep.subr.bf16.mxu0 %v2460
    %2671 = vmatpush2.bf16.msra.mxu0 %v2459
    %2672 = vmatprep.subr.bf16.mxu0 %v2452
    %2673 = vmatpush2.bf16.msra.mxu0 %v2451
    %2674 = vmatprep.subr.bf16.mxu0 %v2444
    %2675 = vmatpush2.bf16.msra.mxu0 %v2443
    %2676 = vmatprep.subr.bf16.mxu0 %v2436
    %2677 = vmatpush2.bf16.msra.mxu0 %v2435
    %2678 = vmatprep.subr.bf16.mxu0 %v2428
    %2679 = vmatpush2.bf16.msra.mxu0 %v2427
    %2680 = vmatprep.subr.bf16.mxu0 %v2420
    %2681 = vmatpush2.bf16.msra.mxu0 %v2419
    %2682 = vmatprep.mubr.bf16.mxu0 %v1840
    %2683 = vmatmul.mubr.bf16.gmra.mxu0 %v1839
    %v2684 = vpop.f32.mrf.mxu0
    %v2685 = vadd.f32 0.0, %v2684
    %v2686 = vpop.f32.mrf.mxu0
    %v2687 = vadd.f32 0.0, %v2686
    %v2688 = vpop.f32.mrf.mxu0
    %v2689 = vpop.f32.mrf.mxu0
    %2690 = vdwg.mxu0
    %2691 = vmatprep.subr.bf16.mxu0 %v2414
    %2692 = vmatpush1.bf16.msra.mxu0 %v2413
    %2693 = vmatprep.subr.bf16.mxu0 %v2406
    %2694 = vmatpush1.bf16.msra.mxu0 %v2405
    %2695 = vmatprep.subr.bf16.mxu0 %v2398
    %2696 = vmatpush1.bf16.msra.mxu0 %v2397
    %2697 = vmatprep.subr.bf16.mxu0 %v2390
    %2698 = vmatpush1.bf16.msra.mxu0 %v2389
    %2699 = vmatprep.subr.bf16.mxu0 %v2382
    %2700 = vmatpush1.bf16.msra.mxu0 %v2381
    %2701 = vmatprep.subr.bf16.mxu0 %v2374
    %2702 = vmatpush1.bf16.msra.mxu0 %v2373
    %2703 = vmatprep.subr.bf16.mxu0 %v2366
    %2704 = vmatpush1.bf16.msra.mxu0 %v2365
    %2705 = vmatprep.subr.bf16.mxu0 %v2358
    %2706 = vmatpush1.bf16.msra.mxu0 %v2357
    %2707 = vmatprep.subr.bf16.mxu0 %v2478
    %2708 = vmatpush2.bf16.msra.mxu0 %v2477
    %2709 = vmatprep.subr.bf16.mxu0 %v2470
    %2710 = vmatpush2.bf16.msra.mxu0 %v2469
    %2711 = vmatprep.subr.bf16.mxu0 %v2462
    %2712 = vmatpush2.bf16.msra.mxu0 %v2461
    %2713 = vmatprep.subr.bf16.mxu0 %v2454
    %2714 = vmatpush2.bf16.msra.mxu0 %v2453
    %2715 = vmatprep.subr.bf16.mxu0 %v2446
    %2716 = vmatpush2.bf16.msra.mxu0 %v2445
    %2717 = vmatprep.subr.bf16.mxu0 %v2438
    %2718 = vmatpush2.bf16.msra.mxu0 %v2437
    %2719 = vmatprep.subr.bf16.mxu0 %v2430
    %2720 = vmatpush2.bf16.msra.mxu0 %v2429
    %2721 = vmatprep.subr.bf16.mxu0 %v2422
    %2722 = vmatpush2.bf16.msra.mxu0 %v2421
    %2723 = vmatprep.mubr.bf16.mxu0 %v1840
    %2724 = vmatmul.mubr.bf16.gmra.mxu0 %v1839
    %v2725 = vpop.f32.mrf.mxu0
    %v2726 = vadd.f32 0.0, %v2725
    %v2727 = vpop.f32.mrf.mxu0
    %v2728 = vadd.f32 0.0, %v2727
    %v2729 = vpop.f32.mrf.mxu0
    %v2730 = vpop.f32.mrf.mxu0
    %2731 = vdwg.mxu0
    %2732 = vmatprep.subr.bf16.mxu0 %v2416
    %2733 = vmatpush1.bf16.msra.mxu0 %v2415
    %2734 = vmatprep.subr.bf16.mxu0 %v2408
    %2735 = vmatpush1.bf16.msra.mxu0 %v2407
    %2736 = vmatprep.subr.bf16.mxu0 %v2400
    %2737 = vmatpush1.bf16.msra.mxu0 %v2399
    %2738 = vmatprep.subr.bf16.mxu0 %v2392
    %2739 = vmatpush1.bf16.msra.mxu0 %v2391
    %2740 = vmatprep.subr.bf16.mxu0 %v2384
    %2741 = vmatpush1.bf16.msra.mxu0 %v2383
    %2742 = vmatprep.subr.bf16.mxu0 %v2376
    %2743 = vmatpush1.bf16.msra.mxu0 %v2375
    %2744 = vmatprep.subr.bf16.mxu0 %v2368
    %2745 = vmatpush1.bf16.msra.mxu0 %v2367
    %2746 = vmatprep.subr.bf16.mxu0 %v2360
    %2747 = vmatpush1.bf16.msra.mxu0 %v2359
    %2748 = vmatprep.subr.bf16.mxu0 %v2480
    %2749 = vmatpush2.bf16.msra.mxu0 %v2479
    %2750 = vmatprep.subr.bf16.mxu0 %v2472
    %2751 = vmatpush2.bf16.msra.mxu0 %v2471
    %2752 = vmatprep.subr.bf16.mxu0 %v2464
    %2753 = vmatpush2.bf16.msra.mxu0 %v2463
    %2754 = vmatprep.subr.bf16.mxu0 %v2456
    %2755 = vmatpush2.bf16.msra.mxu0 %v2455
    %2756 = vmatprep.subr.bf16.mxu0 %v2448
    %2757 = vmatpush2.bf16.msra.mxu0 %v2447
    %2758 = vmatprep.subr.bf16.mxu0 %v2440
    %2759 = vmatpush2.bf16.msra.mxu0 %v2439
    %2760 = vmatprep.subr.bf16.mxu0 %v2432
    %2761 = vmatpush2.bf16.msra.mxu0 %v2431
    %2762 = vmatprep.subr.bf16.mxu0 %v2424
    %2763 = vmatpush2.bf16.msra.mxu0 %v2423
    %2764 = vmatprep.mubr.bf16.mxu0 %v1840
    %2765 = vmatmul.mubr.bf16.gmra.mxu0 %v1839
    %v2766 = vpop.f32.mrf.mxu0
    %v2767 = vadd.f32 0.0, %v2766
    %v2768 = vpop.f32.mrf.mxu0
    %v2769 = vadd.f32 0.0, %v2768
    %v2770 = vpop.f32.mrf.mxu0
    %v2771 = vpop.f32.mrf.mxu0
    %2772 = vdwg.mxu0
    %v2773 = vld [vmem:[#allocation2 + $0x40] sm:$0xff]
    %v2774 = vld [vmem:[#allocation2 + $0x48] sm:$0xff]
    %v2775 = vld [vmem:[#allocation2 + $0x50] sm:$0xff]
    %v2776 = vld [vmem:[#allocation2 + $0x58] sm:$0xff]
    %v2777 = vadd.f32 %v2773, %v2644
    %v2778 = vadd.f32 %v2774, %v2646
    %v2779 = vadd.f32 %v2775, %v2685
    %v2780 = vadd.f32 %v2776, %v2687
    %v2781 = vld [vmem:[#allocation2 + $0x1a0] sm:$0xff]
    %v2782 = vld [vmem:[#allocation2 + $0x1a8] sm:$0xff]
    %v2783 = vld [vmem:[#allocation2 + $0x1b0] sm:$0xff]
    %v2784 = vld [vmem:[#allocation2 + $0x1b8] sm:$0xff]
    %v2785 = vadd.f32 %v2781, %v2726
    %v2786 = vadd.f32 %v2782, %v2728
    %v2787 = vadd.f32 %v2783, %v2767
    %v2788 = vadd.f32 %v2784, %v2769
    %v2789 = vxor.u32 %v2777, 2147483648
    %v2790 = vmul.f32 %v2789, 1.442695
    %v2791 = vpow.pop %v2790
    %v2792 = vadd.f32 %v2791, 1.0
    %v2793 = vrcp.pop %v2792
    %v2794 = vmul.f32 1.0, %v2793
    %v2795 = vxor.u32 %v2778, 2147483648
    %v2796 = vmul.f32 %v2795, 1.442695
    %v2797 = vpow.pop %v2796
    %v2798 = vadd.f32 %v2797, 1.0
    %v2799 = vrcp.pop %v2798
    %v2800 = vmul.f32 1.0, %v2799
    %v2801 = vmul.f32 %v2794, %v2780
    %v2802 = vadd.f32 %v2779, %v2801
    %v2803 = vtanh.pop %v2802
    %v2804 = vsub.f32 1.0, %v2800
    %v2805 = vmul.f32 %v2804, %v2803
    %v2806 = vmul.f32 %v2800, %v1816
    %v2807 = vadd.f32 %v2805, %v2806
    %v2808 = vxor.u32 %v2785, 2147483648
    %v2809 = vmul.f32 %v2808, 1.442695
    %v2810 = vpow.pop %v2809
    %v2811 = vadd.f32 %v2810, 1.0
    %v2812 = vrcp.pop %v2811
    %v2813 = vmul.f32 1.0, %v2812
    %v2814 = vxor.u32 %v2786, 2147483648
    %v2815 = vmul.f32 %v2814, 1.442695
    %v2816 = vpow.pop %v2815
    %v2817 = vadd.f32 %v2816, 1.0
    %v2818 = vrcp.pop %v2817
    %v2819 = vmul.f32 1.0, %v2818
    %v2820 = vmul.f32 %v2813, %v2788
    %v2821 = vadd.f32 %v2787, %v2820
    %v2822 = vtanh.pop %v2821
    %v2823 = vsub.f32 1.0, %v2819
    %v2824 = vmul.f32 %v2823, %v2822
    %v2825 = vmul.f32 %v2819, %v1835
    %v2826 = vadd.f32 %v2824, %v2825
    %s2827 = scalar_lea.vmem %s6, 8
    %2828 = vst [vmem:[%s2827] sm:$0xff] %v2807
    %s2829 = scalar_lea.vmem %s7, 48
    %2830 = vst [vmem:[%s2829] sm:$0xff] %v2826
    %v2831 = vpack.c.bf16 %v2807, %v2807
    %v2832 = vpack.c.bf16 %v2826, %v2826
    %v2833 = vld [vmem:[#allocation5] sm:$0xff]
    %v2834 = vld [vmem:[#allocation5 + $0x8] sm:$0xff]
    %v2835 = vld [vmem:[#allocation5 + $0x10] sm:$0xff]
    %v2836 = vld [vmem:[#allocation5 + $0x18] sm:$0xff]
    %v2837 = vld [vmem:[#allocation5 + $0x20] sm:$0xff]
    %v2838 = vld [vmem:[#allocation5 + $0x28] sm:$0xff]
    %v2839 = vld [vmem:[#allocation5 + $0x30] sm:$0xff]
    %v2840 = vld [vmem:[#allocation5 + $0x38] sm:$0xff]
    %v2841 = vld [vmem:[#allocation5 + $0x40] sm:$0xff]
    %v2842 = vld [vmem:[#allocation5 + $0x48] sm:$0xff]
    %v2843 = vld [vmem:[#allocation5 + $0x50] sm:$0xff]
    %v2844 = vld [vmem:[#allocation5 + $0x58] sm:$0xff]
    %v2845 = vld [vmem:[#allocation5 + $0x60] sm:$0xff]
    %v2846 = vld [vmem:[#allocation5 + $0x68] sm:$0xff]
    %v2847 = vld [vmem:[#allocation5 + $0x70] sm:$0xff]
    %v2848 = vld [vmem:[#allocation5 + $0x78] sm:$0xff]
    %v2849 = vld [vmem:[#allocation5 + $0x80] sm:$0xff]
    %v2850 = vld [vmem:[#allocation5 + $0x88] sm:$0xff]
    %v2851 = vld [vmem:[#allocation5 + $0x90] sm:$0xff]
    %v2852 = vld [vmem:[#allocation5 + $0x98] sm:$0xff]
    %v2853 = vld [vmem:[#allocation5 + $0xa0] sm:$0xff]
    %v2854 = vld [vmem:[#allocation5 + $0xa8] sm:$0xff]
    %v2855 = vld [vmem:[#allocation5 + $0xb0] sm:$0xff]
    %v2856 = vld [vmem:[#allocation5 + $0xb8] sm:$0xff]
    %v2857 = vld [vmem:[#allocation5 + $0xc0] sm:$0xff]
    %v2858 = vld [vmem:[#allocation5 + $0xc8] sm:$0xff]
    %v2859 = vld [vmem:[#allocation5 + $0xd0] sm:$0xff]
    %v2860 = vld [vmem:[#allocation5 + $0xd8] sm:$0xff]
    %v2861 = vld [vmem:[#allocation5 + $0xe0] sm:$0xff]
    %v2862 = vld [vmem:[#allocation5 + $0xe8] sm:$0xff]
    %v2863 = vld [vmem:[#allocation5 + $0xf0] sm:$0xff]
    %v2864 = vld [vmem:[#allocation5 + $0xf8] sm:$0xff]
    %v2865 = vld [vmem:[#allocation5 + $0x100] sm:$0xff]
    %v2866 = vld [vmem:[#allocation5 + $0x108] sm:$0xff]
    %v2867 = vld [vmem:[#allocation5 + $0x110] sm:$0xff]
    %v2868 = vld [vmem:[#allocation5 + $0x118] sm:$0xff]
    %v2869 = vld [vmem:[#allocation5 + $0x120] sm:$0xff]
    %v2870 = vld [vmem:[#allocation5 + $0x128] sm:$0xff]
    %v2871 = vld [vmem:[#allocation5 + $0x130] sm:$0xff]
    %v2872 = vld [vmem:[#allocation5 + $0x138] sm:$0xff]
    %v2873 = vld [vmem:[#allocation5 + $0x140] sm:$0xff]
    %v2874 = vld [vmem:[#allocation5 + $0x148] sm:$0xff]
    %v2875 = vld [vmem:[#allocation5 + $0x150] sm:$0xff]
    %v2876 = vld [vmem:[#allocation5 + $0x158] sm:$0xff]
    %v2877 = vld [vmem:[#allocation5 + $0x160] sm:$0xff]
    %v2878 = vld [vmem:[#allocation5 + $0x168] sm:$0xff]
    %v2879 = vld [vmem:[#allocation5 + $0x170] sm:$0xff]
    %v2880 = vld [vmem:[#allocation5 + $0x178] sm:$0xff]
    %v2881 = vld [vmem:[#allocation5 + $0x180] sm:$0xff]
    %v2882 = vld [vmem:[#allocation5 + $0x188] sm:$0xff]
    %v2883 = vld [vmem:[#allocation5 + $0x190] sm:$0xff]
    %v2884 = vld [vmem:[#allocation5 + $0x198] sm:$0xff]
    %v2885 = vld [vmem:[#allocation5 + $0x1a0] sm:$0xff]
    %v2886 = vld [vmem:[#allocation5 + $0x1a8] sm:$0xff]
    %v2887 = vld [vmem:[#allocation5 + $0x1b0] sm:$0xff]
    %v2888 = vld [vmem:[#allocation5 + $0x1b8] sm:$0xff]
    %v2889 = vld [vmem:[#allocation5 + $0x1c0] sm:$0xff]
    %v2890 = vld [vmem:[#allocation5 + $0x1c8] sm:$0xff]
    %v2891 = vld [vmem:[#allocation5 + $0x1d0] sm:$0xff]
    %v2892 = vld [vmem:[#allocation5 + $0x1d8] sm:$0xff]
    %v2893 = vld [vmem:[#allocation5 + $0x1e0] sm:$0xff]
    %v2894 = vld [vmem:[#allocation5 + $0x1e8] sm:$0xff]
    %v2895 = vld [vmem:[#allocation5 + $0x1f0] sm:$0xff]
    %v2896 = vld [vmem:[#allocation5 + $0x1f8] sm:$0xff]
    %v2897 = vld [vmem:[#allocation5 + $0x200] sm:$0xff]
    %v2898 = vld [vmem:[#allocation5 + $0x208] sm:$0xff]
    %v2899 = vld [vmem:[#allocation5 + $0x210] sm:$0xff]
    %v2900 = vld [vmem:[#allocation5 + $0x218] sm:$0xff]
    %v2901 = vld [vmem:[#allocation5 + $0x220] sm:$0xff]
    %v2902 = vld [vmem:[#allocation5 + $0x228] sm:$0xff]
    %v2903 = vld [vmem:[#allocation5 + $0x230] sm:$0xff]
    %v2904 = vld [vmem:[#allocation5 + $0x238] sm:$0xff]
    %v2905 = vld [vmem:[#allocation5 + $0x240] sm:$0xff]
    %v2906 = vld [vmem:[#allocation5 + $0x248] sm:$0xff]
    %v2907 = vld [vmem:[#allocation5 + $0x250] sm:$0xff]
    %v2908 = vld [vmem:[#allocation5 + $0x258] sm:$0xff]
    %v2909 = vld [vmem:[#allocation5 + $0x260] sm:$0xff]
    %v2910 = vld [vmem:[#allocation5 + $0x268] sm:$0xff]
    %v2911 = vld [vmem:[#allocation5 + $0x270] sm:$0xff]
    %v2912 = vld [vmem:[#allocation5 + $0x278] sm:$0xff]
    %v2913 = vld [vmem:[#allocation5 + $0x280] sm:$0xff]
    %v2914 = vld [vmem:[#allocation5 + $0x288] sm:$0xff]
    %v2915 = vld [vmem:[#allocation5 + $0x290] sm:$0xff]
    %v2916 = vld [vmem:[#allocation5 + $0x298] sm:$0xff]
    %v2917 = vld [vmem:[#allocation5 + $0x2a0] sm:$0xff]
    %v2918 = vld [vmem:[#allocation5 + $0x2a8] sm:$0xff]
    %v2919 = vld [vmem:[#allocation5 + $0x2b0] sm:$0xff]
    %v2920 = vld [vmem:[#allocation5 + $0x2b8] sm:$0xff]
    %v2921 = vld [vmem:[#allocation5 + $0x2c0] sm:$0xff]
    %v2922 = vld [vmem:[#allocation5 + $0x2c8] sm:$0xff]
    %v2923 = vld [vmem:[#allocation5 + $0x2d0] sm:$0xff]
    %v2924 = vld [vmem:[#allocation5 + $0x2d8] sm:$0xff]
    %v2925 = vld [vmem:[#allocation5 + $0x2e0] sm:$0xff]
    %v2926 = vld [vmem:[#allocation5 + $0x2e8] sm:$0xff]
    %v2927 = vld [vmem:[#allocation5 + $0x2f0] sm:$0xff]
    %v2928 = vld [vmem:[#allocation5 + $0x2f8] sm:$0xff]
    %v2929 = vld [vmem:[#allocation5 + $0x300] sm:$0xff]
    %v2930 = vld [vmem:[#allocation5 + $0x308] sm:$0xff]
    %v2931 = vld [vmem:[#allocation5 + $0x310] sm:$0xff]
    %v2932 = vld [vmem:[#allocation5 + $0x318] sm:$0xff]
    %v2933 = vld [vmem:[#allocation5 + $0x320] sm:$0xff]
    %v2934 = vld [vmem:[#allocation5 + $0x328] sm:$0xff]
    %v2935 = vld [vmem:[#allocation5 + $0x330] sm:$0xff]
    %v2936 = vld [vmem:[#allocation5 + $0x338] sm:$0xff]
    %v2937 = vld [vmem:[#allocation5 + $0x340] sm:$0xff]
    %v2938 = vld [vmem:[#allocation5 + $0x348] sm:$0xff]
    %v2939 = vld [vmem:[#allocation5 + $0x350] sm:$0xff]
    %v2940 = vld [vmem:[#allocation5 + $0x358] sm:$0xff]
    %v2941 = vld [vmem:[#allocation5 + $0x360] sm:$0xff]
    %v2942 = vld [vmem:[#allocation5 + $0x368] sm:$0xff]
    %v2943 = vld [vmem:[#allocation5 + $0x370] sm:$0xff]
    %v2944 = vld [vmem:[#allocation5 + $0x378] sm:$0xff]
    %v2945 = vld [vmem:[#allocation5 + $0x380] sm:$0xff]
    %v2946 = vld [vmem:[#allocation5 + $0x388] sm:$0xff]
    %v2947 = vld [vmem:[#allocation5 + $0x390] sm:$0xff]
    %v2948 = vld [vmem:[#allocation5 + $0x398] sm:$0xff]
    %v2949 = vld [vmem:[#allocation5 + $0x3a0] sm:$0xff]
    %v2950 = vld [vmem:[#allocation5 + $0x3a8] sm:$0xff]
    %v2951 = vld [vmem:[#allocation5 + $0x3b0] sm:$0xff]
    %v2952 = vld [vmem:[#allocation5 + $0x3b8] sm:$0xff]
    %v2953 = vld [vmem:[#allocation5 + $0x3c0] sm:$0xff]
    %v2954 = vld [vmem:[#allocation5 + $0x3c8] sm:$0xff]
    %v2955 = vld [vmem:[#allocation5 + $0x3d0] sm:$0xff]
    %v2956 = vld [vmem:[#allocation5 + $0x3d8] sm:$0xff]
    %v2957 = vld [vmem:[#allocation5 + $0x3e0] sm:$0xff]
    %v2958 = vld [vmem:[#allocation5 + $0x3e8] sm:$0xff]
    %v2959 = vld [vmem:[#allocation5 + $0x3f0] sm:$0xff]
    %v2960 = vld [vmem:[#allocation5 + $0x3f8] sm:$0xff]
    %v3089 = vunpack.c.l.b16 %v2833
    %v3090 = vunpack.c.h.b16 %v2833
    %v3091 = vunpack.c.l.b16 %v2834
    %v3092 = vunpack.c.h.b16 %v2834
    %v3093 = vunpack.c.l.b16 %v2835
    %v3094 = vunpack.c.h.b16 %v2835
    %v3095 = vunpack.c.l.b16 %v2836
    %v3096 = vunpack.c.h.b16 %v2836
    %v3097 = vunpack.c.l.b16 %v2837
    %v3098 = vunpack.c.h.b16 %v2837
    %v3099 = vunpack.c.l.b16 %v2838
    %v3100 = vunpack.c.h.b16 %v2838
    %v3101 = vunpack.c.l.b16 %v2839
    %v3102 = vunpack.c.h.b16 %v2839
    %v3103 = vunpack.c.l.b16 %v2840
    %v3104 = vunpack.c.h.b16 %v2840
    %v3105 = vunpack.c.l.b16 %v2841
    %v3106 = vunpack.c.h.b16 %v2841
    %v3107 = vunpack.c.l.b16 %v2842
    %v3108 = vunpack.c.h.b16 %v2842
    %v3109 = vunpack.c.l.b16 %v2843
    %v3110 = vunpack.c.h.b16 %v2843
    %v3111 = vunpack.c.l.b16 %v2844
    %v3112 = vunpack.c.h.b16 %v2844
    %v3113 = vunpack.c.l.b16 %v2845
    %v3114 = vunpack.c.h.b16 %v2845
    %v3115 = vunpack.c.l.b16 %v2846
    %v3116 = vunpack.c.h.b16 %v2846
    %v3117 = vunpack.c.l.b16 %v2847
    %v3118 = vunpack.c.h.b16 %v2847
    %v3119 = vunpack.c.l.b16 %v2848
    %v3120 = vunpack.c.h.b16 %v2848
    %v3121 = vunpack.c.l.b16 %v2849
    %v3122 = vunpack.c.h.b16 %v2849
    %v3123 = vunpack.c.l.b16 %v2850
    %v3124 = vunpack.c.h.b16 %v2850
    %v3125 = vunpack.c.l.b16 %v2851
    %v3126 = vunpack.c.h.b16 %v2851
    %v3127 = vunpack.c.l.b16 %v2852
    %v3128 = vunpack.c.h.b16 %v2852
    %v3129 = vunpack.c.l.b16 %v2853
    %v3130 = vunpack.c.h.b16 %v2853
    %v3131 = vunpack.c.l.b16 %v2854
    %v3132 = vunpack.c.h.b16 %v2854
    %v3133 = vunpack.c.l.b16 %v2855
    %v3134 = vunpack.c.h.b16 %v2855
    %v3135 = vunpack.c.l.b16 %v2856
    %v3136 = vunpack.c.h.b16 %v2856
    %v3137 = vunpack.c.l.b16 %v2857
    %v3138 = vunpack.c.h.b16 %v2857
    %v3139 = vunpack.c.l.b16 %v2858
    %v3140 = vunpack.c.h.b16 %v2858
    %v3141 = vunpack.c.l.b16 %v2859
    %v3142 = vunpack.c.h.b16 %v2859
    %v3143 = vunpack.c.l.b16 %v2860
    %v3144 = vunpack.c.h.b16 %v2860
    %v3145 = vunpack.c.l.b16 %v2861
    %v3146 = vunpack.c.h.b16 %v2861
    %v3147 = vunpack.c.l.b16 %v2862
    %v3148 = vunpack.c.h.b16 %v2862
    %v3149 = vunpack.c.l.b16 %v2863
    %v3150 = vunpack.c.h.b16 %v2863
    %v3151 = vunpack.c.l.b16 %v2864
    %v3152 = vunpack.c.h.b16 %v2864
    %v3153 = vunpack.c.l.b16 %v2865
    %v3154 = vunpack.c.h.b16 %v2865
    %v3155 = vunpack.c.l.b16 %v2866
    %v3156 = vunpack.c.h.b16 %v2866
    %v3157 = vunpack.c.l.b16 %v2867
    %v3158 = vunpack.c.h.b16 %v2867
    %v3159 = vunpack.c.l.b16 %v2868
    %v3160 = vunpack.c.h.b16 %v2868
    %v3161 = vunpack.c.l.b16 %v2869
    %v3162 = vunpack.c.h.b16 %v2869
    %v3163 = vunpack.c.l.b16 %v2870
    %v3164 = vunpack.c.h.b16 %v2870
    %v3165 = vunpack.c.l.b16 %v2871
    %v3166 = vunpack.c.h.b16 %v2871
    %v3167 = vunpack.c.l.b16 %v2872
    %v3168 = vunpack.c.h.b16 %v2872
    %v3169 = vunpack.c.l.b16 %v2873
    %v3170 = vunpack.c.h.b16 %v2873
    %v3171 = vunpack.c.l.b16 %v2874
    %v3172 = vunpack.c.h.b16 %v2874
    %v3173 = vunpack.c.l.b16 %v2875
    %v3174 = vunpack.c.h.b16 %v2875
    %v3175 = vunpack.c.l.b16 %v2876
    %v3176 = vunpack.c.h.b16 %v2876
    %v3177 = vunpack.c.l.b16 %v2877
    %v3178 = vunpack.c.h.b16 %v2877
    %v3179 = vunpack.c.l.b16 %v2878
    %v3180 = vunpack.c.h.b16 %v2878
    %v3181 = vunpack.c.l.b16 %v2879
    %v3182 = vunpack.c.h.b16 %v2879
    %v3183 = vunpack.c.l.b16 %v2880
    %v3184 = vunpack.c.h.b16 %v2880
    %v3185 = vunpack.c.l.b16 %v2881
    %v3186 = vunpack.c.h.b16 %v2881
    %v3187 = vunpack.c.l.b16 %v2882
    %v3188 = vunpack.c.h.b16 %v2882
    %v3189 = vunpack.c.l.b16 %v2883
    %v3190 = vunpack.c.h.b16 %v2883
    %v3191 = vunpack.c.l.b16 %v2884
    %v3192 = vunpack.c.h.b16 %v2884
    %v3193 = vunpack.c.l.b16 %v2885
    %v3194 = vunpack.c.h.b16 %v2885
    %v3195 = vunpack.c.l.b16 %v2886
    %v3196 = vunpack.c.h.b16 %v2886
    %v3197 = vunpack.c.l.b16 %v2887
    %v3198 = vunpack.c.h.b16 %v2887
    %v3199 = vunpack.c.l.b16 %v2888
    %v3200 = vunpack.c.h.b16 %v2888
    %v3201 = vunpack.c.l.b16 %v2889
    %v3202 = vunpack.c.h.b16 %v2889
    %v3203 = vunpack.c.l.b16 %v2890
    %v3204 = vunpack.c.h.b16 %v2890
    %v3205 = vunpack.c.l.b16 %v2891
    %v3206 = vunpack.c.h.b16 %v2891
    %v3207 = vunpack.c.l.b16 %v2892
    %v3208 = vunpack.c.h.b16 %v2892
    %v3209 = vunpack.c.l.b16 %v2893
    %v3210 = vunpack.c.h.b16 %v2893
    %v3211 = vunpack.c.l.b16 %v2894
    %v3212 = vunpack.c.h.b16 %v2894
    %v3213 = vunpack.c.l.b16 %v2895
    %v3214 = vunpack.c.h.b16 %v2895
    %v3215 = vunpack.c.l.b16 %v2896
    %v3216 = vunpack.c.h.b16 %v2896
    %v3217 = vunpack.c.l.b16 %v2897
    %v3218 = vunpack.c.h.b16 %v2897
    %v3219 = vunpack.c.l.b16 %v2898
    %v3220 = vunpack.c.h.b16 %v2898
    %v3221 = vunpack.c.l.b16 %v2899
    %v3222 = vunpack.c.h.b16 %v2899
    %v3223 = vunpack.c.l.b16 %v2900
    %v3224 = vunpack.c.h.b16 %v2900
    %v3225 = vunpack.c.l.b16 %v2901
    %v3226 = vunpack.c.h.b16 %v2901
    %v3227 = vunpack.c.l.b16 %v2902
    %v3228 = vunpack.c.h.b16 %v2902
    %v3229 = vunpack.c.l.b16 %v2903
    %v3230 = vunpack.c.h.b16 %v2903
    %v3231 = vunpack.c.l.b16 %v2904
    %v3232 = vunpack.c.h.b16 %v2904
    %v3233 = vunpack.c.l.b16 %v2905
    %v3234 = vunpack.c.h.b16 %v2905
    %v3235 = vunpack.c.l.b16 %v2906
    %v3236 = vunpack.c.h.b16 %v2906
    %v3237 = vunpack.c.l.b16 %v2907
    %v3238 = vunpack.c.h.b16 %v2907
    %v3239 = vunpack.c.l.b16 %v2908
    %v3240 = vunpack.c.h.b16 %v2908
    %v3241 = vunpack.c.l.b16 %v2909
    %v3242 = vunpack.c.h.b16 %v2909
    %v3243 = vunpack.c.l.b16 %v2910
    %v3244 = vunpack.c.h.b16 %v2910
    %v3245 = vunpack.c.l.b16 %v2911
    %v3246 = vunpack.c.h.b16 %v2911
    %v3247 = vunpack.c.l.b16 %v2912
    %v3248 = vunpack.c.h.b16 %v2912
    %v3249 = vunpack.c.l.b16 %v2913
    %v3250 = vunpack.c.h.b16 %v2913
    %v3251 = vunpack.c.l.b16 %v2914
    %v3252 = vunpack.c.h.b16 %v2914
    %v3253 = vunpack.c.l.b16 %v2915
    %v3254 = vunpack.c.h.b16 %v2915
    %v3255 = vunpack.c.l.b16 %v2916
    %v3256 = vunpack.c.h.b16 %v2916
    %v3257 = vunpack.c.l.b16 %v2917
    %v3258 = vunpack.c.h.b16 %v2917
    %v3259 = vunpack.c.l.b16 %v2918
    %v3260 = vunpack.c.h.b16 %v2918
    %v3261 = vunpack.c.l.b16 %v2919
    %v3262 = vunpack.c.h.b16 %v2919
    %v3263 = vunpack.c.l.b16 %v2920
    %v3264 = vunpack.c.h.b16 %v2920
    %v3265 = vunpack.c.l.b16 %v2921
    %v3266 = vunpack.c.h.b16 %v2921
    %v3267 = vunpack.c.l.b16 %v2922
    %v3268 = vunpack.c.h.b16 %v2922
    %v3269 = vunpack.c.l.b16 %v2923
    %v3270 = vunpack.c.h.b16 %v2923
    %v3271 = vunpack.c.l.b16 %v2924
    %v3272 = vunpack.c.h.b16 %v2924
    %v3273 = vunpack.c.l.b16 %v2925
    %v3274 = vunpack.c.h.b16 %v2925
    %v3275 = vunpack.c.l.b16 %v2926
    %v3276 = vunpack.c.h.b16 %v2926
    %v3277 = vunpack.c.l.b16 %v2927
    %v3278 = vunpack.c.h.b16 %v2927
    %v3279 = vunpack.c.l.b16 %v2928
    %v3280 = vunpack.c.h.b16 %v2928
    %v3281 = vunpack.c.l.b16 %v2929
    %v3282 = vunpack.c.h.b16 %v2929
    %v3283 = vunpack.c.l.b16 %v2930
    %v3284 = vunpack.c.h.b16 %v2930
    %v3285 = vunpack.c.l.b16 %v2931
    %v3286 = vunpack.c.h.b16 %v2931
    %v3287 = vunpack.c.l.b16 %v2932
    %v3288 = vunpack.c.h.b16 %v2932
    %v3289 = vunpack.c.l.b16 %v2933
    %v3290 = vunpack.c.h.b16 %v2933
    %v3291 = vunpack.c.l.b16 %v2934
    %v3292 = vunpack.c.h.b16 %v2934
    %v3293 = vunpack.c.l.b16 %v2935
    %v3294 = vunpack.c.h.b16 %v2935
    %v3295 = vunpack.c.l.b16 %v2936
    %v3296 = vunpack.c.h.b16 %v2936
    %v3297 = vunpack.c.l.b16 %v2937
    %v3298 = vunpack.c.h.b16 %v2937
    %v3299 = vunpack.c.l.b16 %v2938
    %v3300 = vunpack.c.h.b16 %v2938
    %v3301 = vunpack.c.l.b16 %v2939
    %v3302 = vunpack.c.h.b16 %v2939
    %v3303 = vunpack.c.l.b16 %v2940
    %v3304 = vunpack.c.h.b16 %v2940
    %v3305 = vunpack.c.l.b16 %v2941
    %v3306 = vunpack.c.h.b16 %v2941
    %v3307 = vunpack.c.l.b16 %v2942
    %v3308 = vunpack.c.h.b16 %v2942
    %v3309 = vunpack.c.l.b16 %v2943
    %v3310 = vunpack.c.h.b16 %v2943
    %v3311 = vunpack.c.l.b16 %v2944
    %v3312 = vunpack.c.h.b16 %v2944
    %v3313 = vunpack.c.l.b16 %v2945
    %v3314 = vunpack.c.h.b16 %v2945
    %v3315 = vunpack.c.l.b16 %v2946
    %v3316 = vunpack.c.h.b16 %v2946
    %v3317 = vunpack.c.l.b16 %v2947
    %v3318 = vunpack.c.h.b16 %v2947
    %v3319 = vunpack.c.l.b16 %v2948
    %v3320 = vunpack.c.h.b16 %v2948
    %v3321 = vunpack.c.l.b16 %v2949
    %v3322 = vunpack.c.h.b16 %v2949
    %v3323 = vunpack.c.l.b16 %v2950
    %v3324 = vunpack.c.h.b16 %v2950
    %v3325 = vunpack.c.l.b16 %v2951
    %v3326 = vunpack.c.h.b16 %v2951
    %v3327 = vunpack.c.l.b16 %v2952
    %v3328 = vunpack.c.h.b16 %v2952
    %v3329 = vunpack.c.l.b16 %v2953
    %v3330 = vunpack.c.h.b16 %v2953
    %v3331 = vunpack.c.l.b16 %v2954
    %v3332 = vunpack.c.h.b16 %v2954
    %v3333 = vunpack.c.l.b16 %v2955
    %v3334 = vunpack.c.h.b16 %v2955
    %v3335 = vunpack.c.l.b16 %v2956
    %v3336 = vunpack.c.h.b16 %v2956
    %v3337 = vunpack.c.l.b16 %v2957
    %v3338 = vunpack.c.h.b16 %v2957
    %v3339 = vunpack.c.l.b16 %v2958
    %v3340 = vunpack.c.h.b16 %v2958
    %v3341 = vunpack.c.l.b16 %v2959
    %v3342 = vunpack.c.h.b16 %v2959
    %v3343 = vunpack.c.l.b16 %v2960
    %v3344 = vunpack.c.h.b16 %v2960
    %v3345 = vpack.c.b16 %v3097, %v3089
    %v3346 = vpack.c.b16 %v3098, %v3090
    %v3347 = vpack.c.b16 %v3099, %v3091
    %v3348 = vpack.c.b16 %v3100, %v3092
    %v3349 = vpack.c.b16 %v3101, %v3093
    %v3350 = vpack.c.b16 %v3102, %v3094
    %v3351 = vpack.c.b16 %v3103, %v3095
    %v3352 = vpack.c.b16 %v3104, %v3096
    %v3353 = vpack.c.b16 %v3113, %v3105
    %v3354 = vpack.c.b16 %v3114, %v3106
    %v3355 = vpack.c.b16 %v3115, %v3107
    %v3356 = vpack.c.b16 %v3116, %v3108
    %v3357 = vpack.c.b16 %v3117, %v3109
    %v3358 = vpack.c.b16 %v3118, %v3110
    %v3359 = vpack.c.b16 %v3119, %v3111
    %v3360 = vpack.c.b16 %v3120, %v3112
    %v3361 = vpack.c.b16 %v3129, %v3121
    %v3362 = vpack.c.b16 %v3130, %v3122
    %v3363 = vpack.c.b16 %v3131, %v3123
    %v3364 = vpack.c.b16 %v3132, %v3124
    %v3365 = vpack.c.b16 %v3133, %v3125
    %v3366 = vpack.c.b16 %v3134, %v3126
    %v3367 = vpack.c.b16 %v3135, %v3127
    %v3368 = vpack.c.b16 %v3136, %v3128
    %v3369 = vpack.c.b16 %v3145, %v3137
    %v3370 = vpack.c.b16 %v3146, %v3138
    %v3371 = vpack.c.b16 %v3147, %v3139
    %v3372 = vpack.c.b16 %v3148, %v3140
    %v3373 = vpack.c.b16 %v3149, %v3141
    %v3374 = vpack.c.b16 %v3150, %v3142
    %v3375 = vpack.c.b16 %v3151, %v3143
    %v3376 = vpack.c.b16 %v3152, %v3144
    %v3377 = vpack.c.b16 %v3161, %v3153
    %v3378 = vpack.c.b16 %v3162, %v3154
    %v3379 = vpack.c.b16 %v3163, %v3155
    %v3380 = vpack.c.b16 %v3164, %v3156
    %v3381 = vpack.c.b16 %v3165, %v3157
    %v3382 = vpack.c.b16 %v3166, %v3158
    %v3383 = vpack.c.b16 %v3167, %v3159
    %v3384 = vpack.c.b16 %v3168, %v3160
    %v3385 = vpack.c.b16 %v3177, %v3169
    %v3386 = vpack.c.b16 %v3178, %v3170
    %v3387 = vpack.c.b16 %v3179, %v3171
    %v3388 = vpack.c.b16 %v3180, %v3172
    %v3389 = vpack.c.b16 %v3181, %v3173
    %v3390 = vpack.c.b16 %v3182, %v3174
    %v3391 = vpack.c.b16 %v3183, %v3175
    %v3392 = vpack.c.b16 %v3184, %v3176
    %v3393 = vpack.c.b16 %v3193, %v3185
    %v3394 = vpack.c.b16 %v3194, %v3186
    %v3395 = vpack.c.b16 %v3195, %v3187
    %v3396 = vpack.c.b16 %v3196, %v3188
    %v3397 = vpack.c.b16 %v3197, %v3189
    %v3398 = vpack.c.b16 %v3198, %v3190
    %v3399 = vpack.c.b16 %v3199, %v3191
    %v3400 = vpack.c.b16 %v3200, %v3192
    %v3401 = vpack.c.b16 %v3209, %v3201
    %v3402 = vpack.c.b16 %v3210, %v3202
    %v3403 = vpack.c.b16 %v3211, %v3203
    %v3404 = vpack.c.b16 %v3212, %v3204
    %v3405 = vpack.c.b16 %v3213, %v3205
    %v3406 = vpack.c.b16 %v3214, %v3206
    %v3407 = vpack.c.b16 %v3215, %v3207
    %v3408 = vpack.c.b16 %v3216, %v3208
    %v3409 = vpack.c.b16 %v3225, %v3217
    %v3410 = vpack.c.b16 %v3226, %v3218
    %v3411 = vpack.c.b16 %v3227, %v3219
    %v3412 = vpack.c.b16 %v3228, %v3220
    %v3413 = vpack.c.b16 %v3229, %v3221
    %v3414 = vpack.c.b16 %v3230, %v3222
    %v3415 = vpack.c.b16 %v3231, %v3223
    %v3416 = vpack.c.b16 %v3232, %v3224
    %v3417 = vpack.c.b16 %v3241, %v3233
    %v3418 = vpack.c.b16 %v3242, %v3234
    %v3419 = vpack.c.b16 %v3243, %v3235
    %v3420 = vpack.c.b16 %v3244, %v3236
    %v3421 = vpack.c.b16 %v3245, %v3237
    %v3422 = vpack.c.b16 %v3246, %v3238
    %v3423 = vpack.c.b16 %v3247, %v3239
    %v3424 = vpack.c.b16 %v3248, %v3240
    %v3425 = vpack.c.b16 %v3257, %v3249
    %v3426 = vpack.c.b16 %v3258, %v3250
    %v3427 = vpack.c.b16 %v3259, %v3251
    %v3428 = vpack.c.b16 %v3260, %v3252
    %v3429 = vpack.c.b16 %v3261, %v3253
    %v3430 = vpack.c.b16 %v3262, %v3254
    %v3431 = vpack.c.b16 %v3263, %v3255
    %v3432 = vpack.c.b16 %v3264, %v3256
    %v3433 = vpack.c.b16 %v3273, %v3265
    %v3434 = vpack.c.b16 %v3274, %v3266
    %v3435 = vpack.c.b16 %v3275, %v3267
    %v3436 = vpack.c.b16 %v3276, %v3268
    %v3437 = vpack.c.b16 %v3277, %v3269
    %v3438 = vpack.c.b16 %v3278, %v3270
    %v3439 = vpack.c.b16 %v3279, %v3271
    %v3440 = vpack.c.b16 %v3280, %v3272
    %v3441 = vpack.c.b16 %v3289, %v3281
    %v3442 = vpack.c.b16 %v3290, %v3282
    %v3443 = vpack.c.b16 %v3291, %v3283
    %v3444 = vpack.c.b16 %v3292, %v3284
    %v3445 = vpack.c.b16 %v3293, %v3285
    %v3446 = vpack.c.b16 %v3294, %v3286
    %v3447 = vpack.c.b16 %v3295, %v3287
    %v3448 = vpack.c.b16 %v3296, %v3288
    %v3449 = vpack.c.b16 %v3305, %v3297
    %v3450 = vpack.c.b16 %v3306, %v3298
    %v3451 = vpack.c.b16 %v3307, %v3299
    %v3452 = vpack.c.b16 %v3308, %v3300
    %v3453 = vpack.c.b16 %v3309, %v3301
    %v3454 = vpack.c.b16 %v3310, %v3302
    %v3455 = vpack.c.b16 %v3311, %v3303
    %v3456 = vpack.c.b16 %v3312, %v3304
    %v3457 = vpack.c.b16 %v3321, %v3313
    %v3458 = vpack.c.b16 %v3322, %v3314
    %v3459 = vpack.c.b16 %v3323, %v3315
    %v3460 = vpack.c.b16 %v3324, %v3316
    %v3461 = vpack.c.b16 %v3325, %v3317
    %v3462 = vpack.c.b16 %v3326, %v3318
    %v3463 = vpack.c.b16 %v3327, %v3319
    %v3464 = vpack.c.b16 %v3328, %v3320
    %v3465 = vpack.c.b16 %v3337, %v3329
    %v3466 = vpack.c.b16 %v3338, %v3330
    %v3467 = vpack.c.b16 %v3339, %v3331
    %v3468 = vpack.c.b16 %v3340, %v3332
    %v3469 = vpack.c.b16 %v3341, %v3333
    %v3470 = vpack.c.b16 %v3342, %v3334
    %v3471 = vpack.c.b16 %v3343, %v3335
    %v3472 = vpack.c.b16 %v3344, %v3336
    %3601 = vmatprep.subr.bf16.mxu0 %v3402
    %3602 = vmatpush1.bf16.msra.mxu0 %v3401
    %3603 = vmatprep.subr.bf16.mxu0 %v3394
    %3604 = vmatpush1.bf16.msra.mxu0 %v3393
    %3605 = vmatprep.subr.bf16.mxu0 %v3386
    %3606 = vmatpush1.bf16.msra.mxu0 %v3385
    %3607 = vmatprep.subr.bf16.mxu0 %v3378
    %3608 = vmatpush1.bf16.msra.mxu0 %v3377
    %3609 = vmatprep.subr.bf16.mxu0 %v3370
    %3610 = vmatpush1.bf16.msra.mxu0 %v3369
    %3611 = vmatprep.subr.bf16.mxu0 %v3362
    %3612 = vmatpush1.bf16.msra.mxu0 %v3361
    %3613 = vmatprep.subr.bf16.mxu0 %v3354
    %3614 = vmatpush1.bf16.msra.mxu0 %v3353
    %3615 = vmatprep.subr.bf16.mxu0 %v3346
    %3616 = vmatpush1.bf16.msra.mxu0 %v3345
    %3617 = vmatprep.subr.bf16.mxu0 %v3466
    %3618 = vmatpush2.bf16.msra.mxu0 %v3465
    %3619 = vmatprep.subr.bf16.mxu0 %v3458
    %3620 = vmatpush2.bf16.msra.mxu0 %v3457
    %3621 = vmatprep.subr.bf16.mxu0 %v3450
    %3622 = vmatpush2.bf16.msra.mxu0 %v3449
    %3623 = vmatprep.subr.bf16.mxu0 %v3442
    %3624 = vmatpush2.bf16.msra.mxu0 %v3441
    %3625 = vmatprep.subr.bf16.mxu0 %v3434
    %3626 = vmatpush2.bf16.msra.mxu0 %v3433
    %3627 = vmatprep.subr.bf16.mxu0 %v3426
    %3628 = vmatpush2.bf16.msra.mxu0 %v3425
    %3629 = vmatprep.subr.bf16.mxu0 %v3418
    %3630 = vmatpush2.bf16.msra.mxu0 %v3417
    %3631 = vmatprep.subr.bf16.mxu0 %v3410
    %3632 = vmatpush2.bf16.msra.mxu0 %v3409
    %3633 = vmatprep.mubr.bf16.mxu0 %v2832
    %3634 = vmatmul.mubr.bf16.gmra.mxu0 %v2831
    %v3635 = vpop.f32.mrf.mxu0
    %v3636 = vadd.f32 0.0, %v3635
    %v3637 = vpop.f32.mrf.mxu0
    %v3638 = vadd.f32 0.0, %v3637
    %v3639 = vpop.f32.mrf.mxu0
    %v3640 = vpop.f32.mrf.mxu0
    %3641 = vdwg.mxu0
    %3642 = vmatprep.subr.bf16.mxu0 %v3404
    %3643 = vmatpush1.bf16.msra.mxu0 %v3403
    %3644 = vmatprep.subr.bf16.mxu0 %v3396
    %3645 = vmatpush1.bf16.msra.mxu0 %v3395
    %3646 = vmatprep.subr.bf16.mxu0 %v3388
    %3647 = vmatpush1.bf16.msra.mxu0 %v3387
    %3648 = vmatprep.subr.bf16.mxu0 %v3380
    %3649 = vmatpush1.bf16.msra.mxu0 %v3379
    %3650 = vmatprep.subr.bf16.mxu0 %v3372
    %3651 = vmatpush1.bf16.msra.mxu0 %v3371
    %3652 = vmatprep.subr.bf16.mxu0 %v3364
    %3653 = vmatpush1.bf16.msra.mxu0 %v3363
    %3654 = vmatprep.subr.bf16.mxu0 %v3356
    %3655 = vmatpush1.bf16.msra.mxu0 %v3355
    %3656 = vmatprep.subr.bf16.mxu0 %v3348
    %3657 = vmatpush1.bf16.msra.mxu0 %v3347
    %3658 = vmatprep.subr.bf16.mxu0 %v3468
    %3659 = vmatpush2.bf16.msra.mxu0 %v3467
    %3660 = vmatprep.subr.bf16.mxu0 %v3460
    %3661 = vmatpush2.bf16.msra.mxu0 %v3459
    %3662 = vmatprep.subr.bf16.mxu0 %v3452
    %3663 = vmatpush2.bf16.msra.mxu0 %v3451
    %3664 = vmatprep.subr.bf16.mxu0 %v3444
    %3665 = vmatpush2.bf16.msra.mxu0 %v3443
    %3666 = vmatprep.subr.bf16.mxu0 %v3436
    %3667 = vmatpush2.bf16.msra.mxu0 %v3435
    %3668 = vmatprep.subr.bf16.mxu0 %v3428
    %3669 = vmatpush2.bf16.msra.mxu0 %v3427
    %3670 = vmatprep.subr.bf16.mxu0 %v3420
    %3671 = vmatpush2.bf16.msra.mxu0 %v3419
    %3672 = vmatprep.subr.bf16.mxu0 %v3412
    %3673 = vmatpush2.bf16.msra.mxu0 %v3411
    %3674 = vmatprep.mubr.bf16.mxu0 %v2832
    %3675 = vmatmul.mubr.bf16.gmra.mxu0 %v2831
    %v3676 = vpop.f32.mrf.mxu0
    %v3677 = vadd.f32 0.0, %v3676
    %v3678 = vpop.f32.mrf.mxu0
    %v3679 = vadd.f32 0.0, %v3678
    %v3680 = vpop.f32.mrf.mxu0
    %v3681 = vpop.f32.mrf.mxu0
    %3682 = vdwg.mxu0
    %3683 = vmatprep.subr.bf16.mxu0 %v3406
    %3684 = vmatpush1.bf16.msra.mxu0 %v3405
    %3685 = vmatprep.subr.bf16.mxu0 %v3398
    %3686 = vmatpush1.bf16.msra.mxu0 %v3397
    %3687 = vmatprep.subr.bf16.mxu0 %v3390
    %3688 = vmatpush1.bf16.msra.mxu0 %v3389
    %3689 = vmatprep.subr.bf16.mxu0 %v3382
    %3690 = vmatpush1.bf16.msra.mxu0 %v3381
    %3691 = vmatprep.subr.bf16.mxu0 %v3374
    %3692 = vmatpush1.bf16.msra.mxu0 %v3373
    %3693 = vmatprep.subr.bf16.mxu0 %v3366
    %3694 = vmatpush1.bf16.msra.mxu0 %v3365
    %3695 = vmatprep.subr.bf16.mxu0 %v3358
    %3696 = vmatpush1.bf16.msra.mxu0 %v3357
    %3697 = vmatprep.subr.bf16.mxu0 %v3350
    %3698 = vmatpush1.bf16.msra.mxu0 %v3349
    %3699 = vmatprep.subr.bf16.mxu0 %v3470
    %3700 = vmatpush2.bf16.msra.mxu0 %v3469
    %3701 = vmatprep.subr.bf16.mxu0 %v3462
    %3702 = vmatpush2.bf16.msra.mxu0 %v3461
    %3703 = vmatprep.subr.bf16.mxu0 %v3454
    %3704 = vmatpush2.bf16.msra.mxu0 %v3453
    %3705 = vmatprep.subr.bf16.mxu0 %v3446
    %3706 = vmatpush2.bf16.msra.mxu0 %v3445
    %3707 = vmatprep.subr.bf16.mxu0 %v3438
    %3708 = vmatpush2.bf16.msra.mxu0 %v3437
    %3709 = vmatprep.subr.bf16.mxu0 %v3430
    %3710 = vmatpush2.bf16.msra.mxu0 %v3429
    %3711 = vmatprep.subr.bf16.mxu0 %v3422
    %3712 = vmatpush2.bf16.msra.mxu0 %v3421
    %3713 = vmatprep.subr.bf16.mxu0 %v3414
    %3714 = vmatpush2.bf16.msra.mxu0 %v3413
    %3715 = vmatprep.mubr.bf16.mxu0 %v2832
    %3716 = vmatmul.mubr.bf16.gmra.mxu0 %v2831
    %v3717 = vpop.f32.mrf.mxu0
    %v3718 = vadd.f32 0.0, %v3717
    %v3719 = vpop.f32.mrf.mxu0
    %v3720 = vadd.f32 0.0, %v3719
    %v3721 = vpop.f32.mrf.mxu0
    %v3722 = vpop.f32.mrf.mxu0
    %3723 = vdwg.mxu0
    %3724 = vmatprep.subr.bf16.mxu0 %v3408
    %3725 = vmatpush1.bf16.msra.mxu0 %v3407
    %3726 = vmatprep.subr.bf16.mxu0 %v3400
    %3727 = vmatpush1.bf16.msra.mxu0 %v3399
    %3728 = vmatprep.subr.bf16.mxu0 %v3392
    %3729 = vmatpush1.bf16.msra.mxu0 %v3391
    %3730 = vmatprep.subr.bf16.mxu0 %v3384
    %3731 = vmatpush1.bf16.msra.mxu0 %v3383
    %3732 = vmatprep.subr.bf16.mxu0 %v3376
    %3733 = vmatpush1.bf16.msra.mxu0 %v3375
    %3734 = vmatprep.subr.bf16.mxu0 %v3368
    %3735 = vmatpush1.bf16.msra.mxu0 %v3367
    %3736 = vmatprep.subr.bf16.mxu0 %v3360
    %3737 = vmatpush1.bf16.msra.mxu0 %v3359
    %3738 = vmatprep.subr.bf16.mxu0 %v3352
    %3739 = vmatpush1.bf16.msra.mxu0 %v3351
    %3740 = vmatprep.subr.bf16.mxu0 %v3472
    %3741 = vmatpush2.bf16.msra.mxu0 %v3471
    %3742 = vmatprep.subr.bf16.mxu0 %v3464
    %3743 = vmatpush2.bf16.msra.mxu0 %v3463
    %3744 = vmatprep.subr.bf16.mxu0 %v3456
    %3745 = vmatpush2.bf16.msra.mxu0 %v3455
    %3746 = vmatprep.subr.bf16.mxu0 %v3448
    %3747 = vmatpush2.bf16.msra.mxu0 %v3447
    %3748 = vmatprep.subr.bf16.mxu0 %v3440
    %3749 = vmatpush2.bf16.msra.mxu0 %v3439
    %3750 = vmatprep.subr.bf16.mxu0 %v3432
    %3751 = vmatpush2.bf16.msra.mxu0 %v3431
    %3752 = vmatprep.subr.bf16.mxu0 %v3424
    %3753 = vmatpush2.bf16.msra.mxu0 %v3423
    %3754 = vmatprep.subr.bf16.mxu0 %v3416
    %3755 = vmatpush2.bf16.msra.mxu0 %v3415
    %3756 = vmatprep.mubr.bf16.mxu0 %v2832
    %3757 = vmatmul.mubr.bf16.gmra.mxu0 %v2831
    %v3758 = vpop.f32.mrf.mxu0
    %v3759 = vadd.f32 0.0, %v3758
    %v3760 = vpop.f32.mrf.mxu0
    %v3761 = vadd.f32 0.0, %v3760
    %v3762 = vpop.f32.mrf.mxu0
    %v3763 = vpop.f32.mrf.mxu0
    %3764 = vdwg.mxu0
    %v3765 = vld [vmem:[#allocation2 + $0x80] sm:$0xff]
    %v3766 = vld [vmem:[#allocation2 + $0x88] sm:$0xff]
    %v3767 = vld [vmem:[#allocation2 + $0x90] sm:$0xff]
    %v3768 = vld [vmem:[#allocation2 + $0x98] sm:$0xff]
    %v3769 = vadd.f32 %v3765, %v3636
    %v3770 = vadd.f32 %v3766, %v3638
    %v3771 = vadd.f32 %v3767, %v3677
    %v3772 = vadd.f32 %v3768, %v3679
    %v3773 = vld [vmem:[#allocation2 + $0x160] sm:$0xff]
    %v3774 = vld [vmem:[#allocation2 + $0x168] sm:$0xff]
    %v3775 = vld [vmem:[#allocation2 + $0x170] sm:$0xff]
    %v3776 = vld [vmem:[#allocation2 + $0x178] sm:$0xff]
    %v3777 = vadd.f32 %v3773, %v3718
    %v3778 = vadd.f32 %v3774, %v3720
    %v3779 = vadd.f32 %v3775, %v3759
    %v3780 = vadd.f32 %v3776, %v3761
    %v3781 = vxor.u32 %v3769, 2147483648
    %v3782 = vmul.f32 %v3781, 1.442695
    %v3783 = vpow.pop %v3782
    %v3784 = vadd.f32 %v3783, 1.0
    %v3785 = vrcp.pop %v3784
    %v3786 = vmul.f32 1.0, %v3785
    %v3787 = vxor.u32 %v3770, 2147483648
    %v3788 = vmul.f32 %v3787, 1.442695
    %v3789 = vpow.pop %v3788
    %v3790 = vadd.f32 %v3789, 1.0
    %v3791 = vrcp.pop %v3790
    %v3792 = vmul.f32 1.0, %v3791
    %v3793 = vmul.f32 %v3786, %v3772
    %v3794 = vadd.f32 %v3771, %v3793
    %v3795 = vtanh.pop %v3794
    %v3796 = vsub.f32 1.0, %v3792
    %v3797 = vmul.f32 %v3796, %v3795
    %v3798 = vmul.f32 %v3792, %v2807
    %v3799 = vadd.f32 %v3797, %v3798
    %v3800 = vxor.u32 %v3777, 2147483648
    %v3801 = vmul.f32 %v3800, 1.442695
    %v3802 = vpow.pop %v3801
    %v3803 = vadd.f32 %v3802, 1.0
    %v3804 = vrcp.pop %v3803
    %v3805 = vmul.f32 1.0, %v3804
    %v3806 = vxor.u32 %v3778, 2147483648
    %v3807 = vmul.f32 %v3806, 1.442695
    %v3808 = vpow.pop %v3807
    %v3809 = vadd.f32 %v3808, 1.0
    %v3810 = vrcp.pop %v3809
    %v3811 = vmul.f32 1.0, %v3810
    %v3812 = vmul.f32 %v3805, %v3780
    %v3813 = vadd.f32 %v3779, %v3812
    %v3814 = vtanh.pop %v3813
    %v3815 = vsub.f32 1.0, %v3811
    %v3816 = vmul.f32 %v3815, %v3814
    %v3817 = vmul.f32 %v3811, %v2826
    %v3818 = vadd.f32 %v3816, %v3817
    %s3819 = scalar_lea.vmem %s6, 16
    %3820 = vst [vmem:[%s3819] sm:$0xff] %v3799
    %s3821 = scalar_lea.vmem %s7, 40
    %3822 = vst [vmem:[%s3821] sm:$0xff] %v3818
    %v3823 = vpack.c.bf16 %v3799, %v3799
    %v3824 = vpack.c.bf16 %v3818, %v3818
    %v3825 = vld [vmem:[#allocation5] sm:$0xff]
    %v3826 = vld [vmem:[#allocation5 + $0x8] sm:$0xff]
    %v3827 = vld [vmem:[#allocation5 + $0x10] sm:$0xff]
    %v3828 = vld [vmem:[#allocation5 + $0x18] sm:$0xff]
    %v3829 = vld [vmem:[#allocation5 + $0x20] sm:$0xff]
    %v3830 = vld [vmem:[#allocation5 + $0x28] sm:$0xff]
    %v3831 = vld [vmem:[#allocation5 + $0x30] sm:$0xff]
    %v3832 = vld [vmem:[#allocation5 + $0x38] sm:$0xff]
    %v3833 = vld [vmem:[#allocation5 + $0x40] sm:$0xff]
    %v3834 = vld [vmem:[#allocation5 + $0x48] sm:$0xff]
    %v3835 = vld [vmem:[#allocation5 + $0x50] sm:$0xff]
    %v3836 = vld [vmem:[#allocation5 + $0x58] sm:$0xff]
    %v3837 = vld [vmem:[#allocation5 + $0x60] sm:$0xff]
    %v3838 = vld [vmem:[#allocation5 + $0x68] sm:$0xff]
    %v3839 = vld [vmem:[#allocation5 + $0x70] sm:$0xff]
    %v3840 = vld [vmem:[#allocation5 + $0x78] sm:$0xff]
    %v3841 = vld [vmem:[#allocation5 + $0x80] sm:$0xff]
    %v3842 = vld [vmem:[#allocation5 + $0x88] sm:$0xff]
    %v3843 = vld [vmem:[#allocation5 + $0x90] sm:$0xff]
    %v3844 = vld [vmem:[#allocation5 + $0x98] sm:$0xff]
    %v3845 = vld [vmem:[#allocation5 + $0xa0] sm:$0xff]
    %v3846 = vld [vmem:[#allocation5 + $0xa8] sm:$0xff]
    %v3847 = vld [vmem:[#allocation5 + $0xb0] sm:$0xff]
    %v3848 = vld [vmem:[#allocation5 + $0xb8] sm:$0xff]
    %v3849 = vld [vmem:[#allocation5 + $0xc0] sm:$0xff]
    %v3850 = vld [vmem:[#allocation5 + $0xc8] sm:$0xff]
    %v3851 = vld [vmem:[#allocation5 + $0xd0] sm:$0xff]
    %v3852 = vld [vmem:[#allocation5 + $0xd8] sm:$0xff]
    %v3853 = vld [vmem:[#allocation5 + $0xe0] sm:$0xff]
    %v3854 = vld [vmem:[#allocation5 + $0xe8] sm:$0xff]
    %v3855 = vld [vmem:[#allocation5 + $0xf0] sm:$0xff]
    %v3856 = vld [vmem:[#allocation5 + $0xf8] sm:$0xff]
    %v3857 = vld [vmem:[#allocation5 + $0x100] sm:$0xff]
    %v3858 = vld [vmem:[#allocation5 + $0x108] sm:$0xff]
    %v3859 = vld [vmem:[#allocation5 + $0x110] sm:$0xff]
    %v3860 = vld [vmem:[#allocation5 + $0x118] sm:$0xff]
    %v3861 = vld [vmem:[#allocation5 + $0x120] sm:$0xff]
    %v3862 = vld [vmem:[#allocation5 + $0x128] sm:$0xff]
    %v3863 = vld [vmem:[#allocation5 + $0x130] sm:$0xff]
    %v3864 = vld [vmem:[#allocation5 + $0x138] sm:$0xff]
    %v3865 = vld [vmem:[#allocation5 + $0x140] sm:$0xff]
    %v3866 = vld [vmem:[#allocation5 + $0x148] sm:$0xff]
    %v3867 = vld [vmem:[#allocation5 + $0x150] sm:$0xff]
    %v3868 = vld [vmem:[#allocation5 + $0x158] sm:$0xff]
    %v3869 = vld [vmem:[#allocation5 + $0x160] sm:$0xff]
    %v3870 = vld [vmem:[#allocation5 + $0x168] sm:$0xff]
    %v3871 = vld [vmem:[#allocation5 + $0x170] sm:$0xff]
    %v3872 = vld [vmem:[#allocation5 + $0x178] sm:$0xff]
    %v3873 = vld [vmem:[#allocation5 + $0x180] sm:$0xff]
    %v3874 = vld [vmem:[#allocation5 + $0x188] sm:$0xff]
    %v3875 = vld [vmem:[#allocation5 + $0x190] sm:$0xff]
    %v3876 = vld [vmem:[#allocation5 + $0x198] sm:$0xff]
    %v3877 = vld [vmem:[#allocation5 + $0x1a0] sm:$0xff]
    %v3878 = vld [vmem:[#allocation5 + $0x1a8] sm:$0xff]
    %v3879 = vld [vmem:[#allocation5 + $0x1b0] sm:$0xff]
    %v3880 = vld [vmem:[#allocation5 + $0x1b8] sm:$0xff]
    %v3881 = vld [vmem:[#allocation5 + $0x1c0] sm:$0xff]
    %v3882 = vld [vmem:[#allocation5 + $0x1c8] sm:$0xff]
    %v3883 = vld [vmem:[#allocation5 + $0x1d0] sm:$0xff]
    %v3884 = vld [vmem:[#allocation5 + $0x1d8] sm:$0xff]
    %v3885 = vld [vmem:[#allocation5 + $0x1e0] sm:$0xff]
    %v3886 = vld [vmem:[#allocation5 + $0x1e8] sm:$0xff]
    %v3887 = vld [vmem:[#allocation5 + $0x1f0] sm:$0xff]
    %v3888 = vld [vmem:[#allocation5 + $0x1f8] sm:$0xff]
    %v3889 = vld [vmem:[#allocation5 + $0x200] sm:$0xff]
    %v3890 = vld [vmem:[#allocation5 + $0x208] sm:$0xff]
    %v3891 = vld [vmem:[#allocation5 + $0x210] sm:$0xff]
    %v3892 = vld [vmem:[#allocation5 + $0x218] sm:$0xff]
    %v3893 = vld [vmem:[#allocation5 + $0x220] sm:$0xff]
    %v3894 = vld [vmem:[#allocation5 + $0x228] sm:$0xff]
    %v3895 = vld [vmem:[#allocation5 + $0x230] sm:$0xff]
    %v3896 = vld [vmem:[#allocation5 + $0x238] sm:$0xff]
    %v3897 = vld [vmem:[#allocation5 + $0x240] sm:$0xff]
    %v3898 = vld [vmem:[#allocation5 + $0x248] sm:$0xff]
    %v3899 = vld [vmem:[#allocation5 + $0x250] sm:$0xff]
    %v3900 = vld [vmem:[#allocation5 + $0x258] sm:$0xff]
    %v3901 = vld [vmem:[#allocation5 + $0x260] sm:$0xff]
    %v3902 = vld [vmem:[#allocation5 + $0x268] sm:$0xff]
    %v3903 = vld [vmem:[#allocation5 + $0x270] sm:$0xff]
    %v3904 = vld [vmem:[#allocation5 + $0x278] sm:$0xff]
    %v3905 = vld [vmem:[#allocation5 + $0x280] sm:$0xff]
    %v3906 = vld [vmem:[#allocation5 + $0x288] sm:$0xff]
    %v3907 = vld [vmem:[#allocation5 + $0x290] sm:$0xff]
    %v3908 = vld [vmem:[#allocation5 + $0x298] sm:$0xff]
    %v3909 = vld [vmem:[#allocation5 + $0x2a0] sm:$0xff]
    %v3910 = vld [vmem:[#allocation5 + $0x2a8] sm:$0xff]
    %v3911 = vld [vmem:[#allocation5 + $0x2b0] sm:$0xff]
    %v3912 = vld [vmem:[#allocation5 + $0x2b8] sm:$0xff]
    %v3913 = vld [vmem:[#allocation5 + $0x2c0] sm:$0xff]
    %v3914 = vld [vmem:[#allocation5 + $0x2c8] sm:$0xff]
    %v3915 = vld [vmem:[#allocation5 + $0x2d0] sm:$0xff]
    %v3916 = vld [vmem:[#allocation5 + $0x2d8] sm:$0xff]
    %v3917 = vld [vmem:[#allocation5 + $0x2e0] sm:$0xff]
    %v3918 = vld [vmem:[#allocation5 + $0x2e8] sm:$0xff]
    %v3919 = vld [vmem:[#allocation5 + $0x2f0] sm:$0xff]
    %v3920 = vld [vmem:[#allocation5 + $0x2f8] sm:$0xff]
    %v3921 = vld [vmem:[#allocation5 + $0x300] sm:$0xff]
    %v3922 = vld [vmem:[#allocation5 + $0x308] sm:$0xff]
    %v3923 = vld [vmem:[#allocation5 + $0x310] sm:$0xff]
    %v3924 = vld [vmem:[#allocation5 + $0x318] sm:$0xff]
    %v3925 = vld [vmem:[#allocation5 + $0x320] sm:$0xff]
    %v3926 = vld [vmem:[#allocation5 + $0x328] sm:$0xff]
    %v3927 = vld [vmem:[#allocation5 + $0x330] sm:$0xff]
    %v3928 = vld [vmem:[#allocation5 + $0x338] sm:$0xff]
    %v3929 = vld [vmem:[#allocation5 + $0x340] sm:$0xff]
    %v3930 = vld [vmem:[#allocation5 + $0x348] sm:$0xff]
    %v3931 = vld [vmem:[#allocation5 + $0x350] sm:$0xff]
    %v3932 = vld [vmem:[#allocation5 + $0x358] sm:$0xff]
    %v3933 = vld [vmem:[#allocation5 + $0x360] sm:$0xff]
    %v3934 = vld [vmem:[#allocation5 + $0x368] sm:$0xff]
    %v3935 = vld [vmem:[#allocation5 + $0x370] sm:$0xff]
    %v3936 = vld [vmem:[#allocation5 + $0x378] sm:$0xff]
    %v3937 = vld [vmem:[#allocation5 + $0x380] sm:$0xff]
    %v3938 = vld [vmem:[#allocation5 + $0x388] sm:$0xff]
    %v3939 = vld [vmem:[#allocation5 + $0x390] sm:$0xff]
    %v3940 = vld [vmem:[#allocation5 + $0x398] sm:$0xff]
    %v3941 = vld [vmem:[#allocation5 + $0x3a0] sm:$0xff]
    %v3942 = vld [vmem:[#allocation5 + $0x3a8] sm:$0xff]
    %v3943 = vld [vmem:[#allocation5 + $0x3b0] sm:$0xff]
    %v3944 = vld [vmem:[#allocation5 + $0x3b8] sm:$0xff]
    %v3945 = vld [vmem:[#allocation5 + $0x3c0] sm:$0xff]
    %v3946 = vld [vmem:[#allocation5 + $0x3c8] sm:$0xff]
    %v3947 = vld [vmem:[#allocation5 + $0x3d0] sm:$0xff]
    %v3948 = vld [vmem:[#allocation5 + $0x3d8] sm:$0xff]
    %v3949 = vld [vmem:[#allocation5 + $0x3e0] sm:$0xff]
    %v3950 = vld [vmem:[#allocation5 + $0x3e8] sm:$0xff]
    %v3951 = vld [vmem:[#allocation5 + $0x3f0] sm:$0xff]
    %v3952 = vld [vmem:[#allocation5 + $0x3f8] sm:$0xff]
    %v4081 = vunpack.c.l.b16 %v3825
    %v4082 = vunpack.c.h.b16 %v3825
    %v4083 = vunpack.c.l.b16 %v3826
    %v4084 = vunpack.c.h.b16 %v3826
    %v4085 = vunpack.c.l.b16 %v3827
    %v4086 = vunpack.c.h.b16 %v3827
    %v4087 = vunpack.c.l.b16 %v3828
    %v4088 = vunpack.c.h.b16 %v3828
    %v4089 = vunpack.c.l.b16 %v3829
    %v4090 = vunpack.c.h.b16 %v3829
    %v4091 = vunpack.c.l.b16 %v3830
    %v4092 = vunpack.c.h.b16 %v3830
    %v4093 = vunpack.c.l.b16 %v3831
    %v4094 = vunpack.c.h.b16 %v3831
    %v4095 = vunpack.c.l.b16 %v3832
    %v4096 = vunpack.c.h.b16 %v3832
    %v4097 = vunpack.c.l.b16 %v3833
    %v4098 = vunpack.c.h.b16 %v3833
    %v4099 = vunpack.c.l.b16 %v3834
    %v4100 = vunpack.c.h.b16 %v3834
    %v4101 = vunpack.c.l.b16 %v3835
    %v4102 = vunpack.c.h.b16 %v3835
    %v4103 = vunpack.c.l.b16 %v3836
    %v4104 = vunpack.c.h.b16 %v3836
    %v4105 = vunpack.c.l.b16 %v3837
    %v4106 = vunpack.c.h.b16 %v3837
    %v4107 = vunpack.c.l.b16 %v3838
    %v4108 = vunpack.c.h.b16 %v3838
    %v4109 = vunpack.c.l.b16 %v3839
    %v4110 = vunpack.c.h.b16 %v3839
    %v4111 = vunpack.c.l.b16 %v3840
    %v4112 = vunpack.c.h.b16 %v3840
    %v4113 = vunpack.c.l.b16 %v3841
    %v4114 = vunpack.c.h.b16 %v3841
    %v4115 = vunpack.c.l.b16 %v3842
    %v4116 = vunpack.c.h.b16 %v3842
    %v4117 = vunpack.c.l.b16 %v3843
    %v4118 = vunpack.c.h.b16 %v3843
    %v4119 = vunpack.c.l.b16 %v3844
    %v4120 = vunpack.c.h.b16 %v3844
    %v4121 = vunpack.c.l.b16 %v3845
    %v4122 = vunpack.c.h.b16 %v3845
    %v4123 = vunpack.c.l.b16 %v3846
    %v4124 = vunpack.c.h.b16 %v3846
    %v4125 = vunpack.c.l.b16 %v3847
    %v4126 = vunpack.c.h.b16 %v3847
    %v4127 = vunpack.c.l.b16 %v3848
    %v4128 = vunpack.c.h.b16 %v3848
    %v4129 = vunpack.c.l.b16 %v3849
    %v4130 = vunpack.c.h.b16 %v3849
    %v4131 = vunpack.c.l.b16 %v3850
    %v4132 = vunpack.c.h.b16 %v3850
    %v4133 = vunpack.c.l.b16 %v3851
    %v4134 = vunpack.c.h.b16 %v3851
    %v4135 = vunpack.c.l.b16 %v3852
    %v4136 = vunpack.c.h.b16 %v3852
    %v4137 = vunpack.c.l.b16 %v3853
    %v4138 = vunpack.c.h.b16 %v3853
    %v4139 = vunpack.c.l.b16 %v3854
    %v4140 = vunpack.c.h.b16 %v3854
    %v4141 = vunpack.c.l.b16 %v3855
    %v4142 = vunpack.c.h.b16 %v3855
    %v4143 = vunpack.c.l.b16 %v3856
    %v4144 = vunpack.c.h.b16 %v3856
    %v4145 = vunpack.c.l.b16 %v3857
    %v4146 = vunpack.c.h.b16 %v3857
    %v4147 = vunpack.c.l.b16 %v3858
    %v4148 = vunpack.c.h.b16 %v3858
    %v4149 = vunpack.c.l.b16 %v3859
    %v4150 = vunpack.c.h.b16 %v3859
    %v4151 = vunpack.c.l.b16 %v3860
    %v4152 = vunpack.c.h.b16 %v3860
    %v4153 = vunpack.c.l.b16 %v3861
    %v4154 = vunpack.c.h.b16 %v3861
    %v4155 = vunpack.c.l.b16 %v3862
    %v4156 = vunpack.c.h.b16 %v3862
    %v4157 = vunpack.c.l.b16 %v3863
    %v4158 = vunpack.c.h.b16 %v3863
    %v4159 = vunpack.c.l.b16 %v3864
    %v4160 = vunpack.c.h.b16 %v3864
    %v4161 = vunpack.c.l.b16 %v3865
    %v4162 = vunpack.c.h.b16 %v3865
    %v4163 = vunpack.c.l.b16 %v3866
    %v4164 = vunpack.c.h.b16 %v3866
    %v4165 = vunpack.c.l.b16 %v3867
    %v4166 = vunpack.c.h.b16 %v3867
    %v4167 = vunpack.c.l.b16 %v3868
    %v4168 = vunpack.c.h.b16 %v3868
    %v4169 = vunpack.c.l.b16 %v3869
    %v4170 = vunpack.c.h.b16 %v3869
    %v4171 = vunpack.c.l.b16 %v3870
    %v4172 = vunpack.c.h.b16 %v3870
    %v4173 = vunpack.c.l.b16 %v3871
    %v4174 = vunpack.c.h.b16 %v3871
    %v4175 = vunpack.c.l.b16 %v3872
    %v4176 = vunpack.c.h.b16 %v3872
    %v4177 = vunpack.c.l.b16 %v3873
    %v4178 = vunpack.c.h.b16 %v3873
    %v4179 = vunpack.c.l.b16 %v3874
    %v4180 = vunpack.c.h.b16 %v3874
    %v4181 = vunpack.c.l.b16 %v3875
    %v4182 = vunpack.c.h.b16 %v3875
    %v4183 = vunpack.c.l.b16 %v3876
    %v4184 = vunpack.c.h.b16 %v3876
    %v4185 = vunpack.c.l.b16 %v3877
    %v4186 = vunpack.c.h.b16 %v3877
    %v4187 = vunpack.c.l.b16 %v3878
    %v4188 = vunpack.c.h.b16 %v3878
    %v4189 = vunpack.c.l.b16 %v3879
    %v4190 = vunpack.c.h.b16 %v3879
    %v4191 = vunpack.c.l.b16 %v3880
    %v4192 = vunpack.c.h.b16 %v3880
    %v4193 = vunpack.c.l.b16 %v3881
    %v4194 = vunpack.c.h.b16 %v3881
    %v4195 = vunpack.c.l.b16 %v3882
    %v4196 = vunpack.c.h.b16 %v3882
    %v4197 = vunpack.c.l.b16 %v3883
    %v4198 = vunpack.c.h.b16 %v3883
    %v4199 = vunpack.c.l.b16 %v3884
    %v4200 = vunpack.c.h.b16 %v3884
    %v4201 = vunpack.c.l.b16 %v3885
    %v4202 = vunpack.c.h.b16 %v3885
    %v4203 = vunpack.c.l.b16 %v3886
    %v4204 = vunpack.c.h.b16 %v3886
    %v4205 = vunpack.c.l.b16 %v3887
    %v4206 = vunpack.c.h.b16 %v3887
    %v4207 = vunpack.c.l.b16 %v3888
    %v4208 = vunpack.c.h.b16 %v3888
    %v4209 = vunpack.c.l.b16 %v3889
    %v4210 = vunpack.c.h.b16 %v3889
    %v4211 = vunpack.c.l.b16 %v3890
    %v4212 = vunpack.c.h.b16 %v3890
    %v4213 = vunpack.c.l.b16 %v3891
    %v4214 = vunpack.c.h.b16 %v3891
    %v4215 = vunpack.c.l.b16 %v3892
    %v4216 = vunpack.c.h.b16 %v3892
    %v4217 = vunpack.c.l.b16 %v3893
    %v4218 = vunpack.c.h.b16 %v3893
    %v4219 = vunpack.c.l.b16 %v3894
    %v4220 = vunpack.c.h.b16 %v3894
    %v4221 = vunpack.c.l.b16 %v3895
    %v4222 = vunpack.c.h.b16 %v3895
    %v4223 = vunpack.c.l.b16 %v3896
    %v4224 = vunpack.c.h.b16 %v3896
    %v4225 = vunpack.c.l.b16 %v3897
    %v4226 = vunpack.c.h.b16 %v3897
    %v4227 = vunpack.c.l.b16 %v3898
    %v4228 = vunpack.c.h.b16 %v3898
    %v4229 = vunpack.c.l.b16 %v3899
    %v4230 = vunpack.c.h.b16 %v3899
    %v4231 = vunpack.c.l.b16 %v3900
    %v4232 = vunpack.c.h.b16 %v3900
    %v4233 = vunpack.c.l.b16 %v3901
    %v4234 = vunpack.c.h.b16 %v3901
    %v4235 = vunpack.c.l.b16 %v3902
    %v4236 = vunpack.c.h.b16 %v3902
    %v4237 = vunpack.c.l.b16 %v3903
    %v4238 = vunpack.c.h.b16 %v3903
    %v4239 = vunpack.c.l.b16 %v3904
    %v4240 = vunpack.c.h.b16 %v3904
    %v4241 = vunpack.c.l.b16 %v3905
    %v4242 = vunpack.c.h.b16 %v3905
    %v4243 = vunpack.c.l.b16 %v3906
    %v4244 = vunpack.c.h.b16 %v3906
    %v4245 = vunpack.c.l.b16 %v3907
    %v4246 = vunpack.c.h.b16 %v3907
    %v4247 = vunpack.c.l.b16 %v3908
    %v4248 = vunpack.c.h.b16 %v3908
    %v4249 = vunpack.c.l.b16 %v3909
    %v4250 = vunpack.c.h.b16 %v3909
    %v4251 = vunpack.c.l.b16 %v3910
    %v4252 = vunpack.c.h.b16 %v3910
    %v4253 = vunpack.c.l.b16 %v3911
    %v4254 = vunpack.c.h.b16 %v3911
    %v4255 = vunpack.c.l.b16 %v3912
    %v4256 = vunpack.c.h.b16 %v3912
    %v4257 = vunpack.c.l.b16 %v3913
    %v4258 = vunpack.c.h.b16 %v3913
    %v4259 = vunpack.c.l.b16 %v3914
    %v4260 = vunpack.c.h.b16 %v3914
    %v4261 = vunpack.c.l.b16 %v3915
    %v4262 = vunpack.c.h.b16 %v3915
    %v4263 = vunpack.c.l.b16 %v3916
    %v4264 = vunpack.c.h.b16 %v3916
    %v4265 = vunpack.c.l.b16 %v3917
    %v4266 = vunpack.c.h.b16 %v3917
    %v4267 = vunpack.c.l.b16 %v3918
    %v4268 = vunpack.c.h.b16 %v3918
    %v4269 = vunpack.c.l.b16 %v3919
    %v4270 = vunpack.c.h.b16 %v3919
    %v4271 = vunpack.c.l.b16 %v3920
    %v4272 = vunpack.c.h.b16 %v3920
    %v4273 = vunpack.c.l.b16 %v3921
    %v4274 = vunpack.c.h.b16 %v3921
    %v4275 = vunpack.c.l.b16 %v3922
    %v4276 = vunpack.c.h.b16 %v3922
    %v4277 = vunpack.c.l.b16 %v3923
    %v4278 = vunpack.c.h.b16 %v3923
    %v4279 = vunpack.c.l.b16 %v3924
    %v4280 = vunpack.c.h.b16 %v3924
    %v4281 = vunpack.c.l.b16 %v3925
    %v4282 = vunpack.c.h.b16 %v3925
    %v4283 = vunpack.c.l.b16 %v3926
    %v4284 = vunpack.c.h.b16 %v3926
    %v4285 = vunpack.c.l.b16 %v3927
    %v4286 = vunpack.c.h.b16 %v3927
    %v4287 = vunpack.c.l.b16 %v3928
    %v4288 = vunpack.c.h.b16 %v3928
    %v4289 = vunpack.c.l.b16 %v3929
    %v4290 = vunpack.c.h.b16 %v3929
    %v4291 = vunpack.c.l.b16 %v3930
    %v4292 = vunpack.c.h.b16 %v3930
    %v4293 = vunpack.c.l.b16 %v3931
    %v4294 = vunpack.c.h.b16 %v3931
    %v4295 = vunpack.c.l.b16 %v3932
    %v4296 = vunpack.c.h.b16 %v3932
    %v4297 = vunpack.c.l.b16 %v3933
    %v4298 = vunpack.c.h.b16 %v3933
    %v4299 = vunpack.c.l.b16 %v3934
    %v4300 = vunpack.c.h.b16 %v3934
    %v4301 = vunpack.c.l.b16 %v3935
    %v4302 = vunpack.c.h.b16 %v3935
    %v4303 = vunpack.c.l.b16 %v3936
    %v4304 = vunpack.c.h.b16 %v3936
    %v4305 = vunpack.c.l.b16 %v3937
    %v4306 = vunpack.c.h.b16 %v3937
    %v4307 = vunpack.c.l.b16 %v3938
    %v4308 = vunpack.c.h.b16 %v3938
    %v4309 = vunpack.c.l.b16 %v3939
    %v4310 = vunpack.c.h.b16 %v3939
    %v4311 = vunpack.c.l.b16 %v3940
    %v4312 = vunpack.c.h.b16 %v3940
    %v4313 = vunpack.c.l.b16 %v3941
    %v4314 = vunpack.c.h.b16 %v3941
    %v4315 = vunpack.c.l.b16 %v3942
    %v4316 = vunpack.c.h.b16 %v3942
    %v4317 = vunpack.c.l.b16 %v3943
    %v4318 = vunpack.c.h.b16 %v3943
    %v4319 = vunpack.c.l.b16 %v3944
    %v4320 = vunpack.c.h.b16 %v3944
    %v4321 = vunpack.c.l.b16 %v3945
    %v4322 = vunpack.c.h.b16 %v3945
    %v4323 = vunpack.c.l.b16 %v3946
    %v4324 = vunpack.c.h.b16 %v3946
    %v4325 = vunpack.c.l.b16 %v3947
    %v4326 = vunpack.c.h.b16 %v3947
    %v4327 = vunpack.c.l.b16 %v3948
    %v4328 = vunpack.c.h.b16 %v3948
    %v4329 = vunpack.c.l.b16 %v3949
    %v4330 = vunpack.c.h.b16 %v3949
    %v4331 = vunpack.c.l.b16 %v3950
    %v4332 = vunpack.c.h.b16 %v3950
    %v4333 = vunpack.c.l.b16 %v3951
    %v4334 = vunpack.c.h.b16 %v3951
    %v4335 = vunpack.c.l.b16 %v3952
    %v4336 = vunpack.c.h.b16 %v3952
    %v4337 = vpack.c.b16 %v4089, %v4081
    %v4338 = vpack.c.b16 %v4090, %v4082
    %v4339 = vpack.c.b16 %v4091, %v4083
    %v4340 = vpack.c.b16 %v4092, %v4084
    %v4341 = vpack.c.b16 %v4093, %v4085
    %v4342 = vpack.c.b16 %v4094, %v4086
    %v4343 = vpack.c.b16 %v4095, %v4087
    %v4344 = vpack.c.b16 %v4096, %v4088
    %v4345 = vpack.c.b16 %v4105, %v4097
    %v4346 = vpack.c.b16 %v4106, %v4098
    %v4347 = vpack.c.b16 %v4107, %v4099
    %v4348 = vpack.c.b16 %v4108, %v4100
    %v4349 = vpack.c.b16 %v4109, %v4101
    %v4350 = vpack.c.b16 %v4110, %v4102
    %v4351 = vpack.c.b16 %v4111, %v4103
    %v4352 = vpack.c.b16 %v4112, %v4104
    %v4353 = vpack.c.b16 %v4121, %v4113
    %v4354 = vpack.c.b16 %v4122, %v4114
    %v4355 = vpack.c.b16 %v4123, %v4115
    %v4356 = vpack.c.b16 %v4124, %v4116
    %v4357 = vpack.c.b16 %v4125, %v4117
    %v4358 = vpack.c.b16 %v4126, %v4118
    %v4359 = vpack.c.b16 %v4127, %v4119
    %v4360 = vpack.c.b16 %v4128, %v4120
    %v4361 = vpack.c.b16 %v4137, %v4129
    %v4362 = vpack.c.b16 %v4138, %v4130
    %v4363 = vpack.c.b16 %v4139, %v4131
    %v4364 = vpack.c.b16 %v4140, %v4132
    %v4365 = vpack.c.b16 %v4141, %v4133
    %v4366 = vpack.c.b16 %v4142, %v4134
    %v4367 = vpack.c.b16 %v4143, %v4135
    %v4368 = vpack.c.b16 %v4144, %v4136
    %v4369 = vpack.c.b16 %v4153, %v4145
    %v4370 = vpack.c.b16 %v4154, %v4146
    %v4371 = vpack.c.b16 %v4155, %v4147
    %v4372 = vpack.c.b16 %v4156, %v4148
    %v4373 = vpack.c.b16 %v4157, %v4149
    %v4374 = vpack.c.b16 %v4158, %v4150
    %v4375 = vpack.c.b16 %v4159, %v4151
    %v4376 = vpack.c.b16 %v4160, %v4152
    %v4377 = vpack.c.b16 %v4169, %v4161
    %v4378 = vpack.c.b16 %v4170, %v4162
    %v4379 = vpack.c.b16 %v4171, %v4163
    %v4380 = vpack.c.b16 %v4172, %v4164
    %v4381 = vpack.c.b16 %v4173, %v4165
    %v4382 = vpack.c.b16 %v4174, %v4166
    %v4383 = vpack.c.b16 %v4175, %v4167
    %v4384 = vpack.c.b16 %v4176, %v4168
    %v4385 = vpack.c.b16 %v4185, %v4177
    %v4386 = vpack.c.b16 %v4186, %v4178
    %v4387 = vpack.c.b16 %v4187, %v4179
    %v4388 = vpack.c.b16 %v4188, %v4180
    %v4389 = vpack.c.b16 %v4189, %v4181
    %v4390 = vpack.c.b16 %v4190, %v4182
    %v4391 = vpack.c.b16 %v4191, %v4183
    %v4392 = vpack.c.b16 %v4192, %v4184
    %v4393 = vpack.c.b16 %v4201, %v4193
    %v4394 = vpack.c.b16 %v4202, %v4194
    %v4395 = vpack.c.b16 %v4203, %v4195
    %v4396 = vpack.c.b16 %v4204, %v4196
    %v4397 = vpack.c.b16 %v4205, %v4197
    %v4398 = vpack.c.b16 %v4206, %v4198
    %v4399 = vpack.c.b16 %v4207, %v4199
    %v4400 = vpack.c.b16 %v4208, %v4200
    %v4401 = vpack.c.b16 %v4217, %v4209
    %v4402 = vpack.c.b16 %v4218, %v4210
    %v4403 = vpack.c.b16 %v4219, %v4211
    %v4404 = vpack.c.b16 %v4220, %v4212
    %v4405 = vpack.c.b16 %v4221, %v4213
    %v4406 = vpack.c.b16 %v4222, %v4214
    %v4407 = vpack.c.b16 %v4223, %v4215
    %v4408 = vpack.c.b16 %v4224, %v4216
    %v4409 = vpack.c.b16 %v4233, %v4225
    %v4410 = vpack.c.b16 %v4234, %v4226
    %v4411 = vpack.c.b16 %v4235, %v4227
    %v4412 = vpack.c.b16 %v4236, %v4228
    %v4413 = vpack.c.b16 %v4237, %v4229
    %v4414 = vpack.c.b16 %v4238, %v4230
    %v4415 = vpack.c.b16 %v4239, %v4231
    %v4416 = vpack.c.b16 %v4240, %v4232
    %v4417 = vpack.c.b16 %v4249, %v4241
    %v4418 = vpack.c.b16 %v4250, %v4242
    %v4419 = vpack.c.b16 %v4251, %v4243
    %v4420 = vpack.c.b16 %v4252, %v4244
    %v4421 = vpack.c.b16 %v4253, %v4245
    %v4422 = vpack.c.b16 %v4254, %v4246
    %v4423 = vpack.c.b16 %v4255, %v4247
    %v4424 = vpack.c.b16 %v4256, %v4248
    %v4425 = vpack.c.b16 %v4265, %v4257
    %v4426 = vpack.c.b16 %v4266, %v4258
    %v4427 = vpack.c.b16 %v4267, %v4259
    %v4428 = vpack.c.b16 %v4268, %v4260
    %v4429 = vpack.c.b16 %v4269, %v4261
    %v4430 = vpack.c.b16 %v4270, %v4262
    %v4431 = vpack.c.b16 %v4271, %v4263
    %v4432 = vpack.c.b16 %v4272, %v4264
    %v4433 = vpack.c.b16 %v4281, %v4273
    %v4434 = vpack.c.b16 %v4282, %v4274
    %v4435 = vpack.c.b16 %v4283, %v4275
    %v4436 = vpack.c.b16 %v4284, %v4276
    %v4437 = vpack.c.b16 %v4285, %v4277
    %v4438 = vpack.c.b16 %v4286, %v4278
    %v4439 = vpack.c.b16 %v4287, %v4279
    %v4440 = vpack.c.b16 %v4288, %v4280
    %v4441 = vpack.c.b16 %v4297, %v4289
    %v4442 = vpack.c.b16 %v4298, %v4290
    %v4443 = vpack.c.b16 %v4299, %v4291
    %v4444 = vpack.c.b16 %v4300, %v4292
    %v4445 = vpack.c.b16 %v4301, %v4293
    %v4446 = vpack.c.b16 %v4302, %v4294
    %v4447 = vpack.c.b16 %v4303, %v4295
    %v4448 = vpack.c.b16 %v4304, %v4296
    %v4449 = vpack.c.b16 %v4313, %v4305
    %v4450 = vpack.c.b16 %v4314, %v4306
    %v4451 = vpack.c.b16 %v4315, %v4307
    %v4452 = vpack.c.b16 %v4316, %v4308
    %v4453 = vpack.c.b16 %v4317, %v4309
    %v4454 = vpack.c.b16 %v4318, %v4310
    %v4455 = vpack.c.b16 %v4319, %v4311
    %v4456 = vpack.c.b16 %v4320, %v4312
    %v4457 = vpack.c.b16 %v4329, %v4321
    %v4458 = vpack.c.b16 %v4330, %v4322
    %v4459 = vpack.c.b16 %v4331, %v4323
    %v4460 = vpack.c.b16 %v4332, %v4324
    %v4461 = vpack.c.b16 %v4333, %v4325
    %v4462 = vpack.c.b16 %v4334, %v4326
    %v4463 = vpack.c.b16 %v4335, %v4327
    %v4464 = vpack.c.b16 %v4336, %v4328
    %4593 = vmatprep.subr.bf16.mxu0 %v4394
    %4594 = vmatpush1.bf16.msra.mxu0 %v4393
    %4595 = vmatprep.subr.bf16.mxu0 %v4386
    %4596 = vmatpush1.bf16.msra.mxu0 %v4385
    %4597 = vmatprep.subr.bf16.mxu0 %v4378
    %4598 = vmatpush1.bf16.msra.mxu0 %v4377
    %4599 = vmatprep.subr.bf16.mxu0 %v4370
    %4600 = vmatpush1.bf16.msra.mxu0 %v4369
    %4601 = vmatprep.subr.bf16.mxu0 %v4362
    %4602 = vmatpush1.bf16.msra.mxu0 %v4361
    %4603 = vmatprep.subr.bf16.mxu0 %v4354
    %4604 = vmatpush1.bf16.msra.mxu0 %v4353
    %4605 = vmatprep.subr.bf16.mxu0 %v4346
    %4606 = vmatpush1.bf16.msra.mxu0 %v4345
    %4607 = vmatprep.subr.bf16.mxu0 %v4338
    %4608 = vmatpush1.bf16.msra.mxu0 %v4337
    %4609 = vmatprep.subr.bf16.mxu0 %v4458
    %4610 = vmatpush2.bf16.msra.mxu0 %v4457
    %4611 = vmatprep.subr.bf16.mxu0 %v4450
    %4612 = vmatpush2.bf16.msra.mxu0 %v4449
    %4613 = vmatprep.subr.bf16.mxu0 %v4442
    %4614 = vmatpush2.bf16.msra.mxu0 %v4441
    %4615 = vmatprep.subr.bf16.mxu0 %v4434
    %4616 = vmatpush2.bf16.msra.mxu0 %v4433
    %4617 = vmatprep.subr.bf16.mxu0 %v4426
    %4618 = vmatpush2.bf16.msra.mxu0 %v4425
    %4619 = vmatprep.subr.bf16.mxu0 %v4418
    %4620 = vmatpush2.bf16.msra.mxu0 %v4417
    %4621 = vmatprep.subr.bf16.mxu0 %v4410
    %4622 = vmatpush2.bf16.msra.mxu0 %v4409
    %4623 = vmatprep.subr.bf16.mxu0 %v4402
    %4624 = vmatpush2.bf16.msra.mxu0 %v4401
    %4625 = vmatprep.mubr.bf16.mxu0 %v3824
    %4626 = vmatmul.mubr.bf16.gmra.mxu0 %v3823
    %v4627 = vpop.f32.mrf.mxu0
    %v4628 = vadd.f32 0.0, %v4627
    %v4629 = vpop.f32.mrf.mxu0
    %v4630 = vadd.f32 0.0, %v4629
    %v4631 = vpop.f32.mrf.mxu0
    %v4632 = vpop.f32.mrf.mxu0
    %4633 = vdwg.mxu0
    %4634 = vmatprep.subr.bf16.mxu0 %v4396
    %4635 = vmatpush1.bf16.msra.mxu0 %v4395
    %4636 = vmatprep.subr.bf16.mxu0 %v4388
    %4637 = vmatpush1.bf16.msra.mxu0 %v4387
    %4638 = vmatprep.subr.bf16.mxu0 %v4380
    %4639 = vmatpush1.bf16.msra.mxu0 %v4379
    %4640 = vmatprep.subr.bf16.mxu0 %v4372
    %4641 = vmatpush1.bf16.msra.mxu0 %v4371
    %4642 = vmatprep.subr.bf16.mxu0 %v4364
    %4643 = vmatpush1.bf16.msra.mxu0 %v4363
    %4644 = vmatprep.subr.bf16.mxu0 %v4356
    %4645 = vmatpush1.bf16.msra.mxu0 %v4355
    %4646 = vmatprep.subr.bf16.mxu0 %v4348
    %4647 = vmatpush1.bf16.msra.mxu0 %v4347
    %4648 = vmatprep.subr.bf16.mxu0 %v4340
    %4649 = vmatpush1.bf16.msra.mxu0 %v4339
    %4650 = vmatprep.subr.bf16.mxu0 %v4460
    %4651 = vmatpush2.bf16.msra.mxu0 %v4459
    %4652 = vmatprep.subr.bf16.mxu0 %v4452
    %4653 = vmatpush2.bf16.msra.mxu0 %v4451
    %4654 = vmatprep.subr.bf16.mxu0 %v4444
    %4655 = vmatpush2.bf16.msra.mxu0 %v4443
    %4656 = vmatprep.subr.bf16.mxu0 %v4436
    %4657 = vmatpush2.bf16.msra.mxu0 %v4435
    %4658 = vmatprep.subr.bf16.mxu0 %v4428
    %4659 = vmatpush2.bf16.msra.mxu0 %v4427
    %4660 = vmatprep.subr.bf16.mxu0 %v4420
    %4661 = vmatpush2.bf16.msra.mxu0 %v4419
    %4662 = vmatprep.subr.bf16.mxu0 %v4412
    %4663 = vmatpush2.bf16.msra.mxu0 %v4411
    %4664 = vmatprep.subr.bf16.mxu0 %v4404
    %4665 = vmatpush2.bf16.msra.mxu0 %v4403
    %4666 = vmatprep.mubr.bf16.mxu0 %v3824
    %4667 = vmatmul.mubr.bf16.gmra.mxu0 %v3823
    %v4668 = vpop.f32.mrf.mxu0
    %v4669 = vadd.f32 0.0, %v4668
    %v4670 = vpop.f32.mrf.mxu0
    %v4671 = vadd.f32 0.0, %v4670
    %v4672 = vpop.f32.mrf.mxu0
    %v4673 = vpop.f32.mrf.mxu0
    %4674 = vdwg.mxu0
    %4675 = vmatprep.subr.bf16.mxu0 %v4398
    %4676 = vmatpush1.bf16.msra.mxu0 %v4397
    %4677 = vmatprep.subr.bf16.mxu0 %v4390
    %4678 = vmatpush1.bf16.msra.mxu0 %v4389
    %4679 = vmatprep.subr.bf16.mxu0 %v4382
    %4680 = vmatpush1.bf16.msra.mxu0 %v4381
    %4681 = vmatprep.subr.bf16.mxu0 %v4374
    %4682 = vmatpush1.bf16.msra.mxu0 %v4373
    %4683 = vmatprep.subr.bf16.mxu0 %v4366
    %4684 = vmatpush1.bf16.msra.mxu0 %v4365
    %4685 = vmatprep.subr.bf16.mxu0 %v4358
    %4686 = vmatpush1.bf16.msra.mxu0 %v4357
    %4687 = vmatprep.subr.bf16.mxu0 %v4350
    %4688 = vmatpush1.bf16.msra.mxu0 %v4349
    %4689 = vmatprep.subr.bf16.mxu0 %v4342
    %4690 = vmatpush1.bf16.msra.mxu0 %v4341
    %4691 = vmatprep.subr.bf16.mxu0 %v4462
    %4692 = vmatpush2.bf16.msra.mxu0 %v4461
    %4693 = vmatprep.subr.bf16.mxu0 %v4454
    %4694 = vmatpush2.bf16.msra.mxu0 %v4453
    %4695 = vmatprep.subr.bf16.mxu0 %v4446
    %4696 = vmatpush2.bf16.msra.mxu0 %v4445
    %4697 = vmatprep.subr.bf16.mxu0 %v4438
    %4698 = vmatpush2.bf16.msra.mxu0 %v4437
    %4699 = vmatprep.subr.bf16.mxu0 %v4430
    %4700 = vmatpush2.bf16.msra.mxu0 %v4429
    %4701 = vmatprep.subr.bf16.mxu0 %v4422
    %4702 = vmatpush2.bf16.msra.mxu0 %v4421
    %4703 = vmatprep.subr.bf16.mxu0 %v4414
    %4704 = vmatpush2.bf16.msra.mxu0 %v4413
    %4705 = vmatprep.subr.bf16.mxu0 %v4406
    %4706 = vmatpush2.bf16.msra.mxu0 %v4405
    %4707 = vmatprep.mubr.bf16.mxu0 %v3824
    %4708 = vmatmul.mubr.bf16.gmra.mxu0 %v3823
    %v4709 = vpop.f32.mrf.mxu0
    %v4710 = vadd.f32 0.0, %v4709
    %v4711 = vpop.f32.mrf.mxu0
    %v4712 = vadd.f32 0.0, %v4711
    %v4713 = vpop.f32.mrf.mxu0
    %v4714 = vpop.f32.mrf.mxu0
    %4715 = vdwg.mxu0
    %4716 = vmatprep.subr.bf16.mxu0 %v4400
    %4717 = vmatpush1.bf16.msra.mxu0 %v4399
    %4718 = vmatprep.subr.bf16.mxu0 %v4392
    %4719 = vmatpush1.bf16.msra.mxu0 %v4391
    %4720 = vmatprep.subr.bf16.mxu0 %v4384
    %4721 = vmatpush1.bf16.msra.mxu0 %v4383
    %4722 = vmatprep.subr.bf16.mxu0 %v4376
    %4723 = vmatpush1.bf16.msra.mxu0 %v4375
    %4724 = vmatprep.subr.bf16.mxu0 %v4368
    %4725 = vmatpush1.bf16.msra.mxu0 %v4367
    %4726 = vmatprep.subr.bf16.mxu0 %v4360
    %4727 = vmatpush1.bf16.msra.mxu0 %v4359
    %4728 = vmatprep.subr.bf16.mxu0 %v4352
    %4729 = vmatpush1.bf16.msra.mxu0 %v4351
    %4730 = vmatprep.subr.bf16.mxu0 %v4344
    %4731 = vmatpush1.bf16.msra.mxu0 %v4343
    %4732 = vmatprep.subr.bf16.mxu0 %v4464
    %4733 = vmatpush2.bf16.msra.mxu0 %v4463
    %4734 = vmatprep.subr.bf16.mxu0 %v4456
    %4735 = vmatpush2.bf16.msra.mxu0 %v4455
    %4736 = vmatprep.subr.bf16.mxu0 %v4448
    %4737 = vmatpush2.bf16.msra.mxu0 %v4447
    %4738 = vmatprep.subr.bf16.mxu0 %v4440
    %4739 = vmatpush2.bf16.msra.mxu0 %v4439
    %4740 = vmatprep.subr.bf16.mxu0 %v4432
    %4741 = vmatpush2.bf16.msra.mxu0 %v4431
    %4742 = vmatprep.subr.bf16.mxu0 %v4424
    %4743 = vmatpush2.bf16.msra.mxu0 %v4423
    %4744 = vmatprep.subr.bf16.mxu0 %v4416
    %4745 = vmatpush2.bf16.msra.mxu0 %v4415
    %4746 = vmatprep.subr.bf16.mxu0 %v4408
    %4747 = vmatpush2.bf16.msra.mxu0 %v4407
    %4748 = vmatprep.mubr.bf16.mxu0 %v3824
    %4749 = vmatmul.mubr.bf16.gmra.mxu0 %v3823
    %v4750 = vpop.f32.mrf.mxu0
    %v4751 = vadd.f32 0.0, %v4750
    %v4752 = vpop.f32.mrf.mxu0
    %v4753 = vadd.f32 0.0, %v4752
    %v4754 = vpop.f32.mrf.mxu0
    %v4755 = vpop.f32.mrf.mxu0
    %4756 = vdwg.mxu0
    %v4757 = vld [vmem:[#allocation2 + $0xc0] sm:$0xff]
    %v4758 = vld [vmem:[#allocation2 + $0xc8] sm:$0xff]
    %v4759 = vld [vmem:[#allocation2 + $0xd0] sm:$0xff]
    %v4760 = vld [vmem:[#allocation2 + $0xd8] sm:$0xff]
    %v4761 = vadd.f32 %v4757, %v4628
    %v4762 = vadd.f32 %v4758, %v4630
    %v4763 = vadd.f32 %v4759, %v4669
    %v4764 = vadd.f32 %v4760, %v4671
    %v4765 = vld [vmem:[#allocation2 + $0x120] sm:$0xff]
    %v4766 = vld [vmem:[#allocation2 + $0x128] sm:$0xff]
    %v4767 = vld [vmem:[#allocation2 + $0x130] sm:$0xff]
    %v4768 = vld [vmem:[#allocation2 + $0x138] sm:$0xff]
    %v4769 = vadd.f32 %v4765, %v4710
    %v4770 = vadd.f32 %v4766, %v4712
    %v4771 = vadd.f32 %v4767, %v4751
    %v4772 = vadd.f32 %v4768, %v4753
    %v4773 = vxor.u32 %v4761, 2147483648
    %v4774 = vmul.f32 %v4773, 1.442695
    %v4775 = vpow.pop %v4774
    %v4776 = vadd.f32 %v4775, 1.0
    %v4777 = vrcp.pop %v4776
    %v4778 = vmul.f32 1.0, %v4777
    %v4779 = vxor.u32 %v4762, 2147483648
    %v4780 = vmul.f32 %v4779, 1.442695
    %v4781 = vpow.pop %v4780
    %v4782 = vadd.f32 %v4781, 1.0
    %v4783 = vrcp.pop %v4782
    %v4784 = vmul.f32 1.0, %v4783
    %v4785 = vmul.f32 %v4778, %v4764
    %v4786 = vadd.f32 %v4763, %v4785
    %v4787 = vtanh.pop %v4786
    %v4788 = vsub.f32 1.0, %v4784
    %v4789 = vmul.f32 %v4788, %v4787
    %v4790 = vmul.f32 %v4784, %v3799
    %v4791 = vadd.f32 %v4789, %v4790
    %v4792 = vxor.u32 %v4769, 2147483648
    %v4793 = vmul.f32 %v4792, 1.442695
    %v4794 = vpow.pop %v4793
    %v4795 = vadd.f32 %v4794, 1.0
    %v4796 = vrcp.pop %v4795
    %v4797 = vmul.f32 1.0, %v4796
    %v4798 = vxor.u32 %v4770, 2147483648
    %v4799 = vmul.f32 %v4798, 1.442695
    %v4800 = vpow.pop %v4799
    %v4801 = vadd.f32 %v4800, 1.0
    %v4802 = vrcp.pop %v4801
    %v4803 = vmul.f32 1.0, %v4802
    %v4804 = vmul.f32 %v4797, %v4772
    %v4805 = vadd.f32 %v4771, %v4804
    %v4806 = vtanh.pop %v4805
    %v4807 = vsub.f32 1.0, %v4803
    %v4808 = vmul.f32 %v4807, %v4806
    %v4809 = vmul.f32 %v4803, %v3818
    %v4810 = vadd.f32 %v4808, %v4809
    %s4811 = scalar_lea.vmem %s6, 24
    %4812 = vst [vmem:[%s4811] sm:$0xff] %v4791
    %s4813 = scalar_lea.vmem %s7, 32
    %4814 = vst [vmem:[%s4813] sm:$0xff] %v4810
    %v4815 = vpack.c.bf16 %v4791, %v4791
    %v4816 = vpack.c.bf16 %v4810, %v4810
    %v4817 = vld [vmem:[#allocation5] sm:$0xff]
    %v4818 = vld [vmem:[#allocation5 + $0x8] sm:$0xff]
    %v4819 = vld [vmem:[#allocation5 + $0x10] sm:$0xff]
    %v4820 = vld [vmem:[#allocation5 + $0x18] sm:$0xff]
    %v4821 = vld [vmem:[#allocation5 + $0x20] sm:$0xff]
    %v4822 = vld [vmem:[#allocation5 + $0x28] sm:$0xff]
    %v4823 = vld [vmem:[#allocation5 + $0x30] sm:$0xff]
    %v4824 = vld [vmem:[#allocation5 + $0x38] sm:$0xff]
    %v4825 = vld [vmem:[#allocation5 + $0x40] sm:$0xff]
    %v4826 = vld [vmem:[#allocation5 + $0x48] sm:$0xff]
    %v4827 = vld [vmem:[#allocation5 + $0x50] sm:$0xff]
    %v4828 = vld [vmem:[#allocation5 + $0x58] sm:$0xff]
    %v4829 = vld [vmem:[#allocation5 + $0x60] sm:$0xff]
    %v4830 = vld [vmem:[#allocation5 + $0x68] sm:$0xff]
    %v4831 = vld [vmem:[#allocation5 + $0x70] sm:$0xff]
    %v4832 = vld [vmem:[#allocation5 + $0x78] sm:$0xff]
    %v4833 = vld [vmem:[#allocation5 + $0x80] sm:$0xff]
    %v4834 = vld [vmem:[#allocation5 + $0x88] sm:$0xff]
    %v4835 = vld [vmem:[#allocation5 + $0x90] sm:$0xff]
    %v4836 = vld [vmem:[#allocation5 + $0x98] sm:$0xff]
    %v4837 = vld [vmem:[#allocation5 + $0xa0] sm:$0xff]
    %v4838 = vld [vmem:[#allocation5 + $0xa8] sm:$0xff]
    %v4839 = vld [vmem:[#allocation5 + $0xb0] sm:$0xff]
    %v4840 = vld [vmem:[#allocation5 + $0xb8] sm:$0xff]
    %v4841 = vld [vmem:[#allocation5 + $0xc0] sm:$0xff]
    %v4842 = vld [vmem:[#allocation5 + $0xc8] sm:$0xff]
    %v4843 = vld [vmem:[#allocation5 + $0xd0] sm:$0xff]
    %v4844 = vld [vmem:[#allocation5 + $0xd8] sm:$0xff]
    %v4845 = vld [vmem:[#allocation5 + $0xe0] sm:$0xff]
    %v4846 = vld [vmem:[#allocation5 + $0xe8] sm:$0xff]
    %v4847 = vld [vmem:[#allocation5 + $0xf0] sm:$0xff]
    %v4848 = vld [vmem:[#allocation5 + $0xf8] sm:$0xff]
    %v4849 = vld [vmem:[#allocation5 + $0x100] sm:$0xff]
    %v4850 = vld [vmem:[#allocation5 + $0x108] sm:$0xff]
    %v4851 = vld [vmem:[#allocation5 + $0x110] sm:$0xff]
    %v4852 = vld [vmem:[#allocation5 + $0x118] sm:$0xff]
    %v4853 = vld [vmem:[#allocation5 + $0x120] sm:$0xff]
    %v4854 = vld [vmem:[#allocation5 + $0x128] sm:$0xff]
    %v4855 = vld [vmem:[#allocation5 + $0x130] sm:$0xff]
    %v4856 = vld [vmem:[#allocation5 + $0x138] sm:$0xff]
    %v4857 = vld [vmem:[#allocation5 + $0x140] sm:$0xff]
    %v4858 = vld [vmem:[#allocation5 + $0x148] sm:$0xff]
    %v4859 = vld [vmem:[#allocation5 + $0x150] sm:$0xff]
    %v4860 = vld [vmem:[#allocation5 + $0x158] sm:$0xff]
    %v4861 = vld [vmem:[#allocation5 + $0x160] sm:$0xff]
    %v4862 = vld [vmem:[#allocation5 + $0x168] sm:$0xff]
    %v4863 = vld [vmem:[#allocation5 + $0x170] sm:$0xff]
    %v4864 = vld [vmem:[#allocation5 + $0x178] sm:$0xff]
    %v4865 = vld [vmem:[#allocation5 + $0x180] sm:$0xff]
    %v4866 = vld [vmem:[#allocation5 + $0x188] sm:$0xff]
    %v4867 = vld [vmem:[#allocation5 + $0x190] sm:$0xff]
    %v4868 = vld [vmem:[#allocation5 + $0x198] sm:$0xff]
    %v4869 = vld [vmem:[#allocation5 + $0x1a0] sm:$0xff]
    %v4870 = vld [vmem:[#allocation5 + $0x1a8] sm:$0xff]
    %v4871 = vld [vmem:[#allocation5 + $0x1b0] sm:$0xff]
    %v4872 = vld [vmem:[#allocation5 + $0x1b8] sm:$0xff]
    %v4873 = vld [vmem:[#allocation5 + $0x1c0] sm:$0xff]
    %v4874 = vld [vmem:[#allocation5 + $0x1c8] sm:$0xff]
    %v4875 = vld [vmem:[#allocation5 + $0x1d0] sm:$0xff]
    %v4876 = vld [vmem:[#allocation5 + $0x1d8] sm:$0xff]
    %v4877 = vld [vmem:[#allocation5 + $0x1e0] sm:$0xff]
    %v4878 = vld [vmem:[#allocation5 + $0x1e8] sm:$0xff]
    %v4879 = vld [vmem:[#allocation5 + $0x1f0] sm:$0xff]
    %v4880 = vld [vmem:[#allocation5 + $0x1f8] sm:$0xff]
    %v4881 = vld [vmem:[#allocation5 + $0x200] sm:$0xff]
    %v4882 = vld [vmem:[#allocation5 + $0x208] sm:$0xff]
    %v4883 = vld [vmem:[#allocation5 + $0x210] sm:$0xff]
    %v4884 = vld [vmem:[#allocation5 + $0x218] sm:$0xff]
    %v4885 = vld [vmem:[#allocation5 + $0x220] sm:$0xff]
    %v4886 = vld [vmem:[#allocation5 + $0x228] sm:$0xff]
    %v4887 = vld [vmem:[#allocation5 + $0x230] sm:$0xff]
    %v4888 = vld [vmem:[#allocation5 + $0x238] sm:$0xff]
    %v4889 = vld [vmem:[#allocation5 + $0x240] sm:$0xff]
    %v4890 = vld [vmem:[#allocation5 + $0x248] sm:$0xff]
    %v4891 = vld [vmem:[#allocation5 + $0x250] sm:$0xff]
    %v4892 = vld [vmem:[#allocation5 + $0x258] sm:$0xff]
    %v4893 = vld [vmem:[#allocation5 + $0x260] sm:$0xff]
    %v4894 = vld [vmem:[#allocation5 + $0x268] sm:$0xff]
    %v4895 = vld [vmem:[#allocation5 + $0x270] sm:$0xff]
    %v4896 = vld [vmem:[#allocation5 + $0x278] sm:$0xff]
    %v4897 = vld [vmem:[#allocation5 + $0x280] sm:$0xff]
    %v4898 = vld [vmem:[#allocation5 + $0x288] sm:$0xff]
    %v4899 = vld [vmem:[#allocation5 + $0x290] sm:$0xff]
    %v4900 = vld [vmem:[#allocation5 + $0x298] sm:$0xff]
    %v4901 = vld [vmem:[#allocation5 + $0x2a0] sm:$0xff]
    %v4902 = vld [vmem:[#allocation5 + $0x2a8] sm:$0xff]
    %v4903 = vld [vmem:[#allocation5 + $0x2b0] sm:$0xff]
    %v4904 = vld [vmem:[#allocation5 + $0x2b8] sm:$0xff]
    %v4905 = vld [vmem:[#allocation5 + $0x2c0] sm:$0xff]
    %v4906 = vld [vmem:[#allocation5 + $0x2c8] sm:$0xff]
    %v4907 = vld [vmem:[#allocation5 + $0x2d0] sm:$0xff]
    %v4908 = vld [vmem:[#allocation5 + $0x2d8] sm:$0xff]
    %v4909 = vld [vmem:[#allocation5 + $0x2e0] sm:$0xff]
    %v4910 = vld [vmem:[#allocation5 + $0x2e8] sm:$0xff]
    %v4911 = vld [vmem:[#allocation5 + $0x2f0] sm:$0xff]
    %v4912 = vld [vmem:[#allocation5 + $0x2f8] sm:$0xff]
    %v4913 = vld [vmem:[#allocation5 + $0x300] sm:$0xff]
    %v4914 = vld [vmem:[#allocation5 + $0x308] sm:$0xff]
    %v4915 = vld [vmem:[#allocation5 + $0x310] sm:$0xff]
    %v4916 = vld [vmem:[#allocation5 + $0x318] sm:$0xff]
    %v4917 = vld [vmem:[#allocation5 + $0x320] sm:$0xff]
    %v4918 = vld [vmem:[#allocation5 + $0x328] sm:$0xff]
    %v4919 = vld [vmem:[#allocation5 + $0x330] sm:$0xff]
    %v4920 = vld [vmem:[#allocation5 + $0x338] sm:$0xff]
    %v4921 = vld [vmem:[#allocation5 + $0x340] sm:$0xff]
    %v4922 = vld [vmem:[#allocation5 + $0x348] sm:$0xff]
    %v4923 = vld [vmem:[#allocation5 + $0x350] sm:$0xff]
    %v4924 = vld [vmem:[#allocation5 + $0x358] sm:$0xff]
    %v4925 = vld [vmem:[#allocation5 + $0x360] sm:$0xff]
    %v4926 = vld [vmem:[#allocation5 + $0x368] sm:$0xff]
    %v4927 = vld [vmem:[#allocation5 + $0x370] sm:$0xff]
    %v4928 = vld [vmem:[#allocation5 + $0x378] sm:$0xff]
    %v4929 = vld [vmem:[#allocation5 + $0x380] sm:$0xff]
    %v4930 = vld [vmem:[#allocation5 + $0x388] sm:$0xff]
    %v4931 = vld [vmem:[#allocation5 + $0x390] sm:$0xff]
    %v4932 = vld [vmem:[#allocation5 + $0x398] sm:$0xff]
    %v4933 = vld [vmem:[#allocation5 + $0x3a0] sm:$0xff]
    %v4934 = vld [vmem:[#allocation5 + $0x3a8] sm:$0xff]
    %v4935 = vld [vmem:[#allocation5 + $0x3b0] sm:$0xff]
    %v4936 = vld [vmem:[#allocation5 + $0x3b8] sm:$0xff]
    %v4937 = vld [vmem:[#allocation5 + $0x3c0] sm:$0xff]
    %v4938 = vld [vmem:[#allocation5 + $0x3c8] sm:$0xff]
    %v4939 = vld [vmem:[#allocation5 + $0x3d0] sm:$0xff]
    %v4940 = vld [vmem:[#allocation5 + $0x3d8] sm:$0xff]
    %v4941 = vld [vmem:[#allocation5 + $0x3e0] sm:$0xff]
    %v4942 = vld [vmem:[#allocation5 + $0x3e8] sm:$0xff]
    %v4943 = vld [vmem:[#allocation5 + $0x3f0] sm:$0xff]
    %v4944 = vld [vmem:[#allocation5 + $0x3f8] sm:$0xff]
    %v5073 = vunpack.c.l.b16 %v4817
    %v5074 = vunpack.c.h.b16 %v4817
    %v5075 = vunpack.c.l.b16 %v4818
    %v5076 = vunpack.c.h.b16 %v4818
    %v5077 = vunpack.c.l.b16 %v4819
    %v5078 = vunpack.c.h.b16 %v4819
    %v5079 = vunpack.c.l.b16 %v4820
    %v5080 = vunpack.c.h.b16 %v4820
    %v5081 = vunpack.c.l.b16 %v4821
    %v5082 = vunpack.c.h.b16 %v4821
    %v5083 = vunpack.c.l.b16 %v4822
    %v5084 = vunpack.c.h.b16 %v4822
    %v5085 = vunpack.c.l.b16 %v4823
    %v5086 = vunpack.c.h.b16 %v4823
    %v5087 = vunpack.c.l.b16 %v4824
    %v5088 = vunpack.c.h.b16 %v4824
    %v5089 = vunpack.c.l.b16 %v4825
    %v5090 = vunpack.c.h.b16 %v4825
    %v5091 = vunpack.c.l.b16 %v4826
    %v5092 = vunpack.c.h.b16 %v4826
    %v5093 = vunpack.c.l.b16 %v4827
    %v5094 = vunpack.c.h.b16 %v4827
    %v5095 = vunpack.c.l.b16 %v4828
    %v5096 = vunpack.c.h.b16 %v4828
    %v5097 = vunpack.c.l.b16 %v4829
    %v5098 = vunpack.c.h.b16 %v4829
    %v5099 = vunpack.c.l.b16 %v4830
    %v5100 = vunpack.c.h.b16 %v4830
    %v5101 = vunpack.c.l.b16 %v4831
    %v5102 = vunpack.c.h.b16 %v4831
    %v5103 = vunpack.c.l.b16 %v4832
    %v5104 = vunpack.c.h.b16 %v4832
    %v5105 = vunpack.c.l.b16 %v4833
    %v5106 = vunpack.c.h.b16 %v4833
    %v5107 = vunpack.c.l.b16 %v4834
    %v5108 = vunpack.c.h.b16 %v4834
    %v5109 = vunpack.c.l.b16 %v4835
    %v5110 = vunpack.c.h.b16 %v4835
    %v5111 = vunpack.c.l.b16 %v4836
    %v5112 = vunpack.c.h.b16 %v4836
    %v5113 = vunpack.c.l.b16 %v4837
    %v5114 = vunpack.c.h.b16 %v4837
    %v5115 = vunpack.c.l.b16 %v4838
    %v5116 = vunpack.c.h.b16 %v4838
    %v5117 = vunpack.c.l.b16 %v4839
    %v5118 = vunpack.c.h.b16 %v4839
    %v5119 = vunpack.c.l.b16 %v4840
    %v5120 = vunpack.c.h.b16 %v4840
    %v5121 = vunpack.c.l.b16 %v4841
    %v5122 = vunpack.c.h.b16 %v4841
    %v5123 = vunpack.c.l.b16 %v4842
    %v5124 = vunpack.c.h.b16 %v4842
    %v5125 = vunpack.c.l.b16 %v4843
    %v5126 = vunpack.c.h.b16 %v4843
    %v5127 = vunpack.c.l.b16 %v4844
    %v5128 = vunpack.c.h.b16 %v4844
    %v5129 = vunpack.c.l.b16 %v4845
    %v5130 = vunpack.c.h.b16 %v4845
    %v5131 = vunpack.c.l.b16 %v4846
    %v5132 = vunpack.c.h.b16 %v4846
    %v5133 = vunpack.c.l.b16 %v4847
    %v5134 = vunpack.c.h.b16 %v4847
    %v5135 = vunpack.c.l.b16 %v4848
    %v5136 = vunpack.c.h.b16 %v4848
    %v5137 = vunpack.c.l.b16 %v4849
    %v5138 = vunpack.c.h.b16 %v4849
    %v5139 = vunpack.c.l.b16 %v4850
    %v5140 = vunpack.c.h.b16 %v4850
    %v5141 = vunpack.c.l.b16 %v4851
    %v5142 = vunpack.c.h.b16 %v4851
    %v5143 = vunpack.c.l.b16 %v4852
    %v5144 = vunpack.c.h.b16 %v4852
    %v5145 = vunpack.c.l.b16 %v4853
    %v5146 = vunpack.c.h.b16 %v4853
    %v5147 = vunpack.c.l.b16 %v4854
    %v5148 = vunpack.c.h.b16 %v4854
    %v5149 = vunpack.c.l.b16 %v4855
    %v5150 = vunpack.c.h.b16 %v4855
    %v5151 = vunpack.c.l.b16 %v4856
    %v5152 = vunpack.c.h.b16 %v4856
    %v5153 = vunpack.c.l.b16 %v4857
    %v5154 = vunpack.c.h.b16 %v4857
    %v5155 = vunpack.c.l.b16 %v4858
    %v5156 = vunpack.c.h.b16 %v4858
    %v5157 = vunpack.c.l.b16 %v4859
    %v5158 = vunpack.c.h.b16 %v4859
    %v5159 = vunpack.c.l.b16 %v4860
    %v5160 = vunpack.c.h.b16 %v4860
    %v5161 = vunpack.c.l.b16 %v4861
    %v5162 = vunpack.c.h.b16 %v4861
    %v5163 = vunpack.c.l.b16 %v4862
    %v5164 = vunpack.c.h.b16 %v4862
    %v5165 = vunpack.c.l.b16 %v4863
    %v5166 = vunpack.c.h.b16 %v4863
    %v5167 = vunpack.c.l.b16 %v4864
    %v5168 = vunpack.c.h.b16 %v4864
    %v5169 = vunpack.c.l.b16 %v4865
    %v5170 = vunpack.c.h.b16 %v4865
    %v5171 = vunpack.c.l.b16 %v4866
    %v5172 = vunpack.c.h.b16 %v4866
    %v5173 = vunpack.c.l.b16 %v4867
    %v5174 = vunpack.c.h.b16 %v4867
    %v5175 = vunpack.c.l.b16 %v4868
    %v5176 = vunpack.c.h.b16 %v4868
    %v5177 = vunpack.c.l.b16 %v4869
    %v5178 = vunpack.c.h.b16 %v4869
    %v5179 = vunpack.c.l.b16 %v4870
    %v5180 = vunpack.c.h.b16 %v4870
    %v5181 = vunpack.c.l.b16 %v4871
    %v5182 = vunpack.c.h.b16 %v4871
    %v5183 = vunpack.c.l.b16 %v4872
    %v5184 = vunpack.c.h.b16 %v4872
    %v5185 = vunpack.c.l.b16 %v4873
    %v5186 = vunpack.c.h.b16 %v4873
    %v5187 = vunpack.c.l.b16 %v4874
    %v5188 = vunpack.c.h.b16 %v4874
    %v5189 = vunpack.c.l.b16 %v4875
    %v5190 = vunpack.c.h.b16 %v4875
    %v5191 = vunpack.c.l.b16 %v4876
    %v5192 = vunpack.c.h.b16 %v4876
    %v5193 = vunpack.c.l.b16 %v4877
    %v5194 = vunpack.c.h.b16 %v4877
    %v5195 = vunpack.c.l.b16 %v4878
    %v5196 = vunpack.c.h.b16 %v4878
    %v5197 = vunpack.c.l.b16 %v4879
    %v5198 = vunpack.c.h.b16 %v4879
    %v5199 = vunpack.c.l.b16 %v4880
    %v5200 = vunpack.c.h.b16 %v4880
    %v5201 = vunpack.c.l.b16 %v4881
    %v5202 = vunpack.c.h.b16 %v4881
    %v5203 = vunpack.c.l.b16 %v4882
    %v5204 = vunpack.c.h.b16 %v4882
    %v5205 = vunpack.c.l.b16 %v4883
    %v5206 = vunpack.c.h.b16 %v4883
    %v5207 = vunpack.c.l.b16 %v4884
    %v5208 = vunpack.c.h.b16 %v4884
    %v5209 = vunpack.c.l.b16 %v4885
    %v5210 = vunpack.c.h.b16 %v4885
    %v5211 = vunpack.c.l.b16 %v4886
    %v5212 = vunpack.c.h.b16 %v4886
    %v5213 = vunpack.c.l.b16 %v4887
    %v5214 = vunpack.c.h.b16 %v4887
    %v5215 = vunpack.c.l.b16 %v4888
    %v5216 = vunpack.c.h.b16 %v4888
    %v5217 = vunpack.c.l.b16 %v4889
    %v5218 = vunpack.c.h.b16 %v4889
    %v5219 = vunpack.c.l.b16 %v4890
    %v5220 = vunpack.c.h.b16 %v4890
    %v5221 = vunpack.c.l.b16 %v4891
    %v5222 = vunpack.c.h.b16 %v4891
    %v5223 = vunpack.c.l.b16 %v4892
    %v5224 = vunpack.c.h.b16 %v4892
    %v5225 = vunpack.c.l.b16 %v4893
    %v5226 = vunpack.c.h.b16 %v4893
    %v5227 = vunpack.c.l.b16 %v4894
    %v5228 = vunpack.c.h.b16 %v4894
    %v5229 = vunpack.c.l.b16 %v4895
    %v5230 = vunpack.c.h.b16 %v4895
    %v5231 = vunpack.c.l.b16 %v4896
    %v5232 = vunpack.c.h.b16 %v4896
    %v5233 = vunpack.c.l.b16 %v4897
    %v5234 = vunpack.c.h.b16 %v4897
    %v5235 = vunpack.c.l.b16 %v4898
    %v5236 = vunpack.c.h.b16 %v4898
    %v5237 = vunpack.c.l.b16 %v4899
    %v5238 = vunpack.c.h.b16 %v4899
    %v5239 = vunpack.c.l.b16 %v4900
    %v5240 = vunpack.c.h.b16 %v4900
    %v5241 = vunpack.c.l.b16 %v4901
    %v5242 = vunpack.c.h.b16 %v4901
    %v5243 = vunpack.c.l.b16 %v4902
    %v5244 = vunpack.c.h.b16 %v4902
    %v5245 = vunpack.c.l.b16 %v4903
    %v5246 = vunpack.c.h.b16 %v4903
    %v5247 = vunpack.c.l.b16 %v4904
    %v5248 = vunpack.c.h.b16 %v4904
    %v5249 = vunpack.c.l.b16 %v4905
    %v5250 = vunpack.c.h.b16 %v4905
    %v5251 = vunpack.c.l.b16 %v4906
    %v5252 = vunpack.c.h.b16 %v4906
    %v5253 = vunpack.c.l.b16 %v4907
    %v5254 = vunpack.c.h.b16 %v4907
    %v5255 = vunpack.c.l.b16 %v4908
    %v5256 = vunpack.c.h.b16 %v4908
    %v5257 = vunpack.c.l.b16 %v4909
    %v5258 = vunpack.c.h.b16 %v4909
    %v5259 = vunpack.c.l.b16 %v4910
    %v5260 = vunpack.c.h.b16 %v4910
    %v5261 = vunpack.c.l.b16 %v4911
    %v5262 = vunpack.c.h.b16 %v4911
    %v5263 = vunpack.c.l.b16 %v4912
    %v5264 = vunpack.c.h.b16 %v4912
    %v5265 = vunpack.c.l.b16 %v4913
    %v5266 = vunpack.c.h.b16 %v4913
    %v5267 = vunpack.c.l.b16 %v4914
    %v5268 = vunpack.c.h.b16 %v4914
    %v5269 = vunpack.c.l.b16 %v4915
    %v5270 = vunpack.c.h.b16 %v4915
    %v5271 = vunpack.c.l.b16 %v4916
    %v5272 = vunpack.c.h.b16 %v4916
    %v5273 = vunpack.c.l.b16 %v4917
    %v5274 = vunpack.c.h.b16 %v4917
    %v5275 = vunpack.c.l.b16 %v4918
    %v5276 = vunpack.c.h.b16 %v4918
    %v5277 = vunpack.c.l.b16 %v4919
    %v5278 = vunpack.c.h.b16 %v4919
    %v5279 = vunpack.c.l.b16 %v4920
    %v5280 = vunpack.c.h.b16 %v4920
    %v5281 = vunpack.c.l.b16 %v4921
    %v5282 = vunpack.c.h.b16 %v4921
    %v5283 = vunpack.c.l.b16 %v4922
    %v5284 = vunpack.c.h.b16 %v4922
    %v5285 = vunpack.c.l.b16 %v4923
    %v5286 = vunpack.c.h.b16 %v4923
    %v5287 = vunpack.c.l.b16 %v4924
    %v5288 = vunpack.c.h.b16 %v4924
    %v5289 = vunpack.c.l.b16 %v4925
    %v5290 = vunpack.c.h.b16 %v4925
    %v5291 = vunpack.c.l.b16 %v4926
    %v5292 = vunpack.c.h.b16 %v4926
    %v5293 = vunpack.c.l.b16 %v4927
    %v5294 = vunpack.c.h.b16 %v4927
    %v5295 = vunpack.c.l.b16 %v4928
    %v5296 = vunpack.c.h.b16 %v4928
    %v5297 = vunpack.c.l.b16 %v4929
    %v5298 = vunpack.c.h.b16 %v4929
    %v5299 = vunpack.c.l.b16 %v4930
    %v5300 = vunpack.c.h.b16 %v4930
    %v5301 = vunpack.c.l.b16 %v4931
    %v5302 = vunpack.c.h.b16 %v4931
    %v5303 = vunpack.c.l.b16 %v4932
    %v5304 = vunpack.c.h.b16 %v4932
    %v5305 = vunpack.c.l.b16 %v4933
    %v5306 = vunpack.c.h.b16 %v4933
    %v5307 = vunpack.c.l.b16 %v4934
    %v5308 = vunpack.c.h.b16 %v4934
    %v5309 = vunpack.c.l.b16 %v4935
    %v5310 = vunpack.c.h.b16 %v4935
    %v5311 = vunpack.c.l.b16 %v4936
    %v5312 = vunpack.c.h.b16 %v4936
    %v5313 = vunpack.c.l.b16 %v4937
    %v5314 = vunpack.c.h.b16 %v4937
    %v5315 = vunpack.c.l.b16 %v4938
    %v5316 = vunpack.c.h.b16 %v4938
    %v5317 = vunpack.c.l.b16 %v4939
    %v5318 = vunpack.c.h.b16 %v4939
    %v5319 = vunpack.c.l.b16 %v4940
    %v5320 = vunpack.c.h.b16 %v4940
    %v5321 = vunpack.c.l.b16 %v4941
    %v5322 = vunpack.c.h.b16 %v4941
    %v5323 = vunpack.c.l.b16 %v4942
    %v5324 = vunpack.c.h.b16 %v4942
    %v5325 = vunpack.c.l.b16 %v4943
    %v5326 = vunpack.c.h.b16 %v4943
    %v5327 = vunpack.c.l.b16 %v4944
    %v5328 = vunpack.c.h.b16 %v4944
    %v5329 = vpack.c.b16 %v5081, %v5073
    %v5330 = vpack.c.b16 %v5082, %v5074
    %v5331 = vpack.c.b16 %v5083, %v5075
    %v5332 = vpack.c.b16 %v5084, %v5076
    %v5333 = vpack.c.b16 %v5085, %v5077
    %v5334 = vpack.c.b16 %v5086, %v5078
    %v5335 = vpack.c.b16 %v5087, %v5079
    %v5336 = vpack.c.b16 %v5088, %v5080
    %v5337 = vpack.c.b16 %v5097, %v5089
    %v5338 = vpack.c.b16 %v5098, %v5090
    %v5339 = vpack.c.b16 %v5099, %v5091
    %v5340 = vpack.c.b16 %v5100, %v5092
    %v5341 = vpack.c.b16 %v5101, %v5093
    %v5342 = vpack.c.b16 %v5102, %v5094
    %v5343 = vpack.c.b16 %v5103, %v5095
    %v5344 = vpack.c.b16 %v5104, %v5096
    %v5345 = vpack.c.b16 %v5113, %v5105
    %v5346 = vpack.c.b16 %v5114, %v5106
    %v5347 = vpack.c.b16 %v5115, %v5107
    %v5348 = vpack.c.b16 %v5116, %v5108
    %v5349 = vpack.c.b16 %v5117, %v5109
    %v5350 = vpack.c.b16 %v5118, %v5110
    %v5351 = vpack.c.b16 %v5119, %v5111
    %v5352 = vpack.c.b16 %v5120, %v5112
    %v5353 = vpack.c.b16 %v5129, %v5121
    %v5354 = vpack.c.b16 %v5130, %v5122
    %v5355 = vpack.c.b16 %v5131, %v5123
    %v5356 = vpack.c.b16 %v5132, %v5124
    %v5357 = vpack.c.b16 %v5133, %v5125
    %v5358 = vpack.c.b16 %v5134, %v5126
    %v5359 = vpack.c.b16 %v5135, %v5127
    %v5360 = vpack.c.b16 %v5136, %v5128
    %v5361 = vpack.c.b16 %v5145, %v5137
    %v5362 = vpack.c.b16 %v5146, %v5138
    %v5363 = vpack.c.b16 %v5147, %v5139
    %v5364 = vpack.c.b16 %v5148, %v5140
    %v5365 = vpack.c.b16 %v5149, %v5141
    %v5366 = vpack.c.b16 %v5150, %v5142
    %v5367 = vpack.c.b16 %v5151, %v5143
    %v5368 = vpack.c.b16 %v5152, %v5144
    %v5369 = vpack.c.b16 %v5161, %v5153
    %v5370 = vpack.c.b16 %v5162, %v5154
    %v5371 = vpack.c.b16 %v5163, %v5155
    %v5372 = vpack.c.b16 %v5164, %v5156
    %v5373 = vpack.c.b16 %v5165, %v5157
    %v5374 = vpack.c.b16 %v5166, %v5158
    %v5375 = vpack.c.b16 %v5167, %v5159
    %v5376 = vpack.c.b16 %v5168, %v5160
    %v5377 = vpack.c.b16 %v5177, %v5169
    %v5378 = vpack.c.b16 %v5178, %v5170
    %v5379 = vpack.c.b16 %v5179, %v5171
    %v5380 = vpack.c.b16 %v5180, %v5172
    %v5381 = vpack.c.b16 %v5181, %v5173
    %v5382 = vpack.c.b16 %v5182, %v5174
    %v5383 = vpack.c.b16 %v5183, %v5175
    %v5384 = vpack.c.b16 %v5184, %v5176
    %v5385 = vpack.c.b16 %v5193, %v5185
    %v5386 = vpack.c.b16 %v5194, %v5186
    %v5387 = vpack.c.b16 %v5195, %v5187
    %v5388 = vpack.c.b16 %v5196, %v5188
    %v5389 = vpack.c.b16 %v5197, %v5189
    %v5390 = vpack.c.b16 %v5198, %v5190
    %v5391 = vpack.c.b16 %v5199, %v5191
    %v5392 = vpack.c.b16 %v5200, %v5192
    %v5393 = vpack.c.b16 %v5209, %v5201
    %v5394 = vpack.c.b16 %v5210, %v5202
    %v5395 = vpack.c.b16 %v5211, %v5203
    %v5396 = vpack.c.b16 %v5212, %v5204
    %v5397 = vpack.c.b16 %v5213, %v5205
    %v5398 = vpack.c.b16 %v5214, %v5206
    %v5399 = vpack.c.b16 %v5215, %v5207
    %v5400 = vpack.c.b16 %v5216, %v5208
    %v5401 = vpack.c.b16 %v5225, %v5217
    %v5402 = vpack.c.b16 %v5226, %v5218
    %v5403 = vpack.c.b16 %v5227, %v5219
    %v5404 = vpack.c.b16 %v5228, %v5220
    %v5405 = vpack.c.b16 %v5229, %v5221
    %v5406 = vpack.c.b16 %v5230, %v5222
    %v5407 = vpack.c.b16 %v5231, %v5223
    %v5408 = vpack.c.b16 %v5232, %v5224
    %v5409 = vpack.c.b16 %v5241, %v5233
    %v5410 = vpack.c.b16 %v5242, %v5234
    %v5411 = vpack.c.b16 %v5243, %v5235
    %v5412 = vpack.c.b16 %v5244, %v5236
    %v5413 = vpack.c.b16 %v5245, %v5237
    %v5414 = vpack.c.b16 %v5246, %v5238
    %v5415 = vpack.c.b16 %v5247, %v5239
    %v5416 = vpack.c.b16 %v5248, %v5240
    %v5417 = vpack.c.b16 %v5257, %v5249
    %v5418 = vpack.c.b16 %v5258, %v5250
    %v5419 = vpack.c.b16 %v5259, %v5251
    %v5420 = vpack.c.b16 %v5260, %v5252
    %v5421 = vpack.c.b16 %v5261, %v5253
    %v5422 = vpack.c.b16 %v5262, %v5254
    %v5423 = vpack.c.b16 %v5263, %v5255
    %v5424 = vpack.c.b16 %v5264, %v5256
    %v5425 = vpack.c.b16 %v5273, %v5265
    %v5426 = vpack.c.b16 %v5274, %v5266
    %v5427 = vpack.c.b16 %v5275, %v5267
    %v5428 = vpack.c.b16 %v5276, %v5268
    %v5429 = vpack.c.b16 %v5277, %v5269
    %v5430 = vpack.c.b16 %v5278, %v5270
    %v5431 = vpack.c.b16 %v5279, %v5271
    %v5432 = vpack.c.b16 %v5280, %v5272
    %v5433 = vpack.c.b16 %v5289, %v5281
    %v5434 = vpack.c.b16 %v5290, %v5282
    %v5435 = vpack.c.b16 %v5291, %v5283
    %v5436 = vpack.c.b16 %v5292, %v5284
    %v5437 = vpack.c.b16 %v5293, %v5285
    %v5438 = vpack.c.b16 %v5294, %v5286
    %v5439 = vpack.c.b16 %v5295, %v5287
    %v5440 = vpack.c.b16 %v5296, %v5288
    %v5441 = vpack.c.b16 %v5305, %v5297
    %v5442 = vpack.c.b16 %v5306, %v5298
    %v5443 = vpack.c.b16 %v5307, %v5299
    %v5444 = vpack.c.b16 %v5308, %v5300
    %v5445 = vpack.c.b16 %v5309, %v5301
    %v5446 = vpack.c.b16 %v5310, %v5302
    %v5447 = vpack.c.b16 %v5311, %v5303
    %v5448 = vpack.c.b16 %v5312, %v5304
    %v5449 = vpack.c.b16 %v5321, %v5313
    %v5450 = vpack.c.b16 %v5322, %v5314
    %v5451 = vpack.c.b16 %v5323, %v5315
    %v5452 = vpack.c.b16 %v5324, %v5316
    %v5453 = vpack.c.b16 %v5325, %v5317
    %v5454 = vpack.c.b16 %v5326, %v5318
    %v5455 = vpack.c.b16 %v5327, %v5319
    %v5456 = vpack.c.b16 %v5328, %v5320
    %5585 = vmatprep.subr.bf16.mxu0 %v5386
    %5586 = vmatpush1.bf16.msra.mxu0 %v5385
    %5587 = vmatprep.subr.bf16.mxu0 %v5378
    %5588 = vmatpush1.bf16.msra.mxu0 %v5377
    %5589 = vmatprep.subr.bf16.mxu0 %v5370
    %5590 = vmatpush1.bf16.msra.mxu0 %v5369
    %5591 = vmatprep.subr.bf16.mxu0 %v5362
    %5592 = vmatpush1.bf16.msra.mxu0 %v5361
    %5593 = vmatprep.subr.bf16.mxu0 %v5354
    %5594 = vmatpush1.bf16.msra.mxu0 %v5353
    %5595 = vmatprep.subr.bf16.mxu0 %v5346
    %5596 = vmatpush1.bf16.msra.mxu0 %v5345
    %5597 = vmatprep.subr.bf16.mxu0 %v5338
    %5598 = vmatpush1.bf16.msra.mxu0 %v5337
    %5599 = vmatprep.subr.bf16.mxu0 %v5330
    %5600 = vmatpush1.bf16.msra.mxu0 %v5329
    %5601 = vmatprep.subr.bf16.mxu0 %v5450
    %5602 = vmatpush2.bf16.msra.mxu0 %v5449
    %5603 = vmatprep.subr.bf16.mxu0 %v5442
    %5604 = vmatpush2.bf16.msra.mxu0 %v5441
    %5605 = vmatprep.subr.bf16.mxu0 %v5434
    %5606 = vmatpush2.bf16.msra.mxu0 %v5433
    %5607 = vmatprep.subr.bf16.mxu0 %v5426
    %5608 = vmatpush2.bf16.msra.mxu0 %v5425
    %5609 = vmatprep.subr.bf16.mxu0 %v5418
    %5610 = vmatpush2.bf16.msra.mxu0 %v5417
    %5611 = vmatprep.subr.bf16.mxu0 %v5410
    %5612 = vmatpush2.bf16.msra.mxu0 %v5409
    %5613 = vmatprep.subr.bf16.mxu0 %v5402
    %5614 = vmatpush2.bf16.msra.mxu0 %v5401
    %5615 = vmatprep.subr.bf16.mxu0 %v5394
    %5616 = vmatpush2.bf16.msra.mxu0 %v5393
    %5617 = vmatprep.mubr.bf16.mxu0 %v4816
    %5618 = vmatmul.mubr.bf16.gmra.mxu0 %v4815
    %v5619 = vpop.f32.mrf.mxu0
    %v5620 = vadd.f32 0.0, %v5619
    %v5621 = vpop.f32.mrf.mxu0
    %v5622 = vadd.f32 0.0, %v5621
    %v5623 = vpop.f32.mrf.mxu0
    %v5624 = vpop.f32.mrf.mxu0
    %5625 = vdwg.mxu0
    %5626 = vmatprep.subr.bf16.mxu0 %v5388
    %5627 = vmatpush1.bf16.msra.mxu0 %v5387
    %5628 = vmatprep.subr.bf16.mxu0 %v5380
    %5629 = vmatpush1.bf16.msra.mxu0 %v5379
    %5630 = vmatprep.subr.bf16.mxu0 %v5372
    %5631 = vmatpush1.bf16.msra.mxu0 %v5371
    %5632 = vmatprep.subr.bf16.mxu0 %v5364
    %5633 = vmatpush1.bf16.msra.mxu0 %v5363
    %5634 = vmatprep.subr.bf16.mxu0 %v5356
    %5635 = vmatpush1.bf16.msra.mxu0 %v5355
    %5636 = vmatprep.subr.bf16.mxu0 %v5348
    %5637 = vmatpush1.bf16.msra.mxu0 %v5347
    %5638 = vmatprep.subr.bf16.mxu0 %v5340
    %5639 = vmatpush1.bf16.msra.mxu0 %v5339
    %5640 = vmatprep.subr.bf16.mxu0 %v5332
    %5641 = vmatpush1.bf16.msra.mxu0 %v5331
    %5642 = vmatprep.subr.bf16.mxu0 %v5452
    %5643 = vmatpush2.bf16.msra.mxu0 %v5451
    %5644 = vmatprep.subr.bf16.mxu0 %v5444
    %5645 = vmatpush2.bf16.msra.mxu0 %v5443
    %5646 = vmatprep.subr.bf16.mxu0 %v5436
    %5647 = vmatpush2.bf16.msra.mxu0 %v5435
    %5648 = vmatprep.subr.bf16.mxu0 %v5428
    %5649 = vmatpush2.bf16.msra.mxu0 %v5427
    %5650 = vmatprep.subr.bf16.mxu0 %v5420
    %5651 = vmatpush2.bf16.msra.mxu0 %v5419
    %5652 = vmatprep.subr.bf16.mxu0 %v5412
    %5653 = vmatpush2.bf16.msra.mxu0 %v5411
    %5654 = vmatprep.subr.bf16.mxu0 %v5404
    %5655 = vmatpush2.bf16.msra.mxu0 %v5403
    %5656 = vmatprep.subr.bf16.mxu0 %v5396
    %5657 = vmatpush2.bf16.msra.mxu0 %v5395
    %5658 = vmatprep.mubr.bf16.mxu0 %v4816
    %5659 = vmatmul.mubr.bf16.gmra.mxu0 %v4815
    %v5660 = vpop.f32.mrf.mxu0
    %v5661 = vadd.f32 0.0, %v5660
    %v5662 = vpop.f32.mrf.mxu0
    %v5663 = vadd.f32 0.0, %v5662
    %v5664 = vpop.f32.mrf.mxu0
    %v5665 = vpop.f32.mrf.mxu0
    %5666 = vdwg.mxu0
    %5667 = vmatprep.subr.bf16.mxu0 %v5390
    %5668 = vmatpush1.bf16.msra.mxu0 %v5389
    %5669 = vmatprep.subr.bf16.mxu0 %v5382
    %5670 = vmatpush1.bf16.msra.mxu0 %v5381
    %5671 = vmatprep.subr.bf16.mxu0 %v5374
    %5672 = vmatpush1.bf16.msra.mxu0 %v5373
    %5673 = vmatprep.subr.bf16.mxu0 %v5366
    %5674 = vmatpush1.bf16.msra.mxu0 %v5365
    %5675 = vmatprep.subr.bf16.mxu0 %v5358
    %5676 = vmatpush1.bf16.msra.mxu0 %v5357
    %5677 = vmatprep.subr.bf16.mxu0 %v5350
    %5678 = vmatpush1.bf16.msra.mxu0 %v5349
    %5679 = vmatprep.subr.bf16.mxu0 %v5342
    %5680 = vmatpush1.bf16.msra.mxu0 %v5341
    %5681 = vmatprep.subr.bf16.mxu0 %v5334
    %5682 = vmatpush1.bf16.msra.mxu0 %v5333
    %5683 = vmatprep.subr.bf16.mxu0 %v5454
    %5684 = vmatpush2.bf16.msra.mxu0 %v5453
    %5685 = vmatprep.subr.bf16.mxu0 %v5446
    %5686 = vmatpush2.bf16.msra.mxu0 %v5445
    %5687 = vmatprep.subr.bf16.mxu0 %v5438
    %5688 = vmatpush2.bf16.msra.mxu0 %v5437
    %5689 = vmatprep.subr.bf16.mxu0 %v5430
    %5690 = vmatpush2.bf16.msra.mxu0 %v5429
    %5691 = vmatprep.subr.bf16.mxu0 %v5422
    %5692 = vmatpush2.bf16.msra.mxu0 %v5421
    %5693 = vmatprep.subr.bf16.mxu0 %v5414
    %5694 = vmatpush2.bf16.msra.mxu0 %v5413
    %5695 = vmatprep.subr.bf16.mxu0 %v5406
    %5696 = vmatpush2.bf16.msra.mxu0 %v5405
    %5697 = vmatprep.subr.bf16.mxu0 %v5398
    %5698 = vmatpush2.bf16.msra.mxu0 %v5397
    %5699 = vmatprep.mubr.bf16.mxu0 %v4816
    %5700 = vmatmul.mubr.bf16.gmra.mxu0 %v4815
    %v5701 = vpop.f32.mrf.mxu0
    %v5702 = vadd.f32 0.0, %v5701
    %v5703 = vpop.f32.mrf.mxu0
    %v5704 = vadd.f32 0.0, %v5703
    %v5705 = vpop.f32.mrf.mxu0
    %v5706 = vpop.f32.mrf.mxu0
    %5707 = vdwg.mxu0
    %5708 = vmatprep.subr.bf16.mxu0 %v5392
    %5709 = vmatpush1.bf16.msra.mxu0 %v5391
    %5710 = vmatprep.subr.bf16.mxu0 %v5384
    %5711 = vmatpush1.bf16.msra.mxu0 %v5383
    %5712 = vmatprep.subr.bf16.mxu0 %v5376
    %5713 = vmatpush1.bf16.msra.mxu0 %v5375
    %5714 = vmatprep.subr.bf16.mxu0 %v5368
    %5715 = vmatpush1.bf16.msra.mxu0 %v5367
    %5716 = vmatprep.subr.bf16.mxu0 %v5360
    %5717 = vmatpush1.bf16.msra.mxu0 %v5359
    %5718 = vmatprep.subr.bf16.mxu0 %v5352
    %5719 = vmatpush1.bf16.msra.mxu0 %v5351
    %5720 = vmatprep.subr.bf16.mxu0 %v5344
    %5721 = vmatpush1.bf16.msra.mxu0 %v5343
    %5722 = vmatprep.subr.bf16.mxu0 %v5336
    %5723 = vmatpush1.bf16.msra.mxu0 %v5335
    %5724 = vmatprep.subr.bf16.mxu0 %v5456
    %5725 = vmatpush2.bf16.msra.mxu0 %v5455
    %5726 = vmatprep.subr.bf16.mxu0 %v5448
    %5727 = vmatpush2.bf16.msra.mxu0 %v5447
    %5728 = vmatprep.subr.bf16.mxu0 %v5440
    %5729 = vmatpush2.bf16.msra.mxu0 %v5439
    %5730 = vmatprep.subr.bf16.mxu0 %v5432
    %5731 = vmatpush2.bf16.msra.mxu0 %v5431
    %5732 = vmatprep.subr.bf16.mxu0 %v5424
    %5733 = vmatpush2.bf16.msra.mxu0 %v5423
    %5734 = vmatprep.subr.bf16.mxu0 %v5416
    %5735 = vmatpush2.bf16.msra.mxu0 %v5415
    %5736 = vmatprep.subr.bf16.mxu0 %v5408
    %5737 = vmatpush2.bf16.msra.mxu0 %v5407
    %5738 = vmatprep.subr.bf16.mxu0 %v5400
    %5739 = vmatpush2.bf16.msra.mxu0 %v5399
    %5740 = vmatprep.mubr.bf16.mxu0 %v4816
    %5741 = vmatmul.mubr.bf16.gmra.mxu0 %v4815
    %v5742 = vpop.f32.mrf.mxu0
    %v5743 = vadd.f32 0.0, %v5742
    %v5744 = vpop.f32.mrf.mxu0
    %v5745 = vadd.f32 0.0, %v5744
    %v5746 = vpop.f32.mrf.mxu0
    %v5747 = vpop.f32.mrf.mxu0
    %5748 = vdwg.mxu0
    %v5749 = vld [vmem:[#allocation2 + $0x100] sm:$0xff]
    %v5750 = vld [vmem:[#allocation2 + $0x108] sm:$0xff]
    %v5751 = vld [vmem:[#allocation2 + $0x110] sm:$0xff]
    %v5752 = vld [vmem:[#allocation2 + $0x118] sm:$0xff]
    %v5753 = vadd.f32 %v5749, %v5620
    %v5754 = vadd.f32 %v5750, %v5622
    %v5755 = vadd.f32 %v5751, %v5661
    %v5756 = vadd.f32 %v5752, %v5663
    %v5757 = vld [vmem:[#allocation2 + $0xe0] sm:$0xff]
    %v5758 = vld [vmem:[#allocation2 + $0xe8] sm:$0xff]
    %v5759 = vld [vmem:[#allocation2 + $0xf0] sm:$0xff]
    %v5760 = vld [vmem:[#allocation2 + $0xf8] sm:$0xff]
    %v5761 = vadd.f32 %v5757, %v5702
    %v5762 = vadd.f32 %v5758, %v5704
    %v5763 = vadd.f32 %v5759, %v5743
    %v5764 = vadd.f32 %v5760, %v5745
    %v5765 = vxor.u32 %v5753, 2147483648
    %v5766 = vmul.f32 %v5765, 1.442695
    %v5767 = vpow.pop %v5766
    %v5768 = vadd.f32 %v5767, 1.0
    %v5769 = vrcp.pop %v5768
    %v5770 = vmul.f32 1.0, %v5769
    %v5771 = vxor.u32 %v5754, 2147483648
    %v5772 = vmul.f32 %v5771, 1.442695
    %v5773 = vpow.pop %v5772
    %v5774 = vadd.f32 %v5773, 1.0
    %v5775 = vrcp.pop %v5774
    %v5776 = vmul.f32 1.0, %v5775
    %v5777 = vmul.f32 %v5770, %v5756
    %v5778 = vadd.f32 %v5755, %v5777
    %v5779 = vtanh.pop %v5778
    %v5780 = vsub.f32 1.0, %v5776
    %v5781 = vmul.f32 %v5780, %v5779
    %v5782 = vmul.f32 %v5776, %v4791
    %v5783 = vadd.f32 %v5781, %v5782
    %v5784 = vxor.u32 %v5761, 2147483648
    %v5785 = vmul.f32 %v5784, 1.442695
    %v5786 = vpow.pop %v5785
    %v5787 = vadd.f32 %v5786, 1.0
    %v5788 = vrcp.pop %v5787
    %v5789 = vmul.f32 1.0, %v5788
    %v5790 = vxor.u32 %v5762, 2147483648
    %v5791 = vmul.f32 %v5790, 1.442695
    %v5792 = vpow.pop %v5791
    %v5793 = vadd.f32 %v5792, 1.0
    %v5794 = vrcp.pop %v5793
    %v5795 = vmul.f32 1.0, %v5794
    %v5796 = vmul.f32 %v5789, %v5764
    %v5797 = vadd.f32 %v5763, %v5796
    %v5798 = vtanh.pop %v5797
    %v5799 = vsub.f32 1.0, %v5795
    %v5800 = vmul.f32 %v5799, %v5798
    %v5801 = vmul.f32 %v5795, %v4810
    %v5802 = vadd.f32 %v5800, %v5801
    %s5803 = scalar_lea.vmem %s6, 32
    %5804 = vst [vmem:[%s5803] sm:$0xff] %v5783
    %s5805 = scalar_lea.vmem %s7, 24
    %5806 = vst [vmem:[%s5805] sm:$0xff] %v5802
    %v5807 = vpack.c.bf16 %v5783, %v5783
    %v5808 = vpack.c.bf16 %v5802, %v5802
    %v5809 = vld [vmem:[#allocation5] sm:$0xff]
    %v5810 = vld [vmem:[#allocation5 + $0x8] sm:$0xff]
    %v5811 = vld [vmem:[#allocation5 + $0x10] sm:$0xff]
    %v5812 = vld [vmem:[#allocation5 + $0x18] sm:$0xff]
    %v5813 = vld [vmem:[#allocation5 + $0x20] sm:$0xff]
    %v5814 = vld [vmem:[#allocation5 + $0x28] sm:$0xff]
    %v5815 = vld [vmem:[#allocation5 + $0x30] sm:$0xff]
    %v5816 = vld [vmem:[#allocation5 + $0x38] sm:$0xff]
    %v5817 = vld [vmem:[#allocation5 + $0x40] sm:$0xff]
    %v5818 = vld [vmem:[#allocation5 + $0x48] sm:$0xff]
    %v5819 = vld [vmem:[#allocation5 + $0x50] sm:$0xff]
    %v5820 = vld [vmem:[#allocation5 + $0x58] sm:$0xff]
    %v5821 = vld [vmem:[#allocation5 + $0x60] sm:$0xff]
    %v5822 = vld [vmem:[#allocation5 + $0x68] sm:$0xff]
    %v5823 = vld [vmem:[#allocation5 + $0x70] sm:$0xff]
    %v5824 = vld [vmem:[#allocation5 + $0x78] sm:$0xff]
    %v5825 = vld [vmem:[#allocation5 + $0x80] sm:$0xff]
    %v5826 = vld [vmem:[#allocation5 + $0x88] sm:$0xff]
    %v5827 = vld [vmem:[#allocation5 + $0x90] sm:$0xff]
    %v5828 = vld [vmem:[#allocation5 + $0x98] sm:$0xff]
    %v5829 = vld [vmem:[#allocation5 + $0xa0] sm:$0xff]
    %v5830 = vld [vmem:[#allocation5 + $0xa8] sm:$0xff]
    %v5831 = vld [vmem:[#allocation5 + $0xb0] sm:$0xff]
    %v5832 = vld [vmem:[#allocation5 + $0xb8] sm:$0xff]
    %v5833 = vld [vmem:[#allocation5 + $0xc0] sm:$0xff]
    %v5834 = vld [vmem:[#allocation5 + $0xc8] sm:$0xff]
    %v5835 = vld [vmem:[#allocation5 + $0xd0] sm:$0xff]
    %v5836 = vld [vmem:[#allocation5 + $0xd8] sm:$0xff]
    %v5837 = vld [vmem:[#allocation5 + $0xe0] sm:$0xff]
    %v5838 = vld [vmem:[#allocation5 + $0xe8] sm:$0xff]
    %v5839 = vld [vmem:[#allocation5 + $0xf0] sm:$0xff]
    %v5840 = vld [vmem:[#allocation5 + $0xf8] sm:$0xff]
    %v5841 = vld [vmem:[#allocation5 + $0x100] sm:$0xff]
    %v5842 = vld [vmem:[#allocation5 + $0x108] sm:$0xff]
    %v5843 = vld [vmem:[#allocation5 + $0x110] sm:$0xff]
    %v5844 = vld [vmem:[#allocation5 + $0x118] sm:$0xff]
    %v5845 = vld [vmem:[#allocation5 + $0x120] sm:$0xff]
    %v5846 = vld [vmem:[#allocation5 + $0x128] sm:$0xff]
    %v5847 = vld [vmem:[#allocation5 + $0x130] sm:$0xff]
    %v5848 = vld [vmem:[#allocation5 + $0x138] sm:$0xff]
    %v5849 = vld [vmem:[#allocation5 + $0x140] sm:$0xff]
    %v5850 = vld [vmem:[#allocation5 + $0x148] sm:$0xff]
    %v5851 = vld [vmem:[#allocation5 + $0x150] sm:$0xff]
    %v5852 = vld [vmem:[#allocation5 + $0x158] sm:$0xff]
    %v5853 = vld [vmem:[#allocation5 + $0x160] sm:$0xff]
    %v5854 = vld [vmem:[#allocation5 + $0x168] sm:$0xff]
    %v5855 = vld [vmem:[#allocation5 + $0x170] sm:$0xff]
    %v5856 = vld [vmem:[#allocation5 + $0x178] sm:$0xff]
    %v5857 = vld [vmem:[#allocation5 + $0x180] sm:$0xff]
    %v5858 = vld [vmem:[#allocation5 + $0x188] sm:$0xff]
    %v5859 = vld [vmem:[#allocation5 + $0x190] sm:$0xff]
    %v5860 = vld [vmem:[#allocation5 + $0x198] sm:$0xff]
    %v5861 = vld [vmem:[#allocation5 + $0x1a0] sm:$0xff]
    %v5862 = vld [vmem:[#allocation5 + $0x1a8] sm:$0xff]
    %v5863 = vld [vmem:[#allocation5 + $0x1b0] sm:$0xff]
    %v5864 = vld [vmem:[#allocation5 + $0x1b8] sm:$0xff]
    %v5865 = vld [vmem:[#allocation5 + $0x1c0] sm:$0xff]
    %v5866 = vld [vmem:[#allocation5 + $0x1c8] sm:$0xff]
    %v5867 = vld [vmem:[#allocation5 + $0x1d0] sm:$0xff]
    %v5868 = vld [vmem:[#allocation5 + $0x1d8] sm:$0xff]
    %v5869 = vld [vmem:[#allocation5 + $0x1e0] sm:$0xff]
    %v5870 = vld [vmem:[#allocation5 + $0x1e8] sm:$0xff]
    %v5871 = vld [vmem:[#allocation5 + $0x1f0] sm:$0xff]
    %v5872 = vld [vmem:[#allocation5 + $0x1f8] sm:$0xff]
    %v5873 = vld [vmem:[#allocation5 + $0x200] sm:$0xff]
    %v5874 = vld [vmem:[#allocation5 + $0x208] sm:$0xff]
    %v5875 = vld [vmem:[#allocation5 + $0x210] sm:$0xff]
    %v5876 = vld [vmem:[#allocation5 + $0x218] sm:$0xff]
    %v5877 = vld [vmem:[#allocation5 + $0x220] sm:$0xff]
    %v5878 = vld [vmem:[#allocation5 + $0x228] sm:$0xff]
    %v5879 = vld [vmem:[#allocation5 + $0x230] sm:$0xff]
    %v5880 = vld [vmem:[#allocation5 + $0x238] sm:$0xff]
    %v5881 = vld [vmem:[#allocation5 + $0x240] sm:$0xff]
    %v5882 = vld [vmem:[#allocation5 + $0x248] sm:$0xff]
    %v5883 = vld [vmem:[#allocation5 + $0x250] sm:$0xff]
    %v5884 = vld [vmem:[#allocation5 + $0x258] sm:$0xff]
    %v5885 = vld [vmem:[#allocation5 + $0x260] sm:$0xff]
    %v5886 = vld [vmem:[#allocation5 + $0x268] sm:$0xff]
    %v5887 = vld [vmem:[#allocation5 + $0x270] sm:$0xff]
    %v5888 = vld [vmem:[#allocation5 + $0x278] sm:$0xff]
    %v5889 = vld [vmem:[#allocation5 + $0x280] sm:$0xff]
    %v5890 = vld [vmem:[#allocation5 + $0x288] sm:$0xff]
    %v5891 = vld [vmem:[#allocation5 + $0x290] sm:$0xff]
    %v5892 = vld [vmem:[#allocation5 + $0x298] sm:$0xff]
    %v5893 = vld [vmem:[#allocation5 + $0x2a0] sm:$0xff]
    %v5894 = vld [vmem:[#allocation5 + $0x2a8] sm:$0xff]
    %v5895 = vld [vmem:[#allocation5 + $0x2b0] sm:$0xff]
    %v5896 = vld [vmem:[#allocation5 + $0x2b8] sm:$0xff]
    %v5897 = vld [vmem:[#allocation5 + $0x2c0] sm:$0xff]
    %v5898 = vld [vmem:[#allocation5 + $0x2c8] sm:$0xff]
    %v5899 = vld [vmem:[#allocation5 + $0x2d0] sm:$0xff]
    %v5900 = vld [vmem:[#allocation5 + $0x2d8] sm:$0xff]
    %v5901 = vld [vmem:[#allocation5 + $0x2e0] sm:$0xff]
    %v5902 = vld [vmem:[#allocation5 + $0x2e8] sm:$0xff]
    %v5903 = vld [vmem:[#allocation5 + $0x2f0] sm:$0xff]
    %v5904 = vld [vmem:[#allocation5 + $0x2f8] sm:$0xff]
    %v5905 = vld [vmem:[#allocation5 + $0x300] sm:$0xff]
    %v5906 = vld [vmem:[#allocation5 + $0x308] sm:$0xff]
    %v5907 = vld [vmem:[#allocation5 + $0x310] sm:$0xff]
    %v5908 = vld [vmem:[#allocation5 + $0x318] sm:$0xff]
    %v5909 = vld [vmem:[#allocation5 + $0x320] sm:$0xff]
    %v5910 = vld [vmem:[#allocation5 + $0x328] sm:$0xff]
    %v5911 = vld [vmem:[#allocation5 + $0x330] sm:$0xff]
    %v5912 = vld [vmem:[#allocation5 + $0x338] sm:$0xff]
    %v5913 = vld [vmem:[#allocation5 + $0x340] sm:$0xff]
    %v5914 = vld [vmem:[#allocation5 + $0x348] sm:$0xff]
    %v5915 = vld [vmem:[#allocation5 + $0x350] sm:$0xff]
    %v5916 = vld [vmem:[#allocation5 + $0x358] sm:$0xff]
    %v5917 = vld [vmem:[#allocation5 + $0x360] sm:$0xff]
    %v5918 = vld [vmem:[#allocation5 + $0x368] sm:$0xff]
    %v5919 = vld [vmem:[#allocation5 + $0x370] sm:$0xff]
    %v5920 = vld [vmem:[#allocation5 + $0x378] sm:$0xff]
    %v5921 = vld [vmem:[#allocation5 + $0x380] sm:$0xff]
    %v5922 = vld [vmem:[#allocation5 + $0x388] sm:$0xff]
    %v5923 = vld [vmem:[#allocation5 + $0x390] sm:$0xff]
    %v5924 = vld [vmem:[#allocation5 + $0x398] sm:$0xff]
    %v5925 = vld [vmem:[#allocation5 + $0x3a0] sm:$0xff]
    %v5926 = vld [vmem:[#allocation5 + $0x3a8] sm:$0xff]
    %v5927 = vld [vmem:[#allocation5 + $0x3b0] sm:$0xff]
    %v5928 = vld [vmem:[#allocation5 + $0x3b8] sm:$0xff]
    %v5929 = vld [vmem:[#allocation5 + $0x3c0] sm:$0xff]
    %v5930 = vld [vmem:[#allocation5 + $0x3c8] sm:$0xff]
    %v5931 = vld [vmem:[#allocation5 + $0x3d0] sm:$0xff]
    %v5932 = vld [vmem:[#allocation5 + $0x3d8] sm:$0xff]
    %v5933 = vld [vmem:[#allocation5 + $0x3e0] sm:$0xff]
    %v5934 = vld [vmem:[#allocation5 + $0x3e8] sm:$0xff]
    %v5935 = vld [vmem:[#allocation5 + $0x3f0] sm:$0xff]
    %v5936 = vld [vmem:[#allocation5 + $0x3f8] sm:$0xff]
    %v6065 = vunpack.c.l.b16 %v5809
    %v6066 = vunpack.c.h.b16 %v5809
    %v6067 = vunpack.c.l.b16 %v5810
    %v6068 = vunpack.c.h.b16 %v5810
    %v6069 = vunpack.c.l.b16 %v5811
    %v6070 = vunpack.c.h.b16 %v5811
    %v6071 = vunpack.c.l.b16 %v5812
    %v6072 = vunpack.c.h.b16 %v5812
    %v6073 = vunpack.c.l.b16 %v5813
    %v6074 = vunpack.c.h.b16 %v5813
    %v6075 = vunpack.c.l.b16 %v5814
    %v6076 = vunpack.c.h.b16 %v5814
    %v6077 = vunpack.c.l.b16 %v5815
    %v6078 = vunpack.c.h.b16 %v5815
    %v6079 = vunpack.c.l.b16 %v5816
    %v6080 = vunpack.c.h.b16 %v5816
    %v6081 = vunpack.c.l.b16 %v5817
    %v6082 = vunpack.c.h.b16 %v5817
    %v6083 = vunpack.c.l.b16 %v5818
    %v6084 = vunpack.c.h.b16 %v5818
    %v6085 = vunpack.c.l.b16 %v5819
    %v6086 = vunpack.c.h.b16 %v5819
    %v6087 = vunpack.c.l.b16 %v5820
    %v6088 = vunpack.c.h.b16 %v5820
    %v6089 = vunpack.c.l.b16 %v5821
    %v6090 = vunpack.c.h.b16 %v5821
    %v6091 = vunpack.c.l.b16 %v5822
    %v6092 = vunpack.c.h.b16 %v5822
    %v6093 = vunpack.c.l.b16 %v5823
    %v6094 = vunpack.c.h.b16 %v5823
    %v6095 = vunpack.c.l.b16 %v5824
    %v6096 = vunpack.c.h.b16 %v5824
    %v6097 = vunpack.c.l.b16 %v5825
    %v6098 = vunpack.c.h.b16 %v5825
    %v6099 = vunpack.c.l.b16 %v5826
    %v6100 = vunpack.c.h.b16 %v5826
    %v6101 = vunpack.c.l.b16 %v5827
    %v6102 = vunpack.c.h.b16 %v5827
    %v6103 = vunpack.c.l.b16 %v5828
    %v6104 = vunpack.c.h.b16 %v5828
    %v6105 = vunpack.c.l.b16 %v5829
    %v6106 = vunpack.c.h.b16 %v5829
    %v6107 = vunpack.c.l.b16 %v5830
    %v6108 = vunpack.c.h.b16 %v5830
    %v6109 = vunpack.c.l.b16 %v5831
    %v6110 = vunpack.c.h.b16 %v5831
    %v6111 = vunpack.c.l.b16 %v5832
    %v6112 = vunpack.c.h.b16 %v5832
    %v6113 = vunpack.c.l.b16 %v5833
    %v6114 = vunpack.c.h.b16 %v5833
    %v6115 = vunpack.c.l.b16 %v5834
    %v6116 = vunpack.c.h.b16 %v5834
    %v6117 = vunpack.c.l.b16 %v5835
    %v6118 = vunpack.c.h.b16 %v5835
    %v6119 = vunpack.c.l.b16 %v5836
    %v6120 = vunpack.c.h.b16 %v5836
    %v6121 = vunpack.c.l.b16 %v5837
    %v6122 = vunpack.c.h.b16 %v5837
    %v6123 = vunpack.c.l.b16 %v5838
    %v6124 = vunpack.c.h.b16 %v5838
    %v6125 = vunpack.c.l.b16 %v5839
    %v6126 = vunpack.c.h.b16 %v5839
    %v6127 = vunpack.c.l.b16 %v5840
    %v6128 = vunpack.c.h.b16 %v5840
    %v6129 = vunpack.c.l.b16 %v5841
    %v6130 = vunpack.c.h.b16 %v5841
    %v6131 = vunpack.c.l.b16 %v5842
    %v6132 = vunpack.c.h.b16 %v5842
    %v6133 = vunpack.c.l.b16 %v5843
    %v6134 = vunpack.c.h.b16 %v5843
    %v6135 = vunpack.c.l.b16 %v5844
    %v6136 = vunpack.c.h.b16 %v5844
    %v6137 = vunpack.c.l.b16 %v5845
    %v6138 = vunpack.c.h.b16 %v5845
    %v6139 = vunpack.c.l.b16 %v5846
    %v6140 = vunpack.c.h.b16 %v5846
    %v6141 = vunpack.c.l.b16 %v5847
    %v6142 = vunpack.c.h.b16 %v5847
    %v6143 = vunpack.c.l.b16 %v5848
    %v6144 = vunpack.c.h.b16 %v5848
    %v6145 = vunpack.c.l.b16 %v5849
    %v6146 = vunpack.c.h.b16 %v5849
    %v6147 = vunpack.c.l.b16 %v5850
    %v6148 = vunpack.c.h.b16 %v5850
    %v6149 = vunpack.c.l.b16 %v5851
    %v6150 = vunpack.c.h.b16 %v5851
    %v6151 = vunpack.c.l.b16 %v5852
    %v6152 = vunpack.c.h.b16 %v5852
    %v6153 = vunpack.c.l.b16 %v5853
    %v6154 = vunpack.c.h.b16 %v5853
    %v6155 = vunpack.c.l.b16 %v5854
    %v6156 = vunpack.c.h.b16 %v5854
    %v6157 = vunpack.c.l.b16 %v5855
    %v6158 = vunpack.c.h.b16 %v5855
    %v6159 = vunpack.c.l.b16 %v5856
    %v6160 = vunpack.c.h.b16 %v5856
    %v6161 = vunpack.c.l.b16 %v5857
    %v6162 = vunpack.c.h.b16 %v5857
    %v6163 = vunpack.c.l.b16 %v5858
    %v6164 = vunpack.c.h.b16 %v5858
    %v6165 = vunpack.c.l.b16 %v5859
    %v6166 = vunpack.c.h.b16 %v5859
    %v6167 = vunpack.c.l.b16 %v5860
    %v6168 = vunpack.c.h.b16 %v5860
    %v6169 = vunpack.c.l.b16 %v5861
    %v6170 = vunpack.c.h.b16 %v5861
    %v6171 = vunpack.c.l.b16 %v5862
    %v6172 = vunpack.c.h.b16 %v5862
    %v6173 = vunpack.c.l.b16 %v5863
    %v6174 = vunpack.c.h.b16 %v5863
    %v6175 = vunpack.c.l.b16 %v5864
    %v6176 = vunpack.c.h.b16 %v5864
    %v6177 = vunpack.c.l.b16 %v5865
    %v6178 = vunpack.c.h.b16 %v5865
    %v6179 = vunpack.c.l.b16 %v5866
    %v6180 = vunpack.c.h.b16 %v5866
    %v6181 = vunpack.c.l.b16 %v5867
    %v6182 = vunpack.c.h.b16 %v5867
    %v6183 = vunpack.c.l.b16 %v5868
    %v6184 = vunpack.c.h.b16 %v5868
    %v6185 = vunpack.c.l.b16 %v5869
    %v6186 = vunpack.c.h.b16 %v5869
    %v6187 = vunpack.c.l.b16 %v5870
    %v6188 = vunpack.c.h.b16 %v5870
    %v6189 = vunpack.c.l.b16 %v5871
    %v6190 = vunpack.c.h.b16 %v5871
    %v6191 = vunpack.c.l.b16 %v5872
    %v6192 = vunpack.c.h.b16 %v5872
    %v6193 = vunpack.c.l.b16 %v5873
    %v6194 = vunpack.c.h.b16 %v5873
    %v6195 = vunpack.c.l.b16 %v5874
    %v6196 = vunpack.c.h.b16 %v5874
    %v6197 = vunpack.c.l.b16 %v5875
    %v6198 = vunpack.c.h.b16 %v5875
    %v6199 = vunpack.c.l.b16 %v5876
    %v6200 = vunpack.c.h.b16 %v5876
    %v6201 = vunpack.c.l.b16 %v5877
    %v6202 = vunpack.c.h.b16 %v5877
    %v6203 = vunpack.c.l.b16 %v5878
    %v6204 = vunpack.c.h.b16 %v5878
    %v6205 = vunpack.c.l.b16 %v5879
    %v6206 = vunpack.c.h.b16 %v5879
    %v6207 = vunpack.c.l.b16 %v5880
    %v6208 = vunpack.c.h.b16 %v5880
    %v6209 = vunpack.c.l.b16 %v5881
    %v6210 = vunpack.c.h.b16 %v5881
    %v6211 = vunpack.c.l.b16 %v5882
    %v6212 = vunpack.c.h.b16 %v5882
    %v6213 = vunpack.c.l.b16 %v5883
    %v6214 = vunpack.c.h.b16 %v5883
    %v6215 = vunpack.c.l.b16 %v5884
    %v6216 = vunpack.c.h.b16 %v5884
    %v6217 = vunpack.c.l.b16 %v5885
    %v6218 = vunpack.c.h.b16 %v5885
    %v6219 = vunpack.c.l.b16 %v5886
    %v6220 = vunpack.c.h.b16 %v5886
    %v6221 = vunpack.c.l.b16 %v5887
    %v6222 = vunpack.c.h.b16 %v5887
    %v6223 = vunpack.c.l.b16 %v5888
    %v6224 = vunpack.c.h.b16 %v5888
    %v6225 = vunpack.c.l.b16 %v5889
    %v6226 = vunpack.c.h.b16 %v5889
    %v6227 = vunpack.c.l.b16 %v5890
    %v6228 = vunpack.c.h.b16 %v5890
    %v6229 = vunpack.c.l.b16 %v5891
    %v6230 = vunpack.c.h.b16 %v5891
    %v6231 = vunpack.c.l.b16 %v5892
    %v6232 = vunpack.c.h.b16 %v5892
    %v6233 = vunpack.c.l.b16 %v5893
    %v6234 = vunpack.c.h.b16 %v5893
    %v6235 = vunpack.c.l.b16 %v5894
    %v6236 = vunpack.c.h.b16 %v5894
    %v6237 = vunpack.c.l.b16 %v5895
    %v6238 = vunpack.c.h.b16 %v5895
    %v6239 = vunpack.c.l.b16 %v5896
    %v6240 = vunpack.c.h.b16 %v5896
    %v6241 = vunpack.c.l.b16 %v5897
    %v6242 = vunpack.c.h.b16 %v5897
    %v6243 = vunpack.c.l.b16 %v5898
    %v6244 = vunpack.c.h.b16 %v5898
    %v6245 = vunpack.c.l.b16 %v5899
    %v6246 = vunpack.c.h.b16 %v5899
    %v6247 = vunpack.c.l.b16 %v5900
    %v6248 = vunpack.c.h.b16 %v5900
    %v6249 = vunpack.c.l.b16 %v5901
    %v6250 = vunpack.c.h.b16 %v5901
    %v6251 = vunpack.c.l.b16 %v5902
    %v6252 = vunpack.c.h.b16 %v5902
    %v6253 = vunpack.c.l.b16 %v5903
    %v6254 = vunpack.c.h.b16 %v5903
    %v6255 = vunpack.c.l.b16 %v5904
    %v6256 = vunpack.c.h.b16 %v5904
    %v6257 = vunpack.c.l.b16 %v5905
    %v6258 = vunpack.c.h.b16 %v5905
    %v6259 = vunpack.c.l.b16 %v5906
    %v6260 = vunpack.c.h.b16 %v5906
    %v6261 = vunpack.c.l.b16 %v5907
    %v6262 = vunpack.c.h.b16 %v5907
    %v6263 = vunpack.c.l.b16 %v5908
    %v6264 = vunpack.c.h.b16 %v5908
    %v6265 = vunpack.c.l.b16 %v5909
    %v6266 = vunpack.c.h.b16 %v5909
    %v6267 = vunpack.c.l.b16 %v5910
    %v6268 = vunpack.c.h.b16 %v5910
    %v6269 = vunpack.c.l.b16 %v5911
    %v6270 = vunpack.c.h.b16 %v5911
    %v6271 = vunpack.c.l.b16 %v5912
    %v6272 = vunpack.c.h.b16 %v5912
    %v6273 = vunpack.c.l.b16 %v5913
    %v6274 = vunpack.c.h.b16 %v5913
    %v6275 = vunpack.c.l.b16 %v5914
    %v6276 = vunpack.c.h.b16 %v5914
    %v6277 = vunpack.c.l.b16 %v5915
    %v6278 = vunpack.c.h.b16 %v5915
    %v6279 = vunpack.c.l.b16 %v5916
    %v6280 = vunpack.c.h.b16 %v5916
    %v6281 = vunpack.c.l.b16 %v5917
    %v6282 = vunpack.c.h.b16 %v5917
    %v6283 = vunpack.c.l.b16 %v5918
    %v6284 = vunpack.c.h.b16 %v5918
    %v6285 = vunpack.c.l.b16 %v5919
    %v6286 = vunpack.c.h.b16 %v5919
    %v6287 = vunpack.c.l.b16 %v5920
    %v6288 = vunpack.c.h.b16 %v5920
    %v6289 = vunpack.c.l.b16 %v5921
    %v6290 = vunpack.c.h.b16 %v5921
    %v6291 = vunpack.c.l.b16 %v5922
    %v6292 = vunpack.c.h.b16 %v5922
    %v6293 = vunpack.c.l.b16 %v5923
    %v6294 = vunpack.c.h.b16 %v5923
    %v6295 = vunpack.c.l.b16 %v5924
    %v6296 = vunpack.c.h.b16 %v5924
    %v6297 = vunpack.c.l.b16 %v5925
    %v6298 = vunpack.c.h.b16 %v5925
    %v6299 = vunpack.c.l.b16 %v5926
    %v6300 = vunpack.c.h.b16 %v5926
    %v6301 = vunpack.c.l.b16 %v5927
    %v6302 = vunpack.c.h.b16 %v5927
    %v6303 = vunpack.c.l.b16 %v5928
    %v6304 = vunpack.c.h.b16 %v5928
    %v6305 = vunpack.c.l.b16 %v5929
    %v6306 = vunpack.c.h.b16 %v5929
    %v6307 = vunpack.c.l.b16 %v5930
    %v6308 = vunpack.c.h.b16 %v5930
    %v6309 = vunpack.c.l.b16 %v5931
    %v6310 = vunpack.c.h.b16 %v5931
    %v6311 = vunpack.c.l.b16 %v5932
    %v6312 = vunpack.c.h.b16 %v5932
    %v6313 = vunpack.c.l.b16 %v5933
    %v6314 = vunpack.c.h.b16 %v5933
    %v6315 = vunpack.c.l.b16 %v5934
    %v6316 = vunpack.c.h.b16 %v5934
    %v6317 = vunpack.c.l.b16 %v5935
    %v6318 = vunpack.c.h.b16 %v5935
    %v6319 = vunpack.c.l.b16 %v5936
    %v6320 = vunpack.c.h.b16 %v5936
    %v6321 = vpack.c.b16 %v6073, %v6065
    %v6322 = vpack.c.b16 %v6074, %v6066
    %v6323 = vpack.c.b16 %v6075, %v6067
    %v6324 = vpack.c.b16 %v6076, %v6068
    %v6325 = vpack.c.b16 %v6077, %v6069
    %v6326 = vpack.c.b16 %v6078, %v6070
    %v6327 = vpack.c.b16 %v6079, %v6071
    %v6328 = vpack.c.b16 %v6080, %v6072
    %v6329 = vpack.c.b16 %v6089, %v6081
    %v6330 = vpack.c.b16 %v6090, %v6082
    %v6331 = vpack.c.b16 %v6091, %v6083
    %v6332 = vpack.c.b16 %v6092, %v6084
    %v6333 = vpack.c.b16 %v6093, %v6085
    %v6334 = vpack.c.b16 %v6094, %v6086
    %v6335 = vpack.c.b16 %v6095, %v6087
    %v6336 = vpack.c.b16 %v6096, %v6088
    %v6337 = vpack.c.b16 %v6105, %v6097
    %v6338 = vpack.c.b16 %v6106, %v6098
    %v6339 = vpack.c.b16 %v6107, %v6099
    %v6340 = vpack.c.b16 %v6108, %v6100
    %v6341 = vpack.c.b16 %v6109, %v6101
    %v6342 = vpack.c.b16 %v6110, %v6102
    %v6343 = vpack.c.b16 %v6111, %v6103
    %v6344 = vpack.c.b16 %v6112, %v6104
    %v6345 = vpack.c.b16 %v6121, %v6113
    %v6346 = vpack.c.b16 %v6122, %v6114
    %v6347 = vpack.c.b16 %v6123, %v6115
    %v6348 = vpack.c.b16 %v6124, %v6116
    %v6349 = vpack.c.b16 %v6125, %v6117
    %v6350 = vpack.c.b16 %v6126, %v6118
    %v6351 = vpack.c.b16 %v6127, %v6119
    %v6352 = vpack.c.b16 %v6128, %v6120
    %v6353 = vpack.c.b16 %v6137, %v6129
    %v6354 = vpack.c.b16 %v6138, %v6130
    %v6355 = vpack.c.b16 %v6139, %v6131
    %v6356 = vpack.c.b16 %v6140, %v6132
    %v6357 = vpack.c.b16 %v6141, %v6133
    %v6358 = vpack.c.b16 %v6142, %v6134
    %v6359 = vpack.c.b16 %v6143, %v6135
    %v6360 = vpack.c.b16 %v6144, %v6136
    %v6361 = vpack.c.b16 %v6153, %v6145
    %v6362 = vpack.c.b16 %v6154, %v6146
    %v6363 = vpack.c.b16 %v6155, %v6147
    %v6364 = vpack.c.b16 %v6156, %v6148
    %v6365 = vpack.c.b16 %v6157, %v6149
    %v6366 = vpack.c.b16 %v6158, %v6150
    %v6367 = vpack.c.b16 %v6159, %v6151
    %v6368 = vpack.c.b16 %v6160, %v6152
    %v6369 = vpack.c.b16 %v6169, %v6161
    %v6370 = vpack.c.b16 %v6170, %v6162
    %v6371 = vpack.c.b16 %v6171, %v6163
    %v6372 = vpack.c.b16 %v6172, %v6164
    %v6373 = vpack.c.b16 %v6173, %v6165
    %v6374 = vpack.c.b16 %v6174, %v6166
    %v6375 = vpack.c.b16 %v6175, %v6167
    %v6376 = vpack.c.b16 %v6176, %v6168
    %v6377 = vpack.c.b16 %v6185, %v6177
    %v6378 = vpack.c.b16 %v6186, %v6178
    %v6379 = vpack.c.b16 %v6187, %v6179
    %v6380 = vpack.c.b16 %v6188, %v6180
    %v6381 = vpack.c.b16 %v6189, %v6181
    %v6382 = vpack.c.b16 %v6190, %v6182
    %v6383 = vpack.c.b16 %v6191, %v6183
    %v6384 = vpack.c.b16 %v6192, %v6184
    %v6385 = vpack.c.b16 %v6201, %v6193
    %v6386 = vpack.c.b16 %v6202, %v6194
    %v6387 = vpack.c.b16 %v6203, %v6195
    %v6388 = vpack.c.b16 %v6204, %v6196
    %v6389 = vpack.c.b16 %v6205, %v6197
    %v6390 = vpack.c.b16 %v6206, %v6198
    %v6391 = vpack.c.b16 %v6207, %v6199
    %v6392 = vpack.c.b16 %v6208, %v6200
    %v6393 = vpack.c.b16 %v6217, %v6209
    %v6394 = vpack.c.b16 %v6218, %v6210
    %v6395 = vpack.c.b16 %v6219, %v6211
    %v6396 = vpack.c.b16 %v6220, %v6212
    %v6397 = vpack.c.b16 %v6221, %v6213
    %v6398 = vpack.c.b16 %v6222, %v6214
    %v6399 = vpack.c.b16 %v6223, %v6215
    %v6400 = vpack.c.b16 %v6224, %v6216
    %v6401 = vpack.c.b16 %v6233, %v6225
    %v6402 = vpack.c.b16 %v6234, %v6226
    %v6403 = vpack.c.b16 %v6235, %v6227
    %v6404 = vpack.c.b16 %v6236, %v6228
    %v6405 = vpack.c.b16 %v6237, %v6229
    %v6406 = vpack.c.b16 %v6238, %v6230
    %v6407 = vpack.c.b16 %v6239, %v6231
    %v6408 = vpack.c.b16 %v6240, %v6232
    %v6409 = vpack.c.b16 %v6249, %v6241
    %v6410 = vpack.c.b16 %v6250, %v6242
    %v6411 = vpack.c.b16 %v6251, %v6243
    %v6412 = vpack.c.b16 %v6252, %v6244
    %v6413 = vpack.c.b16 %v6253, %v6245
    %v6414 = vpack.c.b16 %v6254, %v6246
    %v6415 = vpack.c.b16 %v6255, %v6247
    %v6416 = vpack.c.b16 %v6256, %v6248
    %v6417 = vpack.c.b16 %v6265, %v6257
    %v6418 = vpack.c.b16 %v6266, %v6258
    %v6419 = vpack.c.b16 %v6267, %v6259
    %v6420 = vpack.c.b16 %v6268, %v6260
    %v6421 = vpack.c.b16 %v6269, %v6261
    %v6422 = vpack.c.b16 %v6270, %v6262
    %v6423 = vpack.c.b16 %v6271, %v6263
    %v6424 = vpack.c.b16 %v6272, %v6264
    %v6425 = vpack.c.b16 %v6281, %v6273
    %v6426 = vpack.c.b16 %v6282, %v6274
    %v6427 = vpack.c.b16 %v6283, %v6275
    %v6428 = vpack.c.b16 %v6284, %v6276
    %v6429 = vpack.c.b16 %v6285, %v6277
    %v6430 = vpack.c.b16 %v6286, %v6278
    %v6431 = vpack.c.b16 %v6287, %v6279
    %v6432 = vpack.c.b16 %v6288, %v6280
    %v6433 = vpack.c.b16 %v6297, %v6289
    %v6434 = vpack.c.b16 %v6298, %v6290
    %v6435 = vpack.c.b16 %v6299, %v6291
    %v6436 = vpack.c.b16 %v6300, %v6292
    %v6437 = vpack.c.b16 %v6301, %v6293
    %v6438 = vpack.c.b16 %v6302, %v6294
    %v6439 = vpack.c.b16 %v6303, %v6295
    %v6440 = vpack.c.b16 %v6304, %v6296
    %v6441 = vpack.c.b16 %v6313, %v6305
    %v6442 = vpack.c.b16 %v6314, %v6306
    %v6443 = vpack.c.b16 %v6315, %v6307
    %v6444 = vpack.c.b16 %v6316, %v6308
    %v6445 = vpack.c.b16 %v6317, %v6309
    %v6446 = vpack.c.b16 %v6318, %v6310
    %v6447 = vpack.c.b16 %v6319, %v6311
    %v6448 = vpack.c.b16 %v6320, %v6312
    %6577 = vmatprep.subr.bf16.mxu0 %v6378
    %6578 = vmatpush1.bf16.msra.mxu0 %v6377
    %6579 = vmatprep.subr.bf16.mxu0 %v6370
    %6580 = vmatpush1.bf16.msra.mxu0 %v6369
    %6581 = vmatprep.subr.bf16.mxu0 %v6362
    %6582 = vmatpush1.bf16.msra.mxu0 %v6361
    %6583 = vmatprep.subr.bf16.mxu0 %v6354
    %6584 = vmatpush1.bf16.msra.mxu0 %v6353
    %6585 = vmatprep.subr.bf16.mxu0 %v6346
    %6586 = vmatpush1.bf16.msra.mxu0 %v6345
    %6587 = vmatprep.subr.bf16.mxu0 %v6338
    %6588 = vmatpush1.bf16.msra.mxu0 %v6337
    %6589 = vmatprep.subr.bf16.mxu0 %v6330
    %6590 = vmatpush1.bf16.msra.mxu0 %v6329
    %6591 = vmatprep.subr.bf16.mxu0 %v6322
    %6592 = vmatpush1.bf16.msra.mxu0 %v6321
    %6593 = vmatprep.subr.bf16.mxu0 %v6442
    %6594 = vmatpush2.bf16.msra.mxu0 %v6441
    %6595 = vmatprep.subr.bf16.mxu0 %v6434
    %6596 = vmatpush2.bf16.msra.mxu0 %v6433
    %6597 = vmatprep.subr.bf16.mxu0 %v6426
    %6598 = vmatpush2.bf16.msra.mxu0 %v6425
    %6599 = vmatprep.subr.bf16.mxu0 %v6418
    %6600 = vmatpush2.bf16.msra.mxu0 %v6417
    %6601 = vmatprep.subr.bf16.mxu0 %v6410
    %6602 = vmatpush2.bf16.msra.mxu0 %v6409
    %6603 = vmatprep.subr.bf16.mxu0 %v6402
    %6604 = vmatpush2.bf16.msra.mxu0 %v6401
    %6605 = vmatprep.subr.bf16.mxu0 %v6394
    %6606 = vmatpush2.bf16.msra.mxu0 %v6393
    %6607 = vmatprep.subr.bf16.mxu0 %v6386
    %6608 = vmatpush2.bf16.msra.mxu0 %v6385
    %6609 = vmatprep.mubr.bf16.mxu0 %v5808
    %6610 = vmatmul.mubr.bf16.gmra.mxu0 %v5807
    %v6611 = vpop.f32.mrf.mxu0
    %v6612 = vadd.f32 0.0, %v6611
    %v6613 = vpop.f32.mrf.mxu0
    %v6614 = vadd.f32 0.0, %v6613
    %v6615 = vpop.f32.mrf.mxu0
    %v6616 = vpop.f32.mrf.mxu0
    %6617 = vdwg.mxu0
    %6618 = vmatprep.subr.bf16.mxu0 %v6380
    %6619 = vmatpush1.bf16.msra.mxu0 %v6379
    %6620 = vmatprep.subr.bf16.mxu0 %v6372
    %6621 = vmatpush1.bf16.msra.mxu0 %v6371
    %6622 = vmatprep.subr.bf16.mxu0 %v6364
    %6623 = vmatpush1.bf16.msra.mxu0 %v6363
    %6624 = vmatprep.subr.bf16.mxu0 %v6356
    %6625 = vmatpush1.bf16.msra.mxu0 %v6355
    %6626 = vmatprep.subr.bf16.mxu0 %v6348
    %6627 = vmatpush1.bf16.msra.mxu0 %v6347
    %6628 = vmatprep.subr.bf16.mxu0 %v6340
    %6629 = vmatpush1.bf16.msra.mxu0 %v6339
    %6630 = vmatprep.subr.bf16.mxu0 %v6332
    %6631 = vmatpush1.bf16.msra.mxu0 %v6331
    %6632 = vmatprep.subr.bf16.mxu0 %v6324
    %6633 = vmatpush1.bf16.msra.mxu0 %v6323
    %6634 = vmatprep.subr.bf16.mxu0 %v6444
    %6635 = vmatpush2.bf16.msra.mxu0 %v6443
    %6636 = vmatprep.subr.bf16.mxu0 %v6436
    %6637 = vmatpush2.bf16.msra.mxu0 %v6435
    %6638 = vmatprep.subr.bf16.mxu0 %v6428
    %6639 = vmatpush2.bf16.msra.mxu0 %v6427
    %6640 = vmatprep.subr.bf16.mxu0 %v6420
    %6641 = vmatpush2.bf16.msra.mxu0 %v6419
    %6642 = vmatprep.subr.bf16.mxu0 %v6412
    %6643 = vmatpush2.bf16.msra.mxu0 %v6411
    %6644 = vmatprep.subr.bf16.mxu0 %v6404
    %6645 = vmatpush2.bf16.msra.mxu0 %v6403
    %6646 = vmatprep.subr.bf16.mxu0 %v6396
    %6647 = vmatpush2.bf16.msra.mxu0 %v6395
    %6648 = vmatprep.subr.bf16.mxu0 %v6388
    %6649 = vmatpush2.bf16.msra.mxu0 %v6387
    %6650 = vmatprep.mubr.bf16.mxu0 %v5808
    %6651 = vmatmul.mubr.bf16.gmra.mxu0 %v5807
    %v6652 = vpop.f32.mrf.mxu0
    %v6653 = vadd.f32 0.0, %v6652
    %v6654 = vpop.f32.mrf.mxu0
    %v6655 = vadd.f32 0.0, %v6654
    %v6656 = vpop.f32.mrf.mxu0
    %v6657 = vpop.f32.mrf.mxu0
    %6658 = vdwg.mxu0
    %6659 = vmatprep.subr.bf16.mxu0 %v6382
    %6660 = vmatpush1.bf16.msra.mxu0 %v6381
    %6661 = vmatprep.subr.bf16.mxu0 %v6374
    %6662 = vmatpush1.bf16.msra.mxu0 %v6373
    %6663 = vmatprep.subr.bf16.mxu0 %v6366
    %6664 = vmatpush1.bf16.msra.mxu0 %v6365
    %6665 = vmatprep.subr.bf16.mxu0 %v6358
    %6666 = vmatpush1.bf16.msra.mxu0 %v6357
    %6667 = vmatprep.subr.bf16.mxu0 %v6350
    %6668 = vmatpush1.bf16.msra.mxu0 %v6349
    %6669 = vmatprep.subr.bf16.mxu0 %v6342
    %6670 = vmatpush1.bf16.msra.mxu0 %v6341
    %6671 = vmatprep.subr.bf16.mxu0 %v6334
    %6672 = vmatpush1.bf16.msra.mxu0 %v6333
    %6673 = vmatprep.subr.bf16.mxu0 %v6326
    %6674 = vmatpush1.bf16.msra.mxu0 %v6325
    %6675 = vmatprep.subr.bf16.mxu0 %v6446
    %6676 = vmatpush2.bf16.msra.mxu0 %v6445
    %6677 = vmatprep.subr.bf16.mxu0 %v6438
    %6678 = vmatpush2.bf16.msra.mxu0 %v6437
    %6679 = vmatprep.subr.bf16.mxu0 %v6430
    %6680 = vmatpush2.bf16.msra.mxu0 %v6429
    %6681 = vmatprep.subr.bf16.mxu0 %v6422
    %6682 = vmatpush2.bf16.msra.mxu0 %v6421
    %6683 = vmatprep.subr.bf16.mxu0 %v6414
    %6684 = vmatpush2.bf16.msra.mxu0 %v6413
    %6685 = vmatprep.subr.bf16.mxu0 %v6406
    %6686 = vmatpush2.bf16.msra.mxu0 %v6405
    %6687 = vmatprep.subr.bf16.mxu0 %v6398
    %6688 = vmatpush2.bf16.msra.mxu0 %v6397
    %6689 = vmatprep.subr.bf16.mxu0 %v6390
    %6690 = vmatpush2.bf16.msra.mxu0 %v6389
    %6691 = vmatprep.mubr.bf16.mxu0 %v5808
    %6692 = vmatmul.mubr.bf16.gmra.mxu0 %v5807
    %v6693 = vpop.f32.mrf.mxu0
    %v6694 = vadd.f32 0.0, %v6693
    %v6695 = vpop.f32.mrf.mxu0
    %v6696 = vadd.f32 0.0, %v6695
    %v6697 = vpop.f32.mrf.mxu0
    %v6698 = vpop.f32.mrf.mxu0
    %6699 = vdwg.mxu0
    %6700 = vmatprep.subr.bf16.mxu0 %v6384
    %6701 = vmatpush1.bf16.msra.mxu0 %v6383
    %6702 = vmatprep.subr.bf16.mxu0 %v6376
    %6703 = vmatpush1.bf16.msra.mxu0 %v6375
    %6704 = vmatprep.subr.bf16.mxu0 %v6368
    %6705 = vmatpush1.bf16.msra.mxu0 %v6367
    %6706 = vmatprep.subr.bf16.mxu0 %v6360
    %6707 = vmatpush1.bf16.msra.mxu0 %v6359
    %6708 = vmatprep.subr.bf16.mxu0 %v6352
    %6709 = vmatpush1.bf16.msra.mxu0 %v6351
    %6710 = vmatprep.subr.bf16.mxu0 %v6344
    %6711 = vmatpush1.bf16.msra.mxu0 %v6343
    %6712 = vmatprep.subr.bf16.mxu0 %v6336
    %6713 = vmatpush1.bf16.msra.mxu0 %v6335
    %6714 = vmatprep.subr.bf16.mxu0 %v6328
    %6715 = vmatpush1.bf16.msra.mxu0 %v6327
    %6716 = vmatprep.subr.bf16.mxu0 %v6448
    %6717 = vmatpush2.bf16.msra.mxu0 %v6447
    %6718 = vmatprep.subr.bf16.mxu0 %v6440
    %6719 = vmatpush2.bf16.msra.mxu0 %v6439
    %6720 = vmatprep.subr.bf16.mxu0 %v6432
    %6721 = vmatpush2.bf16.msra.mxu0 %v6431
    %6722 = vmatprep.subr.bf16.mxu0 %v6424
    %6723 = vmatpush2.bf16.msra.mxu0 %v6423
    %6724 = vmatprep.subr.bf16.mxu0 %v6416
    %6725 = vmatpush2.bf16.msra.mxu0 %v6415
    %6726 = vmatprep.subr.bf16.mxu0 %v6408
    %6727 = vmatpush2.bf16.msra.mxu0 %v6407
    %6728 = vmatprep.subr.bf16.mxu0 %v6400
    %6729 = vmatpush2.bf16.msra.mxu0 %v6399
    %6730 = vmatprep.subr.bf16.mxu0 %v6392
    %6731 = vmatpush2.bf16.msra.mxu0 %v6391
    %6732 = vmatprep.mubr.bf16.mxu0 %v5808
    %6733 = vmatmul.mubr.bf16.gmra.mxu0 %v5807
    %v6734 = vpop.f32.mrf.mxu0
    %v6735 = vadd.f32 0.0, %v6734
    %v6736 = vpop.f32.mrf.mxu0
    %v6737 = vadd.f32 0.0, %v6736
    %v6738 = vpop.f32.mrf.mxu0
    %v6739 = vpop.f32.mrf.mxu0
    %6740 = vdwg.mxu0
    %v6741 = vld [vmem:[#allocation2 + $0x140] sm:$0xff]
    %v6742 = vld [vmem:[#allocation2 + $0x148] sm:$0xff]
    %v6743 = vld [vmem:[#allocation2 + $0x150] sm:$0xff]
    %v6744 = vld [vmem:[#allocation2 + $0x158] sm:$0xff]
    %v6745 = vadd.f32 %v6741, %v6612
    %v6746 = vadd.f32 %v6742, %v6614
    %v6747 = vadd.f32 %v6743, %v6653
    %v6748 = vadd.f32 %v6744, %v6655
    %v6749 = vld [vmem:[#allocation2 + $0xa0] sm:$0xff]
    %v6750 = vld [vmem:[#allocation2 + $0xa8] sm:$0xff]
    %v6751 = vld [vmem:[#allocation2 + $0xb0] sm:$0xff]
    %v6752 = vld [vmem:[#allocation2 + $0xb8] sm:$0xff]
    %v6753 = vadd.f32 %v6749, %v6694
    %v6754 = vadd.f32 %v6750, %v6696
    %v6755 = vadd.f32 %v6751, %v6735
    %v6756 = vadd.f32 %v6752, %v6737
    %v6757 = vxor.u32 %v6745, 2147483648
    %v6758 = vmul.f32 %v6757, 1.442695
    %v6759 = vpow.pop %v6758
    %v6760 = vadd.f32 %v6759, 1.0
    %v6761 = vrcp.pop %v6760
    %v6762 = vmul.f32 1.0, %v6761
    %v6763 = vxor.u32 %v6746, 2147483648
    %v6764 = vmul.f32 %v6763, 1.442695
    %v6765 = vpow.pop %v6764
    %v6766 = vadd.f32 %v6765, 1.0
    %v6767 = vrcp.pop %v6766
    %v6768 = vmul.f32 1.0, %v6767
    %v6769 = vmul.f32 %v6762, %v6748
    %v6770 = vadd.f32 %v6747, %v6769
    %v6771 = vtanh.pop %v6770
    %v6772 = vsub.f32 1.0, %v6768
    %v6773 = vmul.f32 %v6772, %v6771
    %v6774 = vmul.f32 %v6768, %v5783
    %v6775 = vadd.f32 %v6773, %v6774
    %v6776 = vxor.u32 %v6753, 2147483648
    %v6777 = vmul.f32 %v6776, 1.442695
    %v6778 = vpow.pop %v6777
    %v6779 = vadd.f32 %v6778, 1.0
    %v6780 = vrcp.pop %v6779
    %v6781 = vmul.f32 1.0, %v6780
    %v6782 = vxor.u32 %v6754, 2147483648
    %v6783 = vmul.f32 %v6782, 1.442695
    %v6784 = vpow.pop %v6783
    %v6785 = vadd.f32 %v6784, 1.0
    %v6786 = vrcp.pop %v6785
    %v6787 = vmul.f32 1.0, %v6786
    %v6788 = vmul.f32 %v6781, %v6756
    %v6789 = vadd.f32 %v6755, %v6788
    %v6790 = vtanh.pop %v6789
    %v6791 = vsub.f32 1.0, %v6787
    %v6792 = vmul.f32 %v6791, %v6790
    %v6793 = vmul.f32 %v6787, %v5802
    %v6794 = vadd.f32 %v6792, %v6793
    %s6795 = scalar_lea.vmem %s6, 40
    %6796 = vst [vmem:[%s6795] sm:$0xff] %v6775
    %s6797 = scalar_lea.vmem %s7, 16
    %6798 = vst [vmem:[%s6797] sm:$0xff] %v6794
    %v6799 = vpack.c.bf16 %v6775, %v6775
    %v6800 = vpack.c.bf16 %v6794, %v6794
    %v6801 = vld [vmem:[#allocation5] sm:$0xff]
    %v6802 = vld [vmem:[#allocation5 + $0x8] sm:$0xff]
    %v6803 = vld [vmem:[#allocation5 + $0x10] sm:$0xff]
    %v6804 = vld [vmem:[#allocation5 + $0x18] sm:$0xff]
    %v6805 = vld [vmem:[#allocation5 + $0x20] sm:$0xff]
    %v6806 = vld [vmem:[#allocation5 + $0x28] sm:$0xff]
    %v6807 = vld [vmem:[#allocation5 + $0x30] sm:$0xff]
    %v6808 = vld [vmem:[#allocation5 + $0x38] sm:$0xff]
    %v6809 = vld [vmem:[#allocation5 + $0x40] sm:$0xff]
    %v6810 = vld [vmem:[#allocation5 + $0x48] sm:$0xff]
    %v6811 = vld [vmem:[#allocation5 + $0x50] sm:$0xff]
    %v6812 = vld [vmem:[#allocation5 + $0x58] sm:$0xff]
    %v6813 = vld [vmem:[#allocation5 + $0x60] sm:$0xff]
    %v6814 = vld [vmem:[#allocation5 + $0x68] sm:$0xff]
    %v6815 = vld [vmem:[#allocation5 + $0x70] sm:$0xff]
    %v6816 = vld [vmem:[#allocation5 + $0x78] sm:$0xff]
    %v6817 = vld [vmem:[#allocation5 + $0x80] sm:$0xff]
    %v6818 = vld [vmem:[#allocation5 + $0x88] sm:$0xff]
    %v6819 = vld [vmem:[#allocation5 + $0x90] sm:$0xff]
    %v6820 = vld [vmem:[#allocation5 + $0x98] sm:$0xff]
    %v6821 = vld [vmem:[#allocation5 + $0xa0] sm:$0xff]
    %v6822 = vld [vmem:[#allocation5 + $0xa8] sm:$0xff]
    %v6823 = vld [vmem:[#allocation5 + $0xb0] sm:$0xff]
    %v6824 = vld [vmem:[#allocation5 + $0xb8] sm:$0xff]
    %v6825 = vld [vmem:[#allocation5 + $0xc0] sm:$0xff]
    %v6826 = vld [vmem:[#allocation5 + $0xc8] sm:$0xff]
    %v6827 = vld [vmem:[#allocation5 + $0xd0] sm:$0xff]
    %v6828 = vld [vmem:[#allocation5 + $0xd8] sm:$0xff]
    %v6829 = vld [vmem:[#allocation5 + $0xe0] sm:$0xff]
    %v6830 = vld [vmem:[#allocation5 + $0xe8] sm:$0xff]
    %v6831 = vld [vmem:[#allocation5 + $0xf0] sm:$0xff]
    %v6832 = vld [vmem:[#allocation5 + $0xf8] sm:$0xff]
    %v6833 = vld [vmem:[#allocation5 + $0x100] sm:$0xff]
    %v6834 = vld [vmem:[#allocation5 + $0x108] sm:$0xff]
    %v6835 = vld [vmem:[#allocation5 + $0x110] sm:$0xff]
    %v6836 = vld [vmem:[#allocation5 + $0x118] sm:$0xff]
    %v6837 = vld [vmem:[#allocation5 + $0x120] sm:$0xff]
    %v6838 = vld [vmem:[#allocation5 + $0x128] sm:$0xff]
    %v6839 = vld [vmem:[#allocation5 + $0x130] sm:$0xff]
    %v6840 = vld [vmem:[#allocation5 + $0x138] sm:$0xff]
    %v6841 = vld [vmem:[#allocation5 + $0x140] sm:$0xff]
    %v6842 = vld [vmem:[#allocation5 + $0x148] sm:$0xff]
    %v6843 = vld [vmem:[#allocation5 + $0x150] sm:$0xff]
    %v6844 = vld [vmem:[#allocation5 + $0x158] sm:$0xff]
    %v6845 = vld [vmem:[#allocation5 + $0x160] sm:$0xff]
    %v6846 = vld [vmem:[#allocation5 + $0x168] sm:$0xff]
    %v6847 = vld [vmem:[#allocation5 + $0x170] sm:$0xff]
    %v6848 = vld [vmem:[#allocation5 + $0x178] sm:$0xff]
    %v6849 = vld [vmem:[#allocation5 + $0x180] sm:$0xff]
    %v6850 = vld [vmem:[#allocation5 + $0x188] sm:$0xff]
    %v6851 = vld [vmem:[#allocation5 + $0x190] sm:$0xff]
    %v6852 = vld [vmem:[#allocation5 + $0x198] sm:$0xff]
    %v6853 = vld [vmem:[#allocation5 + $0x1a0] sm:$0xff]
    %v6854 = vld [vmem:[#allocation5 + $0x1a8] sm:$0xff]
    %v6855 = vld [vmem:[#allocation5 + $0x1b0] sm:$0xff]
    %v6856 = vld [vmem:[#allocation5 + $0x1b8] sm:$0xff]
    %v6857 = vld [vmem:[#allocation5 + $0x1c0] sm:$0xff]
    %v6858 = vld [vmem:[#allocation5 + $0x1c8] sm:$0xff]
    %v6859 = vld [vmem:[#allocation5 + $0x1d0] sm:$0xff]
    %v6860 = vld [vmem:[#allocation5 + $0x1d8] sm:$0xff]
    %v6861 = vld [vmem:[#allocation5 + $0x1e0] sm:$0xff]
    %v6862 = vld [vmem:[#allocation5 + $0x1e8] sm:$0xff]
    %v6863 = vld [vmem:[#allocation5 + $0x1f0] sm:$0xff]
    %v6864 = vld [vmem:[#allocation5 + $0x1f8] sm:$0xff]
    %v6865 = vld [vmem:[#allocation5 + $0x200] sm:$0xff]
    %v6866 = vld [vmem:[#allocation5 + $0x208] sm:$0xff]
    %v6867 = vld [vmem:[#allocation5 + $0x210] sm:$0xff]
    %v6868 = vld [vmem:[#allocation5 + $0x218] sm:$0xff]
    %v6869 = vld [vmem:[#allocation5 + $0x220] sm:$0xff]
    %v6870 = vld [vmem:[#allocation5 + $0x228] sm:$0xff]
    %v6871 = vld [vmem:[#allocation5 + $0x230] sm:$0xff]
    %v6872 = vld [vmem:[#allocation5 + $0x238] sm:$0xff]
    %v6873 = vld [vmem:[#allocation5 + $0x240] sm:$0xff]
    %v6874 = vld [vmem:[#allocation5 + $0x248] sm:$0xff]
    %v6875 = vld [vmem:[#allocation5 + $0x250] sm:$0xff]
    %v6876 = vld [vmem:[#allocation5 + $0x258] sm:$0xff]
    %v6877 = vld [vmem:[#allocation5 + $0x260] sm:$0xff]
    %v6878 = vld [vmem:[#allocation5 + $0x268] sm:$0xff]
    %v6879 = vld [vmem:[#allocation5 + $0x270] sm:$0xff]
    %v6880 = vld [vmem:[#allocation5 + $0x278] sm:$0xff]
    %v6881 = vld [vmem:[#allocation5 + $0x280] sm:$0xff]
    %v6882 = vld [vmem:[#allocation5 + $0x288] sm:$0xff]
    %v6883 = vld [vmem:[#allocation5 + $0x290] sm:$0xff]
    %v6884 = vld [vmem:[#allocation5 + $0x298] sm:$0xff]
    %v6885 = vld [vmem:[#allocation5 + $0x2a0] sm:$0xff]
    %v6886 = vld [vmem:[#allocation5 + $0x2a8] sm:$0xff]
    %v6887 = vld [vmem:[#allocation5 + $0x2b0] sm:$0xff]
    %v6888 = vld [vmem:[#allocation5 + $0x2b8] sm:$0xff]
    %v6889 = vld [vmem:[#allocation5 + $0x2c0] sm:$0xff]
    %v6890 = vld [vmem:[#allocation5 + $0x2c8] sm:$0xff]
    %v6891 = vld [vmem:[#allocation5 + $0x2d0] sm:$0xff]
    %v6892 = vld [vmem:[#allocation5 + $0x2d8] sm:$0xff]
    %v6893 = vld [vmem:[#allocation5 + $0x2e0] sm:$0xff]
    %v6894 = vld [vmem:[#allocation5 + $0x2e8] sm:$0xff]
    %v6895 = vld [vmem:[#allocation5 + $0x2f0] sm:$0xff]
    %v6896 = vld [vmem:[#allocation5 + $0x2f8] sm:$0xff]
    %v6897 = vld [vmem:[#allocation5 + $0x300] sm:$0xff]
    %v6898 = vld [vmem:[#allocation5 + $0x308] sm:$0xff]
    %v6899 = vld [vmem:[#allocation5 + $0x310] sm:$0xff]
    %v6900 = vld [vmem:[#allocation5 + $0x318] sm:$0xff]
    %v6901 = vld [vmem:[#allocation5 + $0x320] sm:$0xff]
    %v6902 = vld [vmem:[#allocation5 + $0x328] sm:$0xff]
    %v6903 = vld [vmem:[#allocation5 + $0x330] sm:$0xff]
    %v6904 = vld [vmem:[#allocation5 + $0x338] sm:$0xff]
    %v6905 = vld [vmem:[#allocation5 + $0x340] sm:$0xff]
    %v6906 = vld [vmem:[#allocation5 + $0x348] sm:$0xff]
    %v6907 = vld [vmem:[#allocation5 + $0x350] sm:$0xff]
    %v6908 = vld [vmem:[#allocation5 + $0x358] sm:$0xff]
    %v6909 = vld [vmem:[#allocation5 + $0x360] sm:$0xff]
    %v6910 = vld [vmem:[#allocation5 + $0x368] sm:$0xff]
    %v6911 = vld [vmem:[#allocation5 + $0x370] sm:$0xff]
    %v6912 = vld [vmem:[#allocation5 + $0x378] sm:$0xff]
    %v6913 = vld [vmem:[#allocation5 + $0x380] sm:$0xff]
    %v6914 = vld [vmem:[#allocation5 + $0x388] sm:$0xff]
    %v6915 = vld [vmem:[#allocation5 + $0x390] sm:$0xff]
    %v6916 = vld [vmem:[#allocation5 + $0x398] sm:$0xff]
    %v6917 = vld [vmem:[#allocation5 + $0x3a0] sm:$0xff]
    %v6918 = vld [vmem:[#allocation5 + $0x3a8] sm:$0xff]
    %v6919 = vld [vmem:[#allocation5 + $0x3b0] sm:$0xff]
    %v6920 = vld [vmem:[#allocation5 + $0x3b8] sm:$0xff]
    %v6921 = vld [vmem:[#allocation5 + $0x3c0] sm:$0xff]
    %v6922 = vld [vmem:[#allocation5 + $0x3c8] sm:$0xff]
    %v6923 = vld [vmem:[#allocation5 + $0x3d0] sm:$0xff]
    %v6924 = vld [vmem:[#allocation5 + $0x3d8] sm:$0xff]
    %v6925 = vld [vmem:[#allocation5 + $0x3e0] sm:$0xff]
    %v6926 = vld [vmem:[#allocation5 + $0x3e8] sm:$0xff]
    %v6927 = vld [vmem:[#allocation5 + $0x3f0] sm:$0xff]
    %v6928 = vld [vmem:[#allocation5 + $0x3f8] sm:$0xff]
    %v7057 = vunpack.c.l.b16 %v6801
    %v7058 = vunpack.c.h.b16 %v6801
    %v7059 = vunpack.c.l.b16 %v6802
    %v7060 = vunpack.c.h.b16 %v6802
    %v7061 = vunpack.c.l.b16 %v6803
    %v7062 = vunpack.c.h.b16 %v6803
    %v7063 = vunpack.c.l.b16 %v6804
    %v7064 = vunpack.c.h.b16 %v6804
    %v7065 = vunpack.c.l.b16 %v6805
    %v7066 = vunpack.c.h.b16 %v6805
    %v7067 = vunpack.c.l.b16 %v6806
    %v7068 = vunpack.c.h.b16 %v6806
    %v7069 = vunpack.c.l.b16 %v6807
    %v7070 = vunpack.c.h.b16 %v6807
    %v7071 = vunpack.c.l.b16 %v6808
    %v7072 = vunpack.c.h.b16 %v6808
    %v7073 = vunpack.c.l.b16 %v6809
    %v7074 = vunpack.c.h.b16 %v6809
    %v7075 = vunpack.c.l.b16 %v6810
    %v7076 = vunpack.c.h.b16 %v6810
    %v7077 = vunpack.c.l.b16 %v6811
    %v7078 = vunpack.c.h.b16 %v6811
    %v7079 = vunpack.c.l.b16 %v6812
    %v7080 = vunpack.c.h.b16 %v6812
    %v7081 = vunpack.c.l.b16 %v6813
    %v7082 = vunpack.c.h.b16 %v6813
    %v7083 = vunpack.c.l.b16 %v6814
    %v7084 = vunpack.c.h.b16 %v6814
    %v7085 = vunpack.c.l.b16 %v6815
    %v7086 = vunpack.c.h.b16 %v6815
    %v7087 = vunpack.c.l.b16 %v6816
    %v7088 = vunpack.c.h.b16 %v6816
    %v7089 = vunpack.c.l.b16 %v6817
    %v7090 = vunpack.c.h.b16 %v6817
    %v7091 = vunpack.c.l.b16 %v6818
    %v7092 = vunpack.c.h.b16 %v6818
    %v7093 = vunpack.c.l.b16 %v6819
    %v7094 = vunpack.c.h.b16 %v6819
    %v7095 = vunpack.c.l.b16 %v6820
    %v7096 = vunpack.c.h.b16 %v6820
    %v7097 = vunpack.c.l.b16 %v6821
    %v7098 = vunpack.c.h.b16 %v6821
    %v7099 = vunpack.c.l.b16 %v6822
    %v7100 = vunpack.c.h.b16 %v6822
    %v7101 = vunpack.c.l.b16 %v6823
    %v7102 = vunpack.c.h.b16 %v6823
    %v7103 = vunpack.c.l.b16 %v6824
    %v7104 = vunpack.c.h.b16 %v6824
    %v7105 = vunpack.c.l.b16 %v6825
    %v7106 = vunpack.c.h.b16 %v6825
    %v7107 = vunpack.c.l.b16 %v6826
    %v7108 = vunpack.c.h.b16 %v6826
    %v7109 = vunpack.c.l.b16 %v6827
    %v7110 = vunpack.c.h.b16 %v6827
    %v7111 = vunpack.c.l.b16 %v6828
    %v7112 = vunpack.c.h.b16 %v6828
    %v7113 = vunpack.c.l.b16 %v6829
    %v7114 = vunpack.c.h.b16 %v6829
    %v7115 = vunpack.c.l.b16 %v6830
    %v7116 = vunpack.c.h.b16 %v6830
    %v7117 = vunpack.c.l.b16 %v6831
    %v7118 = vunpack.c.h.b16 %v6831
    %v7119 = vunpack.c.l.b16 %v6832
    %v7120 = vunpack.c.h.b16 %v6832
    %v7121 = vunpack.c.l.b16 %v6833
    %v7122 = vunpack.c.h.b16 %v6833
    %v7123 = vunpack.c.l.b16 %v6834
    %v7124 = vunpack.c.h.b16 %v6834
    %v7125 = vunpack.c.l.b16 %v6835
    %v7126 = vunpack.c.h.b16 %v6835
    %v7127 = vunpack.c.l.b16 %v6836
    %v7128 = vunpack.c.h.b16 %v6836
    %v7129 = vunpack.c.l.b16 %v6837
    %v7130 = vunpack.c.h.b16 %v6837
    %v7131 = vunpack.c.l.b16 %v6838
    %v7132 = vunpack.c.h.b16 %v6838
    %v7133 = vunpack.c.l.b16 %v6839
    %v7134 = vunpack.c.h.b16 %v6839
    %v7135 = vunpack.c.l.b16 %v6840
    %v7136 = vunpack.c.h.b16 %v6840
    %v7137 = vunpack.c.l.b16 %v6841
    %v7138 = vunpack.c.h.b16 %v6841
    %v7139 = vunpack.c.l.b16 %v6842
    %v7140 = vunpack.c.h.b16 %v6842
    %v7141 = vunpack.c.l.b16 %v6843
    %v7142 = vunpack.c.h.b16 %v6843
    %v7143 = vunpack.c.l.b16 %v6844
    %v7144 = vunpack.c.h.b16 %v6844
    %v7145 = vunpack.c.l.b16 %v6845
    %v7146 = vunpack.c.h.b16 %v6845
    %v7147 = vunpack.c.l.b16 %v6846
    %v7148 = vunpack.c.h.b16 %v6846
    %v7149 = vunpack.c.l.b16 %v6847
    %v7150 = vunpack.c.h.b16 %v6847
    %v7151 = vunpack.c.l.b16 %v6848
    %v7152 = vunpack.c.h.b16 %v6848
    %v7153 = vunpack.c.l.b16 %v6849
    %v7154 = vunpack.c.h.b16 %v6849
    %v7155 = vunpack.c.l.b16 %v6850
    %v7156 = vunpack.c.h.b16 %v6850
    %v7157 = vunpack.c.l.b16 %v6851
    %v7158 = vunpack.c.h.b16 %v6851
    %v7159 = vunpack.c.l.b16 %v6852
    %v7160 = vunpack.c.h.b16 %v6852
    %v7161 = vunpack.c.l.b16 %v6853
    %v7162 = vunpack.c.h.b16 %v6853
    %v7163 = vunpack.c.l.b16 %v6854
    %v7164 = vunpack.c.h.b16 %v6854
    %v7165 = vunpack.c.l.b16 %v6855
    %v7166 = vunpack.c.h.b16 %v6855
    %v7167 = vunpack.c.l.b16 %v6856
    %v7168 = vunpack.c.h.b16 %v6856
    %v7169 = vunpack.c.l.b16 %v6857
    %v7170 = vunpack.c.h.b16 %v6857
    %v7171 = vunpack.c.l.b16 %v6858
    %v7172 = vunpack.c.h.b16 %v6858
    %v7173 = vunpack.c.l.b16 %v6859
    %v7174 = vunpack.c.h.b16 %v6859
    %v7175 = vunpack.c.l.b16 %v6860
    %v7176 = vunpack.c.h.b16 %v6860
    %v7177 = vunpack.c.l.b16 %v6861
    %v7178 = vunpack.c.h.b16 %v6861
    %v7179 = vunpack.c.l.b16 %v6862
    %v7180 = vunpack.c.h.b16 %v6862
    %v7181 = vunpack.c.l.b16 %v6863
    %v7182 = vunpack.c.h.b16 %v6863
    %v7183 = vunpack.c.l.b16 %v6864
    %v7184 = vunpack.c.h.b16 %v6864
    %v7185 = vunpack.c.l.b16 %v6865
    %v7186 = vunpack.c.h.b16 %v6865
    %v7187 = vunpack.c.l.b16 %v6866
    %v7188 = vunpack.c.h.b16 %v6866
    %v7189 = vunpack.c.l.b16 %v6867
    %v7190 = vunpack.c.h.b16 %v6867
    %v7191 = vunpack.c.l.b16 %v6868
    %v7192 = vunpack.c.h.b16 %v6868
    %v7193 = vunpack.c.l.b16 %v6869
    %v7194 = vunpack.c.h.b16 %v6869
    %v7195 = vunpack.c.l.b16 %v6870
    %v7196 = vunpack.c.h.b16 %v6870
    %v7197 = vunpack.c.l.b16 %v6871
    %v7198 = vunpack.c.h.b16 %v6871
    %v7199 = vunpack.c.l.b16 %v6872
    %v7200 = vunpack.c.h.b16 %v6872
    %v7201 = vunpack.c.l.b16 %v6873
    %v7202 = vunpack.c.h.b16 %v6873
    %v7203 = vunpack.c.l.b16 %v6874
    %v7204 = vunpack.c.h.b16 %v6874
    %v7205 = vunpack.c.l.b16 %v6875
    %v7206 = vunpack.c.h.b16 %v6875
    %v7207 = vunpack.c.l.b16 %v6876
    %v7208 = vunpack.c.h.b16 %v6876
    %v7209 = vunpack.c.l.b16 %v6877
    %v7210 = vunpack.c.h.b16 %v6877
    %v7211 = vunpack.c.l.b16 %v6878
    %v7212 = vunpack.c.h.b16 %v6878
    %v7213 = vunpack.c.l.b16 %v6879
    %v7214 = vunpack.c.h.b16 %v6879
    %v7215 = vunpack.c.l.b16 %v6880
    %v7216 = vunpack.c.h.b16 %v6880
    %v7217 = vunpack.c.l.b16 %v6881
    %v7218 = vunpack.c.h.b16 %v6881
    %v7219 = vunpack.c.l.b16 %v6882
    %v7220 = vunpack.c.h.b16 %v6882
    %v7221 = vunpack.c.l.b16 %v6883
    %v7222 = vunpack.c.h.b16 %v6883
    %v7223 = vunpack.c.l.b16 %v6884
    %v7224 = vunpack.c.h.b16 %v6884
    %v7225 = vunpack.c.l.b16 %v6885
    %v7226 = vunpack.c.h.b16 %v6885
    %v7227 = vunpack.c.l.b16 %v6886
    %v7228 = vunpack.c.h.b16 %v6886
    %v7229 = vunpack.c.l.b16 %v6887
    %v7230 = vunpack.c.h.b16 %v6887
    %v7231 = vunpack.c.l.b16 %v6888
    %v7232 = vunpack.c.h.b16 %v6888
    %v7233 = vunpack.c.l.b16 %v6889
    %v7234 = vunpack.c.h.b16 %v6889
    %v7235 = vunpack.c.l.b16 %v6890
    %v7236 = vunpack.c.h.b16 %v6890
    %v7237 = vunpack.c.l.b16 %v6891
    %v7238 = vunpack.c.h.b16 %v6891
    %v7239 = vunpack.c.l.b16 %v6892
    %v7240 = vunpack.c.h.b16 %v6892
    %v7241 = vunpack.c.l.b16 %v6893
    %v7242 = vunpack.c.h.b16 %v6893
    %v7243 = vunpack.c.l.b16 %v6894
    %v7244 = vunpack.c.h.b16 %v6894
    %v7245 = vunpack.c.l.b16 %v6895
    %v7246 = vunpack.c.h.b16 %v6895
    %v7247 = vunpack.c.l.b16 %v6896
    %v7248 = vunpack.c.h.b16 %v6896
    %v7249 = vunpack.c.l.b16 %v6897
    %v7250 = vunpack.c.h.b16 %v6897
    %v7251 = vunpack.c.l.b16 %v6898
    %v7252 = vunpack.c.h.b16 %v6898
    %v7253 = vunpack.c.l.b16 %v6899
    %v7254 = vunpack.c.h.b16 %v6899
    %v7255 = vunpack.c.l.b16 %v6900
    %v7256 = vunpack.c.h.b16 %v6900
    %v7257 = vunpack.c.l.b16 %v6901
    %v7258 = vunpack.c.h.b16 %v6901
    %v7259 = vunpack.c.l.b16 %v6902
    %v7260 = vunpack.c.h.b16 %v6902
    %v7261 = vunpack.c.l.b16 %v6903
    %v7262 = vunpack.c.h.b16 %v6903
    %v7263 = vunpack.c.l.b16 %v6904
    %v7264 = vunpack.c.h.b16 %v6904
    %v7265 = vunpack.c.l.b16 %v6905
    %v7266 = vunpack.c.h.b16 %v6905
    %v7267 = vunpack.c.l.b16 %v6906
    %v7268 = vunpack.c.h.b16 %v6906
    %v7269 = vunpack.c.l.b16 %v6907
    %v7270 = vunpack.c.h.b16 %v6907
    %v7271 = vunpack.c.l.b16 %v6908
    %v7272 = vunpack.c.h.b16 %v6908
    %v7273 = vunpack.c.l.b16 %v6909
    %v7274 = vunpack.c.h.b16 %v6909
    %v7275 = vunpack.c.l.b16 %v6910
    %v7276 = vunpack.c.h.b16 %v6910
    %v7277 = vunpack.c.l.b16 %v6911
    %v7278 = vunpack.c.h.b16 %v6911
    %v7279 = vunpack.c.l.b16 %v6912
    %v7280 = vunpack.c.h.b16 %v6912
    %v7281 = vunpack.c.l.b16 %v6913
    %v7282 = vunpack.c.h.b16 %v6913
    %v7283 = vunpack.c.l.b16 %v6914
    %v7284 = vunpack.c.h.b16 %v6914
    %v7285 = vunpack.c.l.b16 %v6915
    %v7286 = vunpack.c.h.b16 %v6915
    %v7287 = vunpack.c.l.b16 %v6916
    %v7288 = vunpack.c.h.b16 %v6916
    %v7289 = vunpack.c.l.b16 %v6917
    %v7290 = vunpack.c.h.b16 %v6917
    %v7291 = vunpack.c.l.b16 %v6918
    %v7292 = vunpack.c.h.b16 %v6918
    %v7293 = vunpack.c.l.b16 %v6919
    %v7294 = vunpack.c.h.b16 %v6919
    %v7295 = vunpack.c.l.b16 %v6920
    %v7296 = vunpack.c.h.b16 %v6920
    %v7297 = vunpack.c.l.b16 %v6921
    %v7298 = vunpack.c.h.b16 %v6921
    %v7299 = vunpack.c.l.b16 %v6922
    %v7300 = vunpack.c.h.b16 %v6922
    %v7301 = vunpack.c.l.b16 %v6923
    %v7302 = vunpack.c.h.b16 %v6923
    %v7303 = vunpack.c.l.b16 %v6924
    %v7304 = vunpack.c.h.b16 %v6924
    %v7305 = vunpack.c.l.b16 %v6925
    %v7306 = vunpack.c.h.b16 %v6925
    %v7307 = vunpack.c.l.b16 %v6926
    %v7308 = vunpack.c.h.b16 %v6926
    %v7309 = vunpack.c.l.b16 %v6927
    %v7310 = vunpack.c.h.b16 %v6927
    %v7311 = vunpack.c.l.b16 %v6928
    %v7312 = vunpack.c.h.b16 %v6928
    %v7313 = vpack.c.b16 %v7065, %v7057
    %v7314 = vpack.c.b16 %v7066, %v7058
    %v7315 = vpack.c.b16 %v7067, %v7059
    %v7316 = vpack.c.b16 %v7068, %v7060
    %v7317 = vpack.c.b16 %v7069, %v7061
    %v7318 = vpack.c.b16 %v7070, %v7062
    %v7319 = vpack.c.b16 %v7071, %v7063
    %v7320 = vpack.c.b16 %v7072, %v7064
    %v7321 = vpack.c.b16 %v7081, %v7073
    %v7322 = vpack.c.b16 %v7082, %v7074
    %v7323 = vpack.c.b16 %v7083, %v7075
    %v7324 = vpack.c.b16 %v7084, %v7076
    %v7325 = vpack.c.b16 %v7085, %v7077
    %v7326 = vpack.c.b16 %v7086, %v7078
    %v7327 = vpack.c.b16 %v7087, %v7079
    %v7328 = vpack.c.b16 %v7088, %v7080
    %v7329 = vpack.c.b16 %v7097, %v7089
    %v7330 = vpack.c.b16 %v7098, %v7090
    %v7331 = vpack.c.b16 %v7099, %v7091
    %v7332 = vpack.c.b16 %v7100, %v7092
    %v7333 = vpack.c.b16 %v7101, %v7093
    %v7334 = vpack.c.b16 %v7102, %v7094
    %v7335 = vpack.c.b16 %v7103, %v7095
    %v7336 = vpack.c.b16 %v7104, %v7096
    %v7337 = vpack.c.b16 %v7113, %v7105
    %v7338 = vpack.c.b16 %v7114, %v7106
    %v7339 = vpack.c.b16 %v7115, %v7107
    %v7340 = vpack.c.b16 %v7116, %v7108
    %v7341 = vpack.c.b16 %v7117, %v7109
    %v7342 = vpack.c.b16 %v7118, %v7110
    %v7343 = vpack.c.b16 %v7119, %v7111
    %v7344 = vpack.c.b16 %v7120, %v7112
    %v7345 = vpack.c.b16 %v7129, %v7121
    %v7346 = vpack.c.b16 %v7130, %v7122
    %v7347 = vpack.c.b16 %v7131, %v7123
    %v7348 = vpack.c.b16 %v7132, %v7124
    %v7349 = vpack.c.b16 %v7133, %v7125
    %v7350 = vpack.c.b16 %v7134, %v7126
    %v7351 = vpack.c.b16 %v7135, %v7127
    %v7352 = vpack.c.b16 %v7136, %v7128
    %v7353 = vpack.c.b16 %v7145, %v7137
    %v7354 = vpack.c.b16 %v7146, %v7138
    %v7355 = vpack.c.b16 %v7147, %v7139
    %v7356 = vpack.c.b16 %v7148, %v7140
    %v7357 = vpack.c.b16 %v7149, %v7141
    %v7358 = vpack.c.b16 %v7150, %v7142
    %v7359 = vpack.c.b16 %v7151, %v7143
    %v7360 = vpack.c.b16 %v7152, %v7144
    %v7361 = vpack.c.b16 %v7161, %v7153
    %v7362 = vpack.c.b16 %v7162, %v7154
    %v7363 = vpack.c.b16 %v7163, %v7155
    %v7364 = vpack.c.b16 %v7164, %v7156
    %v7365 = vpack.c.b16 %v7165, %v7157
    %v7366 = vpack.c.b16 %v7166, %v7158
    %v7367 = vpack.c.b16 %v7167, %v7159
    %v7368 = vpack.c.b16 %v7168, %v7160
    %v7369 = vpack.c.b16 %v7177, %v7169
    %v7370 = vpack.c.b16 %v7178, %v7170
    %v7371 = vpack.c.b16 %v7179, %v7171
    %v7372 = vpack.c.b16 %v7180, %v7172
    %v7373 = vpack.c.b16 %v7181, %v7173
    %v7374 = vpack.c.b16 %v7182, %v7174
    %v7375 = vpack.c.b16 %v7183, %v7175
    %v7376 = vpack.c.b16 %v7184, %v7176
    %v7377 = vpack.c.b16 %v7193, %v7185
    %v7378 = vpack.c.b16 %v7194, %v7186
    %v7379 = vpack.c.b16 %v7195, %v7187
    %v7380 = vpack.c.b16 %v7196, %v7188
    %v7381 = vpack.c.b16 %v7197, %v7189
    %v7382 = vpack.c.b16 %v7198, %v7190
    %v7383 = vpack.c.b16 %v7199, %v7191
    %v7384 = vpack.c.b16 %v7200, %v7192
    %v7385 = vpack.c.b16 %v7209, %v7201
    %v7386 = vpack.c.b16 %v7210, %v7202
    %v7387 = vpack.c.b16 %v7211, %v7203
    %v7388 = vpack.c.b16 %v7212, %v7204
    %v7389 = vpack.c.b16 %v7213, %v7205
    %v7390 = vpack.c.b16 %v7214, %v7206
    %v7391 = vpack.c.b16 %v7215, %v7207
    %v7392 = vpack.c.b16 %v7216, %v7208
    %v7393 = vpack.c.b16 %v7225, %v7217
    %v7394 = vpack.c.b16 %v7226, %v7218
    %v7395 = vpack.c.b16 %v7227, %v7219
    %v7396 = vpack.c.b16 %v7228, %v7220
    %v7397 = vpack.c.b16 %v7229, %v7221
    %v7398 = vpack.c.b16 %v7230, %v7222
    %v7399 = vpack.c.b16 %v7231, %v7223
    %v7400 = vpack.c.b16 %v7232, %v7224
    %v7401 = vpack.c.b16 %v7241, %v7233
    %v7402 = vpack.c.b16 %v7242, %v7234
    %v7403 = vpack.c.b16 %v7243, %v7235
    %v7404 = vpack.c.b16 %v7244, %v7236
    %v7405 = vpack.c.b16 %v7245, %v7237
    %v7406 = vpack.c.b16 %v7246, %v7238
    %v7407 = vpack.c.b16 %v7247, %v7239
    %v7408 = vpack.c.b16 %v7248, %v7240
    %v7409 = vpack.c.b16 %v7257, %v7249
    %v7410 = vpack.c.b16 %v7258, %v7250
    %v7411 = vpack.c.b16 %v7259, %v7251
    %v7412 = vpack.c.b16 %v7260, %v7252
    %v7413 = vpack.c.b16 %v7261, %v7253
    %v7414 = vpack.c.b16 %v7262, %v7254
    %v7415 = vpack.c.b16 %v7263, %v7255
    %v7416 = vpack.c.b16 %v7264, %v7256
    %v7417 = vpack.c.b16 %v7273, %v7265
    %v7418 = vpack.c.b16 %v7274, %v7266
    %v7419 = vpack.c.b16 %v7275, %v7267
    %v7420 = vpack.c.b16 %v7276, %v7268
    %v7421 = vpack.c.b16 %v7277, %v7269
    %v7422 = vpack.c.b16 %v7278, %v7270
    %v7423 = vpack.c.b16 %v7279, %v7271
    %v7424 = vpack.c.b16 %v7280, %v7272
    %v7425 = vpack.c.b16 %v7289, %v7281
    %v7426 = vpack.c.b16 %v7290, %v7282
    %v7427 = vpack.c.b16 %v7291, %v7283
    %v7428 = vpack.c.b16 %v7292, %v7284
    %v7429 = vpack.c.b16 %v7293, %v7285
    %v7430 = vpack.c.b16 %v7294, %v7286
    %v7431 = vpack.c.b16 %v7295, %v7287
    %v7432 = vpack.c.b16 %v7296, %v7288
    %v7433 = vpack.c.b16 %v7305, %v7297
    %v7434 = vpack.c.b16 %v7306, %v7298
    %v7435 = vpack.c.b16 %v7307, %v7299
    %v7436 = vpack.c.b16 %v7308, %v7300
    %v7437 = vpack.c.b16 %v7309, %v7301
    %v7438 = vpack.c.b16 %v7310, %v7302
    %v7439 = vpack.c.b16 %v7311, %v7303
    %v7440 = vpack.c.b16 %v7312, %v7304
    %7569 = vmatprep.subr.bf16.mxu0 %v7370
    %7570 = vmatpush1.bf16.msra.mxu0 %v7369
    %7571 = vmatprep.subr.bf16.mxu0 %v7362
    %7572 = vmatpush1.bf16.msra.mxu0 %v7361
    %7573 = vmatprep.subr.bf16.mxu0 %v7354
    %7574 = vmatpush1.bf16.msra.mxu0 %v7353
    %7575 = vmatprep.subr.bf16.mxu0 %v7346
    %7576 = vmatpush1.bf16.msra.mxu0 %v7345
    %7577 = vmatprep.subr.bf16.mxu0 %v7338
    %7578 = vmatpush1.bf16.msra.mxu0 %v7337
    %7579 = vmatprep.subr.bf16.mxu0 %v7330
    %7580 = vmatpush1.bf16.msra.mxu0 %v7329
    %7581 = vmatprep.subr.bf16.mxu0 %v7322
    %7582 = vmatpush1.bf16.msra.mxu0 %v7321
    %7583 = vmatprep.subr.bf16.mxu0 %v7314
    %7584 = vmatpush1.bf16.msra.mxu0 %v7313
    %7585 = vmatprep.subr.bf16.mxu0 %v7434
    %7586 = vmatpush2.bf16.msra.mxu0 %v7433
    %7587 = vmatprep.subr.bf16.mxu0 %v7426
    %7588 = vmatpush2.bf16.msra.mxu0 %v7425
    %7589 = vmatprep.subr.bf16.mxu0 %v7418
    %7590 = vmatpush2.bf16.msra.mxu0 %v7417
    %7591 = vmatprep.subr.bf16.mxu0 %v7410
    %7592 = vmatpush2.bf16.msra.mxu0 %v7409
    %7593 = vmatprep.subr.bf16.mxu0 %v7402
    %7594 = vmatpush2.bf16.msra.mxu0 %v7401
    %7595 = vmatprep.subr.bf16.mxu0 %v7394
    %7596 = vmatpush2.bf16.msra.mxu0 %v7393
    %7597 = vmatprep.subr.bf16.mxu0 %v7386
    %7598 = vmatpush2.bf16.msra.mxu0 %v7385
    %7599 = vmatprep.subr.bf16.mxu0 %v7378
    %7600 = vmatpush2.bf16.msra.mxu0 %v7377
    %7601 = vmatprep.mubr.bf16.mxu0 %v6800
    %7602 = vmatmul.mubr.bf16.gmra.mxu0 %v6799
    %v7603 = vpop.f32.mrf.mxu0
    %v7604 = vadd.f32 0.0, %v7603
    %v7605 = vpop.f32.mrf.mxu0
    %v7606 = vadd.f32 0.0, %v7605
    %v7607 = vpop.f32.mrf.mxu0
    %v7608 = vpop.f32.mrf.mxu0
    %7609 = vdwg.mxu0
    %7610 = vmatprep.subr.bf16.mxu0 %v7372
    %7611 = vmatpush1.bf16.msra.mxu0 %v7371
    %7612 = vmatprep.subr.bf16.mxu0 %v7364
    %7613 = vmatpush1.bf16.msra.mxu0 %v7363
    %7614 = vmatprep.subr.bf16.mxu0 %v7356
    %7615 = vmatpush1.bf16.msra.mxu0 %v7355
    %7616 = vmatprep.subr.bf16.mxu0 %v7348
    %7617 = vmatpush1.bf16.msra.mxu0 %v7347
    %7618 = vmatprep.subr.bf16.mxu0 %v7340
    %7619 = vmatpush1.bf16.msra.mxu0 %v7339
    %7620 = vmatprep.subr.bf16.mxu0 %v7332
    %7621 = vmatpush1.bf16.msra.mxu0 %v7331
    %7622 = vmatprep.subr.bf16.mxu0 %v7324
    %7623 = vmatpush1.bf16.msra.mxu0 %v7323
    %7624 = vmatprep.subr.bf16.mxu0 %v7316
    %7625 = vmatpush1.bf16.msra.mxu0 %v7315
    %7626 = vmatprep.subr.bf16.mxu0 %v7436
    %7627 = vmatpush2.bf16.msra.mxu0 %v7435
    %7628 = vmatprep.subr.bf16.mxu0 %v7428
    %7629 = vmatpush2.bf16.msra.mxu0 %v7427
    %7630 = vmatprep.subr.bf16.mxu0 %v7420
    %7631 = vmatpush2.bf16.msra.mxu0 %v7419
    %7632 = vmatprep.subr.bf16.mxu0 %v7412
    %7633 = vmatpush2.bf16.msra.mxu0 %v7411
    %7634 = vmatprep.subr.bf16.mxu0 %v7404
    %7635 = vmatpush2.bf16.msra.mxu0 %v7403
    %7636 = vmatprep.subr.bf16.mxu0 %v7396
    %7637 = vmatpush2.bf16.msra.mxu0 %v7395
    %7638 = vmatprep.subr.bf16.mxu0 %v7388
    %7639 = vmatpush2.bf16.msra.mxu0 %v7387
    %7640 = vmatprep.subr.bf16.mxu0 %v7380
    %7641 = vmatpush2.bf16.msra.mxu0 %v7379
    %7642 = vmatprep.mubr.bf16.mxu0 %v6800
    %7643 = vmatmul.mubr.bf16.gmra.mxu0 %v6799
    %v7644 = vpop.f32.mrf.mxu0
    %v7645 = vadd.f32 0.0, %v7644
    %v7646 = vpop.f32.mrf.mxu0
    %v7647 = vadd.f32 0.0, %v7646
    %v7648 = vpop.f32.mrf.mxu0
    %v7649 = vpop.f32.mrf.mxu0
    %7650 = vdwg.mxu0
    %7651 = vmatprep.subr.bf16.mxu0 %v7374
    %7652 = vmatpush1.bf16.msra.mxu0 %v7373
    %7653 = vmatprep.subr.bf16.mxu0 %v7366
    %7654 = vmatpush1.bf16.msra.mxu0 %v7365
    %7655 = vmatprep.subr.bf16.mxu0 %v7358
    %7656 = vmatpush1.bf16.msra.mxu0 %v7357
    %7657 = vmatprep.subr.bf16.mxu0 %v7350
    %7658 = vmatpush1.bf16.msra.mxu0 %v7349
    %7659 = vmatprep.subr.bf16.mxu0 %v7342
    %7660 = vmatpush1.bf16.msra.mxu0 %v7341
    %7661 = vmatprep.subr.bf16.mxu0 %v7334
    %7662 = vmatpush1.bf16.msra.mxu0 %v7333
    %7663 = vmatprep.subr.bf16.mxu0 %v7326
    %7664 = vmatpush1.bf16.msra.mxu0 %v7325
    %7665 = vmatprep.subr.bf16.mxu0 %v7318
    %7666 = vmatpush1.bf16.msra.mxu0 %v7317
    %7667 = vmatprep.subr.bf16.mxu0 %v7438
    %7668 = vmatpush2.bf16.msra.mxu0 %v7437
    %7669 = vmatprep.subr.bf16.mxu0 %v7430
    %7670 = vmatpush2.bf16.msra.mxu0 %v7429
    %7671 = vmatprep.subr.bf16.mxu0 %v7422
    %7672 = vmatpush2.bf16.msra.mxu0 %v7421
    %7673 = vmatprep.subr.bf16.mxu0 %v7414
    %7674 = vmatpush2.bf16.msra.mxu0 %v7413
    %7675 = vmatprep.subr.bf16.mxu0 %v7406
    %7676 = vmatpush2.bf16.msra.mxu0 %v7405
    %7677 = vmatprep.subr.bf16.mxu0 %v7398
    %7678 = vmatpush2.bf16.msra.mxu0 %v7397
    %7679 = vmatprep.subr.bf16.mxu0 %v7390
    %7680 = vmatpush2.bf16.msra.mxu0 %v7389
    %7681 = vmatprep.subr.bf16.mxu0 %v7382
    %7682 = vmatpush2.bf16.msra.mxu0 %v7381
    %7683 = vmatprep.mubr.bf16.mxu0 %v6800
    %7684 = vmatmul.mubr.bf16.gmra.mxu0 %v6799
    %v7685 = vpop.f32.mrf.mxu0
    %v7686 = vadd.f32 0.0, %v7685
    %v7687 = vpop.f32.mrf.mxu0
    %v7688 = vadd.f32 0.0, %v7687
    %v7689 = vpop.f32.mrf.mxu0
    %v7690 = vpop.f32.mrf.mxu0
    %7691 = vdwg.mxu0
    %7692 = vmatprep.subr.bf16.mxu0 %v7376
    %7693 = vmatpush1.bf16.msra.mxu0 %v7375
    %7694 = vmatprep.subr.bf16.mxu0 %v7368
    %7695 = vmatpush1.bf16.msra.mxu0 %v7367
    %7696 = vmatprep.subr.bf16.mxu0 %v7360
    %7697 = vmatpush1.bf16.msra.mxu0 %v7359
    %7698 = vmatprep.subr.bf16.mxu0 %v7352
    %7699 = vmatpush1.bf16.msra.mxu0 %v7351
    %7700 = vmatprep.subr.bf16.mxu0 %v7344
    %7701 = vmatpush1.bf16.msra.mxu0 %v7343
    %7702 = vmatprep.subr.bf16.mxu0 %v7336
    %7703 = vmatpush1.bf16.msra.mxu0 %v7335
    %7704 = vmatprep.subr.bf16.mxu0 %v7328
    %7705 = vmatpush1.bf16.msra.mxu0 %v7327
    %7706 = vmatprep.subr.bf16.mxu0 %v7320
    %7707 = vmatpush1.bf16.msra.mxu0 %v7319
    %7708 = vmatprep.subr.bf16.mxu0 %v7440
    %7709 = vmatpush2.bf16.msra.mxu0 %v7439
    %7710 = vmatprep.subr.bf16.mxu0 %v7432
    %7711 = vmatpush2.bf16.msra.mxu0 %v7431
    %7712 = vmatprep.subr.bf16.mxu0 %v7424
    %7713 = vmatpush2.bf16.msra.mxu0 %v7423
    %7714 = vmatprep.subr.bf16.mxu0 %v7416
    %7715 = vmatpush2.bf16.msra.mxu0 %v7415
    %7716 = vmatprep.subr.bf16.mxu0 %v7408
    %7717 = vmatpush2.bf16.msra.mxu0 %v7407
    %7718 = vmatprep.subr.bf16.mxu0 %v7400
    %7719 = vmatpush2.bf16.msra.mxu0 %v7399
    %7720 = vmatprep.subr.bf16.mxu0 %v7392
    %7721 = vmatpush2.bf16.msra.mxu0 %v7391
    %7722 = vmatprep.subr.bf16.mxu0 %v7384
    %7723 = vmatpush2.bf16.msra.mxu0 %v7383
    %7724 = vmatprep.mubr.bf16.mxu0 %v6800
    %7725 = vmatmul.mubr.bf16.gmra.mxu0 %v6799
    %v7726 = vpop.f32.mrf.mxu0
    %v7727 = vadd.f32 0.0, %v7726
    %v7728 = vpop.f32.mrf.mxu0
    %v7729 = vadd.f32 0.0, %v7728
    %v7730 = vpop.f32.mrf.mxu0
    %v7731 = vpop.f32.mrf.mxu0
    %7732 = vdwg.mxu0
    %v7733 = vld [vmem:[#allocation2 + $0x180] sm:$0xff]
    %v7734 = vld [vmem:[#allocation2 + $0x188] sm:$0xff]
    %v7735 = vld [vmem:[#allocation2 + $0x190] sm:$0xff]
    %v7736 = vld [vmem:[#allocation2 + $0x198] sm:$0xff]
    %v7737 = vadd.f32 %v7733, %v7604
    %v7738 = vadd.f32 %v7734, %v7606
    %v7739 = vadd.f32 %v7735, %v7645
    %v7740 = vadd.f32 %v7736, %v7647
    %v7741 = vld [vmem:[#allocation2 + $0x60] sm:$0xff]
    %v7742 = vld [vmem:[#allocation2 + $0x68] sm:$0xff]
    %v7743 = vld [vmem:[#allocation2 + $0x70] sm:$0xff]
    %v7744 = vld [vmem:[#allocation2 + $0x78] sm:$0xff]
    %v7745 = vadd.f32 %v7741, %v7686
    %v7746 = vadd.f32 %v7742, %v7688
    %v7747 = vadd.f32 %v7743, %v7727
    %v7748 = vadd.f32 %v7744, %v7729
    %v7749 = vxor.u32 %v7737, 2147483648
    %v7750 = vmul.f32 %v7749, 1.442695
    %v7751 = vpow.pop %v7750
    %v7752 = vadd.f32 %v7751, 1.0
    %v7753 = vrcp.pop %v7752
    %v7754 = vmul.f32 1.0, %v7753
    %v7755 = vxor.u32 %v7738, 2147483648
    %v7756 = vmul.f32 %v7755, 1.442695
    %v7757 = vpow.pop %v7756
    %v7758 = vadd.f32 %v7757, 1.0
    %v7759 = vrcp.pop %v7758
    %v7760 = vmul.f32 1.0, %v7759
    %v7761 = vmul.f32 %v7754, %v7740
    %v7762 = vadd.f32 %v7739, %v7761
    %v7763 = vtanh.pop %v7762
    %v7764 = vsub.f32 1.0, %v7760
    %v7765 = vmul.f32 %v7764, %v7763
    %v7766 = vmul.f32 %v7760, %v6775
    %v7767 = vadd.f32 %v7765, %v7766
    %v7768 = vxor.u32 %v7745, 2147483648
    %v7769 = vmul.f32 %v7768, 1.442695
    %v7770 = vpow.pop %v7769
    %v7771 = vadd.f32 %v7770, 1.0
    %v7772 = vrcp.pop %v7771
    %v7773 = vmul.f32 1.0, %v7772
    %v7774 = vxor.u32 %v7746, 2147483648
    %v7775 = vmul.f32 %v7774, 1.442695
    %v7776 = vpow.pop %v7775
    %v7777 = vadd.f32 %v7776, 1.0
    %v7778 = vrcp.pop %v7777
    %v7779 = vmul.f32 1.0, %v7778
    %v7780 = vmul.f32 %v7773, %v7748
    %v7781 = vadd.f32 %v7747, %v7780
    %v7782 = vtanh.pop %v7781
    %v7783 = vsub.f32 1.0, %v7779
    %v7784 = vmul.f32 %v7783, %v7782
    %v7785 = vmul.f32 %v7779, %v6794
    %v7786 = vadd.f32 %v7784, %v7785
    %s7787 = scalar_lea.vmem %s6, 48
    %7788 = vst [vmem:[%s7787] sm:$0xff] %v7767
    %s7789 = scalar_lea.vmem %s7, 8
    %7790 = vst [vmem:[%s7789] sm:$0xff] %v7786
    %v7791 = vpack.c.bf16 %v7767, %v7767
    %v7792 = vpack.c.bf16 %v7786, %v7786
    %v7793 = vld [vmem:[#allocation5] sm:$0xff]
    %v7794 = vld [vmem:[#allocation5 + $0x8] sm:$0xff]
    %v7795 = vld [vmem:[#allocation5 + $0x10] sm:$0xff]
    %v7796 = vld [vmem:[#allocation5 + $0x18] sm:$0xff]
    %v7797 = vld [vmem:[#allocation5 + $0x20] sm:$0xff]
    %v7798 = vld [vmem:[#allocation5 + $0x28] sm:$0xff]
    %v7799 = vld [vmem:[#allocation5 + $0x30] sm:$0xff]
    %v7800 = vld [vmem:[#allocation5 + $0x38] sm:$0xff]
    %v7801 = vld [vmem:[#allocation5 + $0x40] sm:$0xff]
    %v7802 = vld [vmem:[#allocation5 + $0x48] sm:$0xff]
    %v7803 = vld [vmem:[#allocation5 + $0x50] sm:$0xff]
    %v7804 = vld [vmem:[#allocation5 + $0x58] sm:$0xff]
    %v7805 = vld [vmem:[#allocation5 + $0x60] sm:$0xff]
    %v7806 = vld [vmem:[#allocation5 + $0x68] sm:$0xff]
    %v7807 = vld [vmem:[#allocation5 + $0x70] sm:$0xff]
    %v7808 = vld [vmem:[#allocation5 + $0x78] sm:$0xff]
    %v7809 = vld [vmem:[#allocation5 + $0x80] sm:$0xff]
    %v7810 = vld [vmem:[#allocation5 + $0x88] sm:$0xff]
    %v7811 = vld [vmem:[#allocation5 + $0x90] sm:$0xff]
    %v7812 = vld [vmem:[#allocation5 + $0x98] sm:$0xff]
    %v7813 = vld [vmem:[#allocation5 + $0xa0] sm:$0xff]
    %v7814 = vld [vmem:[#allocation5 + $0xa8] sm:$0xff]
    %v7815 = vld [vmem:[#allocation5 + $0xb0] sm:$0xff]
    %v7816 = vld [vmem:[#allocation5 + $0xb8] sm:$0xff]
    %v7817 = vld [vmem:[#allocation5 + $0xc0] sm:$0xff]
    %v7818 = vld [vmem:[#allocation5 + $0xc8] sm:$0xff]
    %v7819 = vld [vmem:[#allocation5 + $0xd0] sm:$0xff]
    %v7820 = vld [vmem:[#allocation5 + $0xd8] sm:$0xff]
    %v7821 = vld [vmem:[#allocation5 + $0xe0] sm:$0xff]
    %v7822 = vld [vmem:[#allocation5 + $0xe8] sm:$0xff]
    %v7823 = vld [vmem:[#allocation5 + $0xf0] sm:$0xff]
    %v7824 = vld [vmem:[#allocation5 + $0xf8] sm:$0xff]
    %v7825 = vld [vmem:[#allocation5 + $0x100] sm:$0xff]
    %v7826 = vld [vmem:[#allocation5 + $0x108] sm:$0xff]
    %v7827 = vld [vmem:[#allocation5 + $0x110] sm:$0xff]
    %v7828 = vld [vmem:[#allocation5 + $0x118] sm:$0xff]
    %v7829 = vld [vmem:[#allocation5 + $0x120] sm:$0xff]
    %v7830 = vld [vmem:[#allocation5 + $0x128] sm:$0xff]
    %v7831 = vld [vmem:[#allocation5 + $0x130] sm:$0xff]
    %v7832 = vld [vmem:[#allocation5 + $0x138] sm:$0xff]
    %v7833 = vld [vmem:[#allocation5 + $0x140] sm:$0xff]
    %v7834 = vld [vmem:[#allocation5 + $0x148] sm:$0xff]
    %v7835 = vld [vmem:[#allocation5 + $0x150] sm:$0xff]
    %v7836 = vld [vmem:[#allocation5 + $0x158] sm:$0xff]
    %v7837 = vld [vmem:[#allocation5 + $0x160] sm:$0xff]
    %v7838 = vld [vmem:[#allocation5 + $0x168] sm:$0xff]
    %v7839 = vld [vmem:[#allocation5 + $0x170] sm:$0xff]
    %v7840 = vld [vmem:[#allocation5 + $0x178] sm:$0xff]
    %v7841 = vld [vmem:[#allocation5 + $0x180] sm:$0xff]
    %v7842 = vld [vmem:[#allocation5 + $0x188] sm:$0xff]
    %v7843 = vld [vmem:[#allocation5 + $0x190] sm:$0xff]
    %v7844 = vld [vmem:[#allocation5 + $0x198] sm:$0xff]
    %v7845 = vld [vmem:[#allocation5 + $0x1a0] sm:$0xff]
    %v7846 = vld [vmem:[#allocation5 + $0x1a8] sm:$0xff]
    %v7847 = vld [vmem:[#allocation5 + $0x1b0] sm:$0xff]
    %v7848 = vld [vmem:[#allocation5 + $0x1b8] sm:$0xff]
    %v7849 = vld [vmem:[#allocation5 + $0x1c0] sm:$0xff]
    %v7850 = vld [vmem:[#allocation5 + $0x1c8] sm:$0xff]
    %v7851 = vld [vmem:[#allocation5 + $0x1d0] sm:$0xff]
    %v7852 = vld [vmem:[#allocation5 + $0x1d8] sm:$0xff]
    %v7853 = vld [vmem:[#allocation5 + $0x1e0] sm:$0xff]
    %v7854 = vld [vmem:[#allocation5 + $0x1e8] sm:$0xff]
    %v7855 = vld [vmem:[#allocation5 + $0x1f0] sm:$0xff]
    %v7856 = vld [vmem:[#allocation5 + $0x1f8] sm:$0xff]
    %v7857 = vld [vmem:[#allocation5 + $0x200] sm:$0xff]
    %v7858 = vld [vmem:[#allocation5 + $0x208] sm:$0xff]
    %v7859 = vld [vmem:[#allocation5 + $0x210] sm:$0xff]
    %v7860 = vld [vmem:[#allocation5 + $0x218] sm:$0xff]
    %v7861 = vld [vmem:[#allocation5 + $0x220] sm:$0xff]
    %v7862 = vld [vmem:[#allocation5 + $0x228] sm:$0xff]
    %v7863 = vld [vmem:[#allocation5 + $0x230] sm:$0xff]
    %v7864 = vld [vmem:[#allocation5 + $0x238] sm:$0xff]
    %v7865 = vld [vmem:[#allocation5 + $0x240] sm:$0xff]
    %v7866 = vld [vmem:[#allocation5 + $0x248] sm:$0xff]
    %v7867 = vld [vmem:[#allocation5 + $0x250] sm:$0xff]
    %v7868 = vld [vmem:[#allocation5 + $0x258] sm:$0xff]
    %v7869 = vld [vmem:[#allocation5 + $0x260] sm:$0xff]
    %v7870 = vld [vmem:[#allocation5 + $0x268] sm:$0xff]
    %v7871 = vld [vmem:[#allocation5 + $0x270] sm:$0xff]
    %v7872 = vld [vmem:[#allocation5 + $0x278] sm:$0xff]
    %v7873 = vld [vmem:[#allocation5 + $0x280] sm:$0xff]
    %v7874 = vld [vmem:[#allocation5 + $0x288] sm:$0xff]
    %v7875 = vld [vmem:[#allocation5 + $0x290] sm:$0xff]
    %v7876 = vld [vmem:[#allocation5 + $0x298] sm:$0xff]
    %v7877 = vld [vmem:[#allocation5 + $0x2a0] sm:$0xff]
    %v7878 = vld [vmem:[#allocation5 + $0x2a8] sm:$0xff]
    %v7879 = vld [vmem:[#allocation5 + $0x2b0] sm:$0xff]
    %v7880 = vld [vmem:[#allocation5 + $0x2b8] sm:$0xff]
    %v7881 = vld [vmem:[#allocation5 + $0x2c0] sm:$0xff]
    %v7882 = vld [vmem:[#allocation5 + $0x2c8] sm:$0xff]
    %v7883 = vld [vmem:[#allocation5 + $0x2d0] sm:$0xff]
    %v7884 = vld [vmem:[#allocation5 + $0x2d8] sm:$0xff]
    %v7885 = vld [vmem:[#allocation5 + $0x2e0] sm:$0xff]
    %v7886 = vld [vmem:[#allocation5 + $0x2e8] sm:$0xff]
    %v7887 = vld [vmem:[#allocation5 + $0x2f0] sm:$0xff]
    %v7888 = vld [vmem:[#allocation5 + $0x2f8] sm:$0xff]
    %v7889 = vld [vmem:[#allocation5 + $0x300] sm:$0xff]
    %v7890 = vld [vmem:[#allocation5 + $0x308] sm:$0xff]
    %v7891 = vld [vmem:[#allocation5 + $0x310] sm:$0xff]
    %v7892 = vld [vmem:[#allocation5 + $0x318] sm:$0xff]
    %v7893 = vld [vmem:[#allocation5 + $0x320] sm:$0xff]
    %v7894 = vld [vmem:[#allocation5 + $0x328] sm:$0xff]
    %v7895 = vld [vmem:[#allocation5 + $0x330] sm:$0xff]
    %v7896 = vld [vmem:[#allocation5 + $0x338] sm:$0xff]
    %v7897 = vld [vmem:[#allocation5 + $0x340] sm:$0xff]
    %v7898 = vld [vmem:[#allocation5 + $0x348] sm:$0xff]
    %v7899 = vld [vmem:[#allocation5 + $0x350] sm:$0xff]
    %v7900 = vld [vmem:[#allocation5 + $0x358] sm:$0xff]
    %v7901 = vld [vmem:[#allocation5 + $0x360] sm:$0xff]
    %v7902 = vld [vmem:[#allocation5 + $0x368] sm:$0xff]
    %v7903 = vld [vmem:[#allocation5 + $0x370] sm:$0xff]
    %v7904 = vld [vmem:[#allocation5 + $0x378] sm:$0xff]
    %v7905 = vld [vmem:[#allocation5 + $0x380] sm:$0xff]
    %v7906 = vld [vmem:[#allocation5 + $0x388] sm:$0xff]
    %v7907 = vld [vmem:[#allocation5 + $0x390] sm:$0xff]
    %v7908 = vld [vmem:[#allocation5 + $0x398] sm:$0xff]
    %v7909 = vld [vmem:[#allocation5 + $0x3a0] sm:$0xff]
    %v7910 = vld [vmem:[#allocation5 + $0x3a8] sm:$0xff]
    %v7911 = vld [vmem:[#allocation5 + $0x3b0] sm:$0xff]
    %v7912 = vld [vmem:[#allocation5 + $0x3b8] sm:$0xff]
    %v7913 = vld [vmem:[#allocation5 + $0x3c0] sm:$0xff]
    %v7914 = vld [vmem:[#allocation5 + $0x3c8] sm:$0xff]
    %v7915 = vld [vmem:[#allocation5 + $0x3d0] sm:$0xff]
    %v7916 = vld [vmem:[#allocation5 + $0x3d8] sm:$0xff]
    %v7917 = vld [vmem:[#allocation5 + $0x3e0] sm:$0xff]
    %v7918 = vld [vmem:[#allocation5 + $0x3e8] sm:$0xff]
    %v7919 = vld [vmem:[#allocation5 + $0x3f0] sm:$0xff]
    %v7920 = vld [vmem:[#allocation5 + $0x3f8] sm:$0xff]
    %v8049 = vunpack.c.l.b16 %v7793
    %v8050 = vunpack.c.h.b16 %v7793
    %v8051 = vunpack.c.l.b16 %v7794
    %v8052 = vunpack.c.h.b16 %v7794
    %v8053 = vunpack.c.l.b16 %v7795
    %v8054 = vunpack.c.h.b16 %v7795
    %v8055 = vunpack.c.l.b16 %v7796
    %v8056 = vunpack.c.h.b16 %v7796
    %v8057 = vunpack.c.l.b16 %v7797
    %v8058 = vunpack.c.h.b16 %v7797
    %v8059 = vunpack.c.l.b16 %v7798
    %v8060 = vunpack.c.h.b16 %v7798
    %v8061 = vunpack.c.l.b16 %v7799
    %v8062 = vunpack.c.h.b16 %v7799
    %v8063 = vunpack.c.l.b16 %v7800
    %v8064 = vunpack.c.h.b16 %v7800
    %v8065 = vunpack.c.l.b16 %v7801
    %v8066 = vunpack.c.h.b16 %v7801
    %v8067 = vunpack.c.l.b16 %v7802
    %v8068 = vunpack.c.h.b16 %v7802
    %v8069 = vunpack.c.l.b16 %v7803
    %v8070 = vunpack.c.h.b16 %v7803
    %v8071 = vunpack.c.l.b16 %v7804
    %v8072 = vunpack.c.h.b16 %v7804
    %v8073 = vunpack.c.l.b16 %v7805
    %v8074 = vunpack.c.h.b16 %v7805
    %v8075 = vunpack.c.l.b16 %v7806
    %v8076 = vunpack.c.h.b16 %v7806
    %v8077 = vunpack.c.l.b16 %v7807
    %v8078 = vunpack.c.h.b16 %v7807
    %v8079 = vunpack.c.l.b16 %v7808
    %v8080 = vunpack.c.h.b16 %v7808
    %v8081 = vunpack.c.l.b16 %v7809
    %v8082 = vunpack.c.h.b16 %v7809
    %v8083 = vunpack.c.l.b16 %v7810
    %v8084 = vunpack.c.h.b16 %v7810
    %v8085 = vunpack.c.l.b16 %v7811
    %v8086 = vunpack.c.h.b16 %v7811
    %v8087 = vunpack.c.l.b16 %v7812
    %v8088 = vunpack.c.h.b16 %v7812
    %v8089 = vunpack.c.l.b16 %v7813
    %v8090 = vunpack.c.h.b16 %v7813
    %v8091 = vunpack.c.l.b16 %v7814
    %v8092 = vunpack.c.h.b16 %v7814
    %v8093 = vunpack.c.l.b16 %v7815
    %v8094 = vunpack.c.h.b16 %v7815
    %v8095 = vunpack.c.l.b16 %v7816
    %v8096 = vunpack.c.h.b16 %v7816
    %v8097 = vunpack.c.l.b16 %v7817
    %v8098 = vunpack.c.h.b16 %v7817
    %v8099 = vunpack.c.l.b16 %v7818
    %v8100 = vunpack.c.h.b16 %v7818
    %v8101 = vunpack.c.l.b16 %v7819
    %v8102 = vunpack.c.h.b16 %v7819
    %v8103 = vunpack.c.l.b16 %v7820
    %v8104 = vunpack.c.h.b16 %v7820
    %v8105 = vunpack.c.l.b16 %v7821
    %v8106 = vunpack.c.h.b16 %v7821
    %v8107 = vunpack.c.l.b16 %v7822
    %v8108 = vunpack.c.h.b16 %v7822
    %v8109 = vunpack.c.l.b16 %v7823
    %v8110 = vunpack.c.h.b16 %v7823
    %v8111 = vunpack.c.l.b16 %v7824
    %v8112 = vunpack.c.h.b16 %v7824
    %v8113 = vunpack.c.l.b16 %v7825
    %v8114 = vunpack.c.h.b16 %v7825
    %v8115 = vunpack.c.l.b16 %v7826
    %v8116 = vunpack.c.h.b16 %v7826
    %v8117 = vunpack.c.l.b16 %v7827
    %v8118 = vunpack.c.h.b16 %v7827
    %v8119 = vunpack.c.l.b16 %v7828
    %v8120 = vunpack.c.h.b16 %v7828
    %v8121 = vunpack.c.l.b16 %v7829
    %v8122 = vunpack.c.h.b16 %v7829
    %v8123 = vunpack.c.l.b16 %v7830
    %v8124 = vunpack.c.h.b16 %v7830
    %v8125 = vunpack.c.l.b16 %v7831
    %v8126 = vunpack.c.h.b16 %v7831
    %v8127 = vunpack.c.l.b16 %v7832
    %v8128 = vunpack.c.h.b16 %v7832
    %v8129 = vunpack.c.l.b16 %v7833
    %v8130 = vunpack.c.h.b16 %v7833
    %v8131 = vunpack.c.l.b16 %v7834
    %v8132 = vunpack.c.h.b16 %v7834
    %v8133 = vunpack.c.l.b16 %v7835
    %v8134 = vunpack.c.h.b16 %v7835
    %v8135 = vunpack.c.l.b16 %v7836
    %v8136 = vunpack.c.h.b16 %v7836
    %v8137 = vunpack.c.l.b16 %v7837
    %v8138 = vunpack.c.h.b16 %v7837
    %v8139 = vunpack.c.l.b16 %v7838
    %v8140 = vunpack.c.h.b16 %v7838
    %v8141 = vunpack.c.l.b16 %v7839
    %v8142 = vunpack.c.h.b16 %v7839
    %v8143 = vunpack.c.l.b16 %v7840
    %v8144 = vunpack.c.h.b16 %v7840
    %v8145 = vunpack.c.l.b16 %v7841
    %v8146 = vunpack.c.h.b16 %v7841
    %v8147 = vunpack.c.l.b16 %v7842
    %v8148 = vunpack.c.h.b16 %v7842
    %v8149 = vunpack.c.l.b16 %v7843
    %v8150 = vunpack.c.h.b16 %v7843
    %v8151 = vunpack.c.l.b16 %v7844
    %v8152 = vunpack.c.h.b16 %v7844
    %v8153 = vunpack.c.l.b16 %v7845
    %v8154 = vunpack.c.h.b16 %v7845
    %v8155 = vunpack.c.l.b16 %v7846
    %v8156 = vunpack.c.h.b16 %v7846
    %v8157 = vunpack.c.l.b16 %v7847
    %v8158 = vunpack.c.h.b16 %v7847
    %v8159 = vunpack.c.l.b16 %v7848
    %v8160 = vunpack.c.h.b16 %v7848
    %v8161 = vunpack.c.l.b16 %v7849
    %v8162 = vunpack.c.h.b16 %v7849
    %v8163 = vunpack.c.l.b16 %v7850
    %v8164 = vunpack.c.h.b16 %v7850
    %v8165 = vunpack.c.l.b16 %v7851
    %v8166 = vunpack.c.h.b16 %v7851
    %v8167 = vunpack.c.l.b16 %v7852
    %v8168 = vunpack.c.h.b16 %v7852
    %v8169 = vunpack.c.l.b16 %v7853
    %v8170 = vunpack.c.h.b16 %v7853
    %v8171 = vunpack.c.l.b16 %v7854
    %v8172 = vunpack.c.h.b16 %v7854
    %v8173 = vunpack.c.l.b16 %v7855
    %v8174 = vunpack.c.h.b16 %v7855
    %v8175 = vunpack.c.l.b16 %v7856
    %v8176 = vunpack.c.h.b16 %v7856
    %v8177 = vunpack.c.l.b16 %v7857
    %v8178 = vunpack.c.h.b16 %v7857
    %v8179 = vunpack.c.l.b16 %v7858
    %v8180 = vunpack.c.h.b16 %v7858
    %v8181 = vunpack.c.l.b16 %v7859
    %v8182 = vunpack.c.h.b16 %v7859
    %v8183 = vunpack.c.l.b16 %v7860
    %v8184 = vunpack.c.h.b16 %v7860
    %v8185 = vunpack.c.l.b16 %v7861
    %v8186 = vunpack.c.h.b16 %v7861
    %v8187 = vunpack.c.l.b16 %v7862
    %v8188 = vunpack.c.h.b16 %v7862
    %v8189 = vunpack.c.l.b16 %v7863
    %v8190 = vunpack.c.h.b16 %v7863
    %v8191 = vunpack.c.l.b16 %v7864
    %v8192 = vunpack.c.h.b16 %v7864
    %v8193 = vunpack.c.l.b16 %v7865
    %v8194 = vunpack.c.h.b16 %v7865
    %v8195 = vunpack.c.l.b16 %v7866
    %v8196 = vunpack.c.h.b16 %v7866
    %v8197 = vunpack.c.l.b16 %v7867
    %v8198 = vunpack.c.h.b16 %v7867
    %v8199 = vunpack.c.l.b16 %v7868
    %v8200 = vunpack.c.h.b16 %v7868
    %v8201 = vunpack.c.l.b16 %v7869
    %v8202 = vunpack.c.h.b16 %v7869
    %v8203 = vunpack.c.l.b16 %v7870
    %v8204 = vunpack.c.h.b16 %v7870
    %v8205 = vunpack.c.l.b16 %v7871
    %v8206 = vunpack.c.h.b16 %v7871
    %v8207 = vunpack.c.l.b16 %v7872
    %v8208 = vunpack.c.h.b16 %v7872
    %v8209 = vunpack.c.l.b16 %v7873
    %v8210 = vunpack.c.h.b16 %v7873
    %v8211 = vunpack.c.l.b16 %v7874
    %v8212 = vunpack.c.h.b16 %v7874
    %v8213 = vunpack.c.l.b16 %v7875
    %v8214 = vunpack.c.h.b16 %v7875
    %v8215 = vunpack.c.l.b16 %v7876
    %v8216 = vunpack.c.h.b16 %v7876
    %v8217 = vunpack.c.l.b16 %v7877
    %v8218 = vunpack.c.h.b16 %v7877
    %v8219 = vunpack.c.l.b16 %v7878
    %v8220 = vunpack.c.h.b16 %v7878
    %v8221 = vunpack.c.l.b16 %v7879
    %v8222 = vunpack.c.h.b16 %v7879
    %v8223 = vunpack.c.l.b16 %v7880
    %v8224 = vunpack.c.h.b16 %v7880
    %v8225 = vunpack.c.l.b16 %v7881
    %v8226 = vunpack.c.h.b16 %v7881
    %v8227 = vunpack.c.l.b16 %v7882
    %v8228 = vunpack.c.h.b16 %v7882
    %v8229 = vunpack.c.l.b16 %v7883
    %v8230 = vunpack.c.h.b16 %v7883
    %v8231 = vunpack.c.l.b16 %v7884
    %v8232 = vunpack.c.h.b16 %v7884
    %v8233 = vunpack.c.l.b16 %v7885
    %v8234 = vunpack.c.h.b16 %v7885
    %v8235 = vunpack.c.l.b16 %v7886
    %v8236 = vunpack.c.h.b16 %v7886
    %v8237 = vunpack.c.l.b16 %v7887
    %v8238 = vunpack.c.h.b16 %v7887
    %v8239 = vunpack.c.l.b16 %v7888
    %v8240 = vunpack.c.h.b16 %v7888
    %v8241 = vunpack.c.l.b16 %v7889
    %v8242 = vunpack.c.h.b16 %v7889
    %v8243 = vunpack.c.l.b16 %v7890
    %v8244 = vunpack.c.h.b16 %v7890
    %v8245 = vunpack.c.l.b16 %v7891
    %v8246 = vunpack.c.h.b16 %v7891
    %v8247 = vunpack.c.l.b16 %v7892
    %v8248 = vunpack.c.h.b16 %v7892
    %v8249 = vunpack.c.l.b16 %v7893
    %v8250 = vunpack.c.h.b16 %v7893
    %v8251 = vunpack.c.l.b16 %v7894
    %v8252 = vunpack.c.h.b16 %v7894
    %v8253 = vunpack.c.l.b16 %v7895
    %v8254 = vunpack.c.h.b16 %v7895
    %v8255 = vunpack.c.l.b16 %v7896
    %v8256 = vunpack.c.h.b16 %v7896
    %v8257 = vunpack.c.l.b16 %v7897
    %v8258 = vunpack.c.h.b16 %v7897
    %v8259 = vunpack.c.l.b16 %v7898
    %v8260 = vunpack.c.h.b16 %v7898
    %v8261 = vunpack.c.l.b16 %v7899
    %v8262 = vunpack.c.h.b16 %v7899
    %v8263 = vunpack.c.l.b16 %v7900
    %v8264 = vunpack.c.h.b16 %v7900
    %v8265 = vunpack.c.l.b16 %v7901
    %v8266 = vunpack.c.h.b16 %v7901
    %v8267 = vunpack.c.l.b16 %v7902
    %v8268 = vunpack.c.h.b16 %v7902
    %v8269 = vunpack.c.l.b16 %v7903
    %v8270 = vunpack.c.h.b16 %v7903
    %v8271 = vunpack.c.l.b16 %v7904
    %v8272 = vunpack.c.h.b16 %v7904
    %v8273 = vunpack.c.l.b16 %v7905
    %v8274 = vunpack.c.h.b16 %v7905
    %v8275 = vunpack.c.l.b16 %v7906
    %v8276 = vunpack.c.h.b16 %v7906
    %v8277 = vunpack.c.l.b16 %v7907
    %v8278 = vunpack.c.h.b16 %v7907
    %v8279 = vunpack.c.l.b16 %v7908
    %v8280 = vunpack.c.h.b16 %v7908
    %v8281 = vunpack.c.l.b16 %v7909
    %v8282 = vunpack.c.h.b16 %v7909
    %v8283 = vunpack.c.l.b16 %v7910
    %v8284 = vunpack.c.h.b16 %v7910
    %v8285 = vunpack.c.l.b16 %v7911
    %v8286 = vunpack.c.h.b16 %v7911
    %v8287 = vunpack.c.l.b16 %v7912
    %v8288 = vunpack.c.h.b16 %v7912
    %v8289 = vunpack.c.l.b16 %v7913
    %v8290 = vunpack.c.h.b16 %v7913
    %v8291 = vunpack.c.l.b16 %v7914
    %v8292 = vunpack.c.h.b16 %v7914
    %v8293 = vunpack.c.l.b16 %v7915
    %v8294 = vunpack.c.h.b16 %v7915
    %v8295 = vunpack.c.l.b16 %v7916
    %v8296 = vunpack.c.h.b16 %v7916
    %v8297 = vunpack.c.l.b16 %v7917
    %v8298 = vunpack.c.h.b16 %v7917
    %v8299 = vunpack.c.l.b16 %v7918
    %v8300 = vunpack.c.h.b16 %v7918
    %v8301 = vunpack.c.l.b16 %v7919
    %v8302 = vunpack.c.h.b16 %v7919
    %v8303 = vunpack.c.l.b16 %v7920
    %v8304 = vunpack.c.h.b16 %v7920
    %v8305 = vpack.c.b16 %v8057, %v8049
    %v8306 = vpack.c.b16 %v8058, %v8050
    %v8307 = vpack.c.b16 %v8059, %v8051
    %v8308 = vpack.c.b16 %v8060, %v8052
    %v8309 = vpack.c.b16 %v8061, %v8053
    %v8310 = vpack.c.b16 %v8062, %v8054
    %v8311 = vpack.c.b16 %v8063, %v8055
    %v8312 = vpack.c.b16 %v8064, %v8056
    %v8313 = vpack.c.b16 %v8073, %v8065
    %v8314 = vpack.c.b16 %v8074, %v8066
    %v8315 = vpack.c.b16 %v8075, %v8067
    %v8316 = vpack.c.b16 %v8076, %v8068
    %v8317 = vpack.c.b16 %v8077, %v8069
    %v8318 = vpack.c.b16 %v8078, %v8070
    %v8319 = vpack.c.b16 %v8079, %v8071
    %v8320 = vpack.c.b16 %v8080, %v8072
    %v8321 = vpack.c.b16 %v8089, %v8081
    %v8322 = vpack.c.b16 %v8090, %v8082
    %v8323 = vpack.c.b16 %v8091, %v8083
    %v8324 = vpack.c.b16 %v8092, %v8084
    %v8325 = vpack.c.b16 %v8093, %v8085
    %v8326 = vpack.c.b16 %v8094, %v8086
    %v8327 = vpack.c.b16 %v8095, %v8087
    %v8328 = vpack.c.b16 %v8096, %v8088
    %v8329 = vpack.c.b16 %v8105, %v8097
    %v8330 = vpack.c.b16 %v8106, %v8098
    %v8331 = vpack.c.b16 %v8107, %v8099
    %v8332 = vpack.c.b16 %v8108, %v8100
    %v8333 = vpack.c.b16 %v8109, %v8101
    %v8334 = vpack.c.b16 %v8110, %v8102
    %v8335 = vpack.c.b16 %v8111, %v8103
    %v8336 = vpack.c.b16 %v8112, %v8104
    %v8337 = vpack.c.b16 %v8121, %v8113
    %v8338 = vpack.c.b16 %v8122, %v8114
    %v8339 = vpack.c.b16 %v8123, %v8115
    %v8340 = vpack.c.b16 %v8124, %v8116
    %v8341 = vpack.c.b16 %v8125, %v8117
    %v8342 = vpack.c.b16 %v8126, %v8118
    %v8343 = vpack.c.b16 %v8127, %v8119
    %v8344 = vpack.c.b16 %v8128, %v8120
    %v8345 = vpack.c.b16 %v8137, %v8129
    %v8346 = vpack.c.b16 %v8138, %v8130
    %v8347 = vpack.c.b16 %v8139, %v8131
    %v8348 = vpack.c.b16 %v8140, %v8132
    %v8349 = vpack.c.b16 %v8141, %v8133
    %v8350 = vpack.c.b16 %v8142, %v8134
    %v8351 = vpack.c.b16 %v8143, %v8135
    %v8352 = vpack.c.b16 %v8144, %v8136
    %v8353 = vpack.c.b16 %v8153, %v8145
    %v8354 = vpack.c.b16 %v8154, %v8146
    %v8355 = vpack.c.b16 %v8155, %v8147
    %v8356 = vpack.c.b16 %v8156, %v8148
    %v8357 = vpack.c.b16 %v8157, %v8149
    %v8358 = vpack.c.b16 %v8158, %v8150
    %v8359 = vpack.c.b16 %v8159, %v8151
    %v8360 = vpack.c.b16 %v8160, %v8152
    %v8361 = vpack.c.b16 %v8169, %v8161
    %v8362 = vpack.c.b16 %v8170, %v8162
    %v8363 = vpack.c.b16 %v8171, %v8163
    %v8364 = vpack.c.b16 %v8172, %v8164
    %v8365 = vpack.c.b16 %v8173, %v8165
    %v8366 = vpack.c.b16 %v8174, %v8166
    %v8367 = vpack.c.b16 %v8175, %v8167
    %v8368 = vpack.c.b16 %v8176, %v8168
    %v8369 = vpack.c.b16 %v8185, %v8177
    %v8370 = vpack.c.b16 %v8186, %v8178
    %v8371 = vpack.c.b16 %v8187, %v8179
    %v8372 = vpack.c.b16 %v8188, %v8180
    %v8373 = vpack.c.b16 %v8189, %v8181
    %v8374 = vpack.c.b16 %v8190, %v8182
    %v8375 = vpack.c.b16 %v8191, %v8183
    %v8376 = vpack.c.b16 %v8192, %v8184
    %v8377 = vpack.c.b16 %v8201, %v8193
    %v8378 = vpack.c.b16 %v8202, %v8194
    %v8379 = vpack.c.b16 %v8203, %v8195
    %v8380 = vpack.c.b16 %v8204, %v8196
    %v8381 = vpack.c.b16 %v8205, %v8197
    %v8382 = vpack.c.b16 %v8206, %v8198
    %v8383 = vpack.c.b16 %v8207, %v8199
    %v8384 = vpack.c.b16 %v8208, %v8200
    %v8385 = vpack.c.b16 %v8217, %v8209
    %v8386 = vpack.c.b16 %v8218, %v8210
    %v8387 = vpack.c.b16 %v8219, %v8211
    %v8388 = vpack.c.b16 %v8220, %v8212
    %v8389 = vpack.c.b16 %v8221, %v8213
    %v8390 = vpack.c.b16 %v8222, %v8214
    %v8391 = vpack.c.b16 %v8223, %v8215
    %v8392 = vpack.c.b16 %v8224, %v8216
    %v8393 = vpack.c.b16 %v8233, %v8225
    %v8394 = vpack.c.b16 %v8234, %v8226
    %v8395 = vpack.c.b16 %v8235, %v8227
    %v8396 = vpack.c.b16 %v8236, %v8228
    %v8397 = vpack.c.b16 %v8237, %v8229
    %v8398 = vpack.c.b16 %v8238, %v8230
    %v8399 = vpack.c.b16 %v8239, %v8231
    %v8400 = vpack.c.b16 %v8240, %v8232
    %v8401 = vpack.c.b16 %v8249, %v8241
    %v8402 = vpack.c.b16 %v8250, %v8242
    %v8403 = vpack.c.b16 %v8251, %v8243
    %v8404 = vpack.c.b16 %v8252, %v8244
    %v8405 = vpack.c.b16 %v8253, %v8245
    %v8406 = vpack.c.b16 %v8254, %v8246
    %v8407 = vpack.c.b16 %v8255, %v8247
    %v8408 = vpack.c.b16 %v8256, %v8248
    %v8409 = vpack.c.b16 %v8265, %v8257
    %v8410 = vpack.c.b16 %v8266, %v8258
    %v8411 = vpack.c.b16 %v8267, %v8259
    %v8412 = vpack.c.b16 %v8268, %v8260
    %v8413 = vpack.c.b16 %v8269, %v8261
    %v8414 = vpack.c.b16 %v8270, %v8262
    %v8415 = vpack.c.b16 %v8271, %v8263
    %v8416 = vpack.c.b16 %v8272, %v8264
    %v8417 = vpack.c.b16 %v8281, %v8273
    %v8418 = vpack.c.b16 %v8282, %v8274
    %v8419 = vpack.c.b16 %v8283, %v8275
    %v8420 = vpack.c.b16 %v8284, %v8276
    %v8421 = vpack.c.b16 %v8285, %v8277
    %v8422 = vpack.c.b16 %v8286, %v8278
    %v8423 = vpack.c.b16 %v8287, %v8279
    %v8424 = vpack.c.b16 %v8288, %v8280
    %v8425 = vpack.c.b16 %v8297, %v8289
    %v8426 = vpack.c.b16 %v8298, %v8290
    %v8427 = vpack.c.b16 %v8299, %v8291
    %v8428 = vpack.c.b16 %v8300, %v8292
    %v8429 = vpack.c.b16 %v8301, %v8293
    %v8430 = vpack.c.b16 %v8302, %v8294
    %v8431 = vpack.c.b16 %v8303, %v8295
    %v8432 = vpack.c.b16 %v8304, %v8296
    %8561 = vmatprep.subr.bf16.mxu0 %v8362
    %8562 = vmatpush1.bf16.msra.mxu0 %v8361
    %8563 = vmatprep.subr.bf16.mxu0 %v8354
    %8564 = vmatpush1.bf16.msra.mxu0 %v8353
    %8565 = vmatprep.subr.bf16.mxu0 %v8346
    %8566 = vmatpush1.bf16.msra.mxu0 %v8345
    %8567 = vmatprep.subr.bf16.mxu0 %v8338
    %8568 = vmatpush1.bf16.msra.mxu0 %v8337
    %8569 = vmatprep.subr.bf16.mxu0 %v8330
    %8570 = vmatpush1.bf16.msra.mxu0 %v8329
    %8571 = vmatprep.subr.bf16.mxu0 %v8322
    %8572 = vmatpush1.bf16.msra.mxu0 %v8321
    %8573 = vmatprep.subr.bf16.mxu0 %v8314
    %8574 = vmatpush1.bf16.msra.mxu0 %v8313
    %8575 = vmatprep.subr.bf16.mxu0 %v8306
    %8576 = vmatpush1.bf16.msra.mxu0 %v8305
    %8577 = vmatprep.subr.bf16.mxu0 %v8426
    %8578 = vmatpush2.bf16.msra.mxu0 %v8425
    %8579 = vmatprep.subr.bf16.mxu0 %v8418
    %8580 = vmatpush2.bf16.msra.mxu0 %v8417
    %8581 = vmatprep.subr.bf16.mxu0 %v8410
    %8582 = vmatpush2.bf16.msra.mxu0 %v8409
    %8583 = vmatprep.subr.bf16.mxu0 %v8402
    %8584 = vmatpush2.bf16.msra.mxu0 %v8401
    %8585 = vmatprep.subr.bf16.mxu0 %v8394
    %8586 = vmatpush2.bf16.msra.mxu0 %v8393
    %8587 = vmatprep.subr.bf16.mxu0 %v8386
    %8588 = vmatpush2.bf16.msra.mxu0 %v8385
    %8589 = vmatprep.subr.bf16.mxu0 %v8378
    %8590 = vmatpush2.bf16.msra.mxu0 %v8377
    %8591 = vmatprep.subr.bf16.mxu0 %v8370
    %8592 = vmatpush2.bf16.msra.mxu0 %v8369
    %8593 = vmatprep.mubr.bf16.mxu0 %v7792
    %8594 = vmatmul.mubr.bf16.gmra.mxu0 %v7791
    %v8595 = vpop.f32.mrf.mxu0
    %v8596 = vadd.f32 0.0, %v8595
    %v8597 = vpop.f32.mrf.mxu0
    %v8598 = vadd.f32 0.0, %v8597
    %v8599 = vpop.f32.mrf.mxu0
    %v8600 = vpop.f32.mrf.mxu0
    %8601 = vdwg.mxu0
    %8602 = vmatprep.subr.bf16.mxu0 %v8364
    %8603 = vmatpush1.bf16.msra.mxu0 %v8363
    %8604 = vmatprep.subr.bf16.mxu0 %v8356
    %8605 = vmatpush1.bf16.msra.mxu0 %v8355
    %8606 = vmatprep.subr.bf16.mxu0 %v8348
    %8607 = vmatpush1.bf16.msra.mxu0 %v8347
    %8608 = vmatprep.subr.bf16.mxu0 %v8340
    %8609 = vmatpush1.bf16.msra.mxu0 %v8339
    %8610 = vmatprep.subr.bf16.mxu0 %v8332
    %8611 = vmatpush1.bf16.msra.mxu0 %v8331
    %8612 = vmatprep.subr.bf16.mxu0 %v8324
    %8613 = vmatpush1.bf16.msra.mxu0 %v8323
    %8614 = vmatprep.subr.bf16.mxu0 %v8316
    %8615 = vmatpush1.bf16.msra.mxu0 %v8315
    %8616 = vmatprep.subr.bf16.mxu0 %v8308
    %8617 = vmatpush1.bf16.msra.mxu0 %v8307
    %8618 = vmatprep.subr.bf16.mxu0 %v8428
    %8619 = vmatpush2.bf16.msra.mxu0 %v8427
    %8620 = vmatprep.subr.bf16.mxu0 %v8420
    %8621 = vmatpush2.bf16.msra.mxu0 %v8419
    %8622 = vmatprep.subr.bf16.mxu0 %v8412
    %8623 = vmatpush2.bf16.msra.mxu0 %v8411
    %8624 = vmatprep.subr.bf16.mxu0 %v8404
    %8625 = vmatpush2.bf16.msra.mxu0 %v8403
    %8626 = vmatprep.subr.bf16.mxu0 %v8396
    %8627 = vmatpush2.bf16.msra.mxu0 %v8395
    %8628 = vmatprep.subr.bf16.mxu0 %v8388
    %8629 = vmatpush2.bf16.msra.mxu0 %v8387
    %8630 = vmatprep.subr.bf16.mxu0 %v8380
    %8631 = vmatpush2.bf16.msra.mxu0 %v8379
    %8632 = vmatprep.subr.bf16.mxu0 %v8372
    %8633 = vmatpush2.bf16.msra.mxu0 %v8371
    %8634 = vmatprep.mubr.bf16.mxu0 %v7792
    %8635 = vmatmul.mubr.bf16.gmra.mxu0 %v7791
    %v8636 = vpop.f32.mrf.mxu0
    %v8637 = vadd.f32 0.0, %v8636
    %v8638 = vpop.f32.mrf.mxu0
    %v8639 = vadd.f32 0.0, %v8638
    %v8640 = vpop.f32.mrf.mxu0
    %v8641 = vpop.f32.mrf.mxu0
    %8642 = vdwg.mxu0
    %8643 = vmatprep.subr.bf16.mxu0 %v8366
    %8644 = vmatpush1.bf16.msra.mxu0 %v8365
    %8645 = vmatprep.subr.bf16.mxu0 %v8358
    %8646 = vmatpush1.bf16.msra.mxu0 %v8357
    %8647 = vmatprep.subr.bf16.mxu0 %v8350
    %8648 = vmatpush1.bf16.msra.mxu0 %v8349
    %8649 = vmatprep.subr.bf16.mxu0 %v8342
    %8650 = vmatpush1.bf16.msra.mxu0 %v8341
    %8651 = vmatprep.subr.bf16.mxu0 %v8334
    %8652 = vmatpush1.bf16.msra.mxu0 %v8333
    %8653 = vmatprep.subr.bf16.mxu0 %v8326
    %8654 = vmatpush1.bf16.msra.mxu0 %v8325
    %8655 = vmatprep.subr.bf16.mxu0 %v8318
    %8656 = vmatpush1.bf16.msra.mxu0 %v8317
    %8657 = vmatprep.subr.bf16.mxu0 %v8310
    %8658 = vmatpush1.bf16.msra.mxu0 %v8309
    %8659 = vmatprep.subr.bf16.mxu0 %v8430
    %8660 = vmatpush2.bf16.msra.mxu0 %v8429
    %8661 = vmatprep.subr.bf16.mxu0 %v8422
    %8662 = vmatpush2.bf16.msra.mxu0 %v8421
    %8663 = vmatprep.subr.bf16.mxu0 %v8414
    %8664 = vmatpush2.bf16.msra.mxu0 %v8413
    %8665 = vmatprep.subr.bf16.mxu0 %v8406
    %8666 = vmatpush2.bf16.msra.mxu0 %v8405
    %8667 = vmatprep.subr.bf16.mxu0 %v8398
    %8668 = vmatpush2.bf16.msra.mxu0 %v8397
    %8669 = vmatprep.subr.bf16.mxu0 %v8390
    %8670 = vmatpush2.bf16.msra.mxu0 %v8389
    %8671 = vmatprep.subr.bf16.mxu0 %v8382
    %8672 = vmatpush2.bf16.msra.mxu0 %v8381
    %8673 = vmatprep.subr.bf16.mxu0 %v8374
    %8674 = vmatpush2.bf16.msra.mxu0 %v8373
    %8675 = vmatprep.mubr.bf16.mxu0 %v7792
    %8676 = vmatmul.mubr.bf16.gmra.mxu0 %v7791
    %v8677 = vpop.f32.mrf.mxu0
    %v8678 = vadd.f32 0.0, %v8677
    %v8679 = vpop.f32.mrf.mxu0
    %v8680 = vadd.f32 0.0, %v8679
    %v8681 = vpop.f32.mrf.mxu0
    %v8682 = vpop.f32.mrf.mxu0
    %8683 = vdwg.mxu0
    %8684 = vmatprep.subr.bf16.mxu0 %v8368
    %8685 = vmatpush1.bf16.msra.mxu0 %v8367
    %8686 = vmatprep.subr.bf16.mxu0 %v8360
    %8687 = vmatpush1.bf16.msra.mxu0 %v8359
    %8688 = vmatprep.subr.bf16.mxu0 %v8352
    %8689 = vmatpush1.bf16.msra.mxu0 %v8351
    %8690 = vmatprep.subr.bf16.mxu0 %v8344
    %8691 = vmatpush1.bf16.msra.mxu0 %v8343
    %8692 = vmatprep.subr.bf16.mxu0 %v8336
    %8693 = vmatpush1.bf16.msra.mxu0 %v8335
    %8694 = vmatprep.subr.bf16.mxu0 %v8328
    %8695 = vmatpush1.bf16.msra.mxu0 %v8327
    %8696 = vmatprep.subr.bf16.mxu0 %v8320
    %8697 = vmatpush1.bf16.msra.mxu0 %v8319
    %8698 = vmatprep.subr.bf16.mxu0 %v8312
    %8699 = vmatpush1.bf16.msra.mxu0 %v8311
    %8700 = vmatprep.subr.bf16.mxu0 %v8432
    %8701 = vmatpush2.bf16.msra.mxu0 %v8431
    %8702 = vmatprep.subr.bf16.mxu0 %v8424
    %8703 = vmatpush2.bf16.msra.mxu0 %v8423
    %8704 = vmatprep.subr.bf16.mxu0 %v8416
    %8705 = vmatpush2.bf16.msra.mxu0 %v8415
    %8706 = vmatprep.subr.bf16.mxu0 %v8408
    %8707 = vmatpush2.bf16.msra.mxu0 %v8407
    %8708 = vmatprep.subr.bf16.mxu0 %v8400
    %8709 = vmatpush2.bf16.msra.mxu0 %v8399
    %8710 = vmatprep.subr.bf16.mxu0 %v8392
    %8711 = vmatpush2.bf16.msra.mxu0 %v8391
    %8712 = vmatprep.subr.bf16.mxu0 %v8384
    %8713 = vmatpush2.bf16.msra.mxu0 %v8383
    %8714 = vmatprep.subr.bf16.mxu0 %v8376
    %8715 = vmatpush2.bf16.msra.mxu0 %v8375
    %8716 = vmatprep.mubr.bf16.mxu0 %v7792
    %8717 = vmatmul.mubr.bf16.gmra.mxu0 %v7791
    %v8718 = vpop.f32.mrf.mxu0
    %v8719 = vadd.f32 0.0, %v8718
    %v8720 = vpop.f32.mrf.mxu0
    %v8721 = vadd.f32 0.0, %v8720
    %v8722 = vpop.f32.mrf.mxu0
    %v8723 = vpop.f32.mrf.mxu0
    %8724 = vdwg.mxu0
    %v8725 = vld [vmem:[#allocation2 + $0x1c0] sm:$0xff]
    %v8726 = vld [vmem:[#allocation2 + $0x1c8] sm:$0xff]
    %v8727 = vld [vmem:[#allocation2 + $0x1d0] sm:$0xff]
    %v8728 = vld [vmem:[#allocation2 + $0x1d8] sm:$0xff]
    %v8729 = vadd.f32 %v8725, %v8596
    %v8730 = vadd.f32 %v8726, %v8598
    %v8731 = vadd.f32 %v8727, %v8637
    %v8732 = vadd.f32 %v8728, %v8639
    %v8733 = vld [vmem:[#allocation2 + $0x20] sm:$0xff]
    %v8734 = vld [vmem:[#allocation2 + $0x28] sm:$0xff]
    %v8735 = vld [vmem:[#allocation2 + $0x30] sm:$0xff]
    %v8736 = vld [vmem:[#allocation2 + $0x38] sm:$0xff]
    %v8737 = vadd.f32 %v8733, %v8678
    %v8738 = vadd.f32 %v8734, %v8680
    %v8739 = vadd.f32 %v8735, %v8719
    %v8740 = vadd.f32 %v8736, %v8721
    %v8741 = vxor.u32 %v8729, 2147483648
    %v8742 = vmul.f32 %v8741, 1.442695
    %v8743 = vpow.pop %v8742
    %v8744 = vadd.f32 %v8743, 1.0
    %v8745 = vrcp.pop %v8744
    %v8746 = vmul.f32 1.0, %v8745
    %v8747 = vxor.u32 %v8730, 2147483648
    %v8748 = vmul.f32 %v8747, 1.442695
    %v8749 = vpow.pop %v8748
    %v8750 = vadd.f32 %v8749, 1.0
    %v8751 = vrcp.pop %v8750
    %v8752 = vmul.f32 1.0, %v8751
    %v8753 = vmul.f32 %v8746, %v8732
    %v8754 = vadd.f32 %v8731, %v8753
    %v8755 = vtanh.pop %v8754
    %v8756 = vsub.f32 1.0, %v8752
    %v8757 = vmul.f32 %v8756, %v8755
    %v8758 = vmul.f32 %v8752, %v7767
    %v8759 = vadd.f32 %v8757, %v8758
    %v8760 = vxor.u32 %v8737, 2147483648
    %v8761 = vmul.f32 %v8760, 1.442695
    %v8762 = vpow.pop %v8761
    %v8763 = vadd.f32 %v8762, 1.0
    %v8764 = vrcp.pop %v8763
    %v8765 = vmul.f32 1.0, %v8764
    %v8766 = vxor.u32 %v8738, 2147483648
    %v8767 = vmul.f32 %v8766, 1.442695
    %v8768 = vpow.pop %v8767
    %v8769 = vadd.f32 %v8768, 1.0
    %v8770 = vrcp.pop %v8769
    %v8771 = vmul.f32 1.0, %v8770
    %v8772 = vmul.f32 %v8765, %v8740
    %v8773 = vadd.f32 %v8739, %v8772
    %v8774 = vtanh.pop %v8773
    %v8775 = vsub.f32 1.0, %v8771
    %v8776 = vmul.f32 %v8775, %v8774
    %v8777 = vmul.f32 %v8771, %v7786
    %v8778 = vadd.f32 %v8776, %v8777
    %s8779 = scalar_lea.vmem %s6, 56
    %8780 = vst [vmem:[%s8779] sm:$0xff] %v8759
    %8781 = vst [vmem:[%s7] sm:$0xff] %v8778
    %v8782 = vpack.c.bf16 %v8759, %v8759
    %v8783 = vpack.c.bf16 %v8778, %v8778
    %v8784 = vld [vmem:[%s4] sm:$0xf]
    %v8785 = vld [vmem:[%s4 + $0x4] sm:$0xf]
    %v8786 = vld [vmem:[%s4 + $0x8] sm:$0xf]
    %v8787 = vld [vmem:[%s4 + $0xc] sm:$0xf]
    %v8788 = vld [vmem:[%s4 + $0x10] sm:$0xf]
    %v8789 = vld [vmem:[%s4 + $0x14] sm:$0xf]
    %v8790 = vld [vmem:[%s4 + $0x18] sm:$0xf]
    %v8791 = vld [vmem:[%s4 + $0x1c] sm:$0xf]
    %v8792 = vld [vmem:[%s4 + $0x20] sm:$0xf]
    %v8793 = vld [vmem:[%s4 + $0x24] sm:$0xf]
    %v8794 = vld [vmem:[%s4 + $0x28] sm:$0xf]
    %v8795 = vld [vmem:[%s4 + $0x2c] sm:$0xf]
    %v8796 = vld [vmem:[%s4 + $0x30] sm:$0xf]
    %v8797 = vld [vmem:[%s4 + $0x34] sm:$0xf]
    %v8798 = vld [vmem:[%s4 + $0x38] sm:$0xf]
    %v8799 = vld [vmem:[%s4 + $0x3c] sm:$0xf]
    %v8800 = vld [vmem:[%s4 + $0x40] sm:$0xf]
    %v8801 = vld [vmem:[%s4 + $0x44] sm:$0xf]
    %v8802 = vld [vmem:[%s4 + $0x48] sm:$0xf]
    %v8803 = vld [vmem:[%s4 + $0x4c] sm:$0xf]
    %v8804 = vld [vmem:[%s4 + $0x50] sm:$0xf]
    %v8805 = vld [vmem:[%s4 + $0x54] sm:$0xf]
    %v8806 = vld [vmem:[%s4 + $0x58] sm:$0xf]
    %v8807 = vld [vmem:[%s4 + $0x5c] sm:$0xf]
    %v8808 = vld [vmem:[%s4 + $0x60] sm:$0xf]
    %v8809 = vld [vmem:[%s4 + $0x64] sm:$0xf]
    %v8810 = vld [vmem:[%s4 + $0x68] sm:$0xf]
    %v8811 = vld [vmem:[%s4 + $0x6c] sm:$0xf]
    %v8812 = vld [vmem:[%s4 + $0x70] sm:$0xf]
    %v8813 = vld [vmem:[%s4 + $0x74] sm:$0xf]
    %v8814 = vld [vmem:[%s4 + $0x78] sm:$0xf]
    %v8815 = vld [vmem:[%s4 + $0x7c] sm:$0xf]
    %v8816 = vld [vmem:[%s5] sm:$0x1]
    %v8818 = vlaneseq
    %v8819 = vshrl.u32 %v8818, 7
    %v8820 = vsub.s32 0, %v8819
    %v8821 = vrot.slane %v8816, %v8820
    %v8855 = vunpack.c.l.b16 %v8784
    %v8856 = vunpack.c.l.b16 %v8785
    %v8857 = vunpack.c.l.b16 %v8786
    %v8858 = vunpack.c.l.b16 %v8787
    %v8859 = vunpack.c.l.b16 %v8788
    %v8860 = vunpack.c.l.b16 %v8789
    %v8861 = vunpack.c.l.b16 %v8790
    %v8862 = vunpack.c.l.b16 %v8791
    %v8863 = vunpack.c.l.b16 %v8792
    %v8864 = vunpack.c.l.b16 %v8793
    %v8865 = vunpack.c.l.b16 %v8794
    %v8866 = vunpack.c.l.b16 %v8795
    %v8867 = vunpack.c.l.b16 %v8796
    %v8868 = vunpack.c.l.b16 %v8797
    %v8869 = vunpack.c.l.b16 %v8798
    %v8870 = vunpack.c.l.b16 %v8799
    %v8871 = vunpack.c.l.b16 %v8800
    %v8872 = vunpack.c.l.b16 %v8801
    %v8873 = vunpack.c.l.b16 %v8802
    %v8874 = vunpack.c.l.b16 %v8803
    %v8875 = vunpack.c.l.b16 %v8804
    %v8876 = vunpack.c.l.b16 %v8805
    %v8877 = vunpack.c.l.b16 %v8806
    %v8878 = vunpack.c.l.b16 %v8807
    %v8879 = vunpack.c.l.b16 %v8808
    %v8880 = vunpack.c.l.b16 %v8809
    %v8881 = vunpack.c.l.b16 %v8810
    %v8882 = vunpack.c.l.b16 %v8811
    %v8883 = vunpack.c.l.b16 %v8812
    %v8884 = vunpack.c.l.b16 %v8813
    %v8885 = vunpack.c.l.b16 %v8814
    %v8886 = vunpack.c.l.b16 %v8815
    %v8887 = vpack.c.b16 %v8856, %v8855
    %v8888 = vpack.c.b16 %v8858, %v8857
    %v8889 = vpack.c.b16 %v8860, %v8859
    %v8890 = vpack.c.b16 %v8862, %v8861
    %v8891 = vpack.c.b16 %v8864, %v8863
    %v8892 = vpack.c.b16 %v8866, %v8865
    %v8893 = vpack.c.b16 %v8868, %v8867
    %v8894 = vpack.c.b16 %v8870, %v8869
    %v8895 = vpack.c.b16 %v8872, %v8871
    %v8896 = vpack.c.b16 %v8874, %v8873
    %v8897 = vpack.c.b16 %v8876, %v8875
    %v8898 = vpack.c.b16 %v8878, %v8877
    %v8899 = vpack.c.b16 %v8880, %v8879
    %v8900 = vpack.c.b16 %v8882, %v8881
    %v8901 = vpack.c.b16 %v8884, %v8883
    %v8902 = vpack.c.b16 %v8886, %v8885
    %8919 = vmatprep.subr.bf16.mxu0 0
    %8920 = vmatpush1.bf16.msra.mxu0 %v8894
    %8921 = vmatprep.subr.bf16.mxu0 0
    %8922 = vmatpush1.bf16.msra.mxu0 %v8893
    %8923 = vmatprep.subr.bf16.mxu0 0
    %8924 = vmatpush1.bf16.msra.mxu0 %v8892
    %8925 = vmatprep.subr.bf16.mxu0 0
    %8926 = vmatpush1.bf16.msra.mxu0 %v8891
    %8927 = vmatprep.subr.bf16.mxu0 0
    %8928 = vmatpush1.bf16.msra.mxu0 %v8890
    %8929 = vmatprep.subr.bf16.mxu0 0
    %8930 = vmatpush1.bf16.msra.mxu0 %v8889
    %8931 = vmatprep.subr.bf16.mxu0 0
    %8932 = vmatpush1.bf16.msra.mxu0 %v8888
    %8933 = vmatprep.subr.bf16.mxu0 0
    %8934 = vmatpush1.bf16.msra.mxu0 %v8887
    %8935 = vmatprep.subr.bf16.mxu0 0
    %8936 = vmatpush2.bf16.msra.mxu0 %v8902
    %8937 = vmatprep.subr.bf16.mxu0 0
    %8938 = vmatpush2.bf16.msra.mxu0 %v8901
    %8939 = vmatprep.subr.bf16.mxu0 0
    %8940 = vmatpush2.bf16.msra.mxu0 %v8900
    %8941 = vmatprep.subr.bf16.mxu0 0
    %8942 = vmatpush2.bf16.msra.mxu0 %v8899
    %8943 = vmatprep.subr.bf16.mxu0 0
    %8944 = vmatpush2.bf16.msra.mxu0 %v8898
    %8945 = vmatprep.subr.bf16.mxu0 0
    %8946 = vmatpush2.bf16.msra.mxu0 %v8897
    %8947 = vmatprep.subr.bf16.mxu0 0
    %8948 = vmatpush2.bf16.msra.mxu0 %v8896
    %8949 = vmatprep.subr.bf16.mxu0 0
    %8950 = vmatpush2.bf16.msra.mxu0 %v8895
    %8951 = vmatprep.mubr.bf16.mxu0 %v8783
    %8952 = vmatmul.mubr.bf16.gmra.mxu0 %v8782
    %v8953 = vpop.f32.mrf.mxu0
    %v8954 = vadd.f32 %v8821, %v8953
    %v8955 = vpop.f32.mrf.mxu0
    %v8956 = vpop.f32.mrf.mxu0
    %v8957 = vpop.f32.mrf.mxu0
    %8958 = vdwg.mxu0
    %v8959 = vtanh.pop %v8954
    %8960 = vst [vmem:[%s8] sm:$0xff] %v8959
    // Predicated region
    $region34: #{forward.1} parent=1 // pred_check
      _
    $region35: #{forward.1} parent=1 // pred_check_branch
      %8962 = sbr.rel (0) target = $region37
    $region36: #{forward.1} parent=1 // pred_region
      _
    $region37: #{forward.1} parent=1 // pred_fallthru
      _
    // Predicated region
    $region38: #{forward.1} parent=1 // pred_check
      _
    $region39: #{forward.1} parent=1 // pred_check_branch
      %8964 = sbr.rel (0) target = $region41
    $region40: #{forward.1} parent=1 // pred_region
      _
    $region41: #{forward.1} parent=1 // pred_fallthru
      _
    // Predicated region
    $region42: #{forward.1} parent=1 // pred_check
      _
    $region43: #{forward.1} parent=1 // pred_check_branch
      %8966 = sbr.rel (0) target = $region45
    $region44: #{forward.1} parent=1 // pred_region
      _
    $region45: #{forward.1} parent=1 // pred_fallthru
      _
    // Predicated region
    $region46: #{forward.1} parent=1 // pred_check
      _
    $region47: #{forward.1} parent=1 // pred_check_branch
      %8968 = sbr.rel (0) target = $region49
    $region48: #{forward.1} parent=1 // pred_region
      _
    $region49: #{forward.1} parent=1 // pred_fallthru
      _
    // Predicated region
    $region50: #{forward.1} parent=1 // pred_check
      _
    $region51: #{forward.1} parent=1 // pred_check_branch
      %8970 = sbr.rel (0) target = $region53
    $region52: #{forward.1} parent=1 // pred_region
      _
    $region53: #{forward.1} parent=1 // pred_fallthru
      _
    // Predicated region
    $region54: #{forward.1} parent=1 // pred_check
      _
    $region55: #{forward.1} parent=1 // pred_check_branch
      %8972 = sbr.rel (0) target = $region57
    $region56: #{forward.1} parent=1 // pred_region
      _
    $region57: #{forward.1} parent=1 // pred_fallthru
      _
    %8973 = vsyncpa [#allocation4], 1
    %8974 = vsyncpa [#allocation6], 1

</llo_original>
